<compile_context>
chip_gen: v6e
topology: v6e:2x2x1
jax: 0.10.0
libtpu: 0.0.40
codegen_flags: <defaults>
</compile_context>

<pallas_src>
import math

import jax
import jax.numpy as jnp
from jax import lax
from jax.experimental import pallas as pl
from jax.experimental.pallas import tpu as pltpu


# ----------------------------------------------------------------------------
# small helpers (traced inside the Pallas kernels; also reused by the reference)
# ----------------------------------------------------------------------------
def _linear(x, w, b):
    # PyTorch Linear: y = x @ w.T + b   (w: (out, in), b broadcast as (1, out))
    y = lax.dot_general(x, w, (((1,), (1,)), ((), ())),
                        preferred_element_type=jnp.float32)
    return y + b


def _layernorm(x, gamma, beta, eps=1e-5):
    mu = jnp.mean(x, axis=-1, keepdims=True)
    xc = x - mu
    var = jnp.mean(xc * xc, axis=-1, keepdims=True)
    return xc * lax.rsqrt(var + eps) * gamma + beta


def _gelu_tanh(x):
    # TODO(synk): PyTorch 'gelu' in TransformerEncoderLayer is exact erf-GELU;
    # tanh approximation used here (erf lowering in Mosaic not guaranteed).
    return 0.5 * x * (1.0 + jnp.tanh(0.7978845608028654 *
                                     (x + 0.044715 * x * x * x)))


def _elu(x):
    return jnp.where(x > 0, x, jnp.exp(jnp.minimum(x, 0.0)) - 1.0)


# ----------------------------------------------------------------------------
# Kernel 1: Conv1d(k=3, pad=1) + BatchNorm1d(eval) + ELU + AvgPool1d(2,2)
#   BN folded into the conv weight/bias; pooling done as a pairwise average of
#   the even/odd conv outputs (two im2col matmuls), no pooling matrix.
# ----------------------------------------------------------------------------
def _conv_bn_elu_pool_kernel(xe_ref, xo_ref, w_ref, b_ref, out_ref):
    # xe/xo: (1, 3*C0, S)  w: (C1, 3*C0)  b: (C1, 1)  out: (1, C1, S)
    w = w_ref[...]
    b = b_ref[...]
    ye = jnp.dot(w, xe_ref[0], preferred_element_type=jnp.float32) + b
    yo = jnp.dot(w, xo_ref[0], preferred_element_type=jnp.float32) + b
    out_ref[0] = 0.5 * (_elu(ye) + _elu(yo))      # fused ELU + AvgPool1d(2, 2)


def conv_bn_elu_pool(x, conv_w, conv_b, bn_g, bn_b, bn_mean, bn_var, eps=1e-5):
    B, C0, L = x.shape
    C1 = conv_w.shape[0]
    S = L // 2

    xpad = jnp.pad(x, ((0, 0), (0, 0), (1, 1)))                # padding = 1
    # even/odd im2col (stride-2 taps) so pooling becomes a pairwise average
    xe = jnp.concatenate([xpad[:, :, k:k + 2 * S:2] for k in range(3)], axis=1)
    xo = jnp.concatenate([xpad[:, :, k + 1:k + 1 + 2 * S:2] for k in range(3)],
                         axis=1)                               # (B, 3*C0, S)

    # fold BatchNorm (eval, running stats) into conv weight / bias
    scale = bn_g / jnp.sqrt(bn_var + eps)                      # (C1,)
    w_flat = jnp.transpose(conv_w, (0, 2, 1)).reshape(C1, 3 * C0)
    w_fold = w_flat * scale[:, None]
    b_fold = (scale * (conv_b - bn_mean) + bn_b).reshape(C1, 1)

    return pl.pallas_call(
        _conv_bn_elu_pool_kernel,
        out_shape=jax.ShapeDtypeStruct((B, C1, S), jnp.float32),
        grid=(B,),
        in_specs=[
            pl.BlockSpec((1, 3 * C0, S), lambda i: (i, 0, 0)),
            pl.BlockSpec((1, 3 * C0, S), lambda i: (i, 0, 0)),
            pl.BlockSpec((C1, 3 * C0), lambda i: (0, 0)),
            pl.BlockSpec((C1, 1), lambda i: (0, 0)),
        ],
        out_specs=pl.BlockSpec((1, C1, S), lambda i: (i, 0, 0)),
        compiler_params=pltpu.CompilerParams(
            dimension_semantics=("parallel",),
            vmem_limit_bytes=32 * 1024 * 1024),
    )(xe, xo, w_fold, b_fold)


# ----------------------------------------------------------------------------
# Kernel 2: pos-encoding add + TransformerEncoderLayer (nhead=4, gelu, eval)
#           + fused fc1 partial dot products (one partial per transformer batch)
# ----------------------------------------------------------------------------
def _transformer_fc_kernel(xb_ref, pe_ref, wqkv_ref, bqkv_ref, wo_ref, bo_ref,
                           ln_ref, w1_ref, b1_ref, w2_ref, b2_ref, wr_ref,
                           part_ref):
    S, D = pe_ref.shape
    H = 4                       # nhead = 4
    hd = D // H
    scale = 1.0 / math.sqrt(hd)

    x = xb_ref[0] + pe_ref[...]                               # (S, D) + pos enc

    qkv = _linear(x, wqkv_ref[...], bqkv_ref[...])            # (S, 3D)
    q, k, v = qkv[:, :D], qkv[:, D:2 * D], qkv[:, 2 * D:]

    heads = []
    for h in range(H):                                        # static unroll
        qh = q[:, h * hd:(h + 1) * hd]
        kh = k[:, h * hd:(h + 1) * hd]
        vh = v[:, h * hd:(h + 1) * hd]
        s = lax.dot_general(qh, kh, (((1,), (1,)), ((), ())),
                            preferred_element_type=jnp.float32) * scale
        s = s - jnp.max(s, axis=-1, keepdims=True)
        p = jnp.exp(s)
        p = p * pl.reciprocal(jnp.sum(p, axis=-1, keepdims=True), approx=True)
        heads.append(jnp.dot(p, vh, preferred_element_type=jnp.float32))
    attn = jnp.concatenate(heads, axis=-1)                    # (S, D)
    attn = _linear(attn, wo_ref[...], bo_ref[...])            # out projection

    y1 = _layernorm(x + attn, ln_ref[0:1, :], ln_ref[1:2, :])   # residual + LN1

    h1 = _gelu_tanh(_linear(y1, w1_ref[...], b1_ref[...]))    # (S, F)
    y2 = _linear(h1, w2_ref[...], b2_ref[...])                # (S, D)

    t = _layernorm(y1 + y2, ln_ref[2:3, :], ln_ref[3:4, :])   # (S, D)

    # fused fc1 partial:  part[bo] = sum_{i,k} t[i,k] * wr[bo, i, k]
    wr = wr_ref[0]                                            # (B*O, S, D)
    prod = t[None, :, :] * wr                                 # (B*O, S, D)
    part_ref[0] = jnp.sum(jnp.sum(prod, axis=2), axis=1, keepdims=True)


def _const_spec(shape):
    n = len(shape)
    return pl.BlockSpec(shape, lambda j: (0,) * n)


def transformer_fc(x_bsd, pe, wr, p):
    Bn, S, D = x_bsd.shape
    BO = wr.shape[1]
    args = (
        pe,
        p["wqkv"], p["bqkv"].reshape(1, -1),
        p["wo"], p["bo"].reshape(1, -1),
        jnp.stack([p["ln1_g"], p["ln1_b"], p["ln2_g"], p["ln2_b"]], axis=0),
        p["w1"], p["b1"].reshape(1, -1),
        p["w2"], p["b2"].reshape(1, -1),
    )
    return pl.pallas_call(
        _transformer_fc_kernel,
        out_shape=jax.ShapeDtypeStruct((Bn, BO, 1), jnp.float32),
        grid=(Bn,),
        in_specs=[pl.BlockSpec((1, S, D), lambda j: (j, 0, 0))]
                 + [_const_spec(a.shape) for a in args]
                 + [pl.BlockSpec((1, BO, S, D), lambda j: (j, 0, 0, 0))],
        out_specs=pl.BlockSpec((1, BO, 1), lambda j: (j, 0, 0)),
        compiler_params=pltpu.CompilerParams(
            dimension_semantics=("parallel",),
            vmem_limit_bytes=32 * 1024 * 1024),
    )(x_bsd, *args, wr)


# ----------------------------------------------------------------------------
# fc1 weight rearrangement: fc1 consumes reshape(B, -1) of the (S, B, D)
# transformer output (a raw C-order reinterpretation that interleaves the
# transformer batches), so per transformer batch j we can only emit a partial
# dot product; this builds the matching (j, b*O+o, i, k) weight tensor.
# ----------------------------------------------------------------------------
def rearrange_fc_weight(fc_w, B, S, D):
    O = fc_w.shape[0]
    i_idx = jnp.arange(S).reshape(1, S, 1)
    j_idx = jnp.arange(B).reshape(B, 1, 1)
    k_idx = jnp.arange(D).reshape(1, 1, D)
    col = i_idx * (B * D) + j_idx * D + k_idx           # flat column in (S,B,D)
    slabs = []
    for b in range(B):
        loc = col - b * S * D
        valid = (loc >= 0) & (loc < S * D)
        g = jnp.take(fc_w, jnp.clip(loc, 0, S * D - 1), axis=1)   # (O, B, S, D)
        g = jnp.where(valid[None], g, 0.0)
        slabs.append(jnp.transpose(g, (1, 0, 2, 3)))              # (B, O, S, D)
    wr = jnp.stack(slabs, axis=1)                                 # (Bj, B, O, S, D)
    return wr.reshape(B, B * O, S, D)


# ----------------------------------------------------------------------------
# Positional encoding buffer (matches the PyTorch formula)
# ----------------------------------------------------------------------------
def positional_encoding(d_model, max_len=200):
    position = jnp.arange(max_len, dtype=jnp.float32)[:, None]
    div_term = jnp.exp(jnp.arange(0, d_model, 2, dtype=jnp.float32)
                       * (-math.log(10000.0) / d_model))
    pe = jnp.zeros((max_len, d_model), dtype=jnp.float32)
    pe = pe.at[:, 0::2].set(jnp.sin(position * div_term))
    pe = pe.at[:, 1::2].set(jnp.cos(position * div_term))
    return pe


# ----------------------------------------------------------------------------
# Full forward pass (PyTorch OneCOneTOneF.forward, eval mode)
# ----------------------------------------------------------------------------
def one_c_one_t_one_f(x, params):
    B, _, L = x.shape
    D = params["conv_w"].shape[0]
    S = L // 2
    O = params["fc1_w"].shape[0]
    assert D % 4 == 0 and params["fc1_w"].shape[1] == S * D

    conv_out = conv_bn_elu_pool(x, params["conv_w"], params["conv_b"],
                                params["bn_g"], params["bn_b"],
                                params["bn_mean"], params["bn_var"])  # (B, D, S)

    # PyTorch: out.view(-1, B, D)  -> raw C-order reinterpretation (wrapper glue)
    x_sbd = jnp.reshape(conv_out, (S, B, D))
    x_bsd = jnp.transpose(x_sbd, (1, 0, 2))                   # (B, S, D)

    pe = positional_encoding(D, max_len=200)[:S]              # (S, D)
    wr = rearrange_fc_weight(params["fc1_w"], B, S, D)        # (B, B*O, S, D)

    parts = transformer_fc(x_bsd, pe, wr, params)             # (B, B*O, 1)
    y = jnp.sum(parts[:, :, 0], axis=0).reshape(B, O) + params["fc1_b"][None, :]
    return y


# ----------------------------------------------------------------------------
# Pure-JAX reference (follows the PyTorch ops directly) for a sanity check
# ----------------------------------------------------------------------------
def reference_forward(x, p):
    B, _, L = x.shape
    D = p["conv_w"].shape[0]
    S = L // 2
    xpad = jnp.pad(x, ((0, 0), (0, 0), (1, 1)))
    conv = jnp.zeros((B, D, L), jnp.float32)
    for k in range(3):
        conv = conv + jnp.einsum('dc,bcl->bdl', p["conv_w"][:, :, k],
                                 xpad[:, :, k:k + L])
    conv = conv + p["conv_b"][None, :, None]
    scale = p["bn_g"] / jnp.sqrt(p["bn_var"] + 1e-5)
    conv = (conv - p["bn_mean"][None, :, None]) * scale[None, :, None] \
        + p["bn_b"][None, :, None]
    conv = _elu(conv)
    pooled = 0.5 * (conv[:, :, 0::2] + conv[:, :, 1::2])          # (B, D, S)

    xs = jnp.reshape(pooled, (S, B, D))                           # torch .view
    xs = xs + positional_encoding(D, 200)[:S][:, None, :]

    H, hd = 4, D // 4
    outs = []
    for j in range(B):
        xj = xs[:, j, :]
        qkv = xj @ p["wqkv"].T + p["bqkv"]
        q, k_, v = qkv[:, :D], qkv[:, D:2 * D], qkv[:, 2 * D:]
        heads = []
        for h in range(H):
            qh = q[:, h * hd:(h + 1) * hd]
            kh = k_[:, h * hd:(h + 1) * hd]
            vh = v[:, h * hd:(h + 1) * hd]
            s = qh @ kh.T / math.sqrt(hd)
            heads.append(jax.nn.softmax(s, axis=-1) @ vh)
        attn = jnp.concatenate(heads, axis=-1) @ p["wo"].T + p["bo"]
        y1 = _layernorm(xj + attn, p["ln1_g"][None, :], p["ln1_b"][None, :])
        h1 = _gelu_tanh(y1 @ p["w1"].T + p["b1"])
        y2 = h1 @ p["w2"].T + p["b2"]
        outs.append(_layernorm(y1 + y2, p["ln2_g"][None, :], p["ln2_b"][None, :]))
    t = jnp.stack(outs, axis=1)                                   # (S, B, D)
    flat = jnp.reshape(t, (B, -1))                                # torch .reshape
    return flat @ p["fc1_w"].T + p["fc1_b"][None, :]


# ----------------------------------------------------------------------------
# Deterministic parameter init (shapes from the module's __init__)
# ----------------------------------------------------------------------------
def init_params(key, nc0, nc1, out_features):
    F = nc1 * 100
    ks = jax.random.split(key, 8)

    def w(k, shape, scale):
        return (scale * jax.random.normal(k, shape)).astype(jnp.float32)

    return dict(
        conv_w=w(ks[0], (nc1, nc0, 3), 0.2),
        conv_b=w(ks[1], (nc1,), 0.1),
        bn_g=jnp.ones((nc1,), jnp.float32),
        bn_b=jnp.zeros((nc1,), jnp.float32),
        bn_mean=jnp.zeros((nc1,), jnp.float32),
        bn_var=jnp.ones((nc1,), jnp.float32),
        wqkv=w(ks[2], (3 * nc1, nc1), 0.1),
        bqkv=jnp.zeros((3 * nc1,), jnp.float32),
        wo=w(ks[3], (nc1, nc1), 0.1),
        bo=jnp.zeros((nc1,), jnp.float32),
        ln1_g=jnp.ones((nc1,), jnp.float32),
        ln1_b=jnp.zeros((nc1,), jnp.float32),
        w1=w(ks[4], (F, nc1), 0.05),
        b1=jnp.zeros((F,), jnp.float32),
        w2=w(ks[5], (nc1, F), 0.05),
        b2=jnp.zeros((nc1,), jnp.float32),
        ln2_g=jnp.ones((nc1,), jnp.float32),
        ln2_b=jnp.zeros((nc1,), jnp.float32),
        fc1_w=w(ks[6], (out_features, F), 0.05),
        fc1_b=jnp.zeros((out_features,), jnp.float32),
    )


if __name__ == "__main__":
    # fc1 in_features = nc1*100 forces pooled length 100, i.e. input length 200.
    nc0, nc1, out_features = 4, 8, 6
    B, L = 2, 200

    key = jax.random.PRNGKey(0)
    kx, kp = jax.random.split(key)
    x = jax.random.normal(kx, (B, nc0, L), dtype=jnp.float32)
    params = init_params(kp, nc0, nc1, out_features)

    fwd = jax.jit(one_c_one_t_one_f)
    out = jax.block_until_ready(fwd(x, params))
    ref = jax.block_until_ready(reference_forward(x, params))

    assert out.shape == (B, out_features), out.shape
    assert bool(jnp.all(jnp.isfinite(out)))
    err = float(jnp.max(jnp.abs(out - ref)))
    assert err < 1e-1, f"mismatch vs pure-JAX reference: {err}"
    print("KERNEL_OK")
</pallas_src>

<mosaic_0001>
module attributes {stable_mosaic.version = 11 : i64} {
  func.func @_conv_bn_elu_pool_kernel(%arg0: i32, %arg1: memref<1x12x100xf32, #tpu.memory_space<vmem>>, %arg2: memref<1x12x100xf32, #tpu.memory_space<vmem>>, %arg3: memref<8x12xf32, #tpu.memory_space<vmem>>, %arg4: memref<8x1xf32, #tpu.memory_space<vmem>>, %arg5: memref<1x8x100xf32, #tpu.memory_space<vmem>>) attributes {dimension_semantics = [#tpu.dimension_semantics<parallel>], iteration_bounds = array<i64: 2>, scalar_prefetch = 0 : i64, scratch_operands = 0 : i64, tpu.core_type = #tpu.core_type<tc>, window_params = [{transform_indices = @transform_0, window_bounds = array<i64: 1, 12, 100>}, {transform_indices = @transform_1, window_bounds = array<i64: 1, 12, 100>}, {pipeline_mode = #tpu.pipeline_mode<synchronous>, transform_indices = @transform_2, window_bounds = array<i64: 8, 12>}, {pipeline_mode = #tpu.pipeline_mode<synchronous>, transform_indices = @transform_3, window_bounds = array<i64: 8, 1>}, {transform_indices = @transform_4, window_bounds = array<i64: 1, 8, 100>}]} {
    %c0 = arith.constant 0 : index
    %c0_0 = arith.constant 0 : index
    %0 = vector.load %arg3[%c0, %c0_0] : memref<8x12xf32, #tpu.memory_space<vmem>>, vector<8x12xf32>
    %c0_1 = arith.constant 0 : index
    %c0_2 = arith.constant 0 : index
    %1 = vector.load %arg4[%c0_1, %c0_2] : memref<8x1xf32, #tpu.memory_space<vmem>>, vector<8x1xf32>
    %c0_3 = arith.constant 0 : index
    %c0_4 = arith.constant 0 : index
    %c0_5 = arith.constant 0 : index
    %2 = vector.load %arg1[%c0_3, %c0_4, %c0_5] : memref<1x12x100xf32, #tpu.memory_space<vmem>>, vector<1x12x100xf32>
    %3 = vector.shape_cast %2 : vector<1x12x100xf32> to vector<12x100xf32>
    %cst = arith.constant dense<0.000000e+00> : vector<8x100xf32>
    %4 = tpu.matmul %0, %3, %cst {dimension_numbers = #tpu.dot_dimension_numbers<[1], [0], [0], [1], [0, 0, 1, 1], [], []>} : vector<8x12xf32>, vector<12x100xf32>, vector<8x100xf32> -> vector<8x100xf32>
    %5 = vector.broadcast %1 : vector<8x1xf32> to vector<8x100xf32>
    %6 = arith.addf %4, %5 : vector<8x100xf32>
    %c0_6 = arith.constant 0 : index
    %c0_7 = arith.constant 0 : index
    %c0_8 = arith.constant 0 : index
    %7 = vector.load %arg2[%c0_6, %c0_7, %c0_8] : memref<1x12x100xf32, #tpu.memory_space<vmem>>, vector<1x12x100xf32>
    %8 = vector.shape_cast %7 : vector<1x12x100xf32> to vector<12x100xf32>
    %cst_9 = arith.constant dense<0.000000e+00> : vector<8x100xf32>
    %9 = tpu.matmul %0, %8, %cst_9 {dimension_numbers = #tpu.dot_dimension_numbers<[1], [0], [0], [1], [0, 0, 1, 1], [], []>} : vector<8x12xf32>, vector<12x100xf32>, vector<8x100xf32> -> vector<8x100xf32>
    %10 = vector.broadcast %1 : vector<8x1xf32> to vector<8x100xf32>
    %11 = arith.addf %9, %10 : vector<8x100xf32>
    %cst_10 = arith.constant 0.000000e+00 : f32
    %12 = vector.broadcast %cst_10 : f32 to vector<8x100xf32>
    %13 = arith.cmpf ogt, %6, %12 : vector<8x100xf32>
    %cst_11 = arith.constant 0.000000e+00 : f32
    %14 = vector.broadcast %cst_11 : f32 to vector<8x100xf32>
    %15 = arith.minimumf %6, %14 : vector<8x100xf32>
    %16 = math.exp %15 : vector<8x100xf32>
    %cst_12 = arith.constant 1.000000e+00 : f32
    %17 = vector.broadcast %cst_12 : f32 to vector<8x100xf32>
    %18 = arith.subf %16, %17 : vector<8x100xf32>
    %19 = arith.select %13, %6, %18 : vector<8x100xi1>, vector<8x100xf32>
    %cst_13 = arith.constant 0.000000e+00 : f32
    %20 = vector.broadcast %cst_13 : f32 to vector<8x100xf32>
    %21 = arith.cmpf ogt, %11, %20 : vector<8x100xf32>
    %cst_14 = arith.constant 0.000000e+00 : f32
    %22 = vector.broadcast %cst_14 : f32 to vector<8x100xf32>
    %23 = arith.minimumf %11, %22 : vector<8x100xf32>
    %24 = math.exp %23 : vector<8x100xf32>
    %cst_15 = arith.constant 1.000000e+00 : f32
    %25 = vector.broadcast %cst_15 : f32 to vector<8x100xf32>
    %26 = arith.subf %24, %25 : vector<8x100xf32>
    %27 = arith.select %21, %11, %26 : vector<8x100xi1>, vector<8x100xf32>
    %28 = arith.addf %19, %27 : vector<8x100xf32>
    %cst_16 = arith.constant 5.000000e-01 : f32
    %29 = vector.broadcast %cst_16 : f32 to vector<8x100xf32>
    %30 = arith.mulf %29, %28 : vector<8x100xf32>
    %c0_17 = arith.constant 0 : index
    %c0_18 = arith.constant 0 : index
    %c0_19 = arith.constant 0 : index
    %31 = vector.load %arg5[%c0_17, %c0_18, %c0_19] : memref<1x8x100xf32, #tpu.memory_space<vmem>>, vector<1x8x100xf32>
    %32 = vector.shape_cast %31 : vector<1x8x100xf32> to vector<8x100xf32>
    %33 = vector.shape_cast %30 : vector<8x100xf32> to vector<1x8x100xf32>
    tpu.vector_store %arg5[%c0_17, %c0_18, %c0_19], %33 {strides = array<i32>} : memref<1x8x100xf32, #tpu.memory_space<vmem>>, vector<1x8x100xf32>,
    return
  }
  func.func @transform_0(%arg0: i32) -> (i32, i32, i32) {
    %c0_i32 = arith.constant 0 : i32
    %c0_i32_0 = arith.constant 0 : i32
    %c0_i32_1 = arith.constant 0 : i32
    return %arg0, %c0_i32, %c0_i32_0 : i32, i32, i32
  }
  func.func @transform_1(%arg0: i32) -> (i32, i32, i32) {
    %c0_i32 = arith.constant 0 : i32
    %c0_i32_0 = arith.constant 0 : i32
    %c0_i32_1 = arith.constant 0 : i32
    return %arg0, %c0_i32, %c0_i32_0 : i32, i32, i32
  }
  func.func @transform_2(%arg0: i32) -> (i32, i32) {
    %c0_i32 = arith.constant 0 : i32
    %c0_i32_0 = arith.constant 0 : i32
    %c0_i32_1 = arith.constant 0 : i32
    return %c0_i32, %c0_i32_0 : i32, i32
  }
  func.func @transform_3(%arg0: i32) -> (i32, i32) {
    %c0_i32 = arith.constant 0 : i32
    %c0_i32_0 = arith.constant 0 : i32
    %c0_i32_1 = arith.constant 0 : i32
    return %c0_i32, %c0_i32_0 : i32, i32
  }
  func.func @transform_4(%arg0: i32) -> (i32, i32, i32) {
    %c0_i32 = arith.constant 0 : i32
    %c0_i32_0 = arith.constant 0 : i32
    %c0_i32_1 = arith.constant 0 : i32
    return %arg0, %c0_i32, %c0_i32_0 : i32, i32, i32
  }
}

module attributes {stable_mosaic.version = 11 : i64} {
  func.func @_transformer_fc_kernel(%arg0: i32, %arg1: memref<1x100x8xf32, #tpu.memory_space<vmem>>, %arg2: memref<100x8xf32, #tpu.memory_space<vmem>>, %arg3: memref<24x8xf32, #tpu.memory_space<vmem>>, %arg4: memref<1x24xf32, #tpu.memory_space<vmem>>, %arg5: memref<8x8xf32, #tpu.memory_space<vmem>>, %arg6: memref<1x8xf32, #tpu.memory_space<vmem>>, %arg7: memref<4x8xf32, #tpu.memory_space<vmem>>, %arg8: memref<800x8xf32, #tpu.memory_space<vmem>>, %arg9: memref<1x800xf32, #tpu.memory_space<vmem>>, %arg10: memref<8x800xf32, #tpu.memory_space<vmem>>, %arg11: memref<1x8xf32, #tpu.memory_space<vmem>>, %arg12: memref<1x12x100x8xf32, #tpu.memory_space<vmem>>, %arg13: memref<1x12x1xf32, #tpu.memory_space<vmem>>) attributes {dimension_semantics = [#tpu.dimension_semantics<parallel>], iteration_bounds = array<i64: 2>, scalar_prefetch = 0 : i64, scratch_operands = 0 : i64, tpu.core_type = #tpu.core_type<tc>, window_params = [{transform_indices = @transform_0, window_bounds = array<i64: 1, 100, 8>}, {pipeline_mode = #tpu.pipeline_mode<synchronous>, transform_indices = @transform_1, window_bounds = array<i64: 100, 8>}, {pipeline_mode = #tpu.pipeline_mode<synchronous>, transform_indices = @transform_2, window_bounds = array<i64: 24, 8>}, {pipeline_mode = #tpu.pipeline_mode<synchronous>, transform_indices = @transform_3, window_bounds = array<i64: 1, 24>}, {pipeline_mode = #tpu.pipeline_mode<synchronous>, transform_indices = @transform_4, window_bounds = array<i64: 8, 8>}, {pipeline_mode = #tpu.pipeline_mode<synchronous>, transform_indices = @transform_5, window_bounds = array<i64: 1, 8>}, {pipeline_mode = #tpu.pipeline_mode<synchronous>, transform_indices = @transform_6, window_bounds = array<i64: 4, 8>}, {pipeline_mode = #tpu.pipeline_mode<synchronous>, transform_indices = @transform_7, window_bounds = array<i64: 800, 8>}, {pipeline_mode = #tpu.pipeline_mode<synchronous>, transform_indices = @transform_8, window_bounds = array<i64: 1, 800>}, {pipeline_mode = #tpu.pipeline_mode<synchronous>, transform_indices = @transform_9, window_bounds = array<i64: 8, 800>}, {pipeline_mode = #tpu.pipeline_mode<synchronous>, transform_indices = @transform_10, window_bounds = array<i64: 1, 8>}, {transform_indices = @transform_11, window_bounds = array<i64: 1, 12, 100, 8>}, {transform_indices = @transform_12, window_bounds = array<i64: 1, 12, 1>}]} {
    %c0 = arith.constant 0 : index
    %c0_0 = arith.constant 0 : index
    %c0_1 = arith.constant 0 : index
    %0 = vector.load %arg1[%c0, %c0_0, %c0_1] : memref<1x100x8xf32, #tpu.memory_space<vmem>>, vector<1x100x8xf32>
    %1 = vector.shape_cast %0 : vector<1x100x8xf32> to vector<100x8xf32>
    %c0_2 = arith.constant 0 : index
    %c0_3 = arith.constant 0 : index
    %2 = vector.load %arg2[%c0_2, %c0_3] : memref<100x8xf32, #tpu.memory_space<vmem>>, vector<100x8xf32>
    %3 = arith.addf %1, %2 : vector<100x8xf32>
    %c0_4 = arith.constant 0 : index
    %c0_5 = arith.constant 0 : index
    %4 = vector.load %arg3[%c0_4, %c0_5] : memref<24x8xf32, #tpu.memory_space<vmem>>, vector<24x8xf32>
    %c0_6 = arith.constant 0 : index
    %c0_7 = arith.constant 0 : index
    %5 = vector.load %arg4[%c0_6, %c0_7] : memref<1x24xf32, #tpu.memory_space<vmem>>, vector<1x24xf32>
    %cst = arith.constant dense<0.000000e+00> : vector<100x24xf32>
    %6 = tpu.matmul %3, %4, %cst {dimension_numbers = #tpu.dot_dimension_numbers<[1], [1], [0], [0], [0, 0, 1, 0], [], []>} : vector<100x8xf32>, vector<24x8xf32>, vector<100x24xf32> -> vector<100x24xf32>
    %7 = vector.broadcast %5 : vector<1x24xf32> to vector<100x24xf32>
    %8 = arith.addf %6, %7 : vector<100x24xf32>
    %9 = vector.extract_strided_slice %8 {offsets = [0, 0], sizes = [100, 8], strides = [1, 1]} : vector<100x24xf32> to vector<100x8xf32>
    %10 = vector.extract_strided_slice %8 {offsets = [0, 8], sizes = [100, 8], strides = [1, 1]} : vector<100x24xf32> to vector<100x8xf32>
    %11 = vector.extract_strided_slice %8 {offsets = [0, 16], sizes = [100, 8], strides = [1, 1]} : vector<100x24xf32> to vector<100x8xf32>
    %12 = vector.extract_strided_slice %9 {offsets = [0, 0], sizes = [100, 2], strides = [1, 1]} : vector<100x8xf32> to vector<100x2xf32>
    %13 = vector.extract_strided_slice %10 {offsets = [0, 0], sizes = [100, 2], strides = [1, 1]} : vector<100x8xf32> to vector<100x2xf32>
    %14 = vector.extract_strided_slice %11 {offsets = [0, 0], sizes = [100, 2], strides = [1, 1]} : vector<100x8xf32> to vector<100x2xf32>
    %cst_8 = arith.constant dense<0.000000e+00> : vector<100x100xf32>
    %15 = tpu.matmul %12, %13, %cst_8 {dimension_numbers = #tpu.dot_dimension_numbers<[1], [1], [0], [0], [0, 0, 1, 0], [], []>} : vector<100x2xf32>, vector<100x2xf32>, vector<100x100xf32> -> vector<100x100xf32>
    %cst_9 = arith.constant 0.707106769 : f32
    %16 = vector.broadcast %cst_9 : f32 to vector<100x100xf32>
    %17 = arith.mulf %15, %16 : vector<100x100xf32>
    %cst_10 = arith.constant dense<0xFF800000> : vector<100xf32>
    %18 = vector.multi_reduction <maximumf>, %17, %cst_10 [1] : vector<100x100xf32> to vector<100xf32>
    %19 = vector.shape_cast %18 : vector<100xf32> to vector<100x1xf32>
    %20 = vector.broadcast %19 : vector<100x1xf32> to vector<100x100xf32>
    %21 = arith.subf %17, %20 : vector<100x100xf32>
    %22 = math.exp %21 : vector<100x100xf32>
    %cst_11 = arith.constant dense<0.000000e+00> : vector<100xf32>
    %23 = vector.multi_reduction <add>, %22, %cst_11 [1] : vector<100x100xf32> to vector<100xf32>
    %24 = vector.shape_cast %23 : vector<100xf32> to vector<100x1xf32>
    %25 = tpu.reciprocal %24 {approx = true} : vector<100x1xf32> -> vector<100x1xf32>
    %26 = vector.broadcast %25 : vector<100x1xf32> to vector<100x100xf32>
    %27 = arith.mulf %22, %26 : vector<100x100xf32>
    %cst_12 = arith.constant dense<0.000000e+00> : vector<100x2xf32>
    %28 = tpu.matmul %27, %14, %cst_12 {dimension_numbers = #tpu.dot_dimension_numbers<[1], [0], [0], [1], [0, 0, 1, 1], [], []>} : vector<100x100xf32>, vector<100x2xf32>, vector<100x2xf32> -> vector<100x2xf32>
    %29 = vector.extract_strided_slice %9 {offsets = [0, 2], sizes = [100, 2], strides = [1, 1]} : vector<100x8xf32> to vector<100x2xf32>
    %30 = vector.extract_strided_slice %10 {offsets = [0, 2], sizes = [100, 2], strides = [1, 1]} : vector<100x8xf32> to vector<100x2xf32>
    %31 = vector.extract_strided_slice %11 {offsets = [0, 2], sizes = [100, 2], strides = [1, 1]} : vector<100x8xf32> to vector<100x2xf32>
    %cst_13 = arith.constant dense<0.000000e+00> : vector<100x100xf32>
    %32 = tpu.matmul %29, %30, %cst_13 {dimension_numbers = #tpu.dot_dimension_numbers<[1], [1], [0], [0], [0, 0, 1, 0], [], []>} : vector<100x2xf32>, vector<100x2xf32>, vector<100x100xf32> -> vector<100x100xf32>
    %cst_14 = arith.constant 0.707106769 : f32
    %33 = vector.broadcast %cst_14 : f32 to vector<100x100xf32>
    %34 = arith.mulf %32, %33 : vector<100x100xf32>
    %cst_15 = arith.constant dense<0xFF800000> : vector<100xf32>
    %35 = vector.multi_reduction <maximumf>, %34, %cst_15 [1] : vector<100x100xf32> to vector<100xf32>
    %36 = vector.shape_cast %35 : vector<100xf32> to vector<100x1xf32>
    %37 = vector.broadcast %36 : vector<100x1xf32> to vector<100x100xf32>
    %38 = arith.subf %34, %37 : vector<100x100xf32>
    %39 = math.exp %38 : vector<100x100xf32>
    %cst_16 = arith.constant dense<0.000000e+00> : vector<100xf32>
    %40 = vector.multi_reduction <add>, %39, %cst_16 [1] : vector<100x100xf32> to vector<100xf32>
    %41 = vector.shape_cast %40 : vector<100xf32> to vector<100x1xf32>
    %42 = tpu.reciprocal %41 {approx = true} : vector<100x1xf32> -> vector<100x1xf32>
    %43 = vector.broadcast %42 : vector<100x1xf32> to vector<100x100xf32>
    %44 = arith.mulf %39, %43 : vector<100x100xf32>
    %cst_17 = arith.constant dense<0.000000e+00> : vector<100x2xf32>
    %45 = tpu.matmul %44, %31, %cst_17 {dimension_numbers = #tpu.dot_dimension_numbers<[1], [0], [0], [1], [0, 0, 1, 1], [], []>} : vector<100x100xf32>, vector<100x2xf32>, vector<100x2xf32> -> vector<100x2xf32>
    %46 = vector.extract_strided_slice %9 {offsets = [0, 4], sizes = [100, 2], strides = [1, 1]} : vector<100x8xf32> to vector<100x2xf32>
    %47 = vector.extract_strided_slice %10 {offsets = [0, 4], sizes = [100, 2], strides = [1, 1]} : vector<100x8xf32> to vector<100x2xf32>
    %48 = vector.extract_strided_slice %11 {offsets = [0, 4], sizes = [100, 2], strides = [1, 1]} : vector<100x8xf32> to vector<100x2xf32>
    %cst_18 = arith.constant dense<0.000000e+00> : vector<100x100xf32>
    %49 = tpu.matmul %46, %47, %cst_18 {dimension_numbers = #tpu.dot_dimension_numbers<[1], [1], [0], [0], [0, 0, 1, 0], [], []>} : vector<100x2xf32>, vector<100x2xf32>, vector<100x100xf32> -> vector<100x100xf32>
    %cst_19 = arith.constant 0.707106769 : f32
    %50 = vector.broadcast %cst_19 : f32 to vector<100x100xf32>
    %51 = arith.mulf %49, %50 : vector<100x100xf32>
    %cst_20 = arith.constant dense<0xFF800000> : vector<100xf32>
    %52 = vector.multi_reduction <maximumf>, %51, %cst_20 [1] : vector<100x100xf32> to vector<100xf32>
    %53 = vector.shape_cast %52 : vector<100xf32> to vector<100x1xf32>
    %54 = vector.broadcast %53 : vector<100x1xf32> to vector<100x100xf32>
    %55 = arith.subf %51, %54 : vector<100x100xf32>
    %56 = math.exp %55 : vector<100x100xf32>
    %cst_21 = arith.constant dense<0.000000e+00> : vector<100xf32>
    %57 = vector.multi_reduction <add>, %56, %cst_21 [1] : vector<100x100xf32> to vector<100xf32>
    %58 = vector.shape_cast %57 : vector<100xf32> to vector<100x1xf32>
    %59 = tpu.reciprocal %58 {approx = true} : vector<100x1xf32> -> vector<100x1xf32>
    %60 = vector.broadcast %59 : vector<100x1xf32> to vector<100x100xf32>
    %61 = arith.mulf %56, %60 : vector<100x100xf32>
    %cst_22 = arith.constant dense<0.000000e+00> : vector<100x2xf32>
    %62 = tpu.matmul %61, %48, %cst_22 {dimension_numbers = #tpu.dot_dimension_numbers<[1], [0], [0], [1], [0, 0, 1, 1], [], []>} : vector<100x100xf32>, vector<100x2xf32>, vector<100x2xf32> -> vector<100x2xf32>
    %63 = vector.extract_strided_slice %9 {offsets = [0, 6], sizes = [100, 2], strides = [1, 1]} : vector<100x8xf32> to vector<100x2xf32>
    %64 = vector.extract_strided_slice %10 {offsets = [0, 6], sizes = [100, 2], strides = [1, 1]} : vector<100x8xf32> to vector<100x2xf32>
    %65 = vector.extract_strided_slice %11 {offsets = [0, 6], sizes = [100, 2], strides = [1, 1]} : vector<100x8xf32> to vector<100x2xf32>
    %cst_23 = arith.constant dense<0.000000e+00> : vector<100x100xf32>
    %66 = tpu.matmul %63, %64, %cst_23 {dimension_numbers = #tpu.dot_dimension_numbers<[1], [1], [0], [0], [0, 0, 1, 0], [], []>} : vector<100x2xf32>, vector<100x2xf32>, vector<100x100xf32> -> vector<100x100xf32>
    %cst_24 = arith.constant 0.707106769 : f32
    %67 = vector.broadcast %cst_24 : f32 to vector<100x100xf32>
    %68 = arith.mulf %66, %67 : vector<100x100xf32>
    %cst_25 = arith.constant dense<0xFF800000> : vector<100xf32>
    %69 = vector.multi_reduction <maximumf>, %68, %cst_25 [1] : vector<100x100xf32> to vector<100xf32>
    %70 = vector.shape_cast %69 : vector<100xf32> to vector<100x1xf32>
    %71 = vector.broadcast %70 : vector<100x1xf32> to vector<100x100xf32>
    %72 = arith.subf %68, %71 : vector<100x100xf32>
    %73 = math.exp %72 : vector<100x100xf32>
    %cst_26 = arith.constant dense<0.000000e+00> : vector<100xf32>
    %74 = vector.multi_reduction <add>, %73, %cst_26 [1] : vector<100x100xf32> to vector<100xf32>
    %75 = vector.shape_cast %74 : vector<100xf32> to vector<100x1xf32>
    %76 = tpu.reciprocal %75 {approx = true} : vector<100x1xf32> -> vector<100x1xf32>
    %77 = vector.broadcast %76 : vector<100x1xf32> to vector<100x100xf32>
    %78 = arith.mulf %73, %77 : vector<100x100xf32>
    %cst_27 = arith.constant dense<0.000000e+00> : vector<100x2xf32>
    %79 = tpu.matmul %78, %65, %cst_27 {dimension_numbers = #tpu.dot_dimension_numbers<[1], [0], [0], [1], [0, 0, 1, 1], [], []>} : vector<100x100xf32>, vector<100x2xf32>, vector<100x2xf32> -> vector<100x2xf32>
    %80 = tpu.concatenate %28, %45, %62, %79 in 1 : vector<100x2xf32>, vector<100x2xf32>, vector<100x2xf32>, vector<100x2xf32> -> vector<100x8xf32>
    %c0_28 = arith.constant 0 : index
    %c0_29 = arith.constant 0 : index
    %81 = vector.load %arg5[%c0_28, %c0_29] : memref<8x8xf32, #tpu.memory_space<vmem>>, vector<8x8xf32>
    %c0_30 = arith.constant 0 : index
    %c0_31 = arith.constant 0 : index
    %82 = vector.load %arg6[%c0_30, %c0_31] : memref<1x8xf32, #tpu.memory_space<vmem>>, vector<1x8xf32>
    %cst_32 = arith.constant dense<0.000000e+00> : vector<100x8xf32>
    %83 = tpu.matmul %80, %81, %cst_32 {dimension_numbers = #tpu.dot_dimension_numbers<[1], [1], [0], [0], [0, 0, 1, 0], [], []>} : vector<100x8xf32>, vector<8x8xf32>, vector<100x8xf32> -> vector<100x8xf32>
    %84 = vector.broadcast %82 : vector<1x8xf32> to vector<100x8xf32>
    %85 = arith.addf %83, %84 : vector<100x8xf32>
    %86 = arith.addf %3, %85 : vector<100x8xf32>
    %c0_33 = arith.constant 0 : index
    %c0_34 = arith.constant 0 : index
    %87 = vector.load %arg7[%c0_33, %c0_34] : memref<4x8xf32, #tpu.memory_space<vmem>>, vector<1x8xf32>
    %c1 = arith.constant 1 : index
    %c0_35 = arith.constant 0 : index
    %88 = vector.load %arg7[%c1, %c0_35] : memref<4x8xf32, #tpu.memory_space<vmem>>, vector<1x8xf32>
    %cst_36 = arith.constant dense<0.000000e+00> : vector<100xf32>
    %89 = vector.multi_reduction <add>, %86, %cst_36 [1] : vector<100x8xf32> to vector<100xf32>
    %90 = vector.shape_cast %89 : vector<100xf32> to vector<100x1xf32>
    %cst_37 = arith.constant 8.000000e+00 : f32
    %91 = vector.broadcast %cst_37 : f32 to vector<100x1xf32>
    %92 = arith.divf %90, %91 : vector<100x1xf32>
    %93 = vector.broadcast %92 : vector<100x1xf32> to vector<100x8xf32>
    %94 = arith.subf %86, %93 : vector<100x8xf32>
    %95 = arith.mulf %94, %94 : vector<100x8xf32>
    %cst_38 = arith.constant dense<0.000000e+00> : vector<100xf32>
    %96 = vector.multi_reduction <add>, %95, %cst_38 [1] : vector<100x8xf32> to vector<100xf32>
    %97 = vector.shape_cast %96 : vector<100xf32> to vector<100x1xf32>
    %cst_39 = arith.constant 8.000000e+00 : f32
    %98 = vector.broadcast %cst_39 : f32 to vector<100x1xf32>
    %99 = arith.divf %97, %98 : vector<100x1xf32>
    %cst_40 = arith.constant 9.99999974E-6 : f32
    %100 = vector.broadcast %cst_40 : f32 to vector<100x1xf32>
    %101 = arith.addf %99, %100 : vector<100x1xf32>
    %102 = math.rsqrt %101 : vector<100x1xf32>
    %103 = vector.broadcast %102 : vector<100x1xf32> to vector<100x8xf32>
    %104 = arith.mulf %94, %103 : vector<100x8xf32>
    %105 = vector.broadcast %87 : vector<1x8xf32> to vector<100x8xf32>
    %106 = arith.mulf %104, %105 : vector<100x8xf32>
    %107 = vector.broadcast %88 : vector<1x8xf32> to vector<100x8xf32>
    %108 = arith.addf %106, %107 : vector<100x8xf32>
    %c0_41 = arith.constant 0 : index
    %c0_42 = arith.constant 0 : index
    %109 = vector.load %arg8[%c0_41, %c0_42] : memref<800x8xf32, #tpu.memory_space<vmem>>, vector<800x8xf32>
    %c0_43 = arith.constant 0 : index
    %c0_44 = arith.constant 0 : index
    %110 = vector.load %arg9[%c0_43, %c0_44] : memref<1x800xf32, #tpu.memory_space<vmem>>, vector<1x800xf32>
    %cst_45 = arith.constant dense<0.000000e+00> : vector<100x800xf32>
    %111 = tpu.matmul %108, %109, %cst_45 {dimension_numbers = #tpu.dot_dimension_numbers<[1], [1], [0], [0], [0, 0, 1, 0], [], []>} : vector<100x8xf32>, vector<800x8xf32>, vector<100x800xf32> -> vector<100x800xf32>
    %112 = vector.broadcast %110 : vector<1x800xf32> to vector<100x800xf32>
    %113 = arith.addf %111, %112 : vector<100x800xf32>
    %cst_46 = arith.constant 5.000000e-01 : f32
    %114 = vector.broadcast %cst_46 : f32 to vector<100x800xf32>
    %115 = arith.mulf %114, %113 : vector<100x800xf32>
    %cst_47 = arith.constant 4.471500e-02 : f32
    %116 = vector.broadcast %cst_47 : f32 to vector<100x800xf32>
    %117 = arith.mulf %116, %113 : vector<100x800xf32>
    %118 = arith.mulf %117, %113 : vector<100x800xf32>
    %119 = arith.mulf %118, %113 : vector<100x800xf32>
    %120 = arith.addf %113, %119 : vector<100x800xf32>
    %cst_48 = arith.constant 0.797884583 : f32
    %121 = vector.broadcast %cst_48 : f32 to vector<100x800xf32>
    %122 = arith.mulf %121, %120 : vector<100x800xf32>
    %123 = math.tanh %122 : vector<100x800xf32>
    %cst_49 = arith.constant 1.000000e+00 : f32
    %124 = vector.broadcast %cst_49 : f32 to vector<100x800xf32>
    %125 = arith.addf %124, %123 : vector<100x800xf32>
    %126 = arith.mulf %115, %125 : vector<100x800xf32>
    %c0_50 = arith.constant 0 : index
    %c0_51 = arith.constant 0 : index
    %127 = vector.load %arg10[%c0_50, %c0_51] : memref<8x800xf32, #tpu.memory_space<vmem>>, vector<8x800xf32>
    %c0_52 = arith.constant 0 : index
    %c0_53 = arith.constant 0 : index
    %128 = vector.load %arg11[%c0_52, %c0_53] : memref<1x8xf32, #tpu.memory_space<vmem>>, vector<1x8xf32>
    %cst_54 = arith.constant dense<0.000000e+00> : vector<100x8xf32>
    %129 = tpu.matmul %126, %127, %cst_54 {dimension_numbers = #tpu.dot_dimension_numbers<[1], [1], [0], [0], [0, 0, 1, 0], [], []>} : vector<100x800xf32>, vector<8x800xf32>, vector<100x8xf32> -> vector<100x8xf32>
    %130 = vector.broadcast %128 : vector<1x8xf32> to vector<100x8xf32>
    %131 = arith.addf %129, %130 : vector<100x8xf32>
    %132 = arith.addf %108, %131 : vector<100x8xf32>
    %c2 = arith.constant 2 : index
    %c0_55 = arith.constant 0 : index
    %133 = vector.load %arg7[%c2, %c0_55] : memref<4x8xf32, #tpu.memory_space<vmem>>, vector<1x8xf32>
    %c3 = arith.constant 3 : index
    %c0_56 = arith.constant 0 : index
    %134 = vector.load %arg7[%c3, %c0_56] : memref<4x8xf32, #tpu.memory_space<vmem>>, vector<1x8xf32>
    %cst_57 = arith.constant dense<0.000000e+00> : vector<100xf32>
    %135 = vector.multi_reduction <add>, %132, %cst_57 [1] : vector<100x8xf32> to vector<100xf32>
    %136 = vector.shape_cast %135 : vector<100xf32> to vector<100x1xf32>
    %cst_58 = arith.constant 8.000000e+00 : f32
    %137 = vector.broadcast %cst_58 : f32 to vector<100x1xf32>
    %138 = arith.divf %136, %137 : vector<100x1xf32>
    %139 = vector.broadcast %138 : vector<100x1xf32> to vector<100x8xf32>
    %140 = arith.subf %132, %139 : vector<100x8xf32>
    %141 = arith.mulf %140, %140 : vector<100x8xf32>
    %cst_59 = arith.constant dense<0.000000e+00> : vector<100xf32>
    %142 = vector.multi_reduction <add>, %141, %cst_59 [1] : vector<100x8xf32> to vector<100xf32>
    %143 = vector.shape_cast %142 : vector<100xf32> to vector<100x1xf32>
    %cst_60 = arith.constant 8.000000e+00 : f32
    %144 = vector.broadcast %cst_60 : f32 to vector<100x1xf32>
    %145 = arith.divf %143, %144 : vector<100x1xf32>
    %cst_61 = arith.constant 9.99999974E-6 : f32
    %146 = vector.broadcast %cst_61 : f32 to vector<100x1xf32>
    %147 = arith.addf %145, %146 : vector<100x1xf32>
    %148 = math.rsqrt %147 : vector<100x1xf32>
    %149 = vector.broadcast %148 : vector<100x1xf32> to vector<100x8xf32>
    %150 = arith.mulf %140, %149 : vector<100x8xf32>
    %151 = vector.broadcast %133 : vector<1x8xf32> to vector<100x8xf32>
    %152 = arith.mulf %150, %151 : vector<100x8xf32>
    %153 = vector.broadcast %134 : vector<1x8xf32> to vector<100x8xf32>
    %154 = arith.addf %152, %153 : vector<100x8xf32>
    %c0_62 = arith.constant 0 : index
    %c0_63 = arith.constant 0 : index
    %c0_64 = arith.constant 0 : index
    %c0_65 = arith.constant 0 : index
    %155 = vector.load %arg12[%c0_62, %c0_63, %c0_64, %c0_65] : memref<1x12x100x8xf32, #tpu.memory_space<vmem>>, vector<1x12x100x8xf32>
    %156 = vector.shape_cast %155 : vector<1x12x100x8xf32> to vector<12x100x8xf32>
    %157 = vector.shape_cast %154 : vector<100x8xf32> to vector<1x100x8xf32>
    %158 = vector.broadcast %157 : vector<1x100x8xf32> to vector<12x100x8xf32>
    %159 = arith.mulf %158, %156 : vector<12x100x8xf32>
    %cst_66 = arith.constant dense<0.000000e+00> : vector<12x100xf32>
    %160 = vector.multi_reduction <add>, %159, %cst_66 [2] : vector<12x100x8xf32> to vector<12x100xf32>
    %cst_67 = arith.constant dense<0.000000e+00> : vector<12xf32>
    %161 = vector.multi_reduction <add>, %160, %cst_67 [1] : vector<12x100xf32> to vector<12xf32>
    %162 = vector.shape_cast %161 : vector<12xf32> to vector<12x1xf32>
    %c0_68 = arith.constant 0 : index
    %c0_69 = arith.constant 0 : index
    %c0_70 = arith.constant 0 : index
    %163 = vector.load %arg13[%c0_68, %c0_69, %c0_70] : memref<1x12x1xf32, #tpu.memory_space<vmem>>, vector<1x12x1xf32>
    %164 = vector.shape_cast %163 : vector<1x12x1xf32> to vector<12x1xf32>
    %165 = vector.shape_cast %162 : vector<12x1xf32> to vector<1x12x1xf32>
    tpu.vector_store %arg13[%c0_68, %c0_69, %c0_70], %165 {strides = array<i32>} : memref<1x12x1xf32, #tpu.memory_space<vmem>>, vector<1x12x1xf32>,
    return
  }
  func.func @transform_0(%arg0: i32) -> (i32, i32, i32) {
    %c0_i32 = arith.constant 0 : i32
    %c0_i32_0 = arith.constant 0 : i32
    %c0_i32_1 = arith.constant 0 : i32
    return %arg0, %c0_i32, %c0_i32_0 : i32, i32, i32
  }
  func.func @transform_1(%arg0: i32) -> (i32, i32) {
    %c0_i32 = arith.constant 0 : i32
    %c0_i32_0 = arith.constant 0 : i32
    %c0_i32_1 = arith.constant 0 : i32
    return %c0_i32, %c0_i32_0 : i32, i32
  }
  func.func @transform_2(%arg0: i32) -> (i32, i32) {
    %c0_i32 = arith.constant 0 : i32
    %c0_i32_0 = arith.constant 0 : i32
    %c0_i32_1 = arith.constant 0 : i32
    return %c0_i32, %c0_i32_0 : i32, i32
  }
  func.func @transform_3(%arg0: i32) -> (i32, i32) {
    %c0_i32 = arith.constant 0 : i32
    %c0_i32_0 = arith.constant 0 : i32
    %c0_i32_1 = arith.constant 0 : i32
    return %c0_i32, %c0_i32_0 : i32, i32
  }
  func.func @transform_4(%arg0: i32) -> (i32, i32) {
    %c0_i32 = arith.constant 0 : i32
    %c0_i32_0 = arith.constant 0 : i32
    %c0_i32_1 = arith.constant 0 : i32
    return %c0_i32, %c0_i32_0 : i32, i32
  }
  func.func @transform_5(%arg0: i32) -> (i32, i32) {
    %c0_i32 = arith.constant 0 : i32
    %c0_i32_0 = arith.constant 0 : i32
    %c0_i32_1 = arith.constant 0 : i32
    return %c0_i32, %c0_i32_0 : i32, i32
  }
  func.func @transform_6(%arg0: i32) -> (i32, i32) {
    %c0_i32 = arith.constant 0 : i32
    %c0_i32_0 = arith.constant 0 : i32
    %c0_i32_1 = arith.constant 0 : i32
    return %c0_i32, %c0_i32_0 : i32, i32
  }
  func.func @transform_7(%arg0: i32) -> (i32, i32) {
    %c0_i32 = arith.constant 0 : i32
    %c0_i32_0 = arith.constant 0 : i32
    %c0_i32_1 = arith.constant 0 : i32
    return %c0_i32, %c0_i32_0 : i32, i32
  }
  func.func @transform_8(%arg0: i32) -> (i32, i32) {
    %c0_i32 = arith.constant 0 : i32
    %c0_i32_0 = arith.constant 0 : i32
    %c0_i32_1 = arith.constant 0 : i32
    return %c0_i32, %c0_i32_0 : i32, i32
  }
  func.func @transform_9(%arg0: i32) -> (i32, i32) {
    %c0_i32 = arith.constant 0 : i32
    %c0_i32_0 = arith.constant 0 : i32
    %c0_i32_1 = arith.constant 0 : i32
    return %c0_i32, %c0_i32_0 : i32, i32
  }
  func.func @transform_10(%arg0: i32) -> (i32, i32) {
    %c0_i32 = arith.constant 0 : i32
    %c0_i32_0 = arith.constant 0 : i32
    %c0_i32_1 = arith.constant 0 : i32
    return %c0_i32, %c0_i32_0 : i32, i32
  }
  func.func @transform_11(%arg0: i32) -> (i32, i32, i32, i32) {
    %c0_i32 = arith.constant 0 : i32
    %c0_i32_0 = arith.constant 0 : i32
    %c0_i32_1 = arith.constant 0 : i32
    %c0_i32_2 = arith.constant 0 : i32
    return %arg0, %c0_i32, %c0_i32_0, %c0_i32_1 : i32, i32, i32, i32
  }
  func.func @transform_12(%arg0: i32) -> (i32, i32, i32) {
    %c0_i32 = arith.constant 0 : i32
    %c0_i32_0 = arith.constant 0 : i32
    %c0_i32_1 = arith.constant 0 : i32
    return %arg0, %c0_i32, %c0_i32_0 : i32, i32, i32
  }
}

</mosaic_0001>

<llo_original>
// kernel: one_c_one_t_one_f.2
$region0: #{one_c_one_t_one_f.2}
  #allocation0 [shape = 'u32[]', space=smem, size = 0x4, offset = 0x4, fixed_abs, tag = 'smem constant byte address 0x4 - core index']
  #allocation1 [shape = 'u32[144,128]{1,0:T(1,128)}', space=vmem, size = 0x12000, scoped, tag = 'internal scratch']
  %s0 = inlined_call_operand.vmem [shape: f32[2,12,100], index: 0, kind: input, shape index: {}]
  %s1 = inlined_call_operand.vmem [shape: f32[2,12,100], index: 1, kind: input, shape index: {}]
  %s2 = inlined_call_operand.vmem [shape: f32[8,12], index: 2, kind: input, shape index: {}]
  %s3 = inlined_call_operand.vmem [shape: f32[8,1], index: 3, kind: input, shape index: {}]
  %s4 = inlined_call_operand.vmem [shape: f32[2,8,100], index: 4, kind: output, shape index: {}]
  %s5 = sld [smem:[#allocation0]]
  $region49: #{one_c_one_t_one_f.2} parent=0
    _
  %s7 = ssub.s32 1, %s5
  %s8 = scalar_select 0, %s7, %s5
  loop: start=0, step=1, limit=4
  $region2: #{one_c_one_t_one_f.2} parent=0 // loop_pre_header
    _
  $region3: #{one_c_one_t_one_f.2} parent=0 // loop_header
    %s10 = sphi 0, %s14
    %p11 = scmp.ge.s32.totalorder %s10, 4
    %s20 = sphi 0, %s22
    %s23 = sphi 0, %s20
    %s24 = sphi 0, %s23
    %s40 = sphi 0, %s24
    %s46 = sphi 0, %s48
    %s49 = sphi 0, %s46
    %s50 = sphi 0, %s49
    %s66 = sphi 0, %s50
    %s70 = sphi 0, %s70
    %s72 = sphi 0, %s70
    %s73 = sphi 0, %s72
    %s87 = sphi 0, %s73
    %s91 = sphi 0, %s91
    %s93 = sphi 0, %s91
    %s94 = sphi 0, %s93
    %s108 = sphi 0, %s94
    %s114 = sphi 0, %s116
    %s117 = sphi 0, %s114
    %s118 = sphi 0, %s117
    %s134 = sphi 0, %s118
  $region4: #{one_c_one_t_one_f.2} parent=0 // loop_header_branch
    %13 = sbr.rel (%p11) target = $region8
  $region5: #{one_c_one_t_one_f.2} parent=0 // loop_body
    %s15 = ssub.s32 %s10, 1
    %s16 = ssub.s32 %s10, 2
    %s17 = sadd.s32 %s10, 1
    %s18 = ssub.s32 %s10, %s17
    %p19 = scmp.eq.s32.totalorder %s18, 0
    %s21 = sadd.s32 %s20, 1
    %s22 = scalar_select %p19, %s20, %s21
    %p25 = pneg %p19
    %p26 = scmp.eq.s32.totalorder %s10, 1
    %p27 = por %p25, %p26
    %p28 = scmp.ne.s32.totalorder %s20, %s23
    %p29 = scmp.eq.s32.totalorder %s10, 0
    %p30 = por %p28, %p29
    %p31 = scmp.ne.s32.totalorder %s20, %s23
    %p32 = scmp.eq.s32.totalorder %s15, 1
    %p33 = por %p31, %p32
    %p34 = scmp.ne.s32.totalorder %s23, %s24
    %p35 = scmp.eq.s32.totalorder %s15, 0
    %p36 = por %p34, %p35
    %p37 = scmp.ne.s32.totalorder %s23, %s24
    %p38 = scmp.eq.s32.totalorder %s16, 1
    %p39 = por %p37, %p38
    %p41 = scmp.ne.s32.totalorder %s24, %s40
    %p42 = scmp.eq.s32.totalorder %s16, 0
    %p43 = por %p41, %p42
    %s44 = ssub.s32 %s10, %s17
    %p45 = scmp.eq.s32.totalorder %s44, 0
    %s47 = sadd.s32 %s46, 1
    %s48 = scalar_select %p45, %s46, %s47
    %p51 = pneg %p45
    %p52 = scmp.eq.s32.totalorder %s10, 1
    %p53 = por %p51, %p52
    %p54 = scmp.ne.s32.totalorder %s46, %s49
    %p55 = scmp.eq.s32.totalorder %s10, 0
    %p56 = por %p54, %p55
    %p57 = scmp.ne.s32.totalorder %s46, %s49
    %p58 = scmp.eq.s32.totalorder %s15, 1
    %p59 = por %p57, %p58
    %p60 = scmp.ne.s32.totalorder %s49, %s50
    %p61 = scmp.eq.s32.totalorder %s15, 0
    %p62 = por %p60, %p61
    %p63 = scmp.ne.s32.totalorder %s49, %s50
    %p64 = scmp.eq.s32.totalorder %s16, 1
    %p65 = por %p63, %p64
    %p67 = scmp.ne.s32.totalorder %s50, %s66
    %p68 = scmp.eq.s32.totalorder %s16, 0
    %p69 = por %p67, %p68
    %s71 = sadd.s32 %s70, 1
    %p74 = scmp.eq.s32.totalorder %s10, 1
    %p75 = scmp.ne.s32.totalorder %s70, %s72
    %p76 = scmp.eq.s32.totalorder %s10, 0
    %p77 = por %p75, %p76
    %p78 = scmp.ne.s32.totalorder %s70, %s72
    %p79 = scmp.eq.s32.totalorder %s15, 1
    %p80 = por %p78, %p79
    %p81 = scmp.ne.s32.totalorder %s72, %s73
    %p82 = scmp.eq.s32.totalorder %s15, 0
    %p83 = por %p81, %p82
    %p84 = scmp.ne.s32.totalorder %s72, %s73
    %p85 = scmp.eq.s32.totalorder %s16, 1
    %p86 = por %p84, %p85
    %p88 = scmp.ne.s32.totalorder %s73, %s87
    %p89 = scmp.eq.s32.totalorder %s16, 0
    %p90 = por %p88, %p89
    %s92 = sadd.s32 %s91, 1
    %p95 = scmp.eq.s32.totalorder %s10, 1
    %p96 = scmp.ne.s32.totalorder %s91, %s93
    %p97 = scmp.eq.s32.totalorder %s10, 0
    %p98 = por %p96, %p97
    %p99 = scmp.ne.s32.totalorder %s91, %s93
    %p100 = scmp.eq.s32.totalorder %s15, 1
    %p101 = por %p99, %p100
    %p102 = scmp.ne.s32.totalorder %s93, %s94
    %p103 = scmp.eq.s32.totalorder %s15, 0
    %p104 = por %p102, %p103
    %p105 = scmp.ne.s32.totalorder %s93, %s94
    %p106 = scmp.eq.s32.totalorder %s16, 1
    %p107 = por %p105, %p106
    %p109 = scmp.ne.s32.totalorder %s94, %s108
    %p110 = scmp.eq.s32.totalorder %s16, 0
    %p111 = por %p109, %p110
    %s112 = ssub.s32 %s10, %s17
    %p113 = scmp.eq.s32.totalorder %s112, 0
    %s115 = sadd.s32 %s114, 1
    %s116 = scalar_select %p113, %s114, %s115
    %p119 = pneg %p113
    %p120 = scmp.eq.s32.totalorder %s10, 1
    %p121 = por %p119, %p120
    %p122 = scmp.ne.s32.totalorder %s114, %s117
    %p123 = scmp.eq.s32.totalorder %s10, 0
    %p124 = por %p122, %p123
    %p125 = scmp.ne.s32.totalorder %s114, %s117
    %p126 = scmp.eq.s32.totalorder %s15, 1
    %p127 = por %p125, %p126
    %p128 = scmp.ne.s32.totalorder %s117, %s118
    %p129 = scmp.eq.s32.totalorder %s15, 0
    %p130 = por %p128, %p129
    %p131 = scmp.ne.s32.totalorder %s117, %s118
    %p132 = scmp.eq.s32.totalorder %s16, 1
    %p133 = por %p131, %p132
    %p135 = scmp.ne.s32.totalorder %s118, %s134
    %p136 = scmp.eq.s32.totalorder %s16, 0
    %p137 = por %p135, %p136
    %p138 = scmp.le.s32.totalorder 1, %s10
    %p139 = scmp.lt.s32.totalorder %s10, 3
    %p140 = pnand %p138, %p139
    %p141 = pneg %p140
    // Predicated region
    $region9: #{one_c_one_t_one_f.2} parent=5 // pred_check
      _
    $region10: #{one_c_one_t_one_f.2} parent=5 // pred_check_branch
      %143 = sbr.rel (%p140) target = $region12
    $region11: #{one_c_one_t_one_f.2} parent=5 // pred_region
      %s144 = ssub.s32 %s10, 1
      // Predicated region
      $region13: #{one_c_one_t_one_f.2} parent=11 // pred_check
        %p145 = pneg %p83
      $region14: #{one_c_one_t_one_f.2} parent=11 // pred_check_branch
        %147 = sbr.rel (%p145) target = $region16
      $region15: #{one_c_one_t_one_f.2} parent=11 // pred_region
        _
      $region16: #{one_c_one_t_one_f.2} parent=11 // pred_fallthru
        _
      // Predicated region
      $region17: #{one_c_one_t_one_f.2} parent=11 // pred_check
        %p148 = pneg %p104
      $region18: #{one_c_one_t_one_f.2} parent=11 // pred_check_branch
        %150 = sbr.rel (%p148) target = $region20
      $region19: #{one_c_one_t_one_f.2} parent=11 // pred_region
        _
      $region20: #{one_c_one_t_one_f.2} parent=11 // pred_fallthru
        _
    $region12: #{one_c_one_t_one_f.2} parent=5 // pred_fallthru
      _
    %p151 = scmp.lt.s32.totalorder %s10, 2
    // Predicated region
    $region21: #{one_c_one_t_one_f.2} parent=5 // pred_check
      %p152 = pneg %p151
    $region22: #{one_c_one_t_one_f.2} parent=5 // pred_check_branch
      %154 = sbr.rel (%p152) target = $region24
    $region23: #{one_c_one_t_one_f.2} parent=5 // pred_region
      // Predicated region
      $region25: #{one_c_one_t_one_f.2} parent=23 // pred_check
        %p155 = pneg %p30
      $region26: #{one_c_one_t_one_f.2} parent=23 // pred_check_branch
        %157 = sbr.rel (%p155) target = $region28
      $region27: #{one_c_one_t_one_f.2} parent=23 // pred_region
        %p158 = scmp.lt.s32.totalorder %s10, 1
        %s159 = scalar_select %p158, %s10, 1
        %s160 = smul.addr %s159, 2
        %s161 = smul.addr %s160, 8
        %s162 = scalar_lea.vmem %s0, %s161
      $region28: #{one_c_one_t_one_f.2} parent=23 // pred_fallthru
        _
      // Predicated region
      $region29: #{one_c_one_t_one_f.2} parent=23 // pred_check
        %p163 = pneg %p56
      $region30: #{one_c_one_t_one_f.2} parent=23 // pred_check_branch
        %165 = sbr.rel (%p163) target = $region32
      $region31: #{one_c_one_t_one_f.2} parent=23 // pred_region
        %p166 = scmp.lt.s32.totalorder %s10, 1
        %s167 = scalar_select %p166, %s10, 1
        %s168 = smul.addr %s167, 2
        %s169 = smul.addr %s168, 8
        %s170 = scalar_lea.vmem %s1, %s169
      $region32: #{one_c_one_t_one_f.2} parent=23 // pred_fallthru
        _
    $region24: #{one_c_one_t_one_f.2} parent=5 // pred_fallthru
      _
    %p171 = scmp.le.s32.totalorder 1, %s10
    %p172 = scmp.lt.s32.totalorder %s10, 3
    %p173 = pnand %p171, %p172
    %p174 = pneg %p173
    // Predicated region
    $region33: #{one_c_one_t_one_f.2} parent=5 // pred_check
      _
    $region34: #{one_c_one_t_one_f.2} parent=5 // pred_check_branch
      %176 = sbr.rel (%p173) target = $region36
    $region35: #{one_c_one_t_one_f.2} parent=5 // pred_region
      %s177 = ssub.s32 %s10, 1
      %p178 = scmp.lt.s32.totalorder %s15, 1
      %s179 = scalar_select %p178, %s15, 1
      %s180 = smul.addr %s179, 2
      %s181 = smul.addr %s180, 8
      %s182 = scalar_lea.vmem %s0, %s181
      %p183 = pneg %p36
      %p184 = pneg %p33
      %p185 = scmp.lt.s32.totalorder %s15, 1
      %s186 = scalar_select %p185, %s15, 1
      %s187 = smul.addr %s186, 2
      %s188 = smul.addr %s187, 8
      %s189 = scalar_lea.vmem %s1, %s188
      %p190 = pneg %p62
      %p191 = pneg %p59
      %p192 = pneg %p83
      %p193 = pneg %p80
      %p194 = pneg %p104
      %p195 = pneg %p101
      %p196 = pneg %p130
      %p197 = pneg %p127
      %p198 = scmp.lt.s32.totalorder %s15, 1
      %s199 = scalar_select %p198, %s15, 1
      %s200 = smul.addr %s199, 8
      %s201 = scalar_lea.vmem %s4, %s200
      %p202 = scmp.lt.s32.totalorder %s15, 1
      %s203 = scalar_select %p202, %s15, 1
      %s204 = smul.addr %s203, 2
      %s205 = smul.addr %s204, 8
      %s206 = scalar_lea.vmem %s0, %s205
      %p207 = scmp.lt.s32.totalorder %s15, 1
      %s208 = scalar_select %p207, %s15, 1
      %s209 = smul.addr %s208, 2
      %s210 = smul.addr %s209, 8
      %s211 = scalar_lea.vmem %s1, %s210
      %p212 = scmp.lt.s32.totalorder %s15, 1
      %s213 = scalar_select %p212, %s15, 1
      %s214 = smul.addr %s213, 8
      %s215 = scalar_lea.vmem %s4, %s214
      %v216 = vld [vmem:[%s2] sm:$0xff]
      %v217 = vld [vmem:[%s3] sm:$0xff]
      %v218 = vld [vmem:[%s206] sm:$0xff]
      %v219 = vld [vmem:[%s206 + $0x8] sm:$0xf]
      %221 = vset.pattern.permute.xlu0 0
      %222 = vperm.xlu0 %221, %v217
      %v223 = vpop.permute.xlu0 %222
      %vm225 = vcmask 97280
      %v227 = vsel %vm225, %v216, 0
      %vm229 = vcmask 1043456
      %v231 = vsel %vm229, %v219, 0
      %233 = vmatprep.subr.mxu0 0.0
      %234 = vmatpush1.msra.mxu0 0.0
      %235 = vmatprep.subr.mxu0 0.0
      %236 = vmatpush1.msra.mxu0 0.0
      %237 = vmatprep.subr.mxu0 0.0
      %238 = vmatpush1.msra.mxu0 0.0
      %239 = vmatprep.subr.mxu0 0.0
      %240 = vmatpush1.msra.mxu0 0.0
      %241 = vmatprep.subr.mxu0 0.0
      %242 = vmatpush1.msra.mxu0 0.0
      %243 = vmatprep.subr.mxu0 0.0
      %244 = vmatpush1.msra.mxu0 0.0
      %245 = vmatprep.subr.mxu0 0.0
      %246 = vmatpush1.msra.mxu0 0.0
      %247 = vmatprep.subr.mxu0 0.0
      %248 = vmatpush1.msra.mxu0 0.0
      %249 = vmatprep.subr.mxu0 0.0
      %250 = vmatpush1.msra.mxu0 0.0
      %251 = vmatprep.subr.mxu0 0.0
      %252 = vmatpush1.msra.mxu0 0.0
      %253 = vmatprep.subr.mxu0 0.0
      %254 = vmatpush1.msra.mxu0 0.0
      %255 = vmatprep.subr.mxu0 0.0
      %256 = vmatpush1.msra.mxu0 0.0
      %257 = vmatprep.subr.mxu0 0.0
      %258 = vmatpush1.msra.mxu0 0.0
      %259 = vmatprep.subr.mxu0 0.0
      %260 = vmatpush1.msra.mxu0 0.0
      %261 = vmatprep.subr.mxu0 0.0
      %262 = vmatpush1.msra.mxu0 %v231
      %263 = vmatprep.subr.mxu0 0.0
      %264 = vmatpush1.msra.mxu0 %v218
      %265 = vmatprep.subr.mxu0 0.0
      %266 = vmatpush2.msra.mxu0 0.0
      %267 = vmatprep.subr.mxu0 0.0
      %268 = vmatpush2.msra.mxu0 0.0
      %269 = vmatprep.subr.mxu0 0.0
      %270 = vmatpush2.msra.mxu0 0.0
      %271 = vmatprep.subr.mxu0 0.0
      %272 = vmatpush2.msra.mxu0 0.0
      %273 = vmatprep.subr.mxu0 0.0
      %274 = vmatpush2.msra.mxu0 0.0
      %275 = vmatprep.subr.mxu0 0.0
      %276 = vmatpush2.msra.mxu0 0.0
      %277 = vmatprep.subr.mxu0 0.0
      %278 = vmatpush2.msra.mxu0 0.0
      %279 = vmatprep.subr.mxu0 0.0
      %280 = vmatpush2.msra.mxu0 0.0
      %281 = vmatprep.subr.mxu0 0.0
      %282 = vmatpush2.msra.mxu0 0.0
      %283 = vmatprep.subr.mxu0 0.0
      %284 = vmatpush2.msra.mxu0 0.0
      %285 = vmatprep.subr.mxu0 0.0
      %286 = vmatpush2.msra.mxu0 0.0
      %287 = vmatprep.subr.mxu0 0.0
      %288 = vmatpush2.msra.mxu0 0.0
      %289 = vmatprep.subr.mxu0 0.0
      %290 = vmatpush2.msra.mxu0 0.0
      %291 = vmatprep.subr.mxu0 0.0
      %292 = vmatpush2.msra.mxu0 0.0
      %293 = vmatprep.subr.mxu0 0.0
      %294 = vmatpush2.msra.mxu0 0.0
      %295 = vmatprep.subr.mxu0 0.0
      %296 = vmatpush2.msra.mxu0 0.0
      %297 = vmatprep.mubr.f32.mxu0 0.0
      %298 = vmatmul.mubr.f32.gmra.mxu0 %v227
      %v299 = vpop.f32.mrf.mxu0
      %v300 = vadd.f32 %v223, %v299
      %v301 = vpop.f32.mrf.mxu0
      %302 = vdwg.mxu0
      %v303 = vld [vmem:[%s211] sm:$0xff]
      %v304 = vld [vmem:[%s211 + $0x8] sm:$0xf]
      %v306 = vsel %vm229, %v304, 0
      %308 = vmatprep.subr.mxu0 0.0
      %309 = vmatpush1.msra.mxu0 0.0
      %310 = vmatprep.subr.mxu0 0.0
      %311 = vmatpush1.msra.mxu0 0.0
      %312 = vmatprep.subr.mxu0 0.0
      %313 = vmatpush1.msra.mxu0 0.0
      %314 = vmatprep.subr.mxu0 0.0
      %315 = vmatpush1.msra.mxu0 0.0
      %316 = vmatprep.subr.mxu0 0.0
      %317 = vmatpush1.msra.mxu0 0.0
      %318 = vmatprep.subr.mxu0 0.0
      %319 = vmatpush1.msra.mxu0 0.0
      %320 = vmatprep.subr.mxu0 0.0
      %321 = vmatpush1.msra.mxu0 0.0
      %322 = vmatprep.subr.mxu0 0.0
      %323 = vmatpush1.msra.mxu0 0.0
      %324 = vmatprep.subr.mxu0 0.0
      %325 = vmatpush1.msra.mxu0 0.0
      %326 = vmatprep.subr.mxu0 0.0
      %327 = vmatpush1.msra.mxu0 0.0
      %328 = vmatprep.subr.mxu0 0.0
      %329 = vmatpush1.msra.mxu0 0.0
      %330 = vmatprep.subr.mxu0 0.0
      %331 = vmatpush1.msra.mxu0 0.0
      %332 = vmatprep.subr.mxu0 0.0
      %333 = vmatpush1.msra.mxu0 0.0
      %334 = vmatprep.subr.mxu0 0.0
      %335 = vmatpush1.msra.mxu0 0.0
      %336 = vmatprep.subr.mxu0 0.0
      %337 = vmatpush1.msra.mxu0 %v306
      %338 = vmatprep.subr.mxu0 0.0
      %339 = vmatpush1.msra.mxu0 %v303
      %340 = vmatprep.subr.mxu0 0.0
      %341 = vmatpush2.msra.mxu0 0.0
      %342 = vmatprep.subr.mxu0 0.0
      %343 = vmatpush2.msra.mxu0 0.0
      %344 = vmatprep.subr.mxu0 0.0
      %345 = vmatpush2.msra.mxu0 0.0
      %346 = vmatprep.subr.mxu0 0.0
      %347 = vmatpush2.msra.mxu0 0.0
      %348 = vmatprep.subr.mxu0 0.0
      %349 = vmatpush2.msra.mxu0 0.0
      %350 = vmatprep.subr.mxu0 0.0
      %351 = vmatpush2.msra.mxu0 0.0
      %352 = vmatprep.subr.mxu0 0.0
      %353 = vmatpush2.msra.mxu0 0.0
      %354 = vmatprep.subr.mxu0 0.0
      %355 = vmatpush2.msra.mxu0 0.0
      %356 = vmatprep.subr.mxu0 0.0
      %357 = vmatpush2.msra.mxu0 0.0
      %358 = vmatprep.subr.mxu0 0.0
      %359 = vmatpush2.msra.mxu0 0.0
      %360 = vmatprep.subr.mxu0 0.0
      %361 = vmatpush2.msra.mxu0 0.0
      %362 = vmatprep.subr.mxu0 0.0
      %363 = vmatpush2.msra.mxu0 0.0
      %364 = vmatprep.subr.mxu0 0.0
      %365 = vmatpush2.msra.mxu0 0.0
      %366 = vmatprep.subr.mxu0 0.0
      %367 = vmatpush2.msra.mxu0 0.0
      %368 = vmatprep.subr.mxu0 0.0
      %369 = vmatpush2.msra.mxu0 0.0
      %370 = vmatprep.subr.mxu0 0.0
      %371 = vmatpush2.msra.mxu0 0.0
      %372 = vmatprep.mubr.f32.mxu0 0.0
      %373 = vmatmul.mubr.f32.gmra.mxu0 %v227
      %v374 = vpop.f32.mrf.mxu0
      %v375 = vadd.f32 %v223, %v374
      %v376 = vpop.f32.mrf.mxu0
      %377 = vdwg.mxu0
      %vm378 = vcmp.gt.f32.partialorder %v300, 0.0
      %v379 = vmin.f32 %v300, 0.0
      %v380 = vmul.f32 %v379, 1.442695
      %v381 = vpow.pop %v380
      %v382 = vsub.f32 %v381, 1.0
      %v383 = vsel %vm378, %v300, %v382
      %vm384 = vcmp.gt.f32.partialorder %v375, 0.0
      %v385 = vmin.f32 %v375, 0.0
      %v386 = vmul.f32 %v385, 1.442695
      %v387 = vpow.pop %v386
      %v388 = vsub.f32 %v387, 1.0
      %v389 = vsel %vm384, %v375, %v388
      %v390 = vadd.f32 %v383, %v389
      %v391 = vmul.f32 %v390, 0.5
      %vm392 = vcmask 818176
      %393 = vst.msk [vmem:[%s215] sm:$0xff] %vm392, %v391
      %p394 = scmp.lt.s32.totalorder %s15, 1
      %s395 = scalar_select %p394, %s15, 1
      %s396 = smul.addr %s395, 8
      %s397 = scalar_lea.vmem %s4, %s396
      // Predicated region
      $region37: #{one_c_one_t_one_f.2} parent=35 // pred_check
        %p398 = pneg %p127
      $region38: #{one_c_one_t_one_f.2} parent=35 // pred_check_branch
        %400 = sbr.rel (%p398) target = $region40
      $region39: #{one_c_one_t_one_f.2} parent=35 // pred_region
        _
      $region40: #{one_c_one_t_one_f.2} parent=35 // pred_fallthru
        _
    $region36: #{one_c_one_t_one_f.2} parent=5 // pred_fallthru
      _
    %p401 = scmp.le.s32.totalorder 2, %s10
    // Predicated region
    $region41: #{one_c_one_t_one_f.2} parent=5 // pred_check
      %p402 = pneg %p401
    $region42: #{one_c_one_t_one_f.2} parent=5 // pred_check_branch
      %404 = sbr.rel (%p402) target = $region44
    $region43: #{one_c_one_t_one_f.2} parent=5 // pred_region
      %s405 = ssub.s32 %s10, 2
      // Predicated region
      $region45: #{one_c_one_t_one_f.2} parent=43 // pred_check
        %p406 = pneg %p133
      $region46: #{one_c_one_t_one_f.2} parent=43 // pred_check_branch
        %408 = sbr.rel (%p406) target = $region48
      $region47: #{one_c_one_t_one_f.2} parent=43 // pred_region
        %p409 = scmp.lt.s32.totalorder %s16, 1
        %s410 = scalar_select %p409, %s16, 1
        %s411 = smul.addr %s410, 8
        %s412 = scalar_lea.vmem %s4, %s411
      $region48: #{one_c_one_t_one_f.2} parent=43 // pred_fallthru
        _
    $region44: #{one_c_one_t_one_f.2} parent=5 // pred_fallthru
      _
  $region6: #{one_c_one_t_one_f.2} parent=0 // loop_footer
    %s14 = sadd.s32 1, %s10
  $region7: #{one_c_one_t_one_f.2} parent=0 // loop_footer_branch
    %9 = sbr.rel target = $region3
  $region8: #{one_c_one_t_one_f.2} parent=0 // loop_exit
    _

// kernel: one_c_one_t_one_f.3
$region0: #{one_c_one_t_one_f.3}
  #allocation0 [shape = 'u32[]', space=smem, size = 0x4, offset = 0x4, fixed_abs, tag = 'smem constant byte address 0x4 - core index']
  #allocation1 [shape = 'u32[144,128]{1,0:T(1,128)}', space=vmem, size = 0x12000, scoped, tag = 'internal scratch']
  %s0 = inlined_call_operand.vmem [shape: f32[2,100,8], index: 0, kind: input, shape index: {}]
  %s1 = inlined_call_operand.vmem [shape: f32[100,8], index: 1, kind: input, shape index: {}]
  %s2 = inlined_call_operand.vmem [shape: f32[24,8], index: 2, kind: input, shape index: {}]
  %s3 = inlined_call_operand.vmem [shape: f32[1,24], index: 3, kind: input, shape index: {}]
  %s4 = inlined_call_operand.vmem [shape: f32[8,8], index: 4, kind: input, shape index: {}]
  %s5 = inlined_call_operand.vmem [shape: f32[1,8], index: 5, kind: input, shape index: {}]
  %s6 = inlined_call_operand.vmem [shape: f32[4,8], index: 6, kind: input, shape index: {}]
  %s7 = inlined_call_operand.vmem [shape: f32[800,8], index: 7, kind: input, shape index: {}]
  %s8 = inlined_call_operand.vmem [shape: f32[1,800], index: 8, kind: input, shape index: {}]
  %s9 = inlined_call_operand.vmem [shape: f32[8,800], index: 9, kind: input, shape index: {}]
  %s10 = inlined_call_operand.vmem [shape: f32[1,8], index: 10, kind: input, shape index: {}]
  %s11 = inlined_call_operand.vmem [shape: f32[2,12,100,8], index: 11, kind: input, shape index: {}]
  %s12 = inlined_call_operand.vmem [shape: f32[2,12,1], index: 12, kind: output, shape index: {}]
  %s13 = sld [smem:[#allocation0]]
  $region81: #{one_c_one_t_one_f.3} parent=0
    _
  %s15 = ssub.s32 1, %s13
  %s16 = scalar_select 0, %s15, %s13
  loop: start=0, step=1, limit=4
  $region2: #{one_c_one_t_one_f.3} parent=0 // loop_pre_header
    _
  $region3: #{one_c_one_t_one_f.3} parent=0 // loop_header
    %s18 = sphi 0, %s22
    %p19 = scmp.ge.s32.totalorder %s18, 4
    %s28 = sphi 0, %s30
    %s31 = sphi 0, %s28
    %s32 = sphi 0, %s31
    %s48 = sphi 0, %s32
    %s52 = sphi 0, %s52
    %s54 = sphi 0, %s52
    %s55 = sphi 0, %s54
    %s69 = sphi 0, %s55
    %s73 = sphi 0, %s73
    %s75 = sphi 0, %s73
    %s76 = sphi 0, %s75
    %s90 = sphi 0, %s76
    %s94 = sphi 0, %s94
    %s96 = sphi 0, %s94
    %s97 = sphi 0, %s96
    %s111 = sphi 0, %s97
    %s115 = sphi 0, %s115
    %s117 = sphi 0, %s115
    %s118 = sphi 0, %s117
    %s132 = sphi 0, %s118
    %s136 = sphi 0, %s136
    %s138 = sphi 0, %s136
    %s139 = sphi 0, %s138
    %s153 = sphi 0, %s139
    %s157 = sphi 0, %s157
    %s159 = sphi 0, %s157
    %s160 = sphi 0, %s159
    %s174 = sphi 0, %s160
    %s178 = sphi 0, %s178
    %s180 = sphi 0, %s178
    %s181 = sphi 0, %s180
    %s195 = sphi 0, %s181
    %s199 = sphi 0, %s199
    %s201 = sphi 0, %s199
    %s202 = sphi 0, %s201
    %s216 = sphi 0, %s202
    %s220 = sphi 0, %s220
    %s222 = sphi 0, %s220
    %s223 = sphi 0, %s222
    %s237 = sphi 0, %s223
    %s241 = sphi 0, %s241
    %s243 = sphi 0, %s241
    %s244 = sphi 0, %s243
    %s258 = sphi 0, %s244
    %s264 = sphi 0, %s266
    %s267 = sphi 0, %s264
    %s268 = sphi 0, %s267
    %s284 = sphi 0, %s268
    %s290 = sphi 0, %s292
    %s293 = sphi 0, %s290
    %s294 = sphi 0, %s293
    %s310 = sphi 0, %s294
  $region4: #{one_c_one_t_one_f.3} parent=0 // loop_header_branch
    %21 = sbr.rel (%p19) target = $region8
  $region5: #{one_c_one_t_one_f.3} parent=0 // loop_body
    %s23 = ssub.s32 %s18, 1
    %s24 = ssub.s32 %s18, 2
    %s25 = sadd.s32 %s18, 1
    %s26 = ssub.s32 %s18, %s25
    %p27 = scmp.eq.s32.totalorder %s26, 0
    %s29 = sadd.s32 %s28, 1
    %s30 = scalar_select %p27, %s28, %s29
    %p33 = pneg %p27
    %p34 = scmp.eq.s32.totalorder %s18, 1
    %p35 = por %p33, %p34
    %p36 = scmp.ne.s32.totalorder %s28, %s31
    %p37 = scmp.eq.s32.totalorder %s18, 0
    %p38 = por %p36, %p37
    %p39 = scmp.ne.s32.totalorder %s28, %s31
    %p40 = scmp.eq.s32.totalorder %s23, 1
    %p41 = por %p39, %p40
    %p42 = scmp.ne.s32.totalorder %s31, %s32
    %p43 = scmp.eq.s32.totalorder %s23, 0
    %p44 = por %p42, %p43
    %p45 = scmp.ne.s32.totalorder %s31, %s32
    %p46 = scmp.eq.s32.totalorder %s24, 1
    %p47 = por %p45, %p46
    %p49 = scmp.ne.s32.totalorder %s32, %s48
    %p50 = scmp.eq.s32.totalorder %s24, 0
    %p51 = por %p49, %p50
    %s53 = sadd.s32 %s52, 1
    %p56 = scmp.eq.s32.totalorder %s18, 1
    %p57 = scmp.ne.s32.totalorder %s52, %s54
    %p58 = scmp.eq.s32.totalorder %s18, 0
    %p59 = por %p57, %p58
    %p60 = scmp.ne.s32.totalorder %s52, %s54
    %p61 = scmp.eq.s32.totalorder %s23, 1
    %p62 = por %p60, %p61
    %p63 = scmp.ne.s32.totalorder %s54, %s55
    %p64 = scmp.eq.s32.totalorder %s23, 0
    %p65 = por %p63, %p64
    %p66 = scmp.ne.s32.totalorder %s54, %s55
    %p67 = scmp.eq.s32.totalorder %s24, 1
    %p68 = por %p66, %p67
    %p70 = scmp.ne.s32.totalorder %s55, %s69
    %p71 = scmp.eq.s32.totalorder %s24, 0
    %p72 = por %p70, %p71
    %s74 = sadd.s32 %s73, 1
    %p77 = scmp.eq.s32.totalorder %s18, 1
    %p78 = scmp.ne.s32.totalorder %s73, %s75
    %p79 = scmp.eq.s32.totalorder %s18, 0
    %p80 = por %p78, %p79
    %p81 = scmp.ne.s32.totalorder %s73, %s75
    %p82 = scmp.eq.s32.totalorder %s23, 1
    %p83 = por %p81, %p82
    %p84 = scmp.ne.s32.totalorder %s75, %s76
    %p85 = scmp.eq.s32.totalorder %s23, 0
    %p86 = por %p84, %p85
    %p87 = scmp.ne.s32.totalorder %s75, %s76
    %p88 = scmp.eq.s32.totalorder %s24, 1
    %p89 = por %p87, %p88
    %p91 = scmp.ne.s32.totalorder %s76, %s90
    %p92 = scmp.eq.s32.totalorder %s24, 0
    %p93 = por %p91, %p92
    %s95 = sadd.s32 %s94, 1
    %p98 = scmp.eq.s32.totalorder %s18, 1
    %p99 = scmp.ne.s32.totalorder %s94, %s96
    %p100 = scmp.eq.s32.totalorder %s18, 0
    %p101 = por %p99, %p100
    %p102 = scmp.ne.s32.totalorder %s94, %s96
    %p103 = scmp.eq.s32.totalorder %s23, 1
    %p104 = por %p102, %p103
    %p105 = scmp.ne.s32.totalorder %s96, %s97
    %p106 = scmp.eq.s32.totalorder %s23, 0
    %p107 = por %p105, %p106
    %p108 = scmp.ne.s32.totalorder %s96, %s97
    %p109 = scmp.eq.s32.totalorder %s24, 1
    %p110 = por %p108, %p109
    %p112 = scmp.ne.s32.totalorder %s97, %s111
    %p113 = scmp.eq.s32.totalorder %s24, 0
    %p114 = por %p112, %p113
    %s116 = sadd.s32 %s115, 1
    %p119 = scmp.eq.s32.totalorder %s18, 1
    %p120 = scmp.ne.s32.totalorder %s115, %s117
    %p121 = scmp.eq.s32.totalorder %s18, 0
    %p122 = por %p120, %p121
    %p123 = scmp.ne.s32.totalorder %s115, %s117
    %p124 = scmp.eq.s32.totalorder %s23, 1
    %p125 = por %p123, %p124
    %p126 = scmp.ne.s32.totalorder %s117, %s118
    %p127 = scmp.eq.s32.totalorder %s23, 0
    %p128 = por %p126, %p127
    %p129 = scmp.ne.s32.totalorder %s117, %s118
    %p130 = scmp.eq.s32.totalorder %s24, 1
    %p131 = por %p129, %p130
    %p133 = scmp.ne.s32.totalorder %s118, %s132
    %p134 = scmp.eq.s32.totalorder %s24, 0
    %p135 = por %p133, %p134
    %s137 = sadd.s32 %s136, 1
    %p140 = scmp.eq.s32.totalorder %s18, 1
    %p141 = scmp.ne.s32.totalorder %s136, %s138
    %p142 = scmp.eq.s32.totalorder %s18, 0
    %p143 = por %p141, %p142
    %p144 = scmp.ne.s32.totalorder %s136, %s138
    %p145 = scmp.eq.s32.totalorder %s23, 1
    %p146 = por %p144, %p145
    %p147 = scmp.ne.s32.totalorder %s138, %s139
    %p148 = scmp.eq.s32.totalorder %s23, 0
    %p149 = por %p147, %p148
    %p150 = scmp.ne.s32.totalorder %s138, %s139
    %p151 = scmp.eq.s32.totalorder %s24, 1
    %p152 = por %p150, %p151
    %p154 = scmp.ne.s32.totalorder %s139, %s153
    %p155 = scmp.eq.s32.totalorder %s24, 0
    %p156 = por %p154, %p155
    %s158 = sadd.s32 %s157, 1
    %p161 = scmp.eq.s32.totalorder %s18, 1
    %p162 = scmp.ne.s32.totalorder %s157, %s159
    %p163 = scmp.eq.s32.totalorder %s18, 0
    %p164 = por %p162, %p163
    %p165 = scmp.ne.s32.totalorder %s157, %s159
    %p166 = scmp.eq.s32.totalorder %s23, 1
    %p167 = por %p165, %p166
    %p168 = scmp.ne.s32.totalorder %s159, %s160
    %p169 = scmp.eq.s32.totalorder %s23, 0
    %p170 = por %p168, %p169
    %p171 = scmp.ne.s32.totalorder %s159, %s160
    %p172 = scmp.eq.s32.totalorder %s24, 1
    %p173 = por %p171, %p172
    %p175 = scmp.ne.s32.totalorder %s160, %s174
    %p176 = scmp.eq.s32.totalorder %s24, 0
    %p177 = por %p175, %p176
    %s179 = sadd.s32 %s178, 1
    %p182 = scmp.eq.s32.totalorder %s18, 1
    %p183 = scmp.ne.s32.totalorder %s178, %s180
    %p184 = scmp.eq.s32.totalorder %s18, 0
    %p185 = por %p183, %p184
    %p186 = scmp.ne.s32.totalorder %s178, %s180
    %p187 = scmp.eq.s32.totalorder %s23, 1
    %p188 = por %p186, %p187
    %p189 = scmp.ne.s32.totalorder %s180, %s181
    %p190 = scmp.eq.s32.totalorder %s23, 0
    %p191 = por %p189, %p190
    %p192 = scmp.ne.s32.totalorder %s180, %s181
    %p193 = scmp.eq.s32.totalorder %s24, 1
    %p194 = por %p192, %p193
    %p196 = scmp.ne.s32.totalorder %s181, %s195
    %p197 = scmp.eq.s32.totalorder %s24, 0
    %p198 = por %p196, %p197
    %s200 = sadd.s32 %s199, 1
    %p203 = scmp.eq.s32.totalorder %s18, 1
    %p204 = scmp.ne.s32.totalorder %s199, %s201
    %p205 = scmp.eq.s32.totalorder %s18, 0
    %p206 = por %p204, %p205
    %p207 = scmp.ne.s32.totalorder %s199, %s201
    %p208 = scmp.eq.s32.totalorder %s23, 1
    %p209 = por %p207, %p208
    %p210 = scmp.ne.s32.totalorder %s201, %s202
    %p211 = scmp.eq.s32.totalorder %s23, 0
    %p212 = por %p210, %p211
    %p213 = scmp.ne.s32.totalorder %s201, %s202
    %p214 = scmp.eq.s32.totalorder %s24, 1
    %p215 = por %p213, %p214
    %p217 = scmp.ne.s32.totalorder %s202, %s216
    %p218 = scmp.eq.s32.totalorder %s24, 0
    %p219 = por %p217, %p218
    %s221 = sadd.s32 %s220, 1
    %p224 = scmp.eq.s32.totalorder %s18, 1
    %p225 = scmp.ne.s32.totalorder %s220, %s222
    %p226 = scmp.eq.s32.totalorder %s18, 0
    %p227 = por %p225, %p226
    %p228 = scmp.ne.s32.totalorder %s220, %s222
    %p229 = scmp.eq.s32.totalorder %s23, 1
    %p230 = por %p228, %p229
    %p231 = scmp.ne.s32.totalorder %s222, %s223
    %p232 = scmp.eq.s32.totalorder %s23, 0
    %p233 = por %p231, %p232
    %p234 = scmp.ne.s32.totalorder %s222, %s223
    %p235 = scmp.eq.s32.totalorder %s24, 1
    %p236 = por %p234, %p235
    %p238 = scmp.ne.s32.totalorder %s223, %s237
    %p239 = scmp.eq.s32.totalorder %s24, 0
    %p240 = por %p238, %p239
    %s242 = sadd.s32 %s241, 1
    %p245 = scmp.eq.s32.totalorder %s18, 1
    %p246 = scmp.ne.s32.totalorder %s241, %s243
    %p247 = scmp.eq.s32.totalorder %s18, 0
    %p248 = por %p246, %p247
    %p249 = scmp.ne.s32.totalorder %s241, %s243
    %p250 = scmp.eq.s32.totalorder %s23, 1
    %p251 = por %p249, %p250
    %p252 = scmp.ne.s32.totalorder %s243, %s244
    %p253 = scmp.eq.s32.totalorder %s23, 0
    %p254 = por %p252, %p253
    %p255 = scmp.ne.s32.totalorder %s243, %s244
    %p256 = scmp.eq.s32.totalorder %s24, 1
    %p257 = por %p255, %p256
    %p259 = scmp.ne.s32.totalorder %s244, %s258
    %p260 = scmp.eq.s32.totalorder %s24, 0
    %p261 = por %p259, %p260
    %s262 = ssub.s32 %s18, %s25
    %p263 = scmp.eq.s32.totalorder %s262, 0
    %s265 = sadd.s32 %s264, 1
    %s266 = scalar_select %p263, %s264, %s265
    %p269 = pneg %p263
    %p270 = scmp.eq.s32.totalorder %s18, 1
    %p271 = por %p269, %p270
    %p272 = scmp.ne.s32.totalorder %s264, %s267
    %p273 = scmp.eq.s32.totalorder %s18, 0
    %p274 = por %p272, %p273
    %p275 = scmp.ne.s32.totalorder %s264, %s267
    %p276 = scmp.eq.s32.totalorder %s23, 1
    %p277 = por %p275, %p276
    %p278 = scmp.ne.s32.totalorder %s267, %s268
    %p279 = scmp.eq.s32.totalorder %s23, 0
    %p280 = por %p278, %p279
    %p281 = scmp.ne.s32.totalorder %s267, %s268
    %p282 = scmp.eq.s32.totalorder %s24, 1
    %p283 = por %p281, %p282
    %p285 = scmp.ne.s32.totalorder %s268, %s284
    %p286 = scmp.eq.s32.totalorder %s24, 0
    %p287 = por %p285, %p286
    %s288 = ssub.s32 %s18, %s25
    %p289 = scmp.eq.s32.totalorder %s288, 0
    %s291 = sadd.s32 %s290, 1
    %s292 = scalar_select %p289, %s290, %s291
    %p295 = pneg %p289
    %p296 = scmp.eq.s32.totalorder %s18, 1
    %p297 = por %p295, %p296
    %p298 = scmp.ne.s32.totalorder %s290, %s293
    %p299 = scmp.eq.s32.totalorder %s18, 0
    %p300 = por %p298, %p299
    %p301 = scmp.ne.s32.totalorder %s290, %s293
    %p302 = scmp.eq.s32.totalorder %s23, 1
    %p303 = por %p301, %p302
    %p304 = scmp.ne.s32.totalorder %s293, %s294
    %p305 = scmp.eq.s32.totalorder %s23, 0
    %p306 = por %p304, %p305
    %p307 = scmp.ne.s32.totalorder %s293, %s294
    %p308 = scmp.eq.s32.totalorder %s24, 1
    %p309 = por %p307, %p308
    %p311 = scmp.ne.s32.totalorder %s294, %s310
    %p312 = scmp.eq.s32.totalorder %s24, 0
    %p313 = por %p311, %p312
    %p314 = scmp.le.s32.totalorder 1, %s18
    %p315 = scmp.lt.s32.totalorder %s18, 3
    %p316 = pnand %p314, %p315
    %p317 = pneg %p316
    // Predicated region
    $region9: #{one_c_one_t_one_f.3} parent=5 // pred_check
      _
    $region10: #{one_c_one_t_one_f.3} parent=5 // pred_check_branch
      %319 = sbr.rel (%p316) target = $region12
    $region11: #{one_c_one_t_one_f.3} parent=5 // pred_region
      %s320 = ssub.s32 %s18, 1
      // Predicated region
      $region13: #{one_c_one_t_one_f.3} parent=11 // pred_check
        %p321 = pneg %p65
      $region14: #{one_c_one_t_one_f.3} parent=11 // pred_check_branch
        %323 = sbr.rel (%p321) target = $region16
      $region15: #{one_c_one_t_one_f.3} parent=11 // pred_region
        _
      $region16: #{one_c_one_t_one_f.3} parent=11 // pred_fallthru
        _
      // Predicated region
      $region17: #{one_c_one_t_one_f.3} parent=11 // pred_check
        %p324 = pneg %p86
      $region18: #{one_c_one_t_one_f.3} parent=11 // pred_check_branch
        %326 = sbr.rel (%p324) target = $region20
      $region19: #{one_c_one_t_one_f.3} parent=11 // pred_region
        _
      $region20: #{one_c_one_t_one_f.3} parent=11 // pred_fallthru
        _
      // Predicated region
      $region21: #{one_c_one_t_one_f.3} parent=11 // pred_check
        %p327 = pneg %p107
      $region22: #{one_c_one_t_one_f.3} parent=11 // pred_check_branch
        %329 = sbr.rel (%p327) target = $region24
      $region23: #{one_c_one_t_one_f.3} parent=11 // pred_region
        _
      $region24: #{one_c_one_t_one_f.3} parent=11 // pred_fallthru
        _
      // Predicated region
      $region25: #{one_c_one_t_one_f.3} parent=11 // pred_check
        %p330 = pneg %p128
      $region26: #{one_c_one_t_one_f.3} parent=11 // pred_check_branch
        %332 = sbr.rel (%p330) target = $region28
      $region27: #{one_c_one_t_one_f.3} parent=11 // pred_region
        _
      $region28: #{one_c_one_t_one_f.3} parent=11 // pred_fallthru
        _
      // Predicated region
      $region29: #{one_c_one_t_one_f.3} parent=11 // pred_check
        %p333 = pneg %p149
      $region30: #{one_c_one_t_one_f.3} parent=11 // pred_check_branch
        %335 = sbr.rel (%p333) target = $region32
      $region31: #{one_c_one_t_one_f.3} parent=11 // pred_region
        _
      $region32: #{one_c_one_t_one_f.3} parent=11 // pred_fallthru
        _
      // Predicated region
      $region33: #{one_c_one_t_one_f.3} parent=11 // pred_check
        %p336 = pneg %p170
      $region34: #{one_c_one_t_one_f.3} parent=11 // pred_check_branch
        %338 = sbr.rel (%p336) target = $region36
      $region35: #{one_c_one_t_one_f.3} parent=11 // pred_region
        _
      $region36: #{one_c_one_t_one_f.3} parent=11 // pred_fallthru
        _
      // Predicated region
      $region37: #{one_c_one_t_one_f.3} parent=11 // pred_check
        %p339 = pneg %p191
      $region38: #{one_c_one_t_one_f.3} parent=11 // pred_check_branch
        %341 = sbr.rel (%p339) target = $region40
      $region39: #{one_c_one_t_one_f.3} parent=11 // pred_region
        _
      $region40: #{one_c_one_t_one_f.3} parent=11 // pred_fallthru
        _
      // Predicated region
      $region41: #{one_c_one_t_one_f.3} parent=11 // pred_check
        %p342 = pneg %p212
      $region42: #{one_c_one_t_one_f.3} parent=11 // pred_check_branch
        %344 = sbr.rel (%p342) target = $region44
      $region43: #{one_c_one_t_one_f.3} parent=11 // pred_region
        _
      $region44: #{one_c_one_t_one_f.3} parent=11 // pred_fallthru
        _
      // Predicated region
      $region45: #{one_c_one_t_one_f.3} parent=11 // pred_check
        %p345 = pneg %p233
      $region46: #{one_c_one_t_one_f.3} parent=11 // pred_check_branch
        %347 = sbr.rel (%p345) target = $region48
      $region47: #{one_c_one_t_one_f.3} parent=11 // pred_region
        _
      $region48: #{one_c_one_t_one_f.3} parent=11 // pred_fallthru
        _
      // Predicated region
      $region49: #{one_c_one_t_one_f.3} parent=11 // pred_check
        %p348 = pneg %p254
      $region50: #{one_c_one_t_one_f.3} parent=11 // pred_check_branch
        %350 = sbr.rel (%p348) target = $region52
      $region51: #{one_c_one_t_one_f.3} parent=11 // pred_region
        _
      $region52: #{one_c_one_t_one_f.3} parent=11 // pred_fallthru
        _
    $region12: #{one_c_one_t_one_f.3} parent=5 // pred_fallthru
      _
    %p351 = scmp.lt.s32.totalorder %s18, 2
    // Predicated region
    $region53: #{one_c_one_t_one_f.3} parent=5 // pred_check
      %p352 = pneg %p351
    $region54: #{one_c_one_t_one_f.3} parent=5 // pred_check_branch
      %354 = sbr.rel (%p352) target = $region56
    $region55: #{one_c_one_t_one_f.3} parent=5 // pred_region
      // Predicated region
      $region57: #{one_c_one_t_one_f.3} parent=55 // pred_check
        %p355 = pneg %p38
      $region58: #{one_c_one_t_one_f.3} parent=55 // pred_check_branch
        %357 = sbr.rel (%p355) target = $region60
      $region59: #{one_c_one_t_one_f.3} parent=55 // pred_region
        %p358 = scmp.lt.s32.totalorder %s18, 1
        %s359 = scalar_select %p358, %s18, 1
        %s360 = smul.addr %s359, 13
        %s361 = smul.addr %s360, 8
        %s362 = scalar_lea.vmem %s0, %s361
      $region60: #{one_c_one_t_one_f.3} parent=55 // pred_fallthru
        _
      // Predicated region
      $region61: #{one_c_one_t_one_f.3} parent=55 // pred_check
        %p363 = pneg %p274
      $region62: #{one_c_one_t_one_f.3} parent=55 // pred_check_branch
        %365 = sbr.rel (%p363) target = $region64
      $region63: #{one_c_one_t_one_f.3} parent=55 // pred_region
        %p366 = scmp.lt.s32.totalorder %s18, 1
        %s367 = scalar_select %p366, %s18, 1
        %s368 = smul.addr %s367, 156
        %s369 = smul.addr %s368, 8
        %s370 = scalar_lea.vmem %s11, %s369
      $region64: #{one_c_one_t_one_f.3} parent=55 // pred_fallthru
        _
    $region56: #{one_c_one_t_one_f.3} parent=5 // pred_fallthru
      _
    %p371 = scmp.le.s32.totalorder 1, %s18
    %p372 = scmp.lt.s32.totalorder %s18, 3
    %p373 = pnand %p371, %p372
    %p374 = pneg %p373
    // Predicated region
    $region65: #{one_c_one_t_one_f.3} parent=5 // pred_check
      _
    $region66: #{one_c_one_t_one_f.3} parent=5 // pred_check_branch
      %376 = sbr.rel (%p373) target = $region68
    $region67: #{one_c_one_t_one_f.3} parent=5 // pred_region
      %s377 = ssub.s32 %s18, 1
      %p378 = scmp.lt.s32.totalorder %s23, 1
      %s379 = scalar_select %p378, %s23, 1
      %s380 = smul.addr %s379, 13
      %s381 = smul.addr %s380, 8
      %s382 = scalar_lea.vmem %s0, %s381
      %p383 = pneg %p44
      %p384 = pneg %p41
      %p385 = pneg %p65
      %p386 = pneg %p62
      %p387 = pneg %p86
      %p388 = pneg %p83
      %p389 = pneg %p107
      %p390 = pneg %p104
      %p391 = pneg %p128
      %p392 = pneg %p125
      %p393 = pneg %p149
      %p394 = pneg %p146
      %p395 = pneg %p170
      %p396 = pneg %p167
      %p397 = pneg %p191
      %p398 = pneg %p188
      %p399 = pneg %p212
      %p400 = pneg %p209
      %p401 = pneg %p233
      %p402 = pneg %p230
      %p403 = pneg %p254
      %p404 = pneg %p251
      %p405 = scmp.lt.s32.totalorder %s23, 1
      %s406 = scalar_select %p405, %s23, 1
      %s407 = smul.addr %s406, 156
      %s408 = smul.addr %s407, 8
      %s409 = scalar_lea.vmem %s11, %s408
      %p410 = pneg %p280
      %p411 = pneg %p277
      %p412 = pneg %p306
      %p413 = pneg %p303
      %p414 = scmp.lt.s32.totalorder %s23, 1
      %s415 = scalar_select %p414, %s23, 1
      %s416 = smul.addr %s415, 2
      %s417 = smul.addr %s416, 8
      %s418 = scalar_lea.vmem %s12, %s417
      %p419 = scmp.lt.s32.totalorder %s23, 1
      %s420 = scalar_select %p419, %s23, 1
      %s421 = smul.addr %s420, 13
      %s422 = smul.addr %s421, 8
      %s423 = scalar_lea.vmem %s0, %s422
      %p424 = scmp.lt.s32.totalorder %s23, 1
      %s425 = scalar_select %p424, %s23, 1
      %s426 = smul.addr %s425, 156
      %s427 = smul.addr %s426, 8
      %s428 = scalar_lea.vmem %s11, %s427
      %p429 = scmp.lt.s32.totalorder %s23, 1
      %s430 = scalar_select %p429, %s23, 1
      %s431 = smul.addr %s430, 2
      %s432 = smul.addr %s431, 8
      %s433 = scalar_lea.vmem %s12, %s432
      %v434 = vld [vmem:[%s423] sm:$0xff]
      %v435 = vld [vmem:[%s423 + $0x8] sm:$0xff]
      %v436 = vld [vmem:[%s423 + $0x10] sm:$0xff]
      %v437 = vld [vmem:[%s423 + $0x18] sm:$0xff]
      %v438 = vld [vmem:[%s423 + $0x20] sm:$0xff]
      %v439 = vld [vmem:[%s423 + $0x28] sm:$0xff]
      %v440 = vld [vmem:[%s423 + $0x30] sm:$0xff]
      %v441 = vld [vmem:[%s423 + $0x38] sm:$0xff]
      %v442 = vld [vmem:[%s423 + $0x40] sm:$0xff]
      %v443 = vld [vmem:[%s423 + $0x48] sm:$0xff]
      %v444 = vld [vmem:[%s423 + $0x50] sm:$0xff]
      %v445 = vld [vmem:[%s423 + $0x58] sm:$0xff]
      %v446 = vld [vmem:[%s423 + $0x60] sm:$0xf]
      %v447 = vld [vmem:[%s1] sm:$0xff]
      %v448 = vld [vmem:[%s1 + $0x8] sm:$0xff]
      %v449 = vld [vmem:[%s1 + $0x10] sm:$0xff]
      %v450 = vld [vmem:[%s1 + $0x18] sm:$0xff]
      %v451 = vld [vmem:[%s1 + $0x20] sm:$0xff]
      %v452 = vld [vmem:[%s1 + $0x28] sm:$0xff]
      %v453 = vld [vmem:[%s1 + $0x30] sm:$0xff]
      %v454 = vld [vmem:[%s1 + $0x38] sm:$0xff]
      %v455 = vld [vmem:[%s1 + $0x40] sm:$0xff]
      %v456 = vld [vmem:[%s1 + $0x48] sm:$0xff]
      %v457 = vld [vmem:[%s1 + $0x50] sm:$0xff]
      %v458 = vld [vmem:[%s1 + $0x58] sm:$0xff]
      %v459 = vld [vmem:[%s1 + $0x60] sm:$0xf]
      %v460 = vadd.f32 %v434, %v447
      %v461 = vadd.f32 %v435, %v448
      %v462 = vadd.f32 %v436, %v449
      %v463 = vadd.f32 %v437, %v450
      %v464 = vadd.f32 %v438, %v451
      %v465 = vadd.f32 %v439, %v452
      %v466 = vadd.f32 %v440, %v453
      %v467 = vadd.f32 %v441, %v454
      %v468 = vadd.f32 %v442, %v455
      %v469 = vadd.f32 %v443, %v456
      %v470 = vadd.f32 %v444, %v457
      %v471 = vadd.f32 %v445, %v458
      %v472 = vadd.f32 %v446, %v459
      %v473 = vld [vmem:[%s2] sm:$0xff]
      %v474 = vld [vmem:[%s2 + $0x8] sm:$0xff]
      %v475 = vld [vmem:[%s2 + $0x10] sm:$0xff]
      %v476 = vld [vmem:[%s3] sm:$0x1]
      %v478 = vlaneseq
      %v479 = vshrl.u32 %v478, 7
      %v480 = vsub.s32 0, %v479
      %v481 = vrot.slane %v476, %v480
      %vm483 = vcmask 64512
      %v485 = vsel %vm483, %v460, 0
      %v488 = vsel %vm483, %v461, 0
      %v491 = vsel %vm483, %v462, 0
      %v494 = vsel %vm483, %v463, 0
      %v497 = vsel %vm483, %v464, 0
      %v500 = vsel %vm483, %v465, 0
      %v503 = vsel %vm483, %v466, 0
      %v506 = vsel %vm483, %v467, 0
      %v509 = vsel %vm483, %v468, 0
      %v512 = vsel %vm483, %v469, 0
      %v515 = vsel %vm483, %v470, 0
      %v518 = vsel %vm483, %v471, 0
      %v521 = vsel %vm483, %v472, 0
      %v524 = vsel %vm483, %v473, 0
      %v527 = vsel %vm483, %v474, 0
      %v530 = vsel %vm483, %v475, 0
      %532 = vmatprep.subr.mxu0 0.0
      %533 = vmatpush1.xpose.msra.mxu0 0.0
      %534 = vmatprep.subr.mxu0 0.0
      %535 = vmatpush1.xpose.msra.mxu0 0.0
      %536 = vmatprep.subr.mxu0 0.0
      %537 = vmatpush1.xpose.msra.mxu0 0.0
      %538 = vmatprep.subr.mxu0 0.0
      %539 = vmatpush1.xpose.msra.mxu0 0.0
      %540 = vmatprep.subr.mxu0 0.0
      %541 = vmatpush1.xpose.msra.mxu0 0.0
      %542 = vmatprep.subr.mxu0 0.0
      %543 = vmatpush1.xpose.msra.mxu0 0.0
      %544 = vmatprep.subr.mxu0 0.0
      %545 = vmatpush1.xpose.msra.mxu0 0.0
      %546 = vmatprep.subr.mxu0 0.0
      %547 = vmatpush1.xpose.msra.mxu0 0.0
      %548 = vmatprep.subr.mxu0 0.0
      %549 = vmatpush1.xpose.msra.mxu0 0.0
      %550 = vmatprep.subr.mxu0 0.0
      %551 = vmatpush1.xpose.msra.mxu0 0.0
      %552 = vmatprep.subr.mxu0 0.0
      %553 = vmatpush1.xpose.msra.mxu0 0.0
      %554 = vmatprep.subr.mxu0 0.0
      %555 = vmatpush1.xpose.msra.mxu0 0.0
      %556 = vmatprep.subr.mxu0 0.0
      %557 = vmatpush1.xpose.msra.mxu0 0.0
      %558 = vmatprep.subr.mxu0 0.0
      %559 = vmatpush1.xpose.msra.mxu0 %v530
      %560 = vmatprep.subr.mxu0 0.0
      %561 = vmatpush1.xpose.msra.mxu0 %v527
      %562 = vmatprep.subr.mxu0 0.0
      %563 = vmatpush1.xpose.msra.mxu0 %v524
      %564 = vmatprep.subr.mxu0 0.0
      %565 = vmatpush2.xpose.msra.mxu0 0.0
      %566 = vmatprep.subr.mxu0 0.0
      %567 = vmatpush2.xpose.msra.mxu0 0.0
      %568 = vmatprep.subr.mxu0 0.0
      %569 = vmatpush2.xpose.msra.mxu0 0.0
      %570 = vmatprep.subr.mxu0 0.0
      %571 = vmatpush2.xpose.msra.mxu0 0.0
      %572 = vmatprep.subr.mxu0 0.0
      %573 = vmatpush2.xpose.msra.mxu0 0.0
      %574 = vmatprep.subr.mxu0 0.0
      %575 = vmatpush2.xpose.msra.mxu0 0.0
      %576 = vmatprep.subr.mxu0 0.0
      %577 = vmatpush2.xpose.msra.mxu0 0.0
      %578 = vmatprep.subr.mxu0 0.0
      %579 = vmatpush2.xpose.msra.mxu0 0.0
      %580 = vmatprep.subr.mxu0 0.0
      %581 = vmatpush2.xpose.msra.mxu0 0.0
      %582 = vmatprep.subr.mxu0 0.0
      %583 = vmatpush2.xpose.msra.mxu0 0.0
      %584 = vmatprep.subr.mxu0 0.0
      %585 = vmatpush2.xpose.msra.mxu0 0.0
      %586 = vmatprep.subr.mxu0 0.0
      %587 = vmatpush2.xpose.msra.mxu0 0.0
      %588 = vmatprep.subr.mxu0 0.0
      %589 = vmatpush2.xpose.msra.mxu0 0.0
      %590 = vmatprep.subr.mxu0 0.0
      %591 = vmatpush2.xpose.msra.mxu0 0.0
      %592 = vmatprep.subr.mxu0 0.0
      %593 = vmatpush2.xpose.msra.mxu0 0.0
      %594 = vmatprep.subr.mxu0 0.0
      %595 = vmatpush2.xpose.msra.mxu0 0.0
      %596 = vmatprep.mubr.f32.mxu0 0.0
      %597 = vmatmul.mubr.f32.gmra.mxu0 %v485
      %v598 = vpop.f32.mrf.mxu0
      %v599 = vadd.f32 %v481, %v598
      %v600 = vpop.f32.mrf.mxu0
      %601 = vmatprep.mubr.f32.mxu0 0.0
      %602 = vmatmul.mubr.f32.gmra.mxu0 %v488
      %v603 = vpop.f32.mrf.mxu0
      %v604 = vadd.f32 %v481, %v603
      %v605 = vpop.f32.mrf.mxu0
      %606 = vmatprep.mubr.f32.mxu0 0.0
      %607 = vmatmul.mubr.f32.gmra.mxu0 %v491
      %v608 = vpop.f32.mrf.mxu0
      %v609 = vadd.f32 %v481, %v608
      %v610 = vpop.f32.mrf.mxu0
      %611 = vmatprep.mubr.f32.mxu0 0.0
      %612 = vmatmul.mubr.f32.gmra.mxu0 %v494
      %v613 = vpop.f32.mrf.mxu0
      %v614 = vadd.f32 %v481, %v613
      %v615 = vpop.f32.mrf.mxu0
      %616 = vmatprep.mubr.f32.mxu0 0.0
      %617 = vmatmul.mubr.f32.gmra.mxu0 %v497
      %v618 = vpop.f32.mrf.mxu0
      %v619 = vadd.f32 %v481, %v618
      %v620 = vpop.f32.mrf.mxu0
      %621 = vmatprep.mubr.f32.mxu0 0.0
      %622 = vmatmul.mubr.f32.gmra.mxu0 %v500
      %v623 = vpop.f32.mrf.mxu0
      %v624 = vadd.f32 %v481, %v623
      %v625 = vpop.f32.mrf.mxu0
      %626 = vmatprep.mubr.f32.mxu0 0.0
      %627 = vmatmul.mubr.f32.gmra.mxu0 %v503
      %v628 = vpop.f32.mrf.mxu0
      %v629 = vadd.f32 %v481, %v628
      %v630 = vpop.f32.mrf.mxu0
      %631 = vmatprep.mubr.f32.mxu0 0.0
      %632 = vmatmul.mubr.f32.gmra.mxu0 %v506
      %v633 = vpop.f32.mrf.mxu0
      %v634 = vadd.f32 %v481, %v633
      %v635 = vpop.f32.mrf.mxu0
      %636 = vmatprep.mubr.f32.mxu0 0.0
      %637 = vmatmul.mubr.f32.gmra.mxu0 %v509
      %v638 = vpop.f32.mrf.mxu0
      %v639 = vadd.f32 %v481, %v638
      %v640 = vpop.f32.mrf.mxu0
      %641 = vmatprep.mubr.f32.mxu0 0.0
      %642 = vmatmul.mubr.f32.gmra.mxu0 %v512
      %v643 = vpop.f32.mrf.mxu0
      %v644 = vadd.f32 %v481, %v643
      %v645 = vpop.f32.mrf.mxu0
      %646 = vmatprep.mubr.f32.mxu0 0.0
      %647 = vmatmul.mubr.f32.gmra.mxu0 %v515
      %v648 = vpop.f32.mrf.mxu0
      %v649 = vadd.f32 %v481, %v648
      %v650 = vpop.f32.mrf.mxu0
      %651 = vmatprep.mubr.f32.mxu0 0.0
      %652 = vmatmul.mubr.f32.gmra.mxu0 %v518
      %v653 = vpop.f32.mrf.mxu0
      %v654 = vadd.f32 %v481, %v653
      %v655 = vpop.f32.mrf.mxu0
      %656 = vmatprep.mubr.f32.mxu0 0.0
      %657 = vmatmul.mubr.f32.gmra.mxu0 %v521
      %v658 = vpop.f32.mrf.mxu0
      %v659 = vadd.f32 %v481, %v658
      %v660 = vpop.f32.mrf.mxu0
      %661 = vdwg.mxu0
      %675 = vrot.lane.b32.xlu0 %v599, 120
      %v676 = vpop.permute.xlu0 %675
      %677 = vrot.lane.b32.xlu0 %v604, 120
      %v678 = vpop.permute.xlu0 %677
      %679 = vrot.lane.b32.xlu0 %v609, 120
      %v680 = vpop.permute.xlu0 %679
      %681 = vrot.lane.b32.xlu0 %v614, 120
      %v682 = vpop.permute.xlu0 %681
      %683 = vrot.lane.b32.xlu0 %v619, 120
      %v684 = vpop.permute.xlu0 %683
      %685 = vrot.lane.b32.xlu0 %v624, 120
      %v686 = vpop.permute.xlu0 %685
      %687 = vrot.lane.b32.xlu0 %v629, 120
      %v688 = vpop.permute.xlu0 %687
      %689 = vrot.lane.b32.xlu0 %v634, 120
      %v690 = vpop.permute.xlu0 %689
      %691 = vrot.lane.b32.xlu0 %v639, 120
      %v692 = vpop.permute.xlu0 %691
      %693 = vrot.lane.b32.xlu0 %v644, 120
      %v694 = vpop.permute.xlu0 %693
      %695 = vrot.lane.b32.xlu0 %v649, 120
      %v696 = vpop.permute.xlu0 %695
      %697 = vrot.lane.b32.xlu0 %v654, 120
      %v698 = vpop.permute.xlu0 %697
      %699 = vrot.lane.b32.xlu0 %v659, 120
      %v700 = vpop.permute.xlu0 %699
      %vm701 = vcmask 15360
      %v702 = vsel %vm701, %v599, 0
      %v704 = vsel %vm701, %v604, 0
      %v706 = vsel %vm701, %v609, 0
      %v708 = vsel %vm701, %v614, 0
      %v710 = vsel %vm701, %v619, 0
      %v712 = vsel %vm701, %v624, 0
      %v714 = vsel %vm701, %v629, 0
      %v716 = vsel %vm701, %v634, 0
      %v718 = vsel %vm701, %v639, 0
      %v720 = vsel %vm701, %v644, 0
      %v722 = vsel %vm701, %v649, 0
      %v724 = vsel %vm701, %v654, 0
      %v726 = vsel %vm701, %v659, 0
      %v728 = vsel %vm701, %v676, 0
      %v730 = vsel %vm701, %v678, 0
      %v732 = vsel %vm701, %v680, 0
      %v734 = vsel %vm701, %v682, 0
      %v736 = vsel %vm701, %v684, 0
      %v738 = vsel %vm701, %v686, 0
      %v740 = vsel %vm701, %v688, 0
      %v742 = vsel %vm701, %v690, 0
      %v744 = vsel %vm701, %v692, 0
      %v746 = vsel %vm701, %v694, 0
      %v748 = vsel %vm701, %v696, 0
      %v750 = vsel %vm701, %v698, 0
      %v752 = vsel %vm701, %v700, 0
      %754 = vmatprep.subr.mxu0 0.0
      %755 = vmatpush1.xpose.msra.mxu0 0.0
      %756 = vmatprep.subr.mxu0 0.0
      %757 = vmatpush1.xpose.msra.mxu0 0.0
      %758 = vmatprep.subr.mxu0 0.0
      %759 = vmatpush1.xpose.msra.mxu0 0.0
      %760 = vmatprep.subr.mxu0 0.0
      %761 = vmatpush1.xpose.msra.mxu0 %v752
      %762 = vmatprep.subr.mxu0 0.0
      %763 = vmatpush1.xpose.msra.mxu0 %v750
      %764 = vmatprep.subr.mxu0 0.0
      %765 = vmatpush1.xpose.msra.mxu0 %v748
      %766 = vmatprep.subr.mxu0 0.0
      %767 = vmatpush1.xpose.msra.mxu0 %v746
      %768 = vmatprep.subr.mxu0 0.0
      %769 = vmatpush1.xpose.msra.mxu0 %v744
      %770 = vmatprep.subr.mxu0 0.0
      %771 = vmatpush1.xpose.msra.mxu0 %v742
      %772 = vmatprep.subr.mxu0 0.0
      %773 = vmatpush1.xpose.msra.mxu0 %v740
      %774 = vmatprep.subr.mxu0 0.0
      %775 = vmatpush1.xpose.msra.mxu0 %v738
      %776 = vmatprep.subr.mxu0 0.0
      %777 = vmatpush1.xpose.msra.mxu0 %v736
      %778 = vmatprep.subr.mxu0 0.0
      %779 = vmatpush1.xpose.msra.mxu0 %v734
      %780 = vmatprep.subr.mxu0 0.0
      %781 = vmatpush1.xpose.msra.mxu0 %v732
      %782 = vmatprep.subr.mxu0 0.0
      %783 = vmatpush1.xpose.msra.mxu0 %v730
      %784 = vmatprep.subr.mxu0 0.0
      %785 = vmatpush1.xpose.msra.mxu0 %v728
      %786 = vmatprep.subr.mxu0 0.0
      %787 = vmatpush2.xpose.msra.mxu0 0.0
      %788 = vmatprep.subr.mxu0 0.0
      %789 = vmatpush2.xpose.msra.mxu0 0.0
      %790 = vmatprep.subr.mxu0 0.0
      %791 = vmatpush2.xpose.msra.mxu0 0.0
      %792 = vmatprep.subr.mxu0 0.0
      %793 = vmatpush2.xpose.msra.mxu0 0.0
      %794 = vmatprep.subr.mxu0 0.0
      %795 = vmatpush2.xpose.msra.mxu0 0.0
      %796 = vmatprep.subr.mxu0 0.0
      %797 = vmatpush2.xpose.msra.mxu0 0.0
      %798 = vmatprep.subr.mxu0 0.0
      %799 = vmatpush2.xpose.msra.mxu0 0.0
      %800 = vmatprep.subr.mxu0 0.0
      %801 = vmatpush2.xpose.msra.mxu0 0.0
      %802 = vmatprep.subr.mxu0 0.0
      %803 = vmatpush2.xpose.msra.mxu0 0.0
      %804 = vmatprep.subr.mxu0 0.0
      %805 = vmatpush2.xpose.msra.mxu0 0.0
      %806 = vmatprep.subr.mxu0 0.0
      %807 = vmatpush2.xpose.msra.mxu0 0.0
      %808 = vmatprep.subr.mxu0 0.0
      %809 = vmatpush2.xpose.msra.mxu0 0.0
      %810 = vmatprep.subr.mxu0 0.0
      %811 = vmatpush2.xpose.msra.mxu0 0.0
      %812 = vmatprep.subr.mxu0 0.0
      %813 = vmatpush2.xpose.msra.mxu0 0.0
      %814 = vmatprep.subr.mxu0 0.0
      %815 = vmatpush2.xpose.msra.mxu0 0.0
      %816 = vmatprep.subr.mxu0 0.0
      %817 = vmatpush2.xpose.msra.mxu0 0.0
      %818 = vmatprep.mubr.f32.mxu0 0.0
      %819 = vmatmul.mubr.f32.gmra.mxu0 %v702
      %v820 = vpop.f32.mrf.mxu0
      %v821 = vadd.f32 0.0, %v820
      %v822 = vpop.f32.mrf.mxu0
      %823 = vmatprep.mubr.f32.mxu0 0.0
      %824 = vmatmul.mubr.f32.gmra.mxu0 %v704
      %v825 = vpop.f32.mrf.mxu0
      %v826 = vadd.f32 0.0, %v825
      %v827 = vpop.f32.mrf.mxu0
      %828 = vmatprep.mubr.f32.mxu0 0.0
      %829 = vmatmul.mubr.f32.gmra.mxu0 %v706
      %v830 = vpop.f32.mrf.mxu0
      %v831 = vadd.f32 0.0, %v830
      %v832 = vpop.f32.mrf.mxu0
      %833 = vmatprep.mubr.f32.mxu0 0.0
      %834 = vmatmul.mubr.f32.gmra.mxu0 %v708
      %v835 = vpop.f32.mrf.mxu0
      %v836 = vadd.f32 0.0, %v835
      %v837 = vpop.f32.mrf.mxu0
      %838 = vmatprep.mubr.f32.mxu0 0.0
      %839 = vmatmul.mubr.f32.gmra.mxu0 %v710
      %v840 = vpop.f32.mrf.mxu0
      %v841 = vadd.f32 0.0, %v840
      %v842 = vpop.f32.mrf.mxu0
      %843 = vmatprep.mubr.f32.mxu0 0.0
      %844 = vmatmul.mubr.f32.gmra.mxu0 %v712
      %v845 = vpop.f32.mrf.mxu0
      %v846 = vadd.f32 0.0, %v845
      %v847 = vpop.f32.mrf.mxu0
      %848 = vmatprep.mubr.f32.mxu0 0.0
      %849 = vmatmul.mubr.f32.gmra.mxu0 %v714
      %v850 = vpop.f32.mrf.mxu0
      %v851 = vadd.f32 0.0, %v850
      %v852 = vpop.f32.mrf.mxu0
      %853 = vmatprep.mubr.f32.mxu0 0.0
      %854 = vmatmul.mubr.f32.gmra.mxu0 %v716
      %v855 = vpop.f32.mrf.mxu0
      %v856 = vadd.f32 0.0, %v855
      %v857 = vpop.f32.mrf.mxu0
      %858 = vmatprep.mubr.f32.mxu0 0.0
      %859 = vmatmul.mubr.f32.gmra.mxu0 %v718
      %v860 = vpop.f32.mrf.mxu0
      %v861 = vadd.f32 0.0, %v860
      %v862 = vpop.f32.mrf.mxu0
      %863 = vmatprep.mubr.f32.mxu0 0.0
      %864 = vmatmul.mubr.f32.gmra.mxu0 %v720
      %v865 = vpop.f32.mrf.mxu0
      %v866 = vadd.f32 0.0, %v865
      %v867 = vpop.f32.mrf.mxu0
      %868 = vmatprep.mubr.f32.mxu0 0.0
      %869 = vmatmul.mubr.f32.gmra.mxu0 %v722
      %v870 = vpop.f32.mrf.mxu0
      %v871 = vadd.f32 0.0, %v870
      %v872 = vpop.f32.mrf.mxu0
      %873 = vmatprep.mubr.f32.mxu0 0.0
      %874 = vmatmul.mubr.f32.gmra.mxu0 %v724
      %v875 = vpop.f32.mrf.mxu0
      %v876 = vadd.f32 0.0, %v875
      %v877 = vpop.f32.mrf.mxu0
      %878 = vmatprep.mubr.f32.mxu0 0.0
      %879 = vmatmul.mubr.f32.gmra.mxu0 %v726
      %v880 = vpop.f32.mrf.mxu0
      %v881 = vadd.f32 0.0, %v880
      %v882 = vpop.f32.mrf.mxu0
      %883 = vdwg.mxu0
      %v884 = vmul.f32 %v821, 0.70710677
      %v885 = vmul.f32 %v826, 0.70710677
      %v886 = vmul.f32 %v831, 0.70710677
      %v887 = vmul.f32 %v836, 0.70710677
      %v888 = vmul.f32 %v841, 0.70710677
      %v889 = vmul.f32 %v846, 0.70710677
      %v890 = vmul.f32 %v851, 0.70710677
      %v891 = vmul.f32 %v856, 0.70710677
      %v892 = vmul.f32 %v861, 0.70710677
      %v893 = vmul.f32 %v866, 0.70710677
      %v894 = vmul.f32 %v871, 0.70710677
      %v895 = vmul.f32 %v876, 0.70710677
      %v896 = vmul.f32 %v881, 0.70710677
      %vm897 = vcmask 818176
      %v898 = vsel %vm897, %v884, -inf
      %899 = vmax.xlane.f32.xlu0 %v898
      %v900 = vpop.xlane.xlu0 %899
      %v901 = vsel %vm897, %v885, -inf
      %902 = vmax.xlane.f32.xlu0 %v901
      %v903 = vpop.xlane.xlu0 %902
      %v904 = vsel %vm897, %v886, -inf
      %905 = vmax.xlane.f32.xlu0 %v904
      %v906 = vpop.xlane.xlu0 %905
      %v907 = vsel %vm897, %v887, -inf
      %908 = vmax.xlane.f32.xlu0 %v907
      %v909 = vpop.xlane.xlu0 %908
      %v910 = vsel %vm897, %v888, -inf
      %911 = vmax.xlane.f32.xlu0 %v910
      %v912 = vpop.xlane.xlu0 %911
      %v913 = vsel %vm897, %v889, -inf
      %914 = vmax.xlane.f32.xlu0 %v913
      %v915 = vpop.xlane.xlu0 %914
      %v916 = vsel %vm897, %v890, -inf
      %917 = vmax.xlane.f32.xlu0 %v916
      %v918 = vpop.xlane.xlu0 %917
      %v919 = vsel %vm897, %v891, -inf
      %920 = vmax.xlane.f32.xlu0 %v919
      %v921 = vpop.xlane.xlu0 %920
      %v922 = vsel %vm897, %v892, -inf
      %923 = vmax.xlane.f32.xlu0 %v922
      %v924 = vpop.xlane.xlu0 %923
      %v925 = vsel %vm897, %v893, -inf
      %926 = vmax.xlane.f32.xlu0 %v925
      %v927 = vpop.xlane.xlu0 %926
      %v928 = vsel %vm897, %v894, -inf
      %929 = vmax.xlane.f32.xlu0 %v928
      %v930 = vpop.xlane.xlu0 %929
      %v931 = vsel %vm897, %v895, -inf
      %932 = vmax.xlane.f32.xlu0 %v931
      %v933 = vpop.xlane.xlu0 %932
      %vm934 = vcmask 814080
      %v935 = vsel %vm934, %v896, -inf
      %936 = vmax.xlane.f32.xlu0 %v935
      %v937 = vpop.xlane.xlu0 %936
      %v938 = vsub.f32 %v884, %v900
      %v939 = vsub.f32 %v885, %v903
      %v940 = vsub.f32 %v886, %v906
      %v941 = vsub.f32 %v887, %v909
      %v942 = vsub.f32 %v888, %v912
      %v943 = vsub.f32 %v889, %v915
      %v944 = vsub.f32 %v890, %v918
      %v945 = vsub.f32 %v891, %v921
      %v946 = vsub.f32 %v892, %v924
      %v947 = vsub.f32 %v893, %v927
      %v948 = vsub.f32 %v894, %v930
      %v949 = vsub.f32 %v895, %v933
      %v950 = vsub.f32 %v896, %v937
      %v951 = vmul.f32 %v938, 1.442695
      %v952 = vpow.pop %v951
      %v953 = vmul.f32 %v939, 1.442695
      %v954 = vpow.pop %v953
      %v955 = vmul.f32 %v940, 1.442695
      %v956 = vpow.pop %v955
      %v957 = vmul.f32 %v941, 1.442695
      %v958 = vpow.pop %v957
      %v959 = vmul.f32 %v942, 1.442695
      %v960 = vpow.pop %v959
      %v961 = vmul.f32 %v943, 1.442695
      %v962 = vpow.pop %v961
      %v963 = vmul.f32 %v944, 1.442695
      %v964 = vpow.pop %v963
      %v965 = vmul.f32 %v945, 1.442695
      %v966 = vpow.pop %v965
      %v967 = vmul.f32 %v946, 1.442695
      %v968 = vpow.pop %v967
      %v969 = vmul.f32 %v947, 1.442695
      %v970 = vpow.pop %v969
      %v971 = vmul.f32 %v948, 1.442695
      %v972 = vpow.pop %v971
      %v973 = vmul.f32 %v949, 1.442695
      %v974 = vpow.pop %v973
      %v975 = vmul.f32 %v950, 1.442695
      %v976 = vpow.pop %v975
      %v977 = vsel %vm897, %v952, 0.0
      %978 = vadd.xlane.f32.xlu0 %v977
      %v979 = vpop.xlane.xlu0 %978
      %v980 = vsel %vm897, %v954, 0.0
      %981 = vadd.xlane.f32.xlu0 %v980
      %v982 = vpop.xlane.xlu0 %981
      %v983 = vsel %vm897, %v956, 0.0
      %984 = vadd.xlane.f32.xlu0 %v983
      %v985 = vpop.xlane.xlu0 %984
      %v986 = vsel %vm897, %v958, 0.0
      %987 = vadd.xlane.f32.xlu0 %v986
      %v988 = vpop.xlane.xlu0 %987
      %v989 = vsel %vm897, %v960, 0.0
      %990 = vadd.xlane.f32.xlu0 %v989
      %v991 = vpop.xlane.xlu0 %990
      %v992 = vsel %vm897, %v962, 0.0
      %993 = vadd.xlane.f32.xlu0 %v992
      %v994 = vpop.xlane.xlu0 %993
      %v995 = vsel %vm897, %v964, 0.0
      %996 = vadd.xlane.f32.xlu0 %v995
      %v997 = vpop.xlane.xlu0 %996
      %v998 = vsel %vm897, %v966, 0.0
      %999 = vadd.xlane.f32.xlu0 %v998
      %v1000 = vpop.xlane.xlu0 %999
      %v1001 = vsel %vm897, %v968, 0.0
      %1002 = vadd.xlane.f32.xlu0 %v1001
      %v1003 = vpop.xlane.xlu0 %1002
      %v1004 = vsel %vm897, %v970, 0.0
      %1005 = vadd.xlane.f32.xlu0 %v1004
      %v1006 = vpop.xlane.xlu0 %1005
      %v1007 = vsel %vm897, %v972, 0.0
      %1008 = vadd.xlane.f32.xlu0 %v1007
      %v1009 = vpop.xlane.xlu0 %1008
      %v1010 = vsel %vm897, %v974, 0.0
      %1011 = vadd.xlane.f32.xlu0 %v1010
      %v1012 = vpop.xlane.xlu0 %1011
      %v1013 = vsel %vm934, %v976, 0.0
      %1014 = vadd.xlane.f32.xlu0 %v1013
      %v1015 = vpop.xlane.xlu0 %1014
      %v1016 = vrcp.pop %v979
      %v1017 = vrcp.pop %v982
      %v1018 = vrcp.pop %v985
      %v1019 = vrcp.pop %v988
      %v1020 = vrcp.pop %v991
      %v1021 = vrcp.pop %v994
      %v1022 = vrcp.pop %v997
      %v1023 = vrcp.pop %v1000
      %v1024 = vrcp.pop %v1003
      %v1025 = vrcp.pop %v1006
      %v1026 = vrcp.pop %v1009
      %v1027 = vrcp.pop %v1012
      %v1028 = vrcp.pop %v1015
      %v1029 = vmul.f32 %v952, %v1016
      %v1030 = vmul.f32 %v954, %v1017
      %v1031 = vmul.f32 %v956, %v1018
      %v1032 = vmul.f32 %v958, %v1019
      %v1033 = vmul.f32 %v960, %v1020
      %v1034 = vmul.f32 %v962, %v1021
      %v1035 = vmul.f32 %v964, %v1022
      %v1036 = vmul.f32 %v966, %v1023
      %v1037 = vmul.f32 %v968, %v1024
      %v1038 = vmul.f32 %v970, %v1025
      %v1039 = vmul.f32 %v972, %v1026
      %v1040 = vmul.f32 %v974, %v1027
      %v1041 = vmul.f32 %v976, %v1028
      %1042 = vrot.lane.b32.xlu0 %v599, 112
      %v1043 = vpop.permute.xlu0 %1042
      %1044 = vrot.lane.b32.xlu0 %v604, 112
      %v1045 = vpop.permute.xlu0 %1044
      %1046 = vrot.lane.b32.xlu0 %v609, 112
      %v1047 = vpop.permute.xlu0 %1046
      %1048 = vrot.lane.b32.xlu0 %v614, 112
      %v1049 = vpop.permute.xlu0 %1048
      %1050 = vrot.lane.b32.xlu0 %v619, 112
      %v1051 = vpop.permute.xlu0 %1050
      %1052 = vrot.lane.b32.xlu0 %v624, 112
      %v1053 = vpop.permute.xlu0 %1052
      %1054 = vrot.lane.b32.xlu0 %v629, 112
      %v1055 = vpop.permute.xlu0 %1054
      %1056 = vrot.lane.b32.xlu0 %v634, 112
      %v1057 = vpop.permute.xlu0 %1056
      %1058 = vrot.lane.b32.xlu0 %v639, 112
      %v1059 = vpop.permute.xlu0 %1058
      %1060 = vrot.lane.b32.xlu0 %v644, 112
      %v1061 = vpop.permute.xlu0 %1060
      %1062 = vrot.lane.b32.xlu0 %v649, 112
      %v1063 = vpop.permute.xlu0 %1062
      %1064 = vrot.lane.b32.xlu0 %v654, 112
      %v1065 = vpop.permute.xlu0 %1064
      %1066 = vrot.lane.b32.xlu0 %v659, 112
      %v1067 = vpop.permute.xlu0 %1066
      %v1081 = vsel %vm897, %v1029, 0
      %v1084 = vsel %vm897, %v1030, 0
      %v1087 = vsel %vm897, %v1031, 0
      %v1090 = vsel %vm897, %v1032, 0
      %v1093 = vsel %vm897, %v1033, 0
      %v1096 = vsel %vm897, %v1034, 0
      %v1099 = vsel %vm897, %v1035, 0
      %v1102 = vsel %vm897, %v1036, 0
      %v1105 = vsel %vm897, %v1037, 0
      %v1108 = vsel %vm897, %v1038, 0
      %v1111 = vsel %vm897, %v1039, 0
      %v1114 = vsel %vm897, %v1040, 0
      %v1117 = vsel %vm897, %v1041, 0
      %vm1119 = vcmask 1043456
      %v1120 = vsel %vm1119, %v1067, 0
      %1122 = vmatprep.subr.mxu0 0.0
      %1123 = vmatpush1.msra.mxu0 0.0
      %1124 = vmatprep.subr.mxu0 0.0
      %1125 = vmatpush1.msra.mxu0 0.0
      %1126 = vmatprep.subr.mxu0 0.0
      %1127 = vmatpush1.msra.mxu0 0.0
      %1128 = vmatprep.subr.mxu0 0.0
      %1129 = vmatpush1.msra.mxu0 %v1120
      %1130 = vmatprep.subr.mxu0 0.0
      %1131 = vmatpush1.msra.mxu0 %v1065
      %1132 = vmatprep.subr.mxu0 0.0
      %1133 = vmatpush1.msra.mxu0 %v1063
      %1134 = vmatprep.subr.mxu0 0.0
      %1135 = vmatpush1.msra.mxu0 %v1061
      %1136 = vmatprep.subr.mxu0 0.0
      %1137 = vmatpush1.msra.mxu0 %v1059
      %1138 = vmatprep.subr.mxu0 0.0
      %1139 = vmatpush1.msra.mxu0 %v1057
      %1140 = vmatprep.subr.mxu0 0.0
      %1141 = vmatpush1.msra.mxu0 %v1055
      %1142 = vmatprep.subr.mxu0 0.0
      %1143 = vmatpush1.msra.mxu0 %v1053
      %1144 = vmatprep.subr.mxu0 0.0
      %1145 = vmatpush1.msra.mxu0 %v1051
      %1146 = vmatprep.subr.mxu0 0.0
      %1147 = vmatpush1.msra.mxu0 %v1049
      %1148 = vmatprep.subr.mxu0 0.0
      %1149 = vmatpush1.msra.mxu0 %v1047
      %1150 = vmatprep.subr.mxu0 0.0
      %1151 = vmatpush1.msra.mxu0 %v1045
      %1152 = vmatprep.subr.mxu0 0.0
      %1153 = vmatpush1.msra.mxu0 %v1043
      %1154 = vmatprep.subr.mxu0 0.0
      %1155 = vmatpush2.msra.mxu0 0.0
      %1156 = vmatprep.subr.mxu0 0.0
      %1157 = vmatpush2.msra.mxu0 0.0
      %1158 = vmatprep.subr.mxu0 0.0
      %1159 = vmatpush2.msra.mxu0 0.0
      %1160 = vmatprep.subr.mxu0 0.0
      %1161 = vmatpush2.msra.mxu0 0.0
      %1162 = vmatprep.subr.mxu0 0.0
      %1163 = vmatpush2.msra.mxu0 0.0
      %1164 = vmatprep.subr.mxu0 0.0
      %1165 = vmatpush2.msra.mxu0 0.0
      %1166 = vmatprep.subr.mxu0 0.0
      %1167 = vmatpush2.msra.mxu0 0.0
      %1168 = vmatprep.subr.mxu0 0.0
      %1169 = vmatpush2.msra.mxu0 0.0
      %1170 = vmatprep.subr.mxu0 0.0
      %1171 = vmatpush2.msra.mxu0 0.0
      %1172 = vmatprep.subr.mxu0 0.0
      %1173 = vmatpush2.msra.mxu0 0.0
      %1174 = vmatprep.subr.mxu0 0.0
      %1175 = vmatpush2.msra.mxu0 0.0
      %1176 = vmatprep.subr.mxu0 0.0
      %1177 = vmatpush2.msra.mxu0 0.0
      %1178 = vmatprep.subr.mxu0 0.0
      %1179 = vmatpush2.msra.mxu0 0.0
      %1180 = vmatprep.subr.mxu0 0.0
      %1181 = vmatpush2.msra.mxu0 0.0
      %1182 = vmatprep.subr.mxu0 0.0
      %1183 = vmatpush2.msra.mxu0 0.0
      %1184 = vmatprep.subr.mxu0 0.0
      %1185 = vmatpush2.msra.mxu0 0.0
      %1186 = vmatprep.mubr.f32.mxu0 0.0
      %1187 = vmatmul.mubr.f32.gmra.mxu0 %v1081
      %v1188 = vpop.f32.mrf.mxu0
      %v1189 = vadd.f32 0.0, %v1188
      %v1190 = vpop.f32.mrf.mxu0
      %1191 = vmatprep.mubr.f32.mxu0 0.0
      %1192 = vmatmul.mubr.f32.gmra.mxu0 %v1084
      %v1193 = vpop.f32.mrf.mxu0
      %v1194 = vadd.f32 0.0, %v1193
      %v1195 = vpop.f32.mrf.mxu0
      %1196 = vmatprep.mubr.f32.mxu0 0.0
      %1197 = vmatmul.mubr.f32.gmra.mxu0 %v1087
      %v1198 = vpop.f32.mrf.mxu0
      %v1199 = vadd.f32 0.0, %v1198
      %v1200 = vpop.f32.mrf.mxu0
      %1201 = vmatprep.mubr.f32.mxu0 0.0
      %1202 = vmatmul.mubr.f32.gmra.mxu0 %v1090
      %v1203 = vpop.f32.mrf.mxu0
      %v1204 = vadd.f32 0.0, %v1203
      %v1205 = vpop.f32.mrf.mxu0
      %1206 = vmatprep.mubr.f32.mxu0 0.0
      %1207 = vmatmul.mubr.f32.gmra.mxu0 %v1093
      %v1208 = vpop.f32.mrf.mxu0
      %v1209 = vadd.f32 0.0, %v1208
      %v1210 = vpop.f32.mrf.mxu0
      %1211 = vmatprep.mubr.f32.mxu0 0.0
      %1212 = vmatmul.mubr.f32.gmra.mxu0 %v1096
      %v1213 = vpop.f32.mrf.mxu0
      %v1214 = vadd.f32 0.0, %v1213
      %v1215 = vpop.f32.mrf.mxu0
      %1216 = vmatprep.mubr.f32.mxu0 0.0
      %1217 = vmatmul.mubr.f32.gmra.mxu0 %v1099
      %v1218 = vpop.f32.mrf.mxu0
      %v1219 = vadd.f32 0.0, %v1218
      %v1220 = vpop.f32.mrf.mxu0
      %1221 = vmatprep.mubr.f32.mxu0 0.0
      %1222 = vmatmul.mubr.f32.gmra.mxu0 %v1102
      %v1223 = vpop.f32.mrf.mxu0
      %v1224 = vadd.f32 0.0, %v1223
      %v1225 = vpop.f32.mrf.mxu0
      %1226 = vmatprep.mubr.f32.mxu0 0.0
      %1227 = vmatmul.mubr.f32.gmra.mxu0 %v1105
      %v1228 = vpop.f32.mrf.mxu0
      %v1229 = vadd.f32 0.0, %v1228
      %v1230 = vpop.f32.mrf.mxu0
      %1231 = vmatprep.mubr.f32.mxu0 0.0
      %1232 = vmatmul.mubr.f32.gmra.mxu0 %v1108
      %v1233 = vpop.f32.mrf.mxu0
      %v1234 = vadd.f32 0.0, %v1233
      %v1235 = vpop.f32.mrf.mxu0
      %1236 = vmatprep.mubr.f32.mxu0 0.0
      %1237 = vmatmul.mubr.f32.gmra.mxu0 %v1111
      %v1238 = vpop.f32.mrf.mxu0
      %v1239 = vadd.f32 0.0, %v1238
      %v1240 = vpop.f32.mrf.mxu0
      %1241 = vmatprep.mubr.f32.mxu0 0.0
      %1242 = vmatmul.mubr.f32.gmra.mxu0 %v1114
      %v1243 = vpop.f32.mrf.mxu0
      %v1244 = vadd.f32 0.0, %v1243
      %v1245 = vpop.f32.mrf.mxu0
      %1246 = vmatprep.mubr.f32.mxu0 0.0
      %1247 = vmatmul.mubr.f32.gmra.mxu0 %v1117
      %v1248 = vpop.f32.mrf.mxu0
      %v1249 = vadd.f32 0.0, %v1248
      %v1250 = vpop.f32.mrf.mxu0
      %1251 = vdwg.mxu0
      %1252 = vrot.lane.b32.xlu0 %v599, 126
      %v1253 = vpop.permute.xlu0 %1252
      %1254 = vrot.lane.b32.xlu0 %v604, 126
      %v1255 = vpop.permute.xlu0 %1254
      %1256 = vrot.lane.b32.xlu0 %v609, 126
      %v1257 = vpop.permute.xlu0 %1256
      %1258 = vrot.lane.b32.xlu0 %v614, 126
      %v1259 = vpop.permute.xlu0 %1258
      %1260 = vrot.lane.b32.xlu0 %v619, 126
      %v1261 = vpop.permute.xlu0 %1260
      %1262 = vrot.lane.b32.xlu0 %v624, 126
      %v1263 = vpop.permute.xlu0 %1262
      %1264 = vrot.lane.b32.xlu0 %v629, 126
      %v1265 = vpop.permute.xlu0 %1264
      %1266 = vrot.lane.b32.xlu0 %v634, 126
      %v1267 = vpop.permute.xlu0 %1266
      %1268 = vrot.lane.b32.xlu0 %v639, 126
      %v1269 = vpop.permute.xlu0 %1268
      %1270 = vrot.lane.b32.xlu0 %v644, 126
      %v1271 = vpop.permute.xlu0 %1270
      %1272 = vrot.lane.b32.xlu0 %v649, 126
      %v1273 = vpop.permute.xlu0 %1272
      %1274 = vrot.lane.b32.xlu0 %v654, 126
      %v1275 = vpop.permute.xlu0 %1274
      %1276 = vrot.lane.b32.xlu0 %v659, 126
      %v1277 = vpop.permute.xlu0 %1276
      %1278 = vrot.lane.b32.xlu0 %v599, 118
      %v1279 = vpop.permute.xlu0 %1278
      %1280 = vrot.lane.b32.xlu0 %v604, 118
      %v1281 = vpop.permute.xlu0 %1280
      %1282 = vrot.lane.b32.xlu0 %v609, 118
      %v1283 = vpop.permute.xlu0 %1282
      %1284 = vrot.lane.b32.xlu0 %v614, 118
      %v1285 = vpop.permute.xlu0 %1284
      %1286 = vrot.lane.b32.xlu0 %v619, 118
      %v1287 = vpop.permute.xlu0 %1286
      %1288 = vrot.lane.b32.xlu0 %v624, 118
      %v1289 = vpop.permute.xlu0 %1288
      %1290 = vrot.lane.b32.xlu0 %v629, 118
      %v1291 = vpop.permute.xlu0 %1290
      %1292 = vrot.lane.b32.xlu0 %v634, 118
      %v1293 = vpop.permute.xlu0 %1292
      %1294 = vrot.lane.b32.xlu0 %v639, 118
      %v1295 = vpop.permute.xlu0 %1294
      %1296 = vrot.lane.b32.xlu0 %v644, 118
      %v1297 = vpop.permute.xlu0 %1296
      %1298 = vrot.lane.b32.xlu0 %v649, 118
      %v1299 = vpop.permute.xlu0 %1298
      %1300 = vrot.lane.b32.xlu0 %v654, 118
      %v1301 = vpop.permute.xlu0 %1300
      %1302 = vrot.lane.b32.xlu0 %v659, 118
      %v1303 = vpop.permute.xlu0 %1302
      %v1304 = vsel %vm701, %v1253, 0
      %v1306 = vsel %vm701, %v1255, 0
      %v1308 = vsel %vm701, %v1257, 0
      %v1310 = vsel %vm701, %v1259, 0
      %v1312 = vsel %vm701, %v1261, 0
      %v1314 = vsel %vm701, %v1263, 0
      %v1316 = vsel %vm701, %v1265, 0
      %v1318 = vsel %vm701, %v1267, 0
      %v1320 = vsel %vm701, %v1269, 0
      %v1322 = vsel %vm701, %v1271, 0
      %v1324 = vsel %vm701, %v1273, 0
      %v1326 = vsel %vm701, %v1275, 0
      %v1328 = vsel %vm701, %v1277, 0
      %v1330 = vsel %vm701, %v1279, 0
      %v1332 = vsel %vm701, %v1281, 0
      %v1334 = vsel %vm701, %v1283, 0
      %v1336 = vsel %vm701, %v1285, 0
      %v1338 = vsel %vm701, %v1287, 0
      %v1340 = vsel %vm701, %v1289, 0
      %v1342 = vsel %vm701, %v1291, 0
      %v1344 = vsel %vm701, %v1293, 0
      %v1346 = vsel %vm701, %v1295, 0
      %v1348 = vsel %vm701, %v1297, 0
      %v1350 = vsel %vm701, %v1299, 0
      %v1352 = vsel %vm701, %v1301, 0
      %v1354 = vsel %vm701, %v1303, 0
      %1356 = vmatprep.subr.mxu0 0.0
      %1357 = vmatpush1.xpose.msra.mxu0 0.0
      %1358 = vmatprep.subr.mxu0 0.0
      %1359 = vmatpush1.xpose.msra.mxu0 0.0
      %1360 = vmatprep.subr.mxu0 0.0
      %1361 = vmatpush1.xpose.msra.mxu0 0.0
      %1362 = vmatprep.subr.mxu0 0.0
      %1363 = vmatpush1.xpose.msra.mxu0 %v1354
      %1364 = vmatprep.subr.mxu0 0.0
      %1365 = vmatpush1.xpose.msra.mxu0 %v1352
      %1366 = vmatprep.subr.mxu0 0.0
      %1367 = vmatpush1.xpose.msra.mxu0 %v1350
      %1368 = vmatprep.subr.mxu0 0.0
      %1369 = vmatpush1.xpose.msra.mxu0 %v1348
      %1370 = vmatprep.subr.mxu0 0.0
      %1371 = vmatpush1.xpose.msra.mxu0 %v1346
      %1372 = vmatprep.subr.mxu0 0.0
      %1373 = vmatpush1.xpose.msra.mxu0 %v1344
      %1374 = vmatprep.subr.mxu0 0.0
      %1375 = vmatpush1.xpose.msra.mxu0 %v1342
      %1376 = vmatprep.subr.mxu0 0.0
      %1377 = vmatpush1.xpose.msra.mxu0 %v1340
      %1378 = vmatprep.subr.mxu0 0.0
      %1379 = vmatpush1.xpose.msra.mxu0 %v1338
      %1380 = vmatprep.subr.mxu0 0.0
      %1381 = vmatpush1.xpose.msra.mxu0 %v1336
      %1382 = vmatprep.subr.mxu0 0.0
      %1383 = vmatpush1.xpose.msra.mxu0 %v1334
      %1384 = vmatprep.subr.mxu0 0.0
      %1385 = vmatpush1.xpose.msra.mxu0 %v1332
      %1386 = vmatprep.subr.mxu0 0.0
      %1387 = vmatpush1.xpose.msra.mxu0 %v1330
      %1388 = vmatprep.subr.mxu0 0.0
      %1389 = vmatpush2.xpose.msra.mxu0 0.0
      %1390 = vmatprep.subr.mxu0 0.0
      %1391 = vmatpush2.xpose.msra.mxu0 0.0
      %1392 = vmatprep.subr.mxu0 0.0
      %1393 = vmatpush2.xpose.msra.mxu0 0.0
      %1394 = vmatprep.subr.mxu0 0.0
      %1395 = vmatpush2.xpose.msra.mxu0 0.0
      %1396 = vmatprep.subr.mxu0 0.0
      %1397 = vmatpush2.xpose.msra.mxu0 0.0
      %1398 = vmatprep.subr.mxu0 0.0
      %1399 = vmatpush2.xpose.msra.mxu0 0.0
      %1400 = vmatprep.subr.mxu0 0.0
      %1401 = vmatpush2.xpose.msra.mxu0 0.0
      %1402 = vmatprep.subr.mxu0 0.0
      %1403 = vmatpush2.xpose.msra.mxu0 0.0
      %1404 = vmatprep.subr.mxu0 0.0
      %1405 = vmatpush2.xpose.msra.mxu0 0.0
      %1406 = vmatprep.subr.mxu0 0.0
      %1407 = vmatpush2.xpose.msra.mxu0 0.0
      %1408 = vmatprep.subr.mxu0 0.0
      %1409 = vmatpush2.xpose.msra.mxu0 0.0
      %1410 = vmatprep.subr.mxu0 0.0
      %1411 = vmatpush2.xpose.msra.mxu0 0.0
      %1412 = vmatprep.subr.mxu0 0.0
      %1413 = vmatpush2.xpose.msra.mxu0 0.0
      %1414 = vmatprep.subr.mxu0 0.0
      %1415 = vmatpush2.xpose.msra.mxu0 0.0
      %1416 = vmatprep.subr.mxu0 0.0
      %1417 = vmatpush2.xpose.msra.mxu0 0.0
      %1418 = vmatprep.subr.mxu0 0.0
      %1419 = vmatpush2.xpose.msra.mxu0 0.0
      %1420 = vmatprep.mubr.f32.mxu0 0.0
      %1421 = vmatmul.mubr.f32.gmra.mxu0 %v1304
      %v1422 = vpop.f32.mrf.mxu0
      %v1423 = vadd.f32 0.0, %v1422
      %v1424 = vpop.f32.mrf.mxu0
      %1425 = vmatprep.mubr.f32.mxu0 0.0
      %1426 = vmatmul.mubr.f32.gmra.mxu0 %v1306
      %v1427 = vpop.f32.mrf.mxu0
      %v1428 = vadd.f32 0.0, %v1427
      %v1429 = vpop.f32.mrf.mxu0
      %1430 = vmatprep.mubr.f32.mxu0 0.0
      %1431 = vmatmul.mubr.f32.gmra.mxu0 %v1308
      %v1432 = vpop.f32.mrf.mxu0
      %v1433 = vadd.f32 0.0, %v1432
      %v1434 = vpop.f32.mrf.mxu0
      %1435 = vmatprep.mubr.f32.mxu0 0.0
      %1436 = vmatmul.mubr.f32.gmra.mxu0 %v1310
      %v1437 = vpop.f32.mrf.mxu0
      %v1438 = vadd.f32 0.0, %v1437
      %v1439 = vpop.f32.mrf.mxu0
      %1440 = vmatprep.mubr.f32.mxu0 0.0
      %1441 = vmatmul.mubr.f32.gmra.mxu0 %v1312
      %v1442 = vpop.f32.mrf.mxu0
      %v1443 = vadd.f32 0.0, %v1442
      %v1444 = vpop.f32.mrf.mxu0
      %1445 = vmatprep.mubr.f32.mxu0 0.0
      %1446 = vmatmul.mubr.f32.gmra.mxu0 %v1314
      %v1447 = vpop.f32.mrf.mxu0
      %v1448 = vadd.f32 0.0, %v1447
      %v1449 = vpop.f32.mrf.mxu0
      %1450 = vmatprep.mubr.f32.mxu0 0.0
      %1451 = vmatmul.mubr.f32.gmra.mxu0 %v1316
      %v1452 = vpop.f32.mrf.mxu0
      %v1453 = vadd.f32 0.0, %v1452
      %v1454 = vpop.f32.mrf.mxu0
      %1455 = vmatprep.mubr.f32.mxu0 0.0
      %1456 = vmatmul.mubr.f32.gmra.mxu0 %v1318
      %v1457 = vpop.f32.mrf.mxu0
      %v1458 = vadd.f32 0.0, %v1457
      %v1459 = vpop.f32.mrf.mxu0
      %1460 = vmatprep.mubr.f32.mxu0 0.0
      %1461 = vmatmul.mubr.f32.gmra.mxu0 %v1320
      %v1462 = vpop.f32.mrf.mxu0
      %v1463 = vadd.f32 0.0, %v1462
      %v1464 = vpop.f32.mrf.mxu0
      %1465 = vmatprep.mubr.f32.mxu0 0.0
      %1466 = vmatmul.mubr.f32.gmra.mxu0 %v1322
      %v1467 = vpop.f32.mrf.mxu0
      %v1468 = vadd.f32 0.0, %v1467
      %v1469 = vpop.f32.mrf.mxu0
      %1470 = vmatprep.mubr.f32.mxu0 0.0
      %1471 = vmatmul.mubr.f32.gmra.mxu0 %v1324
      %v1472 = vpop.f32.mrf.mxu0
      %v1473 = vadd.f32 0.0, %v1472
      %v1474 = vpop.f32.mrf.mxu0
      %1475 = vmatprep.mubr.f32.mxu0 0.0
      %1476 = vmatmul.mubr.f32.gmra.mxu0 %v1326
      %v1477 = vpop.f32.mrf.mxu0
      %v1478 = vadd.f32 0.0, %v1477
      %v1479 = vpop.f32.mrf.mxu0
      %1480 = vmatprep.mubr.f32.mxu0 0.0
      %1481 = vmatmul.mubr.f32.gmra.mxu0 %v1328
      %v1482 = vpop.f32.mrf.mxu0
      %v1483 = vadd.f32 0.0, %v1482
      %v1484 = vpop.f32.mrf.mxu0
      %1485 = vdwg.mxu0
      %v1486 = vmul.f32 %v1423, 0.70710677
      %v1487 = vmul.f32 %v1428, 0.70710677
      %v1488 = vmul.f32 %v1433, 0.70710677
      %v1489 = vmul.f32 %v1438, 0.70710677
      %v1490 = vmul.f32 %v1443, 0.70710677
      %v1491 = vmul.f32 %v1448, 0.70710677
      %v1492 = vmul.f32 %v1453, 0.70710677
      %v1493 = vmul.f32 %v1458, 0.70710677
      %v1494 = vmul.f32 %v1463, 0.70710677
      %v1495 = vmul.f32 %v1468, 0.70710677
      %v1496 = vmul.f32 %v1473, 0.70710677
      %v1497 = vmul.f32 %v1478, 0.70710677
      %v1498 = vmul.f32 %v1483, 0.70710677
      %v1499 = vsel %vm897, %v1486, -inf
      %1500 = vmax.xlane.f32.xlu0 %v1499
      %v1501 = vpop.xlane.xlu0 %1500
      %v1502 = vsel %vm897, %v1487, -inf
      %1503 = vmax.xlane.f32.xlu0 %v1502
      %v1504 = vpop.xlane.xlu0 %1503
      %v1505 = vsel %vm897, %v1488, -inf
      %1506 = vmax.xlane.f32.xlu0 %v1505
      %v1507 = vpop.xlane.xlu0 %1506
      %v1508 = vsel %vm897, %v1489, -inf
      %1509 = vmax.xlane.f32.xlu0 %v1508
      %v1510 = vpop.xlane.xlu0 %1509
      %v1511 = vsel %vm897, %v1490, -inf
      %1512 = vmax.xlane.f32.xlu0 %v1511
      %v1513 = vpop.xlane.xlu0 %1512
      %v1514 = vsel %vm897, %v1491, -inf
      %1515 = vmax.xlane.f32.xlu0 %v1514
      %v1516 = vpop.xlane.xlu0 %1515
      %v1517 = vsel %vm897, %v1492, -inf
      %1518 = vmax.xlane.f32.xlu0 %v1517
      %v1519 = vpop.xlane.xlu0 %1518
      %v1520 = vsel %vm897, %v1493, -inf
      %1521 = vmax.xlane.f32.xlu0 %v1520
      %v1522 = vpop.xlane.xlu0 %1521
      %v1523 = vsel %vm897, %v1494, -inf
      %1524 = vmax.xlane.f32.xlu0 %v1523
      %v1525 = vpop.xlane.xlu0 %1524
      %v1526 = vsel %vm897, %v1495, -inf
      %1527 = vmax.xlane.f32.xlu0 %v1526
      %v1528 = vpop.xlane.xlu0 %1527
      %v1529 = vsel %vm897, %v1496, -inf
      %1530 = vmax.xlane.f32.xlu0 %v1529
      %v1531 = vpop.xlane.xlu0 %1530
      %v1532 = vsel %vm897, %v1497, -inf
      %1533 = vmax.xlane.f32.xlu0 %v1532
      %v1534 = vpop.xlane.xlu0 %1533
      %v1535 = vsel %vm934, %v1498, -inf
      %1536 = vmax.xlane.f32.xlu0 %v1535
      %v1537 = vpop.xlane.xlu0 %1536
      %v1538 = vsub.f32 %v1486, %v1501
      %v1539 = vsub.f32 %v1487, %v1504
      %v1540 = vsub.f32 %v1488, %v1507
      %v1541 = vsub.f32 %v1489, %v1510
      %v1542 = vsub.f32 %v1490, %v1513
      %v1543 = vsub.f32 %v1491, %v1516
      %v1544 = vsub.f32 %v1492, %v1519
      %v1545 = vsub.f32 %v1493, %v1522
      %v1546 = vsub.f32 %v1494, %v1525
      %v1547 = vsub.f32 %v1495, %v1528
      %v1548 = vsub.f32 %v1496, %v1531
      %v1549 = vsub.f32 %v1497, %v1534
      %v1550 = vsub.f32 %v1498, %v1537
      %v1551 = vmul.f32 %v1538, 1.442695
      %v1552 = vpow.pop %v1551
      %v1553 = vmul.f32 %v1539, 1.442695
      %v1554 = vpow.pop %v1553
      %v1555 = vmul.f32 %v1540, 1.442695
      %v1556 = vpow.pop %v1555
      %v1557 = vmul.f32 %v1541, 1.442695
      %v1558 = vpow.pop %v1557
      %v1559 = vmul.f32 %v1542, 1.442695
      %v1560 = vpow.pop %v1559
      %v1561 = vmul.f32 %v1543, 1.442695
      %v1562 = vpow.pop %v1561
      %v1563 = vmul.f32 %v1544, 1.442695
      %v1564 = vpow.pop %v1563
      %v1565 = vmul.f32 %v1545, 1.442695
      %v1566 = vpow.pop %v1565
      %v1567 = vmul.f32 %v1546, 1.442695
      %v1568 = vpow.pop %v1567
      %v1569 = vmul.f32 %v1547, 1.442695
      %v1570 = vpow.pop %v1569
      %v1571 = vmul.f32 %v1548, 1.442695
      %v1572 = vpow.pop %v1571
      %v1573 = vmul.f32 %v1549, 1.442695
      %v1574 = vpow.pop %v1573
      %v1575 = vmul.f32 %v1550, 1.442695
      %v1576 = vpow.pop %v1575
      %v1577 = vsel %vm897, %v1552, 0.0
      %1578 = vadd.xlane.f32.xlu0 %v1577
      %v1579 = vpop.xlane.xlu0 %1578
      %v1580 = vsel %vm897, %v1554, 0.0
      %1581 = vadd.xlane.f32.xlu0 %v1580
      %v1582 = vpop.xlane.xlu0 %1581
      %v1583 = vsel %vm897, %v1556, 0.0
      %1584 = vadd.xlane.f32.xlu0 %v1583
      %v1585 = vpop.xlane.xlu0 %1584
      %v1586 = vsel %vm897, %v1558, 0.0
      %1587 = vadd.xlane.f32.xlu0 %v1586
      %v1588 = vpop.xlane.xlu0 %1587
      %v1589 = vsel %vm897, %v1560, 0.0
      %1590 = vadd.xlane.f32.xlu0 %v1589
      %v1591 = vpop.xlane.xlu0 %1590
      %v1592 = vsel %vm897, %v1562, 0.0
      %1593 = vadd.xlane.f32.xlu0 %v1592
      %v1594 = vpop.xlane.xlu0 %1593
      %v1595 = vsel %vm897, %v1564, 0.0
      %1596 = vadd.xlane.f32.xlu0 %v1595
      %v1597 = vpop.xlane.xlu0 %1596
      %v1598 = vsel %vm897, %v1566, 0.0
      %1599 = vadd.xlane.f32.xlu0 %v1598
      %v1600 = vpop.xlane.xlu0 %1599
      %v1601 = vsel %vm897, %v1568, 0.0
      %1602 = vadd.xlane.f32.xlu0 %v1601
      %v1603 = vpop.xlane.xlu0 %1602
      %v1604 = vsel %vm897, %v1570, 0.0
      %1605 = vadd.xlane.f32.xlu0 %v1604
      %v1606 = vpop.xlane.xlu0 %1605
      %v1607 = vsel %vm897, %v1572, 0.0
      %1608 = vadd.xlane.f32.xlu0 %v1607
      %v1609 = vpop.xlane.xlu0 %1608
      %v1610 = vsel %vm897, %v1574, 0.0
      %1611 = vadd.xlane.f32.xlu0 %v1610
      %v1612 = vpop.xlane.xlu0 %1611
      %v1613 = vsel %vm934, %v1576, 0.0
      %1614 = vadd.xlane.f32.xlu0 %v1613
      %v1615 = vpop.xlane.xlu0 %1614
      %v1616 = vrcp.pop %v1579
      %v1617 = vrcp.pop %v1582
      %v1618 = vrcp.pop %v1585
      %v1619 = vrcp.pop %v1588
      %v1620 = vrcp.pop %v1591
      %v1621 = vrcp.pop %v1594
      %v1622 = vrcp.pop %v1597
      %v1623 = vrcp.pop %v1600
      %v1624 = vrcp.pop %v1603
      %v1625 = vrcp.pop %v1606
      %v1626 = vrcp.pop %v1609
      %v1627 = vrcp.pop %v1612
      %v1628 = vrcp.pop %v1615
      %v1629 = vmul.f32 %v1552, %v1616
      %v1630 = vmul.f32 %v1554, %v1617
      %v1631 = vmul.f32 %v1556, %v1618
      %v1632 = vmul.f32 %v1558, %v1619
      %v1633 = vmul.f32 %v1560, %v1620
      %v1634 = vmul.f32 %v1562, %v1621
      %v1635 = vmul.f32 %v1564, %v1622
      %v1636 = vmul.f32 %v1566, %v1623
      %v1637 = vmul.f32 %v1568, %v1624
      %v1638 = vmul.f32 %v1570, %v1625
      %v1639 = vmul.f32 %v1572, %v1626
      %v1640 = vmul.f32 %v1574, %v1627
      %v1641 = vmul.f32 %v1576, %v1628
      %1642 = vrot.lane.b32.xlu0 %v599, 110
      %v1643 = vpop.permute.xlu0 %1642
      %1644 = vrot.lane.b32.xlu0 %v604, 110
      %v1645 = vpop.permute.xlu0 %1644
      %1646 = vrot.lane.b32.xlu0 %v609, 110
      %v1647 = vpop.permute.xlu0 %1646
      %1648 = vrot.lane.b32.xlu0 %v614, 110
      %v1649 = vpop.permute.xlu0 %1648
      %1650 = vrot.lane.b32.xlu0 %v619, 110
      %v1651 = vpop.permute.xlu0 %1650
      %1652 = vrot.lane.b32.xlu0 %v624, 110
      %v1653 = vpop.permute.xlu0 %1652
      %1654 = vrot.lane.b32.xlu0 %v629, 110
      %v1655 = vpop.permute.xlu0 %1654
      %1656 = vrot.lane.b32.xlu0 %v634, 110
      %v1657 = vpop.permute.xlu0 %1656
      %1658 = vrot.lane.b32.xlu0 %v639, 110
      %v1659 = vpop.permute.xlu0 %1658
      %1660 = vrot.lane.b32.xlu0 %v644, 110
      %v1661 = vpop.permute.xlu0 %1660
      %1662 = vrot.lane.b32.xlu0 %v649, 110
      %v1663 = vpop.permute.xlu0 %1662
      %1664 = vrot.lane.b32.xlu0 %v654, 110
      %v1665 = vpop.permute.xlu0 %1664
      %1666 = vrot.lane.b32.xlu0 %v659, 110
      %v1667 = vpop.permute.xlu0 %1666
      %v1681 = vsel %vm897, %v1629, 0
      %v1684 = vsel %vm897, %v1630, 0
      %v1687 = vsel %vm897, %v1631, 0
      %v1690 = vsel %vm897, %v1632, 0
      %v1693 = vsel %vm897, %v1633, 0
      %v1696 = vsel %vm897, %v1634, 0
      %v1699 = vsel %vm897, %v1635, 0
      %v1702 = vsel %vm897, %v1636, 0
      %v1705 = vsel %vm897, %v1637, 0
      %v1708 = vsel %vm897, %v1638, 0
      %v1711 = vsel %vm897, %v1639, 0
      %v1714 = vsel %vm897, %v1640, 0
      %v1717 = vsel %vm897, %v1641, 0
      %v1719 = vsel %vm1119, %v1667, 0
      %1721 = vmatprep.subr.mxu0 0.0
      %1722 = vmatpush1.msra.mxu0 0.0
      %1723 = vmatprep.subr.mxu0 0.0
      %1724 = vmatpush1.msra.mxu0 0.0
      %1725 = vmatprep.subr.mxu0 0.0
      %1726 = vmatpush1.msra.mxu0 0.0
      %1727 = vmatprep.subr.mxu0 0.0
      %1728 = vmatpush1.msra.mxu0 %v1719
      %1729 = vmatprep.subr.mxu0 0.0
      %1730 = vmatpush1.msra.mxu0 %v1665
      %1731 = vmatprep.subr.mxu0 0.0
      %1732 = vmatpush1.msra.mxu0 %v1663
      %1733 = vmatprep.subr.mxu0 0.0
      %1734 = vmatpush1.msra.mxu0 %v1661
      %1735 = vmatprep.subr.mxu0 0.0
      %1736 = vmatpush1.msra.mxu0 %v1659
      %1737 = vmatprep.subr.mxu0 0.0
      %1738 = vmatpush1.msra.mxu0 %v1657
      %1739 = vmatprep.subr.mxu0 0.0
      %1740 = vmatpush1.msra.mxu0 %v1655
      %1741 = vmatprep.subr.mxu0 0.0
      %1742 = vmatpush1.msra.mxu0 %v1653
      %1743 = vmatprep.subr.mxu0 0.0
      %1744 = vmatpush1.msra.mxu0 %v1651
      %1745 = vmatprep.subr.mxu0 0.0
      %1746 = vmatpush1.msra.mxu0 %v1649
      %1747 = vmatprep.subr.mxu0 0.0
      %1748 = vmatpush1.msra.mxu0 %v1647
      %1749 = vmatprep.subr.mxu0 0.0
      %1750 = vmatpush1.msra.mxu0 %v1645
      %1751 = vmatprep.subr.mxu0 0.0
      %1752 = vmatpush1.msra.mxu0 %v1643
      %1753 = vmatprep.subr.mxu0 0.0
      %1754 = vmatpush2.msra.mxu0 0.0
      %1755 = vmatprep.subr.mxu0 0.0
      %1756 = vmatpush2.msra.mxu0 0.0
      %1757 = vmatprep.subr.mxu0 0.0
      %1758 = vmatpush2.msra.mxu0 0.0
      %1759 = vmatprep.subr.mxu0 0.0
      %1760 = vmatpush2.msra.mxu0 0.0
      %1761 = vmatprep.subr.mxu0 0.0
      %1762 = vmatpush2.msra.mxu0 0.0
      %1763 = vmatprep.subr.mxu0 0.0
      %1764 = vmatpush2.msra.mxu0 0.0
      %1765 = vmatprep.subr.mxu0 0.0
      %1766 = vmatpush2.msra.mxu0 0.0
      %1767 = vmatprep.subr.mxu0 0.0
      %1768 = vmatpush2.msra.mxu0 0.0
      %1769 = vmatprep.subr.mxu0 0.0
      %1770 = vmatpush2.msra.mxu0 0.0
      %1771 = vmatprep.subr.mxu0 0.0
      %1772 = vmatpush2.msra.mxu0 0.0
      %1773 = vmatprep.subr.mxu0 0.0
      %1774 = vmatpush2.msra.mxu0 0.0
      %1775 = vmatprep.subr.mxu0 0.0
      %1776 = vmatpush2.msra.mxu0 0.0
      %1777 = vmatprep.subr.mxu0 0.0
      %1778 = vmatpush2.msra.mxu0 0.0
      %1779 = vmatprep.subr.mxu0 0.0
      %1780 = vmatpush2.msra.mxu0 0.0
      %1781 = vmatprep.subr.mxu0 0.0
      %1782 = vmatpush2.msra.mxu0 0.0
      %1783 = vmatprep.subr.mxu0 0.0
      %1784 = vmatpush2.msra.mxu0 0.0
      %1785 = vmatprep.mubr.f32.mxu0 0.0
      %1786 = vmatmul.mubr.f32.gmra.mxu0 %v1681
      %v1787 = vpop.f32.mrf.mxu0
      %v1788 = vadd.f32 0.0, %v1787
      %v1789 = vpop.f32.mrf.mxu0
      %1790 = vmatprep.mubr.f32.mxu0 0.0
      %1791 = vmatmul.mubr.f32.gmra.mxu0 %v1684
      %v1792 = vpop.f32.mrf.mxu0
      %v1793 = vadd.f32 0.0, %v1792
      %v1794 = vpop.f32.mrf.mxu0
      %1795 = vmatprep.mubr.f32.mxu0 0.0
      %1796 = vmatmul.mubr.f32.gmra.mxu0 %v1687
      %v1797 = vpop.f32.mrf.mxu0
      %v1798 = vadd.f32 0.0, %v1797
      %v1799 = vpop.f32.mrf.mxu0
      %1800 = vmatprep.mubr.f32.mxu0 0.0
      %1801 = vmatmul.mubr.f32.gmra.mxu0 %v1690
      %v1802 = vpop.f32.mrf.mxu0
      %v1803 = vadd.f32 0.0, %v1802
      %v1804 = vpop.f32.mrf.mxu0
      %1805 = vmatprep.mubr.f32.mxu0 0.0
      %1806 = vmatmul.mubr.f32.gmra.mxu0 %v1693
      %v1807 = vpop.f32.mrf.mxu0
      %v1808 = vadd.f32 0.0, %v1807
      %v1809 = vpop.f32.mrf.mxu0
      %1810 = vmatprep.mubr.f32.mxu0 0.0
      %1811 = vmatmul.mubr.f32.gmra.mxu0 %v1696
      %v1812 = vpop.f32.mrf.mxu0
      %v1813 = vadd.f32 0.0, %v1812
      %v1814 = vpop.f32.mrf.mxu0
      %1815 = vmatprep.mubr.f32.mxu0 0.0
      %1816 = vmatmul.mubr.f32.gmra.mxu0 %v1699
      %v1817 = vpop.f32.mrf.mxu0
      %v1818 = vadd.f32 0.0, %v1817
      %v1819 = vpop.f32.mrf.mxu0
      %1820 = vmatprep.mubr.f32.mxu0 0.0
      %1821 = vmatmul.mubr.f32.gmra.mxu0 %v1702
      %v1822 = vpop.f32.mrf.mxu0
      %v1823 = vadd.f32 0.0, %v1822
      %v1824 = vpop.f32.mrf.mxu0
      %1825 = vmatprep.mubr.f32.mxu0 0.0
      %1826 = vmatmul.mubr.f32.gmra.mxu0 %v1705
      %v1827 = vpop.f32.mrf.mxu0
      %v1828 = vadd.f32 0.0, %v1827
      %v1829 = vpop.f32.mrf.mxu0
      %1830 = vmatprep.mubr.f32.mxu0 0.0
      %1831 = vmatmul.mubr.f32.gmra.mxu0 %v1708
      %v1832 = vpop.f32.mrf.mxu0
      %v1833 = vadd.f32 0.0, %v1832
      %v1834 = vpop.f32.mrf.mxu0
      %1835 = vmatprep.mubr.f32.mxu0 0.0
      %1836 = vmatmul.mubr.f32.gmra.mxu0 %v1711
      %v1837 = vpop.f32.mrf.mxu0
      %v1838 = vadd.f32 0.0, %v1837
      %v1839 = vpop.f32.mrf.mxu0
      %1840 = vmatprep.mubr.f32.mxu0 0.0
      %1841 = vmatmul.mubr.f32.gmra.mxu0 %v1714
      %v1842 = vpop.f32.mrf.mxu0
      %v1843 = vadd.f32 0.0, %v1842
      %v1844 = vpop.f32.mrf.mxu0
      %1845 = vmatprep.mubr.f32.mxu0 0.0
      %1846 = vmatmul.mubr.f32.gmra.mxu0 %v1717
      %v1847 = vpop.f32.mrf.mxu0
      %v1848 = vadd.f32 0.0, %v1847
      %v1849 = vpop.f32.mrf.mxu0
      %1850 = vdwg.mxu0
      %1851 = vrot.lane.b32.xlu0 %v599, 124
      %v1852 = vpop.permute.xlu0 %1851
      %1853 = vrot.lane.b32.xlu0 %v604, 124
      %v1854 = vpop.permute.xlu0 %1853
      %1855 = vrot.lane.b32.xlu0 %v609, 124
      %v1856 = vpop.permute.xlu0 %1855
      %1857 = vrot.lane.b32.xlu0 %v614, 124
      %v1858 = vpop.permute.xlu0 %1857
      %1859 = vrot.lane.b32.xlu0 %v619, 124
      %v1860 = vpop.permute.xlu0 %1859
      %1861 = vrot.lane.b32.xlu0 %v624, 124
      %v1862 = vpop.permute.xlu0 %1861
      %1863 = vrot.lane.b32.xlu0 %v629, 124
      %v1864 = vpop.permute.xlu0 %1863
      %1865 = vrot.lane.b32.xlu0 %v634, 124
      %v1866 = vpop.permute.xlu0 %1865
      %1867 = vrot.lane.b32.xlu0 %v639, 124
      %v1868 = vpop.permute.xlu0 %1867
      %1869 = vrot.lane.b32.xlu0 %v644, 124
      %v1870 = vpop.permute.xlu0 %1869
      %1871 = vrot.lane.b32.xlu0 %v649, 124
      %v1872 = vpop.permute.xlu0 %1871
      %1873 = vrot.lane.b32.xlu0 %v654, 124
      %v1874 = vpop.permute.xlu0 %1873
      %1875 = vrot.lane.b32.xlu0 %v659, 124
      %v1876 = vpop.permute.xlu0 %1875
      %1877 = vrot.lane.b32.xlu0 %v599, 116
      %v1878 = vpop.permute.xlu0 %1877
      %1879 = vrot.lane.b32.xlu0 %v604, 116
      %v1880 = vpop.permute.xlu0 %1879
      %1881 = vrot.lane.b32.xlu0 %v609, 116
      %v1882 = vpop.permute.xlu0 %1881
      %1883 = vrot.lane.b32.xlu0 %v614, 116
      %v1884 = vpop.permute.xlu0 %1883
      %1885 = vrot.lane.b32.xlu0 %v619, 116
      %v1886 = vpop.permute.xlu0 %1885
      %1887 = vrot.lane.b32.xlu0 %v624, 116
      %v1888 = vpop.permute.xlu0 %1887
      %1889 = vrot.lane.b32.xlu0 %v629, 116
      %v1890 = vpop.permute.xlu0 %1889
      %1891 = vrot.lane.b32.xlu0 %v634, 116
      %v1892 = vpop.permute.xlu0 %1891
      %1893 = vrot.lane.b32.xlu0 %v639, 116
      %v1894 = vpop.permute.xlu0 %1893
      %1895 = vrot.lane.b32.xlu0 %v644, 116
      %v1896 = vpop.permute.xlu0 %1895
      %1897 = vrot.lane.b32.xlu0 %v649, 116
      %v1898 = vpop.permute.xlu0 %1897
      %1899 = vrot.lane.b32.xlu0 %v654, 116
      %v1900 = vpop.permute.xlu0 %1899
      %1901 = vrot.lane.b32.xlu0 %v659, 116
      %v1902 = vpop.permute.xlu0 %1901
      %v1903 = vsel %vm701, %v1852, 0
      %v1905 = vsel %vm701, %v1854, 0
      %v1907 = vsel %vm701, %v1856, 0
      %v1909 = vsel %vm701, %v1858, 0
      %v1911 = vsel %vm701, %v1860, 0
      %v1913 = vsel %vm701, %v1862, 0
      %v1915 = vsel %vm701, %v1864, 0
      %v1917 = vsel %vm701, %v1866, 0
      %v1919 = vsel %vm701, %v1868, 0
      %v1921 = vsel %vm701, %v1870, 0
      %v1923 = vsel %vm701, %v1872, 0
      %v1925 = vsel %vm701, %v1874, 0
      %v1927 = vsel %vm701, %v1876, 0
      %v1929 = vsel %vm701, %v1878, 0
      %v1931 = vsel %vm701, %v1880, 0
      %v1933 = vsel %vm701, %v1882, 0
      %v1935 = vsel %vm701, %v1884, 0
      %v1937 = vsel %vm701, %v1886, 0
      %v1939 = vsel %vm701, %v1888, 0
      %v1941 = vsel %vm701, %v1890, 0
      %v1943 = vsel %vm701, %v1892, 0
      %v1945 = vsel %vm701, %v1894, 0
      %v1947 = vsel %vm701, %v1896, 0
      %v1949 = vsel %vm701, %v1898, 0
      %v1951 = vsel %vm701, %v1900, 0
      %v1953 = vsel %vm701, %v1902, 0
      %1955 = vmatprep.subr.mxu0 0.0
      %1956 = vmatpush1.xpose.msra.mxu0 0.0
      %1957 = vmatprep.subr.mxu0 0.0
      %1958 = vmatpush1.xpose.msra.mxu0 0.0
      %1959 = vmatprep.subr.mxu0 0.0
      %1960 = vmatpush1.xpose.msra.mxu0 0.0
      %1961 = vmatprep.subr.mxu0 0.0
      %1962 = vmatpush1.xpose.msra.mxu0 %v1953
      %1963 = vmatprep.subr.mxu0 0.0
      %1964 = vmatpush1.xpose.msra.mxu0 %v1951
      %1965 = vmatprep.subr.mxu0 0.0
      %1966 = vmatpush1.xpose.msra.mxu0 %v1949
      %1967 = vmatprep.subr.mxu0 0.0
      %1968 = vmatpush1.xpose.msra.mxu0 %v1947
      %1969 = vmatprep.subr.mxu0 0.0
      %1970 = vmatpush1.xpose.msra.mxu0 %v1945
      %1971 = vmatprep.subr.mxu0 0.0
      %1972 = vmatpush1.xpose.msra.mxu0 %v1943
      %1973 = vmatprep.subr.mxu0 0.0
      %1974 = vmatpush1.xpose.msra.mxu0 %v1941
      %1975 = vmatprep.subr.mxu0 0.0
      %1976 = vmatpush1.xpose.msra.mxu0 %v1939
      %1977 = vmatprep.subr.mxu0 0.0
      %1978 = vmatpush1.xpose.msra.mxu0 %v1937
      %1979 = vmatprep.subr.mxu0 0.0
      %1980 = vmatpush1.xpose.msra.mxu0 %v1935
      %1981 = vmatprep.subr.mxu0 0.0
      %1982 = vmatpush1.xpose.msra.mxu0 %v1933
      %1983 = vmatprep.subr.mxu0 0.0
      %1984 = vmatpush1.xpose.msra.mxu0 %v1931
      %1985 = vmatprep.subr.mxu0 0.0
      %1986 = vmatpush1.xpose.msra.mxu0 %v1929
      %1987 = vmatprep.subr.mxu0 0.0
      %1988 = vmatpush2.xpose.msra.mxu0 0.0
      %1989 = vmatprep.subr.mxu0 0.0
      %1990 = vmatpush2.xpose.msra.mxu0 0.0
      %1991 = vmatprep.subr.mxu0 0.0
      %1992 = vmatpush2.xpose.msra.mxu0 0.0
      %1993 = vmatprep.subr.mxu0 0.0
      %1994 = vmatpush2.xpose.msra.mxu0 0.0
      %1995 = vmatprep.subr.mxu0 0.0
      %1996 = vmatpush2.xpose.msra.mxu0 0.0
      %1997 = vmatprep.subr.mxu0 0.0
      %1998 = vmatpush2.xpose.msra.mxu0 0.0
      %1999 = vmatprep.subr.mxu0 0.0
      %2000 = vmatpush2.xpose.msra.mxu0 0.0
      %2001 = vmatprep.subr.mxu0 0.0
      %2002 = vmatpush2.xpose.msra.mxu0 0.0
      %2003 = vmatprep.subr.mxu0 0.0
      %2004 = vmatpush2.xpose.msra.mxu0 0.0
      %2005 = vmatprep.subr.mxu0 0.0
      %2006 = vmatpush2.xpose.msra.mxu0 0.0
      %2007 = vmatprep.subr.mxu0 0.0
      %2008 = vmatpush2.xpose.msra.mxu0 0.0
      %2009 = vmatprep.subr.mxu0 0.0
      %2010 = vmatpush2.xpose.msra.mxu0 0.0
      %2011 = vmatprep.subr.mxu0 0.0
      %2012 = vmatpush2.xpose.msra.mxu0 0.0
      %2013 = vmatprep.subr.mxu0 0.0
      %2014 = vmatpush2.xpose.msra.mxu0 0.0
      %2015 = vmatprep.subr.mxu0 0.0
      %2016 = vmatpush2.xpose.msra.mxu0 0.0
      %2017 = vmatprep.subr.mxu0 0.0
      %2018 = vmatpush2.xpose.msra.mxu0 0.0
      %2019 = vmatprep.mubr.f32.mxu0 0.0
      %2020 = vmatmul.mubr.f32.gmra.mxu0 %v1903
      %v2021 = vpop.f32.mrf.mxu0
      %v2022 = vadd.f32 0.0, %v2021
      %v2023 = vpop.f32.mrf.mxu0
      %2024 = vmatprep.mubr.f32.mxu0 0.0
      %2025 = vmatmul.mubr.f32.gmra.mxu0 %v1905
      %v2026 = vpop.f32.mrf.mxu0
      %v2027 = vadd.f32 0.0, %v2026
      %v2028 = vpop.f32.mrf.mxu0
      %2029 = vmatprep.mubr.f32.mxu0 0.0
      %2030 = vmatmul.mubr.f32.gmra.mxu0 %v1907
      %v2031 = vpop.f32.mrf.mxu0
      %v2032 = vadd.f32 0.0, %v2031
      %v2033 = vpop.f32.mrf.mxu0
      %2034 = vmatprep.mubr.f32.mxu0 0.0
      %2035 = vmatmul.mubr.f32.gmra.mxu0 %v1909
      %v2036 = vpop.f32.mrf.mxu0
      %v2037 = vadd.f32 0.0, %v2036
      %v2038 = vpop.f32.mrf.mxu0
      %2039 = vmatprep.mubr.f32.mxu0 0.0
      %2040 = vmatmul.mubr.f32.gmra.mxu0 %v1911
      %v2041 = vpop.f32.mrf.mxu0
      %v2042 = vadd.f32 0.0, %v2041
      %v2043 = vpop.f32.mrf.mxu0
      %2044 = vmatprep.mubr.f32.mxu0 0.0
      %2045 = vmatmul.mubr.f32.gmra.mxu0 %v1913
      %v2046 = vpop.f32.mrf.mxu0
      %v2047 = vadd.f32 0.0, %v2046
      %v2048 = vpop.f32.mrf.mxu0
      %2049 = vmatprep.mubr.f32.mxu0 0.0
      %2050 = vmatmul.mubr.f32.gmra.mxu0 %v1915
      %v2051 = vpop.f32.mrf.mxu0
      %v2052 = vadd.f32 0.0, %v2051
      %v2053 = vpop.f32.mrf.mxu0
      %2054 = vmatprep.mubr.f32.mxu0 0.0
      %2055 = vmatmul.mubr.f32.gmra.mxu0 %v1917
      %v2056 = vpop.f32.mrf.mxu0
      %v2057 = vadd.f32 0.0, %v2056
      %v2058 = vpop.f32.mrf.mxu0
      %2059 = vmatprep.mubr.f32.mxu0 0.0
      %2060 = vmatmul.mubr.f32.gmra.mxu0 %v1919
      %v2061 = vpop.f32.mrf.mxu0
      %v2062 = vadd.f32 0.0, %v2061
      %v2063 = vpop.f32.mrf.mxu0
      %2064 = vmatprep.mubr.f32.mxu0 0.0
      %2065 = vmatmul.mubr.f32.gmra.mxu0 %v1921
      %v2066 = vpop.f32.mrf.mxu0
      %v2067 = vadd.f32 0.0, %v2066
      %v2068 = vpop.f32.mrf.mxu0
      %2069 = vmatprep.mubr.f32.mxu0 0.0
      %2070 = vmatmul.mubr.f32.gmra.mxu0 %v1923
      %v2071 = vpop.f32.mrf.mxu0
      %v2072 = vadd.f32 0.0, %v2071
      %v2073 = vpop.f32.mrf.mxu0
      %2074 = vmatprep.mubr.f32.mxu0 0.0
      %2075 = vmatmul.mubr.f32.gmra.mxu0 %v1925
      %v2076 = vpop.f32.mrf.mxu0
      %v2077 = vadd.f32 0.0, %v2076
      %v2078 = vpop.f32.mrf.mxu0
      %2079 = vmatprep.mubr.f32.mxu0 0.0
      %2080 = vmatmul.mubr.f32.gmra.mxu0 %v1927
      %v2081 = vpop.f32.mrf.mxu0
      %v2082 = vadd.f32 0.0, %v2081
      %v2083 = vpop.f32.mrf.mxu0
      %2084 = vdwg.mxu0
      %v2085 = vmul.f32 %v2022, 0.70710677
      %v2086 = vmul.f32 %v2027, 0.70710677
      %v2087 = vmul.f32 %v2032, 0.70710677
      %v2088 = vmul.f32 %v2037, 0.70710677
      %v2089 = vmul.f32 %v2042, 0.70710677
      %v2090 = vmul.f32 %v2047, 0.70710677
      %v2091 = vmul.f32 %v2052, 0.70710677
      %v2092 = vmul.f32 %v2057, 0.70710677
      %v2093 = vmul.f32 %v2062, 0.70710677
      %v2094 = vmul.f32 %v2067, 0.70710677
      %v2095 = vmul.f32 %v2072, 0.70710677
      %v2096 = vmul.f32 %v2077, 0.70710677
      %v2097 = vmul.f32 %v2082, 0.70710677
      %v2098 = vsel %vm897, %v2085, -inf
      %2099 = vmax.xlane.f32.xlu0 %v2098
      %v2100 = vpop.xlane.xlu0 %2099
      %v2101 = vsel %vm897, %v2086, -inf
      %2102 = vmax.xlane.f32.xlu0 %v2101
      %v2103 = vpop.xlane.xlu0 %2102
      %v2104 = vsel %vm897, %v2087, -inf
      %2105 = vmax.xlane.f32.xlu0 %v2104
      %v2106 = vpop.xlane.xlu0 %2105
      %v2107 = vsel %vm897, %v2088, -inf
      %2108 = vmax.xlane.f32.xlu0 %v2107
      %v2109 = vpop.xlane.xlu0 %2108
      %v2110 = vsel %vm897, %v2089, -inf
      %2111 = vmax.xlane.f32.xlu0 %v2110
      %v2112 = vpop.xlane.xlu0 %2111
      %v2113 = vsel %vm897, %v2090, -inf
      %2114 = vmax.xlane.f32.xlu0 %v2113
      %v2115 = vpop.xlane.xlu0 %2114
      %v2116 = vsel %vm897, %v2091, -inf
      %2117 = vmax.xlane.f32.xlu0 %v2116
      %v2118 = vpop.xlane.xlu0 %2117
      %v2119 = vsel %vm897, %v2092, -inf
      %2120 = vmax.xlane.f32.xlu0 %v2119
      %v2121 = vpop.xlane.xlu0 %2120
      %v2122 = vsel %vm897, %v2093, -inf
      %2123 = vmax.xlane.f32.xlu0 %v2122
      %v2124 = vpop.xlane.xlu0 %2123
      %v2125 = vsel %vm897, %v2094, -inf
      %2126 = vmax.xlane.f32.xlu0 %v2125
      %v2127 = vpop.xlane.xlu0 %2126
      %v2128 = vsel %vm897, %v2095, -inf
      %2129 = vmax.xlane.f32.xlu0 %v2128
      %v2130 = vpop.xlane.xlu0 %2129
      %v2131 = vsel %vm897, %v2096, -inf
      %2132 = vmax.xlane.f32.xlu0 %v2131
      %v2133 = vpop.xlane.xlu0 %2132
      %v2134 = vsel %vm934, %v2097, -inf
      %2135 = vmax.xlane.f32.xlu0 %v2134
      %v2136 = vpop.xlane.xlu0 %2135
      %v2137 = vsub.f32 %v2085, %v2100
      %v2138 = vsub.f32 %v2086, %v2103
      %v2139 = vsub.f32 %v2087, %v2106
      %v2140 = vsub.f32 %v2088, %v2109
      %v2141 = vsub.f32 %v2089, %v2112
      %v2142 = vsub.f32 %v2090, %v2115
      %v2143 = vsub.f32 %v2091, %v2118
      %v2144 = vsub.f32 %v2092, %v2121
      %v2145 = vsub.f32 %v2093, %v2124
      %v2146 = vsub.f32 %v2094, %v2127
      %v2147 = vsub.f32 %v2095, %v2130
      %v2148 = vsub.f32 %v2096, %v2133
      %v2149 = vsub.f32 %v2097, %v2136
      %v2150 = vmul.f32 %v2137, 1.442695
      %v2151 = vpow.pop %v2150
      %v2152 = vmul.f32 %v2138, 1.442695
      %v2153 = vpow.pop %v2152
      %v2154 = vmul.f32 %v2139, 1.442695
      %v2155 = vpow.pop %v2154
      %v2156 = vmul.f32 %v2140, 1.442695
      %v2157 = vpow.pop %v2156
      %v2158 = vmul.f32 %v2141, 1.442695
      %v2159 = vpow.pop %v2158
      %v2160 = vmul.f32 %v2142, 1.442695
      %v2161 = vpow.pop %v2160
      %v2162 = vmul.f32 %v2143, 1.442695
      %v2163 = vpow.pop %v2162
      %v2164 = vmul.f32 %v2144, 1.442695
      %v2165 = vpow.pop %v2164
      %v2166 = vmul.f32 %v2145, 1.442695
      %v2167 = vpow.pop %v2166
      %v2168 = vmul.f32 %v2146, 1.442695
      %v2169 = vpow.pop %v2168
      %v2170 = vmul.f32 %v2147, 1.442695
      %v2171 = vpow.pop %v2170
      %v2172 = vmul.f32 %v2148, 1.442695
      %v2173 = vpow.pop %v2172
      %v2174 = vmul.f32 %v2149, 1.442695
      %v2175 = vpow.pop %v2174
      %v2176 = vsel %vm897, %v2151, 0.0
      %2177 = vadd.xlane.f32.xlu0 %v2176
      %v2178 = vpop.xlane.xlu0 %2177
      %v2179 = vsel %vm897, %v2153, 0.0
      %2180 = vadd.xlane.f32.xlu0 %v2179
      %v2181 = vpop.xlane.xlu0 %2180
      %v2182 = vsel %vm897, %v2155, 0.0
      %2183 = vadd.xlane.f32.xlu0 %v2182
      %v2184 = vpop.xlane.xlu0 %2183
      %v2185 = vsel %vm897, %v2157, 0.0
      %2186 = vadd.xlane.f32.xlu0 %v2185
      %v2187 = vpop.xlane.xlu0 %2186
      %v2188 = vsel %vm897, %v2159, 0.0
      %2189 = vadd.xlane.f32.xlu0 %v2188
      %v2190 = vpop.xlane.xlu0 %2189
      %v2191 = vsel %vm897, %v2161, 0.0
      %2192 = vadd.xlane.f32.xlu0 %v2191
      %v2193 = vpop.xlane.xlu0 %2192
      %v2194 = vsel %vm897, %v2163, 0.0
      %2195 = vadd.xlane.f32.xlu0 %v2194
      %v2196 = vpop.xlane.xlu0 %2195
      %v2197 = vsel %vm897, %v2165, 0.0
      %2198 = vadd.xlane.f32.xlu0 %v2197
      %v2199 = vpop.xlane.xlu0 %2198
      %v2200 = vsel %vm897, %v2167, 0.0
      %2201 = vadd.xlane.f32.xlu0 %v2200
      %v2202 = vpop.xlane.xlu0 %2201
      %v2203 = vsel %vm897, %v2169, 0.0
      %2204 = vadd.xlane.f32.xlu0 %v2203
      %v2205 = vpop.xlane.xlu0 %2204
      %v2206 = vsel %vm897, %v2171, 0.0
      %2207 = vadd.xlane.f32.xlu0 %v2206
      %v2208 = vpop.xlane.xlu0 %2207
      %v2209 = vsel %vm897, %v2173, 0.0
      %2210 = vadd.xlane.f32.xlu0 %v2209
      %v2211 = vpop.xlane.xlu0 %2210
      %v2212 = vsel %vm934, %v2175, 0.0
      %2213 = vadd.xlane.f32.xlu0 %v2212
      %v2214 = vpop.xlane.xlu0 %2213
      %v2215 = vrcp.pop %v2178
      %v2216 = vrcp.pop %v2181
      %v2217 = vrcp.pop %v2184
      %v2218 = vrcp.pop %v2187
      %v2219 = vrcp.pop %v2190
      %v2220 = vrcp.pop %v2193
      %v2221 = vrcp.pop %v2196
      %v2222 = vrcp.pop %v2199
      %v2223 = vrcp.pop %v2202
      %v2224 = vrcp.pop %v2205
      %v2225 = vrcp.pop %v2208
      %v2226 = vrcp.pop %v2211
      %v2227 = vrcp.pop %v2214
      %v2228 = vmul.f32 %v2151, %v2215
      %v2229 = vmul.f32 %v2153, %v2216
      %v2230 = vmul.f32 %v2155, %v2217
      %v2231 = vmul.f32 %v2157, %v2218
      %v2232 = vmul.f32 %v2159, %v2219
      %v2233 = vmul.f32 %v2161, %v2220
      %v2234 = vmul.f32 %v2163, %v2221
      %v2235 = vmul.f32 %v2165, %v2222
      %v2236 = vmul.f32 %v2167, %v2223
      %v2237 = vmul.f32 %v2169, %v2224
      %v2238 = vmul.f32 %v2171, %v2225
      %v2239 = vmul.f32 %v2173, %v2226
      %v2240 = vmul.f32 %v2175, %v2227
      %2241 = vrot.lane.b32.xlu0 %v599, 108
      %v2242 = vpop.permute.xlu0 %2241
      %2243 = vrot.lane.b32.xlu0 %v604, 108
      %v2244 = vpop.permute.xlu0 %2243
      %2245 = vrot.lane.b32.xlu0 %v609, 108
      %v2246 = vpop.permute.xlu0 %2245
      %2247 = vrot.lane.b32.xlu0 %v614, 108
      %v2248 = vpop.permute.xlu0 %2247
      %2249 = vrot.lane.b32.xlu0 %v619, 108
      %v2250 = vpop.permute.xlu0 %2249
      %2251 = vrot.lane.b32.xlu0 %v624, 108
      %v2252 = vpop.permute.xlu0 %2251
      %2253 = vrot.lane.b32.xlu0 %v629, 108
      %v2254 = vpop.permute.xlu0 %2253
      %2255 = vrot.lane.b32.xlu0 %v634, 108
      %v2256 = vpop.permute.xlu0 %2255
      %2257 = vrot.lane.b32.xlu0 %v639, 108
      %v2258 = vpop.permute.xlu0 %2257
      %2259 = vrot.lane.b32.xlu0 %v644, 108
      %v2260 = vpop.permute.xlu0 %2259
      %2261 = vrot.lane.b32.xlu0 %v649, 108
      %v2262 = vpop.permute.xlu0 %2261
      %2263 = vrot.lane.b32.xlu0 %v654, 108
      %v2264 = vpop.permute.xlu0 %2263
      %2265 = vrot.lane.b32.xlu0 %v659, 108
      %v2266 = vpop.permute.xlu0 %2265
      %v2280 = vsel %vm897, %v2228, 0
      %v2283 = vsel %vm897, %v2229, 0
      %v2286 = vsel %vm897, %v2230, 0
      %v2289 = vsel %vm897, %v2231, 0
      %v2292 = vsel %vm897, %v2232, 0
      %v2295 = vsel %vm897, %v2233, 0
      %v2298 = vsel %vm897, %v2234, 0
      %v2301 = vsel %vm897, %v2235, 0
      %v2304 = vsel %vm897, %v2236, 0
      %v2307 = vsel %vm897, %v2237, 0
      %v2310 = vsel %vm897, %v2238, 0
      %v2313 = vsel %vm897, %v2239, 0
      %v2316 = vsel %vm897, %v2240, 0
      %v2318 = vsel %vm1119, %v2266, 0
      %2320 = vmatprep.subr.mxu0 0.0
      %2321 = vmatpush1.msra.mxu0 0.0
      %2322 = vmatprep.subr.mxu0 0.0
      %2323 = vmatpush1.msra.mxu0 0.0
      %2324 = vmatprep.subr.mxu0 0.0
      %2325 = vmatpush1.msra.mxu0 0.0
      %2326 = vmatprep.subr.mxu0 0.0
      %2327 = vmatpush1.msra.mxu0 %v2318
      %2328 = vmatprep.subr.mxu0 0.0
      %2329 = vmatpush1.msra.mxu0 %v2264
      %2330 = vmatprep.subr.mxu0 0.0
      %2331 = vmatpush1.msra.mxu0 %v2262
      %2332 = vmatprep.subr.mxu0 0.0
      %2333 = vmatpush1.msra.mxu0 %v2260
      %2334 = vmatprep.subr.mxu0 0.0
      %2335 = vmatpush1.msra.mxu0 %v2258
      %2336 = vmatprep.subr.mxu0 0.0
      %2337 = vmatpush1.msra.mxu0 %v2256
      %2338 = vmatprep.subr.mxu0 0.0
      %2339 = vmatpush1.msra.mxu0 %v2254
      %2340 = vmatprep.subr.mxu0 0.0
      %2341 = vmatpush1.msra.mxu0 %v2252
      %2342 = vmatprep.subr.mxu0 0.0
      %2343 = vmatpush1.msra.mxu0 %v2250
      %2344 = vmatprep.subr.mxu0 0.0
      %2345 = vmatpush1.msra.mxu0 %v2248
      %2346 = vmatprep.subr.mxu0 0.0
      %2347 = vmatpush1.msra.mxu0 %v2246
      %2348 = vmatprep.subr.mxu0 0.0
      %2349 = vmatpush1.msra.mxu0 %v2244
      %2350 = vmatprep.subr.mxu0 0.0
      %2351 = vmatpush1.msra.mxu0 %v2242
      %2352 = vmatprep.subr.mxu0 0.0
      %2353 = vmatpush2.msra.mxu0 0.0
      %2354 = vmatprep.subr.mxu0 0.0
      %2355 = vmatpush2.msra.mxu0 0.0
      %2356 = vmatprep.subr.mxu0 0.0
      %2357 = vmatpush2.msra.mxu0 0.0
      %2358 = vmatprep.subr.mxu0 0.0
      %2359 = vmatpush2.msra.mxu0 0.0
      %2360 = vmatprep.subr.mxu0 0.0
      %2361 = vmatpush2.msra.mxu0 0.0
      %2362 = vmatprep.subr.mxu0 0.0
      %2363 = vmatpush2.msra.mxu0 0.0
      %2364 = vmatprep.subr.mxu0 0.0
      %2365 = vmatpush2.msra.mxu0 0.0
      %2366 = vmatprep.subr.mxu0 0.0
      %2367 = vmatpush2.msra.mxu0 0.0
      %2368 = vmatprep.subr.mxu0 0.0
      %2369 = vmatpush2.msra.mxu0 0.0
      %2370 = vmatprep.subr.mxu0 0.0
      %2371 = vmatpush2.msra.mxu0 0.0
      %2372 = vmatprep.subr.mxu0 0.0
      %2373 = vmatpush2.msra.mxu0 0.0
      %2374 = vmatprep.subr.mxu0 0.0
      %2375 = vmatpush2.msra.mxu0 0.0
      %2376 = vmatprep.subr.mxu0 0.0
      %2377 = vmatpush2.msra.mxu0 0.0
      %2378 = vmatprep.subr.mxu0 0.0
      %2379 = vmatpush2.msra.mxu0 0.0
      %2380 = vmatprep.subr.mxu0 0.0
      %2381 = vmatpush2.msra.mxu0 0.0
      %2382 = vmatprep.subr.mxu0 0.0
      %2383 = vmatpush2.msra.mxu0 0.0
      %2384 = vmatprep.mubr.f32.mxu0 0.0
      %2385 = vmatmul.mubr.f32.gmra.mxu0 %v2280
      %v2386 = vpop.f32.mrf.mxu0
      %v2387 = vadd.f32 0.0, %v2386
      %v2388 = vpop.f32.mrf.mxu0
      %2389 = vmatprep.mubr.f32.mxu0 0.0
      %2390 = vmatmul.mubr.f32.gmra.mxu0 %v2283
      %v2391 = vpop.f32.mrf.mxu0
      %v2392 = vadd.f32 0.0, %v2391
      %v2393 = vpop.f32.mrf.mxu0
      %2394 = vmatprep.mubr.f32.mxu0 0.0
      %2395 = vmatmul.mubr.f32.gmra.mxu0 %v2286
      %v2396 = vpop.f32.mrf.mxu0
      %v2397 = vadd.f32 0.0, %v2396
      %v2398 = vpop.f32.mrf.mxu0
      %2399 = vmatprep.mubr.f32.mxu0 0.0
      %2400 = vmatmul.mubr.f32.gmra.mxu0 %v2289
      %v2401 = vpop.f32.mrf.mxu0
      %v2402 = vadd.f32 0.0, %v2401
      %v2403 = vpop.f32.mrf.mxu0
      %2404 = vmatprep.mubr.f32.mxu0 0.0
      %2405 = vmatmul.mubr.f32.gmra.mxu0 %v2292
      %v2406 = vpop.f32.mrf.mxu0
      %v2407 = vadd.f32 0.0, %v2406
      %v2408 = vpop.f32.mrf.mxu0
      %2409 = vmatprep.mubr.f32.mxu0 0.0
      %2410 = vmatmul.mubr.f32.gmra.mxu0 %v2295
      %v2411 = vpop.f32.mrf.mxu0
      %v2412 = vadd.f32 0.0, %v2411
      %v2413 = vpop.f32.mrf.mxu0
      %2414 = vmatprep.mubr.f32.mxu0 0.0
      %2415 = vmatmul.mubr.f32.gmra.mxu0 %v2298
      %v2416 = vpop.f32.mrf.mxu0
      %v2417 = vadd.f32 0.0, %v2416
      %v2418 = vpop.f32.mrf.mxu0
      %2419 = vmatprep.mubr.f32.mxu0 0.0
      %2420 = vmatmul.mubr.f32.gmra.mxu0 %v2301
      %v2421 = vpop.f32.mrf.mxu0
      %v2422 = vadd.f32 0.0, %v2421
      %v2423 = vpop.f32.mrf.mxu0
      %2424 = vmatprep.mubr.f32.mxu0 0.0
      %2425 = vmatmul.mubr.f32.gmra.mxu0 %v2304
      %v2426 = vpop.f32.mrf.mxu0
      %v2427 = vadd.f32 0.0, %v2426
      %v2428 = vpop.f32.mrf.mxu0
      %2429 = vmatprep.mubr.f32.mxu0 0.0
      %2430 = vmatmul.mubr.f32.gmra.mxu0 %v2307
      %v2431 = vpop.f32.mrf.mxu0
      %v2432 = vadd.f32 0.0, %v2431
      %v2433 = vpop.f32.mrf.mxu0
      %2434 = vmatprep.mubr.f32.mxu0 0.0
      %2435 = vmatmul.mubr.f32.gmra.mxu0 %v2310
      %v2436 = vpop.f32.mrf.mxu0
      %v2437 = vadd.f32 0.0, %v2436
      %v2438 = vpop.f32.mrf.mxu0
      %2439 = vmatprep.mubr.f32.mxu0 0.0
      %2440 = vmatmul.mubr.f32.gmra.mxu0 %v2313
      %v2441 = vpop.f32.mrf.mxu0
      %v2442 = vadd.f32 0.0, %v2441
      %v2443 = vpop.f32.mrf.mxu0
      %2444 = vmatprep.mubr.f32.mxu0 0.0
      %2445 = vmatmul.mubr.f32.gmra.mxu0 %v2316
      %v2446 = vpop.f32.mrf.mxu0
      %v2447 = vadd.f32 0.0, %v2446
      %v2448 = vpop.f32.mrf.mxu0
      %2449 = vdwg.mxu0
      %2450 = vrot.lane.b32.xlu0 %v599, 122
      %v2451 = vpop.permute.xlu0 %2450
      %2452 = vrot.lane.b32.xlu0 %v604, 122
      %v2453 = vpop.permute.xlu0 %2452
      %2454 = vrot.lane.b32.xlu0 %v609, 122
      %v2455 = vpop.permute.xlu0 %2454
      %2456 = vrot.lane.b32.xlu0 %v614, 122
      %v2457 = vpop.permute.xlu0 %2456
      %2458 = vrot.lane.b32.xlu0 %v619, 122
      %v2459 = vpop.permute.xlu0 %2458
      %2460 = vrot.lane.b32.xlu0 %v624, 122
      %v2461 = vpop.permute.xlu0 %2460
      %2462 = vrot.lane.b32.xlu0 %v629, 122
      %v2463 = vpop.permute.xlu0 %2462
      %2464 = vrot.lane.b32.xlu0 %v634, 122
      %v2465 = vpop.permute.xlu0 %2464
      %2466 = vrot.lane.b32.xlu0 %v639, 122
      %v2467 = vpop.permute.xlu0 %2466
      %2468 = vrot.lane.b32.xlu0 %v644, 122
      %v2469 = vpop.permute.xlu0 %2468
      %2470 = vrot.lane.b32.xlu0 %v649, 122
      %v2471 = vpop.permute.xlu0 %2470
      %2472 = vrot.lane.b32.xlu0 %v654, 122
      %v2473 = vpop.permute.xlu0 %2472
      %2474 = vrot.lane.b32.xlu0 %v659, 122
      %v2475 = vpop.permute.xlu0 %2474
      %2476 = vrot.lane.b32.xlu0 %v599, 114
      %v2477 = vpop.permute.xlu0 %2476
      %2478 = vrot.lane.b32.xlu0 %v604, 114
      %v2479 = vpop.permute.xlu0 %2478
      %2480 = vrot.lane.b32.xlu0 %v609, 114
      %v2481 = vpop.permute.xlu0 %2480
      %2482 = vrot.lane.b32.xlu0 %v614, 114
      %v2483 = vpop.permute.xlu0 %2482
      %2484 = vrot.lane.b32.xlu0 %v619, 114
      %v2485 = vpop.permute.xlu0 %2484
      %2486 = vrot.lane.b32.xlu0 %v624, 114
      %v2487 = vpop.permute.xlu0 %2486
      %2488 = vrot.lane.b32.xlu0 %v629, 114
      %v2489 = vpop.permute.xlu0 %2488
      %2490 = vrot.lane.b32.xlu0 %v634, 114
      %v2491 = vpop.permute.xlu0 %2490
      %2492 = vrot.lane.b32.xlu0 %v639, 114
      %v2493 = vpop.permute.xlu0 %2492
      %2494 = vrot.lane.b32.xlu0 %v644, 114
      %v2495 = vpop.permute.xlu0 %2494
      %2496 = vrot.lane.b32.xlu0 %v649, 114
      %v2497 = vpop.permute.xlu0 %2496
      %2498 = vrot.lane.b32.xlu0 %v654, 114
      %v2499 = vpop.permute.xlu0 %2498
      %2500 = vrot.lane.b32.xlu0 %v659, 114
      %v2501 = vpop.permute.xlu0 %2500
      %v2502 = vsel %vm701, %v2451, 0
      %v2504 = vsel %vm701, %v2453, 0
      %v2506 = vsel %vm701, %v2455, 0
      %v2508 = vsel %vm701, %v2457, 0
      %v2510 = vsel %vm701, %v2459, 0
      %v2512 = vsel %vm701, %v2461, 0
      %v2514 = vsel %vm701, %v2463, 0
      %v2516 = vsel %vm701, %v2465, 0
      %v2518 = vsel %vm701, %v2467, 0
      %v2520 = vsel %vm701, %v2469, 0
      %v2522 = vsel %vm701, %v2471, 0
      %v2524 = vsel %vm701, %v2473, 0
      %v2526 = vsel %vm701, %v2475, 0
      %v2528 = vsel %vm701, %v2477, 0
      %v2530 = vsel %vm701, %v2479, 0
      %v2532 = vsel %vm701, %v2481, 0
      %v2534 = vsel %vm701, %v2483, 0
      %v2536 = vsel %vm701, %v2485, 0
      %v2538 = vsel %vm701, %v2487, 0
      %v2540 = vsel %vm701, %v2489, 0
      %v2542 = vsel %vm701, %v2491, 0
      %v2544 = vsel %vm701, %v2493, 0
      %v2546 = vsel %vm701, %v2495, 0
      %v2548 = vsel %vm701, %v2497, 0
      %v2550 = vsel %vm701, %v2499, 0
      %v2552 = vsel %vm701, %v2501, 0
      %2554 = vmatprep.subr.mxu0 0.0
      %2555 = vmatpush1.xpose.msra.mxu0 0.0
      %2556 = vmatprep.subr.mxu0 0.0
      %2557 = vmatpush1.xpose.msra.mxu0 0.0
      %2558 = vmatprep.subr.mxu0 0.0
      %2559 = vmatpush1.xpose.msra.mxu0 0.0
      %2560 = vmatprep.subr.mxu0 0.0
      %2561 = vmatpush1.xpose.msra.mxu0 %v2552
      %2562 = vmatprep.subr.mxu0 0.0
      %2563 = vmatpush1.xpose.msra.mxu0 %v2550
      %2564 = vmatprep.subr.mxu0 0.0
      %2565 = vmatpush1.xpose.msra.mxu0 %v2548
      %2566 = vmatprep.subr.mxu0 0.0
      %2567 = vmatpush1.xpose.msra.mxu0 %v2546
      %2568 = vmatprep.subr.mxu0 0.0
      %2569 = vmatpush1.xpose.msra.mxu0 %v2544
      %2570 = vmatprep.subr.mxu0 0.0
      %2571 = vmatpush1.xpose.msra.mxu0 %v2542
      %2572 = vmatprep.subr.mxu0 0.0
      %2573 = vmatpush1.xpose.msra.mxu0 %v2540
      %2574 = vmatprep.subr.mxu0 0.0
      %2575 = vmatpush1.xpose.msra.mxu0 %v2538
      %2576 = vmatprep.subr.mxu0 0.0
      %2577 = vmatpush1.xpose.msra.mxu0 %v2536
      %2578 = vmatprep.subr.mxu0 0.0
      %2579 = vmatpush1.xpose.msra.mxu0 %v2534
      %2580 = vmatprep.subr.mxu0 0.0
      %2581 = vmatpush1.xpose.msra.mxu0 %v2532
      %2582 = vmatprep.subr.mxu0 0.0
      %2583 = vmatpush1.xpose.msra.mxu0 %v2530
      %2584 = vmatprep.subr.mxu0 0.0
      %2585 = vmatpush1.xpose.msra.mxu0 %v2528
      %2586 = vmatprep.subr.mxu0 0.0
      %2587 = vmatpush2.xpose.msra.mxu0 0.0
      %2588 = vmatprep.subr.mxu0 0.0
      %2589 = vmatpush2.xpose.msra.mxu0 0.0
      %2590 = vmatprep.subr.mxu0 0.0
      %2591 = vmatpush2.xpose.msra.mxu0 0.0
      %2592 = vmatprep.subr.mxu0 0.0
      %2593 = vmatpush2.xpose.msra.mxu0 0.0
      %2594 = vmatprep.subr.mxu0 0.0
      %2595 = vmatpush2.xpose.msra.mxu0 0.0
      %2596 = vmatprep.subr.mxu0 0.0
      %2597 = vmatpush2.xpose.msra.mxu0 0.0
      %2598 = vmatprep.subr.mxu0 0.0
      %2599 = vmatpush2.xpose.msra.mxu0 0.0
      %2600 = vmatprep.subr.mxu0 0.0
      %2601 = vmatpush2.xpose.msra.mxu0 0.0
      %2602 = vmatprep.subr.mxu0 0.0
      %2603 = vmatpush2.xpose.msra.mxu0 0.0
      %2604 = vmatprep.subr.mxu0 0.0
      %2605 = vmatpush2.xpose.msra.mxu0 0.0
      %2606 = vmatprep.subr.mxu0 0.0
      %2607 = vmatpush2.xpose.msra.mxu0 0.0
      %2608 = vmatprep.subr.mxu0 0.0
      %2609 = vmatpush2.xpose.msra.mxu0 0.0
      %2610 = vmatprep.subr.mxu0 0.0
      %2611 = vmatpush2.xpose.msra.mxu0 0.0
      %2612 = vmatprep.subr.mxu0 0.0
      %2613 = vmatpush2.xpose.msra.mxu0 0.0
      %2614 = vmatprep.subr.mxu0 0.0
      %2615 = vmatpush2.xpose.msra.mxu0 0.0
      %2616 = vmatprep.subr.mxu0 0.0
      %2617 = vmatpush2.xpose.msra.mxu0 0.0
      %2618 = vmatprep.mubr.f32.mxu0 0.0
      %2619 = vmatmul.mubr.f32.gmra.mxu0 %v2502
      %v2620 = vpop.f32.mrf.mxu0
      %v2621 = vadd.f32 0.0, %v2620
      %v2622 = vpop.f32.mrf.mxu0
      %2623 = vmatprep.mubr.f32.mxu0 0.0
      %2624 = vmatmul.mubr.f32.gmra.mxu0 %v2504
      %v2625 = vpop.f32.mrf.mxu0
      %v2626 = vadd.f32 0.0, %v2625
      %v2627 = vpop.f32.mrf.mxu0
      %2628 = vmatprep.mubr.f32.mxu0 0.0
      %2629 = vmatmul.mubr.f32.gmra.mxu0 %v2506
      %v2630 = vpop.f32.mrf.mxu0
      %v2631 = vadd.f32 0.0, %v2630
      %v2632 = vpop.f32.mrf.mxu0
      %2633 = vmatprep.mubr.f32.mxu0 0.0
      %2634 = vmatmul.mubr.f32.gmra.mxu0 %v2508
      %v2635 = vpop.f32.mrf.mxu0
      %v2636 = vadd.f32 0.0, %v2635
      %v2637 = vpop.f32.mrf.mxu0
      %2638 = vmatprep.mubr.f32.mxu0 0.0
      %2639 = vmatmul.mubr.f32.gmra.mxu0 %v2510
      %v2640 = vpop.f32.mrf.mxu0
      %v2641 = vadd.f32 0.0, %v2640
      %v2642 = vpop.f32.mrf.mxu0
      %2643 = vmatprep.mubr.f32.mxu0 0.0
      %2644 = vmatmul.mubr.f32.gmra.mxu0 %v2512
      %v2645 = vpop.f32.mrf.mxu0
      %v2646 = vadd.f32 0.0, %v2645
      %v2647 = vpop.f32.mrf.mxu0
      %2648 = vmatprep.mubr.f32.mxu0 0.0
      %2649 = vmatmul.mubr.f32.gmra.mxu0 %v2514
      %v2650 = vpop.f32.mrf.mxu0
      %v2651 = vadd.f32 0.0, %v2650
      %v2652 = vpop.f32.mrf.mxu0
      %2653 = vmatprep.mubr.f32.mxu0 0.0
      %2654 = vmatmul.mubr.f32.gmra.mxu0 %v2516
      %v2655 = vpop.f32.mrf.mxu0
      %v2656 = vadd.f32 0.0, %v2655
      %v2657 = vpop.f32.mrf.mxu0
      %2658 = vmatprep.mubr.f32.mxu0 0.0
      %2659 = vmatmul.mubr.f32.gmra.mxu0 %v2518
      %v2660 = vpop.f32.mrf.mxu0
      %v2661 = vadd.f32 0.0, %v2660
      %v2662 = vpop.f32.mrf.mxu0
      %2663 = vmatprep.mubr.f32.mxu0 0.0
      %2664 = vmatmul.mubr.f32.gmra.mxu0 %v2520
      %v2665 = vpop.f32.mrf.mxu0
      %v2666 = vadd.f32 0.0, %v2665
      %v2667 = vpop.f32.mrf.mxu0
      %2668 = vmatprep.mubr.f32.mxu0 0.0
      %2669 = vmatmul.mubr.f32.gmra.mxu0 %v2522
      %v2670 = vpop.f32.mrf.mxu0
      %v2671 = vadd.f32 0.0, %v2670
      %v2672 = vpop.f32.mrf.mxu0
      %2673 = vmatprep.mubr.f32.mxu0 0.0
      %2674 = vmatmul.mubr.f32.gmra.mxu0 %v2524
      %v2675 = vpop.f32.mrf.mxu0
      %v2676 = vadd.f32 0.0, %v2675
      %v2677 = vpop.f32.mrf.mxu0
      %2678 = vmatprep.mubr.f32.mxu0 0.0
      %2679 = vmatmul.mubr.f32.gmra.mxu0 %v2526
      %v2680 = vpop.f32.mrf.mxu0
      %v2681 = vadd.f32 0.0, %v2680
      %v2682 = vpop.f32.mrf.mxu0
      %2683 = vdwg.mxu0
      %v2684 = vmul.f32 %v2621, 0.70710677
      %v2685 = vmul.f32 %v2626, 0.70710677
      %v2686 = vmul.f32 %v2631, 0.70710677
      %v2687 = vmul.f32 %v2636, 0.70710677
      %v2688 = vmul.f32 %v2641, 0.70710677
      %v2689 = vmul.f32 %v2646, 0.70710677
      %v2690 = vmul.f32 %v2651, 0.70710677
      %v2691 = vmul.f32 %v2656, 0.70710677
      %v2692 = vmul.f32 %v2661, 0.70710677
      %v2693 = vmul.f32 %v2666, 0.70710677
      %v2694 = vmul.f32 %v2671, 0.70710677
      %v2695 = vmul.f32 %v2676, 0.70710677
      %v2696 = vmul.f32 %v2681, 0.70710677
      %v2697 = vsel %vm897, %v2684, -inf
      %2698 = vmax.xlane.f32.xlu0 %v2697
      %v2699 = vpop.xlane.xlu0 %2698
      %v2700 = vsel %vm897, %v2685, -inf
      %2701 = vmax.xlane.f32.xlu0 %v2700
      %v2702 = vpop.xlane.xlu0 %2701
      %v2703 = vsel %vm897, %v2686, -inf
      %2704 = vmax.xlane.f32.xlu0 %v2703
      %v2705 = vpop.xlane.xlu0 %2704
      %v2706 = vsel %vm897, %v2687, -inf
      %2707 = vmax.xlane.f32.xlu0 %v2706
      %v2708 = vpop.xlane.xlu0 %2707
      %v2709 = vsel %vm897, %v2688, -inf
      %2710 = vmax.xlane.f32.xlu0 %v2709
      %v2711 = vpop.xlane.xlu0 %2710
      %v2712 = vsel %vm897, %v2689, -inf
      %2713 = vmax.xlane.f32.xlu0 %v2712
      %v2714 = vpop.xlane.xlu0 %2713
      %v2715 = vsel %vm897, %v2690, -inf
      %2716 = vmax.xlane.f32.xlu0 %v2715
      %v2717 = vpop.xlane.xlu0 %2716
      %v2718 = vsel %vm897, %v2691, -inf
      %2719 = vmax.xlane.f32.xlu0 %v2718
      %v2720 = vpop.xlane.xlu0 %2719
      %v2721 = vsel %vm897, %v2692, -inf
      %2722 = vmax.xlane.f32.xlu0 %v2721
      %v2723 = vpop.xlane.xlu0 %2722
      %v2724 = vsel %vm897, %v2693, -inf
      %2725 = vmax.xlane.f32.xlu0 %v2724
      %v2726 = vpop.xlane.xlu0 %2725
      %v2727 = vsel %vm897, %v2694, -inf
      %2728 = vmax.xlane.f32.xlu0 %v2727
      %v2729 = vpop.xlane.xlu0 %2728
      %v2730 = vsel %vm897, %v2695, -inf
      %2731 = vmax.xlane.f32.xlu0 %v2730
      %v2732 = vpop.xlane.xlu0 %2731
      %v2733 = vsel %vm934, %v2696, -inf
      %2734 = vmax.xlane.f32.xlu0 %v2733
      %v2735 = vpop.xlane.xlu0 %2734
      %v2736 = vsub.f32 %v2684, %v2699
      %v2737 = vsub.f32 %v2685, %v2702
      %v2738 = vsub.f32 %v2686, %v2705
      %v2739 = vsub.f32 %v2687, %v2708
      %v2740 = vsub.f32 %v2688, %v2711
      %v2741 = vsub.f32 %v2689, %v2714
      %v2742 = vsub.f32 %v2690, %v2717
      %v2743 = vsub.f32 %v2691, %v2720
      %v2744 = vsub.f32 %v2692, %v2723
      %v2745 = vsub.f32 %v2693, %v2726
      %v2746 = vsub.f32 %v2694, %v2729
      %v2747 = vsub.f32 %v2695, %v2732
      %v2748 = vsub.f32 %v2696, %v2735
      %v2749 = vmul.f32 %v2736, 1.442695
      %v2750 = vpow.pop %v2749
      %v2751 = vmul.f32 %v2737, 1.442695
      %v2752 = vpow.pop %v2751
      %v2753 = vmul.f32 %v2738, 1.442695
      %v2754 = vpow.pop %v2753
      %v2755 = vmul.f32 %v2739, 1.442695
      %v2756 = vpow.pop %v2755
      %v2757 = vmul.f32 %v2740, 1.442695
      %v2758 = vpow.pop %v2757
      %v2759 = vmul.f32 %v2741, 1.442695
      %v2760 = vpow.pop %v2759
      %v2761 = vmul.f32 %v2742, 1.442695
      %v2762 = vpow.pop %v2761
      %v2763 = vmul.f32 %v2743, 1.442695
      %v2764 = vpow.pop %v2763
      %v2765 = vmul.f32 %v2744, 1.442695
      %v2766 = vpow.pop %v2765
      %v2767 = vmul.f32 %v2745, 1.442695
      %v2768 = vpow.pop %v2767
      %v2769 = vmul.f32 %v2746, 1.442695
      %v2770 = vpow.pop %v2769
      %v2771 = vmul.f32 %v2747, 1.442695
      %v2772 = vpow.pop %v2771
      %v2773 = vmul.f32 %v2748, 1.442695
      %v2774 = vpow.pop %v2773
      %v2775 = vsel %vm897, %v2750, 0.0
      %2776 = vadd.xlane.f32.xlu0 %v2775
      %v2777 = vpop.xlane.xlu0 %2776
      %v2778 = vsel %vm897, %v2752, 0.0
      %2779 = vadd.xlane.f32.xlu0 %v2778
      %v2780 = vpop.xlane.xlu0 %2779
      %v2781 = vsel %vm897, %v2754, 0.0
      %2782 = vadd.xlane.f32.xlu0 %v2781
      %v2783 = vpop.xlane.xlu0 %2782
      %v2784 = vsel %vm897, %v2756, 0.0
      %2785 = vadd.xlane.f32.xlu0 %v2784
      %v2786 = vpop.xlane.xlu0 %2785
      %v2787 = vsel %vm897, %v2758, 0.0
      %2788 = vadd.xlane.f32.xlu0 %v2787
      %v2789 = vpop.xlane.xlu0 %2788
      %v2790 = vsel %vm897, %v2760, 0.0
      %2791 = vadd.xlane.f32.xlu0 %v2790
      %v2792 = vpop.xlane.xlu0 %2791
      %v2793 = vsel %vm897, %v2762, 0.0
      %2794 = vadd.xlane.f32.xlu0 %v2793
      %v2795 = vpop.xlane.xlu0 %2794
      %v2796 = vsel %vm897, %v2764, 0.0
      %2797 = vadd.xlane.f32.xlu0 %v2796
      %v2798 = vpop.xlane.xlu0 %2797
      %v2799 = vsel %vm897, %v2766, 0.0
      %2800 = vadd.xlane.f32.xlu0 %v2799
      %v2801 = vpop.xlane.xlu0 %2800
      %v2802 = vsel %vm897, %v2768, 0.0
      %2803 = vadd.xlane.f32.xlu0 %v2802
      %v2804 = vpop.xlane.xlu0 %2803
      %v2805 = vsel %vm897, %v2770, 0.0
      %2806 = vadd.xlane.f32.xlu0 %v2805
      %v2807 = vpop.xlane.xlu0 %2806
      %v2808 = vsel %vm897, %v2772, 0.0
      %2809 = vadd.xlane.f32.xlu0 %v2808
      %v2810 = vpop.xlane.xlu0 %2809
      %v2811 = vsel %vm934, %v2774, 0.0
      %2812 = vadd.xlane.f32.xlu0 %v2811
      %v2813 = vpop.xlane.xlu0 %2812
      %v2814 = vrcp.pop %v2777
      %v2815 = vrcp.pop %v2780
      %v2816 = vrcp.pop %v2783
      %v2817 = vrcp.pop %v2786
      %v2818 = vrcp.pop %v2789
      %v2819 = vrcp.pop %v2792
      %v2820 = vrcp.pop %v2795
      %v2821 = vrcp.pop %v2798
      %v2822 = vrcp.pop %v2801
      %v2823 = vrcp.pop %v2804
      %v2824 = vrcp.pop %v2807
      %v2825 = vrcp.pop %v2810
      %v2826 = vrcp.pop %v2813
      %v2827 = vmul.f32 %v2750, %v2814
      %v2828 = vmul.f32 %v2752, %v2815
      %v2829 = vmul.f32 %v2754, %v2816
      %v2830 = vmul.f32 %v2756, %v2817
      %v2831 = vmul.f32 %v2758, %v2818
      %v2832 = vmul.f32 %v2760, %v2819
      %v2833 = vmul.f32 %v2762, %v2820
      %v2834 = vmul.f32 %v2764, %v2821
      %v2835 = vmul.f32 %v2766, %v2822
      %v2836 = vmul.f32 %v2768, %v2823
      %v2837 = vmul.f32 %v2770, %v2824
      %v2838 = vmul.f32 %v2772, %v2825
      %v2839 = vmul.f32 %v2774, %v2826
      %2840 = vrot.lane.b32.xlu0 %v599, 106
      %v2841 = vpop.permute.xlu0 %2840
      %2842 = vrot.lane.b32.xlu0 %v604, 106
      %v2843 = vpop.permute.xlu0 %2842
      %2844 = vrot.lane.b32.xlu0 %v609, 106
      %v2845 = vpop.permute.xlu0 %2844
      %2846 = vrot.lane.b32.xlu0 %v614, 106
      %v2847 = vpop.permute.xlu0 %2846
      %2848 = vrot.lane.b32.xlu0 %v619, 106
      %v2849 = vpop.permute.xlu0 %2848
      %2850 = vrot.lane.b32.xlu0 %v624, 106
      %v2851 = vpop.permute.xlu0 %2850
      %2852 = vrot.lane.b32.xlu0 %v629, 106
      %v2853 = vpop.permute.xlu0 %2852
      %2854 = vrot.lane.b32.xlu0 %v634, 106
      %v2855 = vpop.permute.xlu0 %2854
      %2856 = vrot.lane.b32.xlu0 %v639, 106
      %v2857 = vpop.permute.xlu0 %2856
      %2858 = vrot.lane.b32.xlu0 %v644, 106
      %v2859 = vpop.permute.xlu0 %2858
      %2860 = vrot.lane.b32.xlu0 %v649, 106
      %v2861 = vpop.permute.xlu0 %2860
      %2862 = vrot.lane.b32.xlu0 %v654, 106
      %v2863 = vpop.permute.xlu0 %2862
      %2864 = vrot.lane.b32.xlu0 %v659, 106
      %v2865 = vpop.permute.xlu0 %2864
      %v2879 = vsel %vm897, %v2827, 0
      %v2882 = vsel %vm897, %v2828, 0
      %v2885 = vsel %vm897, %v2829, 0
      %v2888 = vsel %vm897, %v2830, 0
      %v2891 = vsel %vm897, %v2831, 0
      %v2894 = vsel %vm897, %v2832, 0
      %v2897 = vsel %vm897, %v2833, 0
      %v2900 = vsel %vm897, %v2834, 0
      %v2903 = vsel %vm897, %v2835, 0
      %v2906 = vsel %vm897, %v2836, 0
      %v2909 = vsel %vm897, %v2837, 0
      %v2912 = vsel %vm897, %v2838, 0
      %v2915 = vsel %vm897, %v2839, 0
      %v2917 = vsel %vm1119, %v2865, 0
      %2919 = vmatprep.subr.mxu0 0.0
      %2920 = vmatpush1.msra.mxu0 0.0
      %2921 = vmatprep.subr.mxu0 0.0
      %2922 = vmatpush1.msra.mxu0 0.0
      %2923 = vmatprep.subr.mxu0 0.0
      %2924 = vmatpush1.msra.mxu0 0.0
      %2925 = vmatprep.subr.mxu0 0.0
      %2926 = vmatpush1.msra.mxu0 %v2917
      %2927 = vmatprep.subr.mxu0 0.0
      %2928 = vmatpush1.msra.mxu0 %v2863
      %2929 = vmatprep.subr.mxu0 0.0
      %2930 = vmatpush1.msra.mxu0 %v2861
      %2931 = vmatprep.subr.mxu0 0.0
      %2932 = vmatpush1.msra.mxu0 %v2859
      %2933 = vmatprep.subr.mxu0 0.0
      %2934 = vmatpush1.msra.mxu0 %v2857
      %2935 = vmatprep.subr.mxu0 0.0
      %2936 = vmatpush1.msra.mxu0 %v2855
      %2937 = vmatprep.subr.mxu0 0.0
      %2938 = vmatpush1.msra.mxu0 %v2853
      %2939 = vmatprep.subr.mxu0 0.0
      %2940 = vmatpush1.msra.mxu0 %v2851
      %2941 = vmatprep.subr.mxu0 0.0
      %2942 = vmatpush1.msra.mxu0 %v2849
      %2943 = vmatprep.subr.mxu0 0.0
      %2944 = vmatpush1.msra.mxu0 %v2847
      %2945 = vmatprep.subr.mxu0 0.0
      %2946 = vmatpush1.msra.mxu0 %v2845
      %2947 = vmatprep.subr.mxu0 0.0
      %2948 = vmatpush1.msra.mxu0 %v2843
      %2949 = vmatprep.subr.mxu0 0.0
      %2950 = vmatpush1.msra.mxu0 %v2841
      %2951 = vmatprep.subr.mxu0 0.0
      %2952 = vmatpush2.msra.mxu0 0.0
      %2953 = vmatprep.subr.mxu0 0.0
      %2954 = vmatpush2.msra.mxu0 0.0
      %2955 = vmatprep.subr.mxu0 0.0
      %2956 = vmatpush2.msra.mxu0 0.0
      %2957 = vmatprep.subr.mxu0 0.0
      %2958 = vmatpush2.msra.mxu0 0.0
      %2959 = vmatprep.subr.mxu0 0.0
      %2960 = vmatpush2.msra.mxu0 0.0
      %2961 = vmatprep.subr.mxu0 0.0
      %2962 = vmatpush2.msra.mxu0 0.0
      %2963 = vmatprep.subr.mxu0 0.0
      %2964 = vmatpush2.msra.mxu0 0.0
      %2965 = vmatprep.subr.mxu0 0.0
      %2966 = vmatpush2.msra.mxu0 0.0
      %2967 = vmatprep.subr.mxu0 0.0
      %2968 = vmatpush2.msra.mxu0 0.0
      %2969 = vmatprep.subr.mxu0 0.0
      %2970 = vmatpush2.msra.mxu0 0.0
      %2971 = vmatprep.subr.mxu0 0.0
      %2972 = vmatpush2.msra.mxu0 0.0
      %2973 = vmatprep.subr.mxu0 0.0
      %2974 = vmatpush2.msra.mxu0 0.0
      %2975 = vmatprep.subr.mxu0 0.0
      %2976 = vmatpush2.msra.mxu0 0.0
      %2977 = vmatprep.subr.mxu0 0.0
      %2978 = vmatpush2.msra.mxu0 0.0
      %2979 = vmatprep.subr.mxu0 0.0
      %2980 = vmatpush2.msra.mxu0 0.0
      %2981 = vmatprep.subr.mxu0 0.0
      %2982 = vmatpush2.msra.mxu0 0.0
      %2983 = vmatprep.mubr.f32.mxu0 0.0
      %2984 = vmatmul.mubr.f32.gmra.mxu0 %v2879
      %v2985 = vpop.f32.mrf.mxu0
      %v2986 = vadd.f32 0.0, %v2985
      %v2987 = vpop.f32.mrf.mxu0
      %2988 = vmatprep.mubr.f32.mxu0 0.0
      %2989 = vmatmul.mubr.f32.gmra.mxu0 %v2882
      %v2990 = vpop.f32.mrf.mxu0
      %v2991 = vadd.f32 0.0, %v2990
      %v2992 = vpop.f32.mrf.mxu0
      %2993 = vmatprep.mubr.f32.mxu0 0.0
      %2994 = vmatmul.mubr.f32.gmra.mxu0 %v2885
      %v2995 = vpop.f32.mrf.mxu0
      %v2996 = vadd.f32 0.0, %v2995
      %v2997 = vpop.f32.mrf.mxu0
      %2998 = vmatprep.mubr.f32.mxu0 0.0
      %2999 = vmatmul.mubr.f32.gmra.mxu0 %v2888
      %v3000 = vpop.f32.mrf.mxu0
      %v3001 = vadd.f32 0.0, %v3000
      %v3002 = vpop.f32.mrf.mxu0
      %3003 = vmatprep.mubr.f32.mxu0 0.0
      %3004 = vmatmul.mubr.f32.gmra.mxu0 %v2891
      %v3005 = vpop.f32.mrf.mxu0
      %v3006 = vadd.f32 0.0, %v3005
      %v3007 = vpop.f32.mrf.mxu0
      %3008 = vmatprep.mubr.f32.mxu0 0.0
      %3009 = vmatmul.mubr.f32.gmra.mxu0 %v2894
      %v3010 = vpop.f32.mrf.mxu0
      %v3011 = vadd.f32 0.0, %v3010
      %v3012 = vpop.f32.mrf.mxu0
      %3013 = vmatprep.mubr.f32.mxu0 0.0
      %3014 = vmatmul.mubr.f32.gmra.mxu0 %v2897
      %v3015 = vpop.f32.mrf.mxu0
      %v3016 = vadd.f32 0.0, %v3015
      %v3017 = vpop.f32.mrf.mxu0
      %3018 = vmatprep.mubr.f32.mxu0 0.0
      %3019 = vmatmul.mubr.f32.gmra.mxu0 %v2900
      %v3020 = vpop.f32.mrf.mxu0
      %v3021 = vadd.f32 0.0, %v3020
      %v3022 = vpop.f32.mrf.mxu0
      %3023 = vmatprep.mubr.f32.mxu0 0.0
      %3024 = vmatmul.mubr.f32.gmra.mxu0 %v2903
      %v3025 = vpop.f32.mrf.mxu0
      %v3026 = vadd.f32 0.0, %v3025
      %v3027 = vpop.f32.mrf.mxu0
      %3028 = vmatprep.mubr.f32.mxu0 0.0
      %3029 = vmatmul.mubr.f32.gmra.mxu0 %v2906
      %v3030 = vpop.f32.mrf.mxu0
      %v3031 = vadd.f32 0.0, %v3030
      %v3032 = vpop.f32.mrf.mxu0
      %3033 = vmatprep.mubr.f32.mxu0 0.0
      %3034 = vmatmul.mubr.f32.gmra.mxu0 %v2909
      %v3035 = vpop.f32.mrf.mxu0
      %v3036 = vadd.f32 0.0, %v3035
      %v3037 = vpop.f32.mrf.mxu0
      %3038 = vmatprep.mubr.f32.mxu0 0.0
      %3039 = vmatmul.mubr.f32.gmra.mxu0 %v2912
      %v3040 = vpop.f32.mrf.mxu0
      %v3041 = vadd.f32 0.0, %v3040
      %v3042 = vpop.f32.mrf.mxu0
      %3043 = vmatprep.mubr.f32.mxu0 0.0
      %3044 = vmatmul.mubr.f32.gmra.mxu0 %v2915
      %v3045 = vpop.f32.mrf.mxu0
      %v3046 = vadd.f32 0.0, %v3045
      %v3047 = vpop.f32.mrf.mxu0
      %3048 = vdwg.mxu0
      %3062 = vrot.lane.b32.xlu0 %v1788, 2
      %v3063 = vpop.permute.xlu0 %3062
      %3064 = vrot.lane.b32.xlu0 %v1793, 2
      %v3065 = vpop.permute.xlu0 %3064
      %3066 = vrot.lane.b32.xlu0 %v1798, 2
      %v3067 = vpop.permute.xlu0 %3066
      %3068 = vrot.lane.b32.xlu0 %v1803, 2
      %v3069 = vpop.permute.xlu0 %3068
      %3070 = vrot.lane.b32.xlu0 %v1808, 2
      %v3071 = vpop.permute.xlu0 %3070
      %3072 = vrot.lane.b32.xlu0 %v1813, 2
      %v3073 = vpop.permute.xlu0 %3072
      %3074 = vrot.lane.b32.xlu0 %v1818, 2
      %v3075 = vpop.permute.xlu0 %3074
      %3076 = vrot.lane.b32.xlu0 %v1823, 2
      %v3077 = vpop.permute.xlu0 %3076
      %3078 = vrot.lane.b32.xlu0 %v1828, 2
      %v3079 = vpop.permute.xlu0 %3078
      %3080 = vrot.lane.b32.xlu0 %v1833, 2
      %v3081 = vpop.permute.xlu0 %3080
      %3082 = vrot.lane.b32.xlu0 %v1838, 2
      %v3083 = vpop.permute.xlu0 %3082
      %3084 = vrot.lane.b32.xlu0 %v1843, 2
      %v3085 = vpop.permute.xlu0 %3084
      %3086 = vrot.lane.b32.xlu0 %v1848, 2
      %v3087 = vpop.permute.xlu0 %3086
      %3114 = vrot.lane.b32.xlu0 %v2387, 4
      %v3115 = vpop.permute.xlu0 %3114
      %3116 = vrot.lane.b32.xlu0 %v2392, 4
      %v3117 = vpop.permute.xlu0 %3116
      %3118 = vrot.lane.b32.xlu0 %v2397, 4
      %v3119 = vpop.permute.xlu0 %3118
      %3120 = vrot.lane.b32.xlu0 %v2402, 4
      %v3121 = vpop.permute.xlu0 %3120
      %3122 = vrot.lane.b32.xlu0 %v2407, 4
      %v3123 = vpop.permute.xlu0 %3122
      %3124 = vrot.lane.b32.xlu0 %v2412, 4
      %v3125 = vpop.permute.xlu0 %3124
      %3126 = vrot.lane.b32.xlu0 %v2417, 4
      %v3127 = vpop.permute.xlu0 %3126
      %3128 = vrot.lane.b32.xlu0 %v2422, 4
      %v3129 = vpop.permute.xlu0 %3128
      %3130 = vrot.lane.b32.xlu0 %v2427, 4
      %v3131 = vpop.permute.xlu0 %3130
      %3132 = vrot.lane.b32.xlu0 %v2432, 4
      %v3133 = vpop.permute.xlu0 %3132
      %3134 = vrot.lane.b32.xlu0 %v2437, 4
      %v3135 = vpop.permute.xlu0 %3134
      %3136 = vrot.lane.b32.xlu0 %v2442, 4
      %v3137 = vpop.permute.xlu0 %3136
      %3138 = vrot.lane.b32.xlu0 %v2447, 4
      %v3139 = vpop.permute.xlu0 %3138
      %3166 = vrot.lane.b32.xlu0 %v2986, 6
      %v3167 = vpop.permute.xlu0 %3166
      %3168 = vrot.lane.b32.xlu0 %v2991, 6
      %v3169 = vpop.permute.xlu0 %3168
      %3170 = vrot.lane.b32.xlu0 %v2996, 6
      %v3171 = vpop.permute.xlu0 %3170
      %3172 = vrot.lane.b32.xlu0 %v3001, 6
      %v3173 = vpop.permute.xlu0 %3172
      %3174 = vrot.lane.b32.xlu0 %v3006, 6
      %v3175 = vpop.permute.xlu0 %3174
      %3176 = vrot.lane.b32.xlu0 %v3011, 6
      %v3177 = vpop.permute.xlu0 %3176
      %3178 = vrot.lane.b32.xlu0 %v3016, 6
      %v3179 = vpop.permute.xlu0 %3178
      %3180 = vrot.lane.b32.xlu0 %v3021, 6
      %v3181 = vpop.permute.xlu0 %3180
      %3182 = vrot.lane.b32.xlu0 %v3026, 6
      %v3183 = vpop.permute.xlu0 %3182
      %3184 = vrot.lane.b32.xlu0 %v3031, 6
      %v3185 = vpop.permute.xlu0 %3184
      %3186 = vrot.lane.b32.xlu0 %v3036, 6
      %v3187 = vpop.permute.xlu0 %3186
      %3188 = vrot.lane.b32.xlu0 %v3041, 6
      %v3189 = vpop.permute.xlu0 %3188
      %3190 = vrot.lane.b32.xlu0 %v3046, 6
      %v3191 = vpop.permute.xlu0 %3190
      %v3205 = vsel %vm701, %v1189, %v3063
      %v3206 = vsel %vm701, %v1194, %v3065
      %v3207 = vsel %vm701, %v1199, %v3067
      %v3208 = vsel %vm701, %v1204, %v3069
      %v3209 = vsel %vm701, %v1209, %v3071
      %v3210 = vsel %vm701, %v1214, %v3073
      %v3211 = vsel %vm701, %v1219, %v3075
      %v3212 = vsel %vm701, %v1224, %v3077
      %v3213 = vsel %vm701, %v1229, %v3079
      %v3214 = vsel %vm701, %v1234, %v3081
      %v3215 = vsel %vm701, %v1239, %v3083
      %v3216 = vsel %vm701, %v1244, %v3085
      %v3217 = vsel %vm701, %v1249, %v3087
      %vm3218 = vcmask 31744
      %v3219 = vsel %vm3218, %v3205, %v3115
      %v3220 = vsel %vm3218, %v3206, %v3117
      %v3221 = vsel %vm3218, %v3207, %v3119
      %v3222 = vsel %vm3218, %v3208, %v3121
      %v3223 = vsel %vm3218, %v3209, %v3123
      %v3224 = vsel %vm3218, %v3210, %v3125
      %v3225 = vsel %vm3218, %v3211, %v3127
      %v3226 = vsel %vm3218, %v3212, %v3129
      %v3227 = vsel %vm3218, %v3213, %v3131
      %v3228 = vsel %vm3218, %v3214, %v3133
      %v3229 = vsel %vm3218, %v3215, %v3135
      %v3230 = vsel %vm3218, %v3216, %v3137
      %v3231 = vsel %vm3218, %v3217, %v3139
      %vm3232 = vcmask 48128
      %v3233 = vsel %vm3232, %v3219, %v3167
      %v3234 = vsel %vm3232, %v3220, %v3169
      %v3235 = vsel %vm3232, %v3221, %v3171
      %v3236 = vsel %vm3232, %v3222, %v3173
      %v3237 = vsel %vm3232, %v3223, %v3175
      %v3238 = vsel %vm3232, %v3224, %v3177
      %v3239 = vsel %vm3232, %v3225, %v3179
      %v3240 = vsel %vm3232, %v3226, %v3181
      %v3241 = vsel %vm3232, %v3227, %v3183
      %v3242 = vsel %vm3232, %v3228, %v3185
      %v3243 = vsel %vm3232, %v3229, %v3187
      %v3244 = vsel %vm3232, %v3230, %v3189
      %v3245 = vsel %vm3232, %v3231, %v3191
      %v3246 = vld [vmem:[%s4] sm:$0xff]
      %v3247 = vld [vmem:[%s5] sm:$0x1]
      %v3249 = vlaneseq
      %v3250 = vshrl.u32 %v3249, 7
      %v3251 = vsub.s32 0, %v3250
      %v3252 = vrot.slane %v3247, %v3251
      %v3255 = vsel %vm483, %v3233, 0
      %v3258 = vsel %vm483, %v3234, 0
      %v3261 = vsel %vm483, %v3235, 0
      %v3264 = vsel %vm483, %v3236, 0
      %v3267 = vsel %vm483, %v3237, 0
      %v3270 = vsel %vm483, %v3238, 0
      %v3273 = vsel %vm483, %v3239, 0
      %v3276 = vsel %vm483, %v3240, 0
      %v3279 = vsel %vm483, %v3241, 0
      %v3282 = vsel %vm483, %v3242, 0
      %v3285 = vsel %vm483, %v3243, 0
      %v3288 = vsel %vm483, %v3244, 0
      %v3291 = vsel %vm483, %v3245, 0
      %v3294 = vsel %vm483, %v3246, 0
      %3296 = vmatprep.subr.mxu0 0.0
      %3297 = vmatpush1.xpose.msra.mxu0 0.0
      %3298 = vmatprep.subr.mxu0 0.0
      %3299 = vmatpush1.xpose.msra.mxu0 0.0
      %3300 = vmatprep.subr.mxu0 0.0
      %3301 = vmatpush1.xpose.msra.mxu0 0.0
      %3302 = vmatprep.subr.mxu0 0.0
      %3303 = vmatpush1.xpose.msra.mxu0 0.0
      %3304 = vmatprep.subr.mxu0 0.0
      %3305 = vmatpush1.xpose.msra.mxu0 0.0
      %3306 = vmatprep.subr.mxu0 0.0
      %3307 = vmatpush1.xpose.msra.mxu0 0.0
      %3308 = vmatprep.subr.mxu0 0.0
      %3309 = vmatpush1.xpose.msra.mxu0 0.0
      %3310 = vmatprep.subr.mxu0 0.0
      %3311 = vmatpush1.xpose.msra.mxu0 0.0
      %3312 = vmatprep.subr.mxu0 0.0
      %3313 = vmatpush1.xpose.msra.mxu0 0.0
      %3314 = vmatprep.subr.mxu0 0.0
      %3315 = vmatpush1.xpose.msra.mxu0 0.0
      %3316 = vmatprep.subr.mxu0 0.0
      %3317 = vmatpush1.xpose.msra.mxu0 0.0
      %3318 = vmatprep.subr.mxu0 0.0
      %3319 = vmatpush1.xpose.msra.mxu0 0.0
      %3320 = vmatprep.subr.mxu0 0.0
      %3321 = vmatpush1.xpose.msra.mxu0 0.0
      %3322 = vmatprep.subr.mxu0 0.0
      %3323 = vmatpush1.xpose.msra.mxu0 0.0
      %3324 = vmatprep.subr.mxu0 0.0
      %3325 = vmatpush1.xpose.msra.mxu0 0.0
      %3326 = vmatprep.subr.mxu0 0.0
      %3327 = vmatpush1.xpose.msra.mxu0 %v3294
      %3328 = vmatprep.subr.mxu0 0.0
      %3329 = vmatpush2.xpose.msra.mxu0 0.0
      %3330 = vmatprep.subr.mxu0 0.0
      %3331 = vmatpush2.xpose.msra.mxu0 0.0
      %3332 = vmatprep.subr.mxu0 0.0
      %3333 = vmatpush2.xpose.msra.mxu0 0.0
      %3334 = vmatprep.subr.mxu0 0.0
      %3335 = vmatpush2.xpose.msra.mxu0 0.0
      %3336 = vmatprep.subr.mxu0 0.0
      %3337 = vmatpush2.xpose.msra.mxu0 0.0
      %3338 = vmatprep.subr.mxu0 0.0
      %3339 = vmatpush2.xpose.msra.mxu0 0.0
      %3340 = vmatprep.subr.mxu0 0.0
      %3341 = vmatpush2.xpose.msra.mxu0 0.0
      %3342 = vmatprep.subr.mxu0 0.0
      %3343 = vmatpush2.xpose.msra.mxu0 0.0
      %3344 = vmatprep.subr.mxu0 0.0
      %3345 = vmatpush2.xpose.msra.mxu0 0.0
      %3346 = vmatprep.subr.mxu0 0.0
      %3347 = vmatpush2.xpose.msra.mxu0 0.0
      %3348 = vmatprep.subr.mxu0 0.0
      %3349 = vmatpush2.xpose.msra.mxu0 0.0
      %3350 = vmatprep.subr.mxu0 0.0
      %3351 = vmatpush2.xpose.msra.mxu0 0.0
      %3352 = vmatprep.subr.mxu0 0.0
      %3353 = vmatpush2.xpose.msra.mxu0 0.0
      %3354 = vmatprep.subr.mxu0 0.0
      %3355 = vmatpush2.xpose.msra.mxu0 0.0
      %3356 = vmatprep.subr.mxu0 0.0
      %3357 = vmatpush2.xpose.msra.mxu0 0.0
      %3358 = vmatprep.subr.mxu0 0.0
      %3359 = vmatpush2.xpose.msra.mxu0 0.0
      %3360 = vmatprep.mubr.f32.mxu0 0.0
      %3361 = vmatmul.mubr.f32.gmra.mxu0 %v3255
      %v3362 = vpop.f32.mrf.mxu0
      %v3363 = vadd.f32 %v3252, %v3362
      %v3364 = vpop.f32.mrf.mxu0
      %3365 = vmatprep.mubr.f32.mxu0 0.0
      %3366 = vmatmul.mubr.f32.gmra.mxu0 %v3258
      %v3367 = vpop.f32.mrf.mxu0
      %v3368 = vadd.f32 %v3252, %v3367
      %v3369 = vpop.f32.mrf.mxu0
      %3370 = vmatprep.mubr.f32.mxu0 0.0
      %3371 = vmatmul.mubr.f32.gmra.mxu0 %v3261
      %v3372 = vpop.f32.mrf.mxu0
      %v3373 = vadd.f32 %v3252, %v3372
      %v3374 = vpop.f32.mrf.mxu0
      %3375 = vmatprep.mubr.f32.mxu0 0.0
      %3376 = vmatmul.mubr.f32.gmra.mxu0 %v3264
      %v3377 = vpop.f32.mrf.mxu0
      %v3378 = vadd.f32 %v3252, %v3377
      %v3379 = vpop.f32.mrf.mxu0
      %3380 = vmatprep.mubr.f32.mxu0 0.0
      %3381 = vmatmul.mubr.f32.gmra.mxu0 %v3267
      %v3382 = vpop.f32.mrf.mxu0
      %v3383 = vadd.f32 %v3252, %v3382
      %v3384 = vpop.f32.mrf.mxu0
      %3385 = vmatprep.mubr.f32.mxu0 0.0
      %3386 = vmatmul.mubr.f32.gmra.mxu0 %v3270
      %v3387 = vpop.f32.mrf.mxu0
      %v3388 = vadd.f32 %v3252, %v3387
      %v3389 = vpop.f32.mrf.mxu0
      %3390 = vmatprep.mubr.f32.mxu0 0.0
      %3391 = vmatmul.mubr.f32.gmra.mxu0 %v3273
      %v3392 = vpop.f32.mrf.mxu0
      %v3393 = vadd.f32 %v3252, %v3392
      %v3394 = vpop.f32.mrf.mxu0
      %3395 = vmatprep.mubr.f32.mxu0 0.0
      %3396 = vmatmul.mubr.f32.gmra.mxu0 %v3276
      %v3397 = vpop.f32.mrf.mxu0
      %v3398 = vadd.f32 %v3252, %v3397
      %v3399 = vpop.f32.mrf.mxu0
      %3400 = vmatprep.mubr.f32.mxu0 0.0
      %3401 = vmatmul.mubr.f32.gmra.mxu0 %v3279
      %v3402 = vpop.f32.mrf.mxu0
      %v3403 = vadd.f32 %v3252, %v3402
      %v3404 = vpop.f32.mrf.mxu0
      %3405 = vmatprep.mubr.f32.mxu0 0.0
      %3406 = vmatmul.mubr.f32.gmra.mxu0 %v3282
      %v3407 = vpop.f32.mrf.mxu0
      %v3408 = vadd.f32 %v3252, %v3407
      %v3409 = vpop.f32.mrf.mxu0
      %3410 = vmatprep.mubr.f32.mxu0 0.0
      %3411 = vmatmul.mubr.f32.gmra.mxu0 %v3285
      %v3412 = vpop.f32.mrf.mxu0
      %v3413 = vadd.f32 %v3252, %v3412
      %v3414 = vpop.f32.mrf.mxu0
      %3415 = vmatprep.mubr.f32.mxu0 0.0
      %3416 = vmatmul.mubr.f32.gmra.mxu0 %v3288
      %v3417 = vpop.f32.mrf.mxu0
      %v3418 = vadd.f32 %v3252, %v3417
      %v3419 = vpop.f32.mrf.mxu0
      %3420 = vmatprep.mubr.f32.mxu0 0.0
      %3421 = vmatmul.mubr.f32.gmra.mxu0 %v3291
      %v3422 = vpop.f32.mrf.mxu0
      %v3423 = vadd.f32 %v3252, %v3422
      %v3424 = vpop.f32.mrf.mxu0
      %3425 = vdwg.mxu0
      %v3426 = vadd.f32 %v460, %v3363
      %v3427 = vadd.f32 %v461, %v3368
      %v3428 = vadd.f32 %v462, %v3373
      %v3429 = vadd.f32 %v463, %v3378
      %v3430 = vadd.f32 %v464, %v3383
      %v3431 = vadd.f32 %v465, %v3388
      %v3432 = vadd.f32 %v466, %v3393
      %v3433 = vadd.f32 %v467, %v3398
      %v3434 = vadd.f32 %v468, %v3403
      %v3435 = vadd.f32 %v469, %v3408
      %v3436 = vadd.f32 %v470, %v3413
      %v3437 = vadd.f32 %v471, %v3418
      %v3438 = vadd.f32 %v472, %v3423
      %v3439 = vld [vmem:[%s6] sm:$0x1]
      %v3440 = vld [vmem:[%s6 + $0x1] sm:$0x1]
      %v3441 = vsel %vm483, %v3426, 0.0
      %3442 = vadd.xlane.f32.xlu0 %v3441
      %v3443 = vpop.xlane.xlu0 %3442
      %v3444 = vsel %vm483, %v3427, 0.0
      %3445 = vadd.xlane.f32.xlu0 %v3444
      %v3446 = vpop.xlane.xlu0 %3445
      %v3447 = vsel %vm483, %v3428, 0.0
      %3448 = vadd.xlane.f32.xlu0 %v3447
      %v3449 = vpop.xlane.xlu0 %3448
      %v3450 = vsel %vm483, %v3429, 0.0
      %3451 = vadd.xlane.f32.xlu0 %v3450
      %v3452 = vpop.xlane.xlu0 %3451
      %v3453 = vsel %vm483, %v3430, 0.0
      %3454 = vadd.xlane.f32.xlu0 %v3453
      %v3455 = vpop.xlane.xlu0 %3454
      %v3456 = vsel %vm483, %v3431, 0.0
      %3457 = vadd.xlane.f32.xlu0 %v3456
      %v3458 = vpop.xlane.xlu0 %3457
      %v3459 = vsel %vm483, %v3432, 0.0
      %3460 = vadd.xlane.f32.xlu0 %v3459
      %v3461 = vpop.xlane.xlu0 %3460
      %v3462 = vsel %vm483, %v3433, 0.0
      %3463 = vadd.xlane.f32.xlu0 %v3462
      %v3464 = vpop.xlane.xlu0 %3463
      %v3465 = vsel %vm483, %v3434, 0.0
      %3466 = vadd.xlane.f32.xlu0 %v3465
      %v3467 = vpop.xlane.xlu0 %3466
      %v3468 = vsel %vm483, %v3435, 0.0
      %3469 = vadd.xlane.f32.xlu0 %v3468
      %v3470 = vpop.xlane.xlu0 %3469
      %v3471 = vsel %vm483, %v3436, 0.0
      %3472 = vadd.xlane.f32.xlu0 %v3471
      %v3473 = vpop.xlane.xlu0 %3472
      %v3474 = vsel %vm483, %v3437, 0.0
      %3475 = vadd.xlane.f32.xlu0 %v3474
      %v3476 = vpop.xlane.xlu0 %3475
      %vm3477 = vcmask 60416
      %v3478 = vsel %vm3477, %v3438, 0.0
      %3479 = vadd.xlane.f32.xlu0 %v3478
      %v3480 = vpop.xlane.xlu0 %3479
      %v3481 = vrcp.pop 8.0
      %v3482 = vmul.f32 %v3443, %v3481
      %v3483 = vmul.f32 %v3446, %v3481
      %v3484 = vmul.f32 %v3449, %v3481
      %v3485 = vmul.f32 %v3452, %v3481
      %v3486 = vmul.f32 %v3455, %v3481
      %v3487 = vmul.f32 %v3458, %v3481
      %v3488 = vmul.f32 %v3461, %v3481
      %v3489 = vmul.f32 %v3464, %v3481
      %v3490 = vmul.f32 %v3467, %v3481
      %v3491 = vmul.f32 %v3470, %v3481
      %v3492 = vmul.f32 %v3473, %v3481
      %v3493 = vmul.f32 %v3476, %v3481
      %v3494 = vmul.f32 %v3480, %v3481
      %v3495 = vsub.f32 %v3426, %v3482
      %v3496 = vsub.f32 %v3427, %v3483
      %v3497 = vsub.f32 %v3428, %v3484
      %v3498 = vsub.f32 %v3429, %v3485
      %v3499 = vsub.f32 %v3430, %v3486
      %v3500 = vsub.f32 %v3431, %v3487
      %v3501 = vsub.f32 %v3432, %v3488
      %v3502 = vsub.f32 %v3433, %v3489
      %v3503 = vsub.f32 %v3434, %v3490
      %v3504 = vsub.f32 %v3435, %v3491
      %v3505 = vsub.f32 %v3436, %v3492
      %v3506 = vsub.f32 %v3437, %v3493
      %v3507 = vsub.f32 %v3438, %v3494
      %v3508 = vmul.f32 %v3495, %v3495
      %v3509 = vmul.f32 %v3496, %v3496
      %v3510 = vmul.f32 %v3497, %v3497
      %v3511 = vmul.f32 %v3498, %v3498
      %v3512 = vmul.f32 %v3499, %v3499
      %v3513 = vmul.f32 %v3500, %v3500
      %v3514 = vmul.f32 %v3501, %v3501
      %v3515 = vmul.f32 %v3502, %v3502
      %v3516 = vmul.f32 %v3503, %v3503
      %v3517 = vmul.f32 %v3504, %v3504
      %v3518 = vmul.f32 %v3505, %v3505
      %v3519 = vmul.f32 %v3506, %v3506
      %v3520 = vmul.f32 %v3507, %v3507
      %v3521 = vsel %vm483, %v3508, 0.0
      %3522 = vadd.xlane.f32.xlu0 %v3521
      %v3523 = vpop.xlane.xlu0 %3522
      %v3524 = vsel %vm483, %v3509, 0.0
      %3525 = vadd.xlane.f32.xlu0 %v3524
      %v3526 = vpop.xlane.xlu0 %3525
      %v3527 = vsel %vm483, %v3510, 0.0
      %3528 = vadd.xlane.f32.xlu0 %v3527
      %v3529 = vpop.xlane.xlu0 %3528
      %v3530 = vsel %vm483, %v3511, 0.0
      %3531 = vadd.xlane.f32.xlu0 %v3530
      %v3532 = vpop.xlane.xlu0 %3531
      %v3533 = vsel %vm483, %v3512, 0.0
      %3534 = vadd.xlane.f32.xlu0 %v3533
      %v3535 = vpop.xlane.xlu0 %3534
      %v3536 = vsel %vm483, %v3513, 0.0
      %3537 = vadd.xlane.f32.xlu0 %v3536
      %v3538 = vpop.xlane.xlu0 %3537
      %v3539 = vsel %vm483, %v3514, 0.0
      %3540 = vadd.xlane.f32.xlu0 %v3539
      %v3541 = vpop.xlane.xlu0 %3540
      %v3542 = vsel %vm483, %v3515, 0.0
      %3543 = vadd.xlane.f32.xlu0 %v3542
      %v3544 = vpop.xlane.xlu0 %3543
      %v3545 = vsel %vm483, %v3516, 0.0
      %3546 = vadd.xlane.f32.xlu0 %v3545
      %v3547 = vpop.xlane.xlu0 %3546
      %v3548 = vsel %vm483, %v3517, 0.0
      %3549 = vadd.xlane.f32.xlu0 %v3548
      %v3550 = vpop.xlane.xlu0 %3549
      %v3551 = vsel %vm483, %v3518, 0.0
      %3552 = vadd.xlane.f32.xlu0 %v3551
      %v3553 = vpop.xlane.xlu0 %3552
      %v3554 = vsel %vm483, %v3519, 0.0
      %3555 = vadd.xlane.f32.xlu0 %v3554
      %v3556 = vpop.xlane.xlu0 %3555
      %v3557 = vsel %vm3477, %v3520, 0.0
      %3558 = vadd.xlane.f32.xlu0 %v3557
      %v3559 = vpop.xlane.xlu0 %3558
      %v3560 = vmul.f32 %v3523, %v3481
      %v3561 = vmul.f32 %v3526, %v3481
      %v3562 = vmul.f32 %v3529, %v3481
      %v3563 = vmul.f32 %v3532, %v3481
      %v3564 = vmul.f32 %v3535, %v3481
      %v3565 = vmul.f32 %v3538, %v3481
      %v3566 = vmul.f32 %v3541, %v3481
      %v3567 = vmul.f32 %v3544, %v3481
      %v3568 = vmul.f32 %v3547, %v3481
      %v3569 = vmul.f32 %v3550, %v3481
      %v3570 = vmul.f32 %v3553, %v3481
      %v3571 = vmul.f32 %v3556, %v3481
      %v3572 = vmul.f32 %v3559, %v3481
      %v3573 = vadd.f32 %v3560, 1e-05
      %v3574 = vadd.f32 %v3561, 1e-05
      %v3575 = vadd.f32 %v3562, 1e-05
      %v3576 = vadd.f32 %v3563, 1e-05
      %v3577 = vadd.f32 %v3564, 1e-05
      %v3578 = vadd.f32 %v3565, 1e-05
      %v3579 = vadd.f32 %v3566, 1e-05
      %v3580 = vadd.f32 %v3567, 1e-05
      %v3581 = vadd.f32 %v3568, 1e-05
      %v3582 = vadd.f32 %v3569, 1e-05
      %v3583 = vadd.f32 %v3570, 1e-05
      %v3584 = vadd.f32 %v3571, 1e-05
      %v3585 = vadd.f32 %v3572, 1e-05
      %v3586 = vrsqrt.pop %v3573
      %v3587 = vrsqrt.pop %v3574
      %v3588 = vrsqrt.pop %v3575
      %v3589 = vrsqrt.pop %v3576
      %v3590 = vrsqrt.pop %v3577
      %v3591 = vrsqrt.pop %v3578
      %v3592 = vrsqrt.pop %v3579
      %v3593 = vrsqrt.pop %v3580
      %v3594 = vrsqrt.pop %v3581
      %v3595 = vrsqrt.pop %v3582
      %v3596 = vrsqrt.pop %v3583
      %v3597 = vrsqrt.pop %v3584
      %v3598 = vrsqrt.pop %v3585
      %v3599 = vmul.f32 %v3495, %v3586
      %v3600 = vmul.f32 %v3496, %v3587
      %v3601 = vmul.f32 %v3497, %v3588
      %v3602 = vmul.f32 %v3498, %v3589
      %v3603 = vmul.f32 %v3499, %v3590
      %v3604 = vmul.f32 %v3500, %v3591
      %v3605 = vmul.f32 %v3501, %v3592
      %v3606 = vmul.f32 %v3502, %v3593
      %v3607 = vmul.f32 %v3503, %v3594
      %v3608 = vmul.f32 %v3504, %v3595
      %v3609 = vmul.f32 %v3505, %v3596
      %v3610 = vmul.f32 %v3506, %v3597
      %v3611 = vmul.f32 %v3507, %v3598
      %v3612 = vlaneseq
      %v3613 = vshrl.u32 %v3612, 7
      %v3614 = vsub.s32 0, %v3613
      %v3615 = vrot.slane %v3439, %v3614
      %v3616 = vmul.f32 %v3599, %v3615
      %v3617 = vmul.f32 %v3600, %v3615
      %v3618 = vmul.f32 %v3601, %v3615
      %v3619 = vmul.f32 %v3602, %v3615
      %v3620 = vmul.f32 %v3603, %v3615
      %v3621 = vmul.f32 %v3604, %v3615
      %v3622 = vmul.f32 %v3605, %v3615
      %v3623 = vmul.f32 %v3606, %v3615
      %v3624 = vmul.f32 %v3607, %v3615
      %v3625 = vmul.f32 %v3608, %v3615
      %v3626 = vmul.f32 %v3609, %v3615
      %v3627 = vmul.f32 %v3610, %v3615
      %v3628 = vmul.f32 %v3611, %v3615
      %v3629 = vlaneseq
      %v3630 = vshrl.u32 %v3629, 7
      %v3631 = vsub.s32 0, %v3630
      %v3632 = vrot.slane %v3440, %v3631
      %v3633 = vadd.f32 %v3616, %v3632
      %v3634 = vadd.f32 %v3617, %v3632
      %v3635 = vadd.f32 %v3618, %v3632
      %v3636 = vadd.f32 %v3619, %v3632
      %v3637 = vadd.f32 %v3620, %v3632
      %v3638 = vadd.f32 %v3621, %v3632
      %v3639 = vadd.f32 %v3622, %v3632
      %v3640 = vadd.f32 %v3623, %v3632
      %v3641 = vadd.f32 %v3624, %v3632
      %v3642 = vadd.f32 %v3625, %v3632
      %v3643 = vadd.f32 %v3626, %v3632
      %v3644 = vadd.f32 %v3627, %v3632
      %v3645 = vadd.f32 %v3628, %v3632
      %v3646 = vld [vmem:[%s7] sm:$0xff]
      %v3647 = vld [vmem:[%s7 + $0x8] sm:$0xff]
      %v3648 = vld [vmem:[%s7 + $0x10] sm:$0xff]
      %v3649 = vld [vmem:[%s7 + $0x18] sm:$0xff]
      %v3650 = vld [vmem:[%s7 + $0x20] sm:$0xff]
      %v3651 = vld [vmem:[%s7 + $0x28] sm:$0xff]
      %v3652 = vld [vmem:[%s7 + $0x30] sm:$0xff]
      %v3653 = vld [vmem:[%s7 + $0x38] sm:$0xff]
      %v3654 = vld [vmem:[%s7 + $0x40] sm:$0xff]
      %v3655 = vld [vmem:[%s7 + $0x48] sm:$0xff]
      %v3656 = vld [vmem:[%s7 + $0x50] sm:$0xff]
      %v3657 = vld [vmem:[%s7 + $0x58] sm:$0xff]
      %v3658 = vld [vmem:[%s7 + $0x60] sm:$0xff]
      %v3659 = vld [vmem:[%s7 + $0x68] sm:$0xff]
      %v3660 = vld [vmem:[%s7 + $0x70] sm:$0xff]
      %v3661 = vld [vmem:[%s7 + $0x78] sm:$0xff]
      %v3662 = vld [vmem:[%s7 + $0x80] sm:$0xff]
      %v3663 = vld [vmem:[%s7 + $0x88] sm:$0xff]
      %v3664 = vld [vmem:[%s7 + $0x90] sm:$0xff]
      %v3665 = vld [vmem:[%s7 + $0x98] sm:$0xff]
      %v3666 = vld [vmem:[%s7 + $0xa0] sm:$0xff]
      %v3667 = vld [vmem:[%s7 + $0xa8] sm:$0xff]
      %v3668 = vld [vmem:[%s7 + $0xb0] sm:$0xff]
      %v3669 = vld [vmem:[%s7 + $0xb8] sm:$0xff]
      %v3670 = vld [vmem:[%s7 + $0xc0] sm:$0xff]
      %v3671 = vld [vmem:[%s7 + $0xc8] sm:$0xff]
      %v3672 = vld [vmem:[%s7 + $0xd0] sm:$0xff]
      %v3673 = vld [vmem:[%s7 + $0xd8] sm:$0xff]
      %v3674 = vld [vmem:[%s7 + $0xe0] sm:$0xff]
      %v3675 = vld [vmem:[%s7 + $0xe8] sm:$0xff]
      %v3676 = vld [vmem:[%s7 + $0xf0] sm:$0xff]
      %v3677 = vld [vmem:[%s7 + $0xf8] sm:$0xff]
      %v3678 = vld [vmem:[%s7 + $0x100] sm:$0xff]
      %v3679 = vld [vmem:[%s7 + $0x108] sm:$0xff]
      %v3680 = vld [vmem:[%s7 + $0x110] sm:$0xff]
      %v3681 = vld [vmem:[%s7 + $0x118] sm:$0xff]
      %v3682 = vld [vmem:[%s7 + $0x120] sm:$0xff]
      %v3683 = vld [vmem:[%s7 + $0x128] sm:$0xff]
      %v3684 = vld [vmem:[%s7 + $0x130] sm:$0xff]
      %v3685 = vld [vmem:[%s7 + $0x138] sm:$0xff]
      %v3686 = vld [vmem:[%s7 + $0x140] sm:$0xff]
      %v3687 = vld [vmem:[%s7 + $0x148] sm:$0xff]
      %v3688 = vld [vmem:[%s7 + $0x150] sm:$0xff]
      %v3689 = vld [vmem:[%s7 + $0x158] sm:$0xff]
      %v3690 = vld [vmem:[%s7 + $0x160] sm:$0xff]
      %v3691 = vld [vmem:[%s7 + $0x168] sm:$0xff]
      %v3692 = vld [vmem:[%s7 + $0x170] sm:$0xff]
      %v3693 = vld [vmem:[%s7 + $0x178] sm:$0xff]
      %v3694 = vld [vmem:[%s7 + $0x180] sm:$0xff]
      %v3695 = vld [vmem:[%s7 + $0x188] sm:$0xff]
      %v3696 = vld [vmem:[%s7 + $0x190] sm:$0xff]
      %v3697 = vld [vmem:[%s7 + $0x198] sm:$0xff]
      %v3698 = vld [vmem:[%s7 + $0x1a0] sm:$0xff]
      %v3699 = vld [vmem:[%s7 + $0x1a8] sm:$0xff]
      %v3700 = vld [vmem:[%s7 + $0x1b0] sm:$0xff]
      %v3701 = vld [vmem:[%s7 + $0x1b8] sm:$0xff]
      %v3702 = vld [vmem:[%s7 + $0x1c0] sm:$0xff]
      %v3703 = vld [vmem:[%s7 + $0x1c8] sm:$0xff]
      %v3704 = vld [vmem:[%s7 + $0x1d0] sm:$0xff]
      %v3705 = vld [vmem:[%s7 + $0x1d8] sm:$0xff]
      %v3706 = vld [vmem:[%s7 + $0x1e0] sm:$0xff]
      %v3707 = vld [vmem:[%s7 + $0x1e8] sm:$0xff]
      %v3708 = vld [vmem:[%s7 + $0x1f0] sm:$0xff]
      %v3709 = vld [vmem:[%s7 + $0x1f8] sm:$0xff]
      %v3710 = vld [vmem:[%s7 + $0x200] sm:$0xff]
      %v3711 = vld [vmem:[%s7 + $0x208] sm:$0xff]
      %v3712 = vld [vmem:[%s7 + $0x210] sm:$0xff]
      %v3713 = vld [vmem:[%s7 + $0x218] sm:$0xff]
      %v3714 = vld [vmem:[%s7 + $0x220] sm:$0xff]
      %v3715 = vld [vmem:[%s7 + $0x228] sm:$0xff]
      %v3716 = vld [vmem:[%s7 + $0x230] sm:$0xff]
      %v3717 = vld [vmem:[%s7 + $0x238] sm:$0xff]
      %v3718 = vld [vmem:[%s7 + $0x240] sm:$0xff]
      %v3719 = vld [vmem:[%s7 + $0x248] sm:$0xff]
      %v3720 = vld [vmem:[%s7 + $0x250] sm:$0xff]
      %v3721 = vld [vmem:[%s7 + $0x258] sm:$0xff]
      %v3722 = vld [vmem:[%s7 + $0x260] sm:$0xff]
      %v3723 = vld [vmem:[%s7 + $0x268] sm:$0xff]
      %v3724 = vld [vmem:[%s7 + $0x270] sm:$0xff]
      %v3725 = vld [vmem:[%s7 + $0x278] sm:$0xff]
      %v3726 = vld [vmem:[%s7 + $0x280] sm:$0xff]
      %v3727 = vld [vmem:[%s7 + $0x288] sm:$0xff]
      %v3728 = vld [vmem:[%s7 + $0x290] sm:$0xff]
      %v3729 = vld [vmem:[%s7 + $0x298] sm:$0xff]
      %v3730 = vld [vmem:[%s7 + $0x2a0] sm:$0xff]
      %v3731 = vld [vmem:[%s7 + $0x2a8] sm:$0xff]
      %v3732 = vld [vmem:[%s7 + $0x2b0] sm:$0xff]
      %v3733 = vld [vmem:[%s7 + $0x2b8] sm:$0xff]
      %v3734 = vld [vmem:[%s7 + $0x2c0] sm:$0xff]
      %v3735 = vld [vmem:[%s7 + $0x2c8] sm:$0xff]
      %v3736 = vld [vmem:[%s7 + $0x2d0] sm:$0xff]
      %v3737 = vld [vmem:[%s7 + $0x2d8] sm:$0xff]
      %v3738 = vld [vmem:[%s7 + $0x2e0] sm:$0xff]
      %v3739 = vld [vmem:[%s7 + $0x2e8] sm:$0xff]
      %v3740 = vld [vmem:[%s7 + $0x2f0] sm:$0xff]
      %v3741 = vld [vmem:[%s7 + $0x2f8] sm:$0xff]
      %v3742 = vld [vmem:[%s7 + $0x300] sm:$0xff]
      %v3743 = vld [vmem:[%s7 + $0x308] sm:$0xff]
      %v3744 = vld [vmem:[%s7 + $0x310] sm:$0xff]
      %v3745 = vld [vmem:[%s7 + $0x318] sm:$0xff]
      %v3746 = vld [vmem:[%s8] sm:$0x7f]
      %v3748 = vlaneseq
      %v3749 = vshrl.u32 %v3748, 7
      %v3750 = vsub.s32 0, %v3749
      %v3751 = vrot.slane %v3746, %v3750
      %v3752 = vlaneseq
      %v3753 = vshrl.u32 %v3752, 7
      %v3754 = vsub.s32 1, %v3753
      %v3755 = vrot.slane %v3746, %v3754
      %v3756 = vlaneseq
      %v3757 = vshrl.u32 %v3756, 7
      %v3758 = vsub.s32 2, %v3757
      %v3759 = vrot.slane %v3746, %v3758
      %v3760 = vlaneseq
      %v3761 = vshrl.u32 %v3760, 7
      %v3762 = vsub.s32 3, %v3761
      %v3763 = vrot.slane %v3746, %v3762
      %v3764 = vlaneseq
      %v3765 = vshrl.u32 %v3764, 7
      %v3766 = vsub.s32 4, %v3765
      %v3767 = vrot.slane %v3746, %v3766
      %v3768 = vlaneseq
      %v3769 = vshrl.u32 %v3768, 7
      %v3770 = vsub.s32 5, %v3769
      %v3771 = vrot.slane %v3746, %v3770
      %v3772 = vlaneseq
      %v3773 = vshrl.u32 %v3772, 7
      %v3774 = vsub.s32 6, %v3773
      %v3775 = vrot.slane %v3746, %v3774
      %v3784 = vsel %vm483, %v3633, 0
      %v3787 = vsel %vm483, %v3634, 0
      %v3790 = vsel %vm483, %v3635, 0
      %v3793 = vsel %vm483, %v3636, 0
      %v3796 = vsel %vm483, %v3637, 0
      %v3799 = vsel %vm483, %v3638, 0
      %v3802 = vsel %vm483, %v3639, 0
      %v3805 = vsel %vm483, %v3640, 0
      %v3808 = vsel %vm483, %v3641, 0
      %v3811 = vsel %vm483, %v3642, 0
      %v3814 = vsel %vm483, %v3643, 0
      %v3817 = vsel %vm483, %v3644, 0
      %v3820 = vsel %vm483, %v3645, 0
      %v3823 = vsel %vm483, %v3646, 0
      %v3826 = vsel %vm483, %v3647, 0
      %v3829 = vsel %vm483, %v3648, 0
      %v3832 = vsel %vm483, %v3649, 0
      %v3835 = vsel %vm483, %v3650, 0
      %v3838 = vsel %vm483, %v3651, 0
      %v3841 = vsel %vm483, %v3652, 0
      %v3844 = vsel %vm483, %v3653, 0
      %v3847 = vsel %vm483, %v3654, 0
      %v3850 = vsel %vm483, %v3655, 0
      %v3853 = vsel %vm483, %v3656, 0
      %v3856 = vsel %vm483, %v3657, 0
      %v3859 = vsel %vm483, %v3658, 0
      %v3862 = vsel %vm483, %v3659, 0
      %v3865 = vsel %vm483, %v3660, 0
      %v3868 = vsel %vm483, %v3661, 0
      %v3871 = vsel %vm483, %v3662, 0
      %v3874 = vsel %vm483, %v3663, 0
      %v3877 = vsel %vm483, %v3664, 0
      %v3880 = vsel %vm483, %v3665, 0
      %v3883 = vsel %vm483, %v3666, 0
      %v3886 = vsel %vm483, %v3667, 0
      %v3889 = vsel %vm483, %v3668, 0
      %v3892 = vsel %vm483, %v3669, 0
      %v3895 = vsel %vm483, %v3670, 0
      %v3898 = vsel %vm483, %v3671, 0
      %v3901 = vsel %vm483, %v3672, 0
      %v3904 = vsel %vm483, %v3673, 0
      %v3907 = vsel %vm483, %v3674, 0
      %v3910 = vsel %vm483, %v3675, 0
      %v3913 = vsel %vm483, %v3676, 0
      %v3916 = vsel %vm483, %v3677, 0
      %v3919 = vsel %vm483, %v3678, 0
      %v3922 = vsel %vm483, %v3679, 0
      %v3925 = vsel %vm483, %v3680, 0
      %v3928 = vsel %vm483, %v3681, 0
      %v3931 = vsel %vm483, %v3682, 0
      %v3934 = vsel %vm483, %v3683, 0
      %v3937 = vsel %vm483, %v3684, 0
      %v3940 = vsel %vm483, %v3685, 0
      %v3943 = vsel %vm483, %v3686, 0
      %v3946 = vsel %vm483, %v3687, 0
      %v3949 = vsel %vm483, %v3688, 0
      %v3952 = vsel %vm483, %v3689, 0
      %v3955 = vsel %vm483, %v3690, 0
      %v3958 = vsel %vm483, %v3691, 0
      %v3961 = vsel %vm483, %v3692, 0
      %v3964 = vsel %vm483, %v3693, 0
      %v3967 = vsel %vm483, %v3694, 0
      %v3970 = vsel %vm483, %v3695, 0
      %v3973 = vsel %vm483, %v3696, 0
      %v3976 = vsel %vm483, %v3697, 0
      %v3979 = vsel %vm483, %v3698, 0
      %v3982 = vsel %vm483, %v3699, 0
      %v3985 = vsel %vm483, %v3700, 0
      %v3988 = vsel %vm483, %v3701, 0
      %v3991 = vsel %vm483, %v3702, 0
      %v3994 = vsel %vm483, %v3703, 0
      %v3997 = vsel %vm483, %v3704, 0
      %v4000 = vsel %vm483, %v3705, 0
      %v4003 = vsel %vm483, %v3706, 0
      %v4006 = vsel %vm483, %v3707, 0
      %v4009 = vsel %vm483, %v3708, 0
      %v4012 = vsel %vm483, %v3709, 0
      %v4015 = vsel %vm483, %v3710, 0
      %v4018 = vsel %vm483, %v3711, 0
      %v4021 = vsel %vm483, %v3712, 0
      %v4024 = vsel %vm483, %v3713, 0
      %v4027 = vsel %vm483, %v3714, 0
      %v4030 = vsel %vm483, %v3715, 0
      %v4033 = vsel %vm483, %v3716, 0
      %v4036 = vsel %vm483, %v3717, 0
      %v4039 = vsel %vm483, %v3718, 0
      %v4042 = vsel %vm483, %v3719, 0
      %v4045 = vsel %vm483, %v3720, 0
      %v4048 = vsel %vm483, %v3721, 0
      %v4051 = vsel %vm483, %v3722, 0
      %v4054 = vsel %vm483, %v3723, 0
      %v4057 = vsel %vm483, %v3724, 0
      %v4060 = vsel %vm483, %v3725, 0
      %v4063 = vsel %vm483, %v3726, 0
      %v4066 = vsel %vm483, %v3727, 0
      %v4069 = vsel %vm483, %v3728, 0
      %v4072 = vsel %vm483, %v3729, 0
      %v4075 = vsel %vm483, %v3730, 0
      %v4078 = vsel %vm483, %v3731, 0
      %v4081 = vsel %vm483, %v3732, 0
      %v4084 = vsel %vm483, %v3733, 0
      %v4087 = vsel %vm483, %v3734, 0
      %v4090 = vsel %vm483, %v3735, 0
      %v4093 = vsel %vm483, %v3736, 0
      %v4096 = vsel %vm483, %v3737, 0
      %v4099 = vsel %vm483, %v3738, 0
      %v4102 = vsel %vm483, %v3739, 0
      %v4105 = vsel %vm483, %v3740, 0
      %v4108 = vsel %vm483, %v3741, 0
      %v4111 = vsel %vm483, %v3742, 0
      %v4114 = vsel %vm483, %v3743, 0
      %v4117 = vsel %vm483, %v3744, 0
      %v4120 = vsel %vm483, %v3745, 0
      %4122 = vmatprep.subr.mxu0 0.0
      %4123 = vmatpush1.xpose.msra.mxu0 %v3868
      %4124 = vmatprep.subr.mxu0 0.0
      %4125 = vmatpush1.xpose.msra.mxu0 %v3865
      %4126 = vmatprep.subr.mxu0 0.0
      %4127 = vmatpush1.xpose.msra.mxu0 %v3862
      %4128 = vmatprep.subr.mxu0 0.0
      %4129 = vmatpush1.xpose.msra.mxu0 %v3859
      %4130 = vmatprep.subr.mxu0 0.0
      %4131 = vmatpush1.xpose.msra.mxu0 %v3856
      %4132 = vmatprep.subr.mxu0 0.0
      %4133 = vmatpush1.xpose.msra.mxu0 %v3853
      %4134 = vmatprep.subr.mxu0 0.0
      %4135 = vmatpush1.xpose.msra.mxu0 %v3850
      %4136 = vmatprep.subr.mxu0 0.0
      %4137 = vmatpush1.xpose.msra.mxu0 %v3847
      %4138 = vmatprep.subr.mxu0 0.0
      %4139 = vmatpush1.xpose.msra.mxu0 %v3844
      %4140 = vmatprep.subr.mxu0 0.0
      %4141 = vmatpush1.xpose.msra.mxu0 %v3841
      %4142 = vmatprep.subr.mxu0 0.0
      %4143 = vmatpush1.xpose.msra.mxu0 %v3838
      %4144 = vmatprep.subr.mxu0 0.0
      %4145 = vmatpush1.xpose.msra.mxu0 %v3835
      %4146 = vmatprep.subr.mxu0 0.0
      %4147 = vmatpush1.xpose.msra.mxu0 %v3832
      %4148 = vmatprep.subr.mxu0 0.0
      %4149 = vmatpush1.xpose.msra.mxu0 %v3829
      %4150 = vmatprep.subr.mxu0 0.0
      %4151 = vmatpush1.xpose.msra.mxu0 %v3826
      %4152 = vmatprep.subr.mxu0 0.0
      %4153 = vmatpush1.xpose.msra.mxu0 %v3823
      %4154 = vmatprep.subr.mxu0 0.0
      %4155 = vmatpush2.xpose.msra.mxu0 %v3916
      %4156 = vmatprep.subr.mxu0 0.0
      %4157 = vmatpush2.xpose.msra.mxu0 %v3913
      %4158 = vmatprep.subr.mxu0 0.0
      %4159 = vmatpush2.xpose.msra.mxu0 %v3910
      %4160 = vmatprep.subr.mxu0 0.0
      %4161 = vmatpush2.xpose.msra.mxu0 %v3907
      %4162 = vmatprep.subr.mxu0 0.0
      %4163 = vmatpush2.xpose.msra.mxu0 %v3904
      %4164 = vmatprep.subr.mxu0 0.0
      %4165 = vmatpush2.xpose.msra.mxu0 %v3901
      %4166 = vmatprep.subr.mxu0 0.0
      %4167 = vmatpush2.xpose.msra.mxu0 %v3898
      %4168 = vmatprep.subr.mxu0 0.0
      %4169 = vmatpush2.xpose.msra.mxu0 %v3895
      %4170 = vmatprep.subr.mxu0 0.0
      %4171 = vmatpush2.xpose.msra.mxu0 %v3892
      %4172 = vmatprep.subr.mxu0 0.0
      %4173 = vmatpush2.xpose.msra.mxu0 %v3889
      %4174 = vmatprep.subr.mxu0 0.0
      %4175 = vmatpush2.xpose.msra.mxu0 %v3886
      %4176 = vmatprep.subr.mxu0 0.0
      %4177 = vmatpush2.xpose.msra.mxu0 %v3883
      %4178 = vmatprep.subr.mxu0 0.0
      %4179 = vmatpush2.xpose.msra.mxu0 %v3880
      %4180 = vmatprep.subr.mxu0 0.0
      %4181 = vmatpush2.xpose.msra.mxu0 %v3877
      %4182 = vmatprep.subr.mxu0 0.0
      %4183 = vmatpush2.xpose.msra.mxu0 %v3874
      %4184 = vmatprep.subr.mxu0 0.0
      %4185 = vmatpush2.xpose.msra.mxu0 %v3871
      %4186 = vmatprep.mubr.f32.mxu0 0.0
      %4187 = vmatmul.mubr.f32.gmra.mxu0 %v3784
      %v4188 = vpop.f32.mrf.mxu0
      %v4189 = vadd.f32 %v3751, %v4188
      %v4190 = vpop.f32.mrf.mxu0
      %v4191 = vadd.f32 %v3755, %v4190
      %4192 = vmatprep.mubr.f32.mxu0 0.0
      %4193 = vmatmul.mubr.f32.gmra.mxu0 %v3787
      %v4194 = vpop.f32.mrf.mxu0
      %v4195 = vadd.f32 %v3751, %v4194
      %v4196 = vpop.f32.mrf.mxu0
      %v4197 = vadd.f32 %v3755, %v4196
      %4198 = vmatprep.mubr.f32.mxu0 0.0
      %4199 = vmatmul.mubr.f32.gmra.mxu0 %v3790
      %v4200 = vpop.f32.mrf.mxu0
      %v4201 = vadd.f32 %v3751, %v4200
      %v4202 = vpop.f32.mrf.mxu0
      %v4203 = vadd.f32 %v3755, %v4202
      %4204 = vmatprep.mubr.f32.mxu0 0.0
      %4205 = vmatmul.mubr.f32.gmra.mxu0 %v3793
      %v4206 = vpop.f32.mrf.mxu0
      %v4207 = vadd.f32 %v3751, %v4206
      %v4208 = vpop.f32.mrf.mxu0
      %v4209 = vadd.f32 %v3755, %v4208
      %4210 = vmatprep.mubr.f32.mxu0 0.0
      %4211 = vmatmul.mubr.f32.gmra.mxu0 %v3796
      %v4212 = vpop.f32.mrf.mxu0
      %v4213 = vadd.f32 %v3751, %v4212
      %v4214 = vpop.f32.mrf.mxu0
      %v4215 = vadd.f32 %v3755, %v4214
      %4216 = vmatprep.mubr.f32.mxu0 0.0
      %4217 = vmatmul.mubr.f32.gmra.mxu0 %v3799
      %v4218 = vpop.f32.mrf.mxu0
      %v4219 = vadd.f32 %v3751, %v4218
      %v4220 = vpop.f32.mrf.mxu0
      %v4221 = vadd.f32 %v3755, %v4220
      %4222 = vmatprep.mubr.f32.mxu0 0.0
      %4223 = vmatmul.mubr.f32.gmra.mxu0 %v3802
      %v4224 = vpop.f32.mrf.mxu0
      %v4225 = vadd.f32 %v3751, %v4224
      %v4226 = vpop.f32.mrf.mxu0
      %v4227 = vadd.f32 %v3755, %v4226
      %4228 = vmatprep.mubr.f32.mxu0 0.0
      %4229 = vmatmul.mubr.f32.gmra.mxu0 %v3805
      %v4230 = vpop.f32.mrf.mxu0
      %v4231 = vadd.f32 %v3751, %v4230
      %v4232 = vpop.f32.mrf.mxu0
      %v4233 = vadd.f32 %v3755, %v4232
      %4234 = vmatprep.mubr.f32.mxu0 0.0
      %4235 = vmatmul.mubr.f32.gmra.mxu0 %v3808
      %v4236 = vpop.f32.mrf.mxu0
      %v4237 = vadd.f32 %v3751, %v4236
      %v4238 = vpop.f32.mrf.mxu0
      %v4239 = vadd.f32 %v3755, %v4238
      %4240 = vmatprep.mubr.f32.mxu0 0.0
      %4241 = vmatmul.mubr.f32.gmra.mxu0 %v3811
      %v4242 = vpop.f32.mrf.mxu0
      %v4243 = vadd.f32 %v3751, %v4242
      %v4244 = vpop.f32.mrf.mxu0
      %v4245 = vadd.f32 %v3755, %v4244
      %4246 = vmatprep.mubr.f32.mxu0 0.0
      %4247 = vmatmul.mubr.f32.gmra.mxu0 %v3814
      %v4248 = vpop.f32.mrf.mxu0
      %v4249 = vadd.f32 %v3751, %v4248
      %v4250 = vpop.f32.mrf.mxu0
      %v4251 = vadd.f32 %v3755, %v4250
      %4252 = vmatprep.mubr.f32.mxu0 0.0
      %4253 = vmatmul.mubr.f32.gmra.mxu0 %v3817
      %v4254 = vpop.f32.mrf.mxu0
      %v4255 = vadd.f32 %v3751, %v4254
      %v4256 = vpop.f32.mrf.mxu0
      %v4257 = vadd.f32 %v3755, %v4256
      %4258 = vmatprep.mubr.f32.mxu0 0.0
      %4259 = vmatmul.mubr.f32.gmra.mxu0 %v3820
      %v4260 = vpop.f32.mrf.mxu0
      %v4261 = vadd.f32 %v3751, %v4260
      %v4262 = vpop.f32.mrf.mxu0
      %v4263 = vadd.f32 %v3755, %v4262
      %4264 = vdwg.mxu0
      %4265 = vmatprep.subr.mxu0 0.0
      %4266 = vmatpush1.xpose.msra.mxu0 %v3964
      %4267 = vmatprep.subr.mxu0 0.0
      %4268 = vmatpush1.xpose.msra.mxu0 %v3961
      %4269 = vmatprep.subr.mxu0 0.0
      %4270 = vmatpush1.xpose.msra.mxu0 %v3958
      %4271 = vmatprep.subr.mxu0 0.0
      %4272 = vmatpush1.xpose.msra.mxu0 %v3955
      %4273 = vmatprep.subr.mxu0 0.0
      %4274 = vmatpush1.xpose.msra.mxu0 %v3952
      %4275 = vmatprep.subr.mxu0 0.0
      %4276 = vmatpush1.xpose.msra.mxu0 %v3949
      %4277 = vmatprep.subr.mxu0 0.0
      %4278 = vmatpush1.xpose.msra.mxu0 %v3946
      %4279 = vmatprep.subr.mxu0 0.0
      %4280 = vmatpush1.xpose.msra.mxu0 %v3943
      %4281 = vmatprep.subr.mxu0 0.0
      %4282 = vmatpush1.xpose.msra.mxu0 %v3940
      %4283 = vmatprep.subr.mxu0 0.0
      %4284 = vmatpush1.xpose.msra.mxu0 %v3937
      %4285 = vmatprep.subr.mxu0 0.0
      %4286 = vmatpush1.xpose.msra.mxu0 %v3934
      %4287 = vmatprep.subr.mxu0 0.0
      %4288 = vmatpush1.xpose.msra.mxu0 %v3931
      %4289 = vmatprep.subr.mxu0 0.0
      %4290 = vmatpush1.xpose.msra.mxu0 %v3928
      %4291 = vmatprep.subr.mxu0 0.0
      %4292 = vmatpush1.xpose.msra.mxu0 %v3925
      %4293 = vmatprep.subr.mxu0 0.0
      %4294 = vmatpush1.xpose.msra.mxu0 %v3922
      %4295 = vmatprep.subr.mxu0 0.0
      %4296 = vmatpush1.xpose.msra.mxu0 %v3919
      %4297 = vmatprep.subr.mxu0 0.0
      %4298 = vmatpush2.xpose.msra.mxu0 %v4012
      %4299 = vmatprep.subr.mxu0 0.0
      %4300 = vmatpush2.xpose.msra.mxu0 %v4009
      %4301 = vmatprep.subr.mxu0 0.0
      %4302 = vmatpush2.xpose.msra.mxu0 %v4006
      %4303 = vmatprep.subr.mxu0 0.0
      %4304 = vmatpush2.xpose.msra.mxu0 %v4003
      %4305 = vmatprep.subr.mxu0 0.0
      %4306 = vmatpush2.xpose.msra.mxu0 %v4000
      %4307 = vmatprep.subr.mxu0 0.0
      %4308 = vmatpush2.xpose.msra.mxu0 %v3997
      %4309 = vmatprep.subr.mxu0 0.0
      %4310 = vmatpush2.xpose.msra.mxu0 %v3994
      %4311 = vmatprep.subr.mxu0 0.0
      %4312 = vmatpush2.xpose.msra.mxu0 %v3991
      %4313 = vmatprep.subr.mxu0 0.0
      %4314 = vmatpush2.xpose.msra.mxu0 %v3988
      %4315 = vmatprep.subr.mxu0 0.0
      %4316 = vmatpush2.xpose.msra.mxu0 %v3985
      %4317 = vmatprep.subr.mxu0 0.0
      %4318 = vmatpush2.xpose.msra.mxu0 %v3982
      %4319 = vmatprep.subr.mxu0 0.0
      %4320 = vmatpush2.xpose.msra.mxu0 %v3979
      %4321 = vmatprep.subr.mxu0 0.0
      %4322 = vmatpush2.xpose.msra.mxu0 %v3976
      %4323 = vmatprep.subr.mxu0 0.0
      %4324 = vmatpush2.xpose.msra.mxu0 %v3973
      %4325 = vmatprep.subr.mxu0 0.0
      %4326 = vmatpush2.xpose.msra.mxu0 %v3970
      %4327 = vmatprep.subr.mxu0 0.0
      %4328 = vmatpush2.xpose.msra.mxu0 %v3967
      %4329 = vmatprep.mubr.f32.mxu0 0.0
      %4330 = vmatmul.mubr.f32.gmra.mxu0 %v3784
      %v4331 = vpop.f32.mrf.mxu0
      %v4332 = vadd.f32 %v3759, %v4331
      %v4333 = vpop.f32.mrf.mxu0
      %v4334 = vadd.f32 %v3763, %v4333
      %4335 = vmatprep.mubr.f32.mxu0 0.0
      %4336 = vmatmul.mubr.f32.gmra.mxu0 %v3787
      %v4337 = vpop.f32.mrf.mxu0
      %v4338 = vadd.f32 %v3759, %v4337
      %v4339 = vpop.f32.mrf.mxu0
      %v4340 = vadd.f32 %v3763, %v4339
      %4341 = vmatprep.mubr.f32.mxu0 0.0
      %4342 = vmatmul.mubr.f32.gmra.mxu0 %v3790
      %v4343 = vpop.f32.mrf.mxu0
      %v4344 = vadd.f32 %v3759, %v4343
      %v4345 = vpop.f32.mrf.mxu0
      %v4346 = vadd.f32 %v3763, %v4345
      %4347 = vmatprep.mubr.f32.mxu0 0.0
      %4348 = vmatmul.mubr.f32.gmra.mxu0 %v3793
      %v4349 = vpop.f32.mrf.mxu0
      %v4350 = vadd.f32 %v3759, %v4349
      %v4351 = vpop.f32.mrf.mxu0
      %v4352 = vadd.f32 %v3763, %v4351
      %4353 = vmatprep.mubr.f32.mxu0 0.0
      %4354 = vmatmul.mubr.f32.gmra.mxu0 %v3796
      %v4355 = vpop.f32.mrf.mxu0
      %v4356 = vadd.f32 %v3759, %v4355
      %v4357 = vpop.f32.mrf.mxu0
      %v4358 = vadd.f32 %v3763, %v4357
      %4359 = vmatprep.mubr.f32.mxu0 0.0
      %4360 = vmatmul.mubr.f32.gmra.mxu0 %v3799
      %v4361 = vpop.f32.mrf.mxu0
      %v4362 = vadd.f32 %v3759, %v4361
      %v4363 = vpop.f32.mrf.mxu0
      %v4364 = vadd.f32 %v3763, %v4363
      %4365 = vmatprep.mubr.f32.mxu0 0.0
      %4366 = vmatmul.mubr.f32.gmra.mxu0 %v3802
      %v4367 = vpop.f32.mrf.mxu0
      %v4368 = vadd.f32 %v3759, %v4367
      %v4369 = vpop.f32.mrf.mxu0
      %v4370 = vadd.f32 %v3763, %v4369
      %4371 = vmatprep.mubr.f32.mxu0 0.0
      %4372 = vmatmul.mubr.f32.gmra.mxu0 %v3805
      %v4373 = vpop.f32.mrf.mxu0
      %v4374 = vadd.f32 %v3759, %v4373
      %v4375 = vpop.f32.mrf.mxu0
      %v4376 = vadd.f32 %v3763, %v4375
      %4377 = vmatprep.mubr.f32.mxu0 0.0
      %4378 = vmatmul.mubr.f32.gmra.mxu0 %v3808
      %v4379 = vpop.f32.mrf.mxu0
      %v4380 = vadd.f32 %v3759, %v4379
      %v4381 = vpop.f32.mrf.mxu0
      %v4382 = vadd.f32 %v3763, %v4381
      %4383 = vmatprep.mubr.f32.mxu0 0.0
      %4384 = vmatmul.mubr.f32.gmra.mxu0 %v3811
      %v4385 = vpop.f32.mrf.mxu0
      %v4386 = vadd.f32 %v3759, %v4385
      %v4387 = vpop.f32.mrf.mxu0
      %v4388 = vadd.f32 %v3763, %v4387
      %4389 = vmatprep.mubr.f32.mxu0 0.0
      %4390 = vmatmul.mubr.f32.gmra.mxu0 %v3814
      %v4391 = vpop.f32.mrf.mxu0
      %v4392 = vadd.f32 %v3759, %v4391
      %v4393 = vpop.f32.mrf.mxu0
      %v4394 = vadd.f32 %v3763, %v4393
      %4395 = vmatprep.mubr.f32.mxu0 0.0
      %4396 = vmatmul.mubr.f32.gmra.mxu0 %v3817
      %v4397 = vpop.f32.mrf.mxu0
      %v4398 = vadd.f32 %v3759, %v4397
      %v4399 = vpop.f32.mrf.mxu0
      %v4400 = vadd.f32 %v3763, %v4399
      %4401 = vmatprep.mubr.f32.mxu0 0.0
      %4402 = vmatmul.mubr.f32.gmra.mxu0 %v3820
      %v4403 = vpop.f32.mrf.mxu0
      %v4404 = vadd.f32 %v3759, %v4403
      %v4405 = vpop.f32.mrf.mxu0
      %v4406 = vadd.f32 %v3763, %v4405
      %4407 = vdwg.mxu0
      %4408 = vmatprep.subr.mxu0 0.0
      %4409 = vmatpush1.xpose.msra.mxu0 %v4060
      %4410 = vmatprep.subr.mxu0 0.0
      %4411 = vmatpush1.xpose.msra.mxu0 %v4057
      %4412 = vmatprep.subr.mxu0 0.0
      %4413 = vmatpush1.xpose.msra.mxu0 %v4054
      %4414 = vmatprep.subr.mxu0 0.0
      %4415 = vmatpush1.xpose.msra.mxu0 %v4051
      %4416 = vmatprep.subr.mxu0 0.0
      %4417 = vmatpush1.xpose.msra.mxu0 %v4048
      %4418 = vmatprep.subr.mxu0 0.0
      %4419 = vmatpush1.xpose.msra.mxu0 %v4045
      %4420 = vmatprep.subr.mxu0 0.0
      %4421 = vmatpush1.xpose.msra.mxu0 %v4042
      %4422 = vmatprep.subr.mxu0 0.0
      %4423 = vmatpush1.xpose.msra.mxu0 %v4039
      %4424 = vmatprep.subr.mxu0 0.0
      %4425 = vmatpush1.xpose.msra.mxu0 %v4036
      %4426 = vmatprep.subr.mxu0 0.0
      %4427 = vmatpush1.xpose.msra.mxu0 %v4033
      %4428 = vmatprep.subr.mxu0 0.0
      %4429 = vmatpush1.xpose.msra.mxu0 %v4030
      %4430 = vmatprep.subr.mxu0 0.0
      %4431 = vmatpush1.xpose.msra.mxu0 %v4027
      %4432 = vmatprep.subr.mxu0 0.0
      %4433 = vmatpush1.xpose.msra.mxu0 %v4024
      %4434 = vmatprep.subr.mxu0 0.0
      %4435 = vmatpush1.xpose.msra.mxu0 %v4021
      %4436 = vmatprep.subr.mxu0 0.0
      %4437 = vmatpush1.xpose.msra.mxu0 %v4018
      %4438 = vmatprep.subr.mxu0 0.0
      %4439 = vmatpush1.xpose.msra.mxu0 %v4015
      %4440 = vmatprep.subr.mxu0 0.0
      %4441 = vmatpush2.xpose.msra.mxu0 %v4108
      %4442 = vmatprep.subr.mxu0 0.0
      %4443 = vmatpush2.xpose.msra.mxu0 %v4105
      %4444 = vmatprep.subr.mxu0 0.0
      %4445 = vmatpush2.xpose.msra.mxu0 %v4102
      %4446 = vmatprep.subr.mxu0 0.0
      %4447 = vmatpush2.xpose.msra.mxu0 %v4099
      %4448 = vmatprep.subr.mxu0 0.0
      %4449 = vmatpush2.xpose.msra.mxu0 %v4096
      %4450 = vmatprep.subr.mxu0 0.0
      %4451 = vmatpush2.xpose.msra.mxu0 %v4093
      %4452 = vmatprep.subr.mxu0 0.0
      %4453 = vmatpush2.xpose.msra.mxu0 %v4090
      %4454 = vmatprep.subr.mxu0 0.0
      %4455 = vmatpush2.xpose.msra.mxu0 %v4087
      %4456 = vmatprep.subr.mxu0 0.0
      %4457 = vmatpush2.xpose.msra.mxu0 %v4084
      %4458 = vmatprep.subr.mxu0 0.0
      %4459 = vmatpush2.xpose.msra.mxu0 %v4081
      %4460 = vmatprep.subr.mxu0 0.0
      %4461 = vmatpush2.xpose.msra.mxu0 %v4078
      %4462 = vmatprep.subr.mxu0 0.0
      %4463 = vmatpush2.xpose.msra.mxu0 %v4075
      %4464 = vmatprep.subr.mxu0 0.0
      %4465 = vmatpush2.xpose.msra.mxu0 %v4072
      %4466 = vmatprep.subr.mxu0 0.0
      %4467 = vmatpush2.xpose.msra.mxu0 %v4069
      %4468 = vmatprep.subr.mxu0 0.0
      %4469 = vmatpush2.xpose.msra.mxu0 %v4066
      %4470 = vmatprep.subr.mxu0 0.0
      %4471 = vmatpush2.xpose.msra.mxu0 %v4063
      %4472 = vmatprep.mubr.f32.mxu0 0.0
      %4473 = vmatmul.mubr.f32.gmra.mxu0 %v3784
      %v4474 = vpop.f32.mrf.mxu0
      %v4475 = vadd.f32 %v3767, %v4474
      %v4476 = vpop.f32.mrf.mxu0
      %v4477 = vadd.f32 %v3771, %v4476
      %4478 = vmatprep.mubr.f32.mxu0 0.0
      %4479 = vmatmul.mubr.f32.gmra.mxu0 %v3787
      %v4480 = vpop.f32.mrf.mxu0
      %v4481 = vadd.f32 %v3767, %v4480
      %v4482 = vpop.f32.mrf.mxu0
      %v4483 = vadd.f32 %v3771, %v4482
      %4484 = vmatprep.mubr.f32.mxu0 0.0
      %4485 = vmatmul.mubr.f32.gmra.mxu0 %v3790
      %v4486 = vpop.f32.mrf.mxu0
      %v4487 = vadd.f32 %v3767, %v4486
      %v4488 = vpop.f32.mrf.mxu0
      %v4489 = vadd.f32 %v3771, %v4488
      %4490 = vmatprep.mubr.f32.mxu0 0.0
      %4491 = vmatmul.mubr.f32.gmra.mxu0 %v3793
      %v4492 = vpop.f32.mrf.mxu0
      %v4493 = vadd.f32 %v3767, %v4492
      %v4494 = vpop.f32.mrf.mxu0
      %v4495 = vadd.f32 %v3771, %v4494
      %4496 = vmatprep.mubr.f32.mxu0 0.0
      %4497 = vmatmul.mubr.f32.gmra.mxu0 %v3796
      %v4498 = vpop.f32.mrf.mxu0
      %v4499 = vadd.f32 %v3767, %v4498
      %v4500 = vpop.f32.mrf.mxu0
      %v4501 = vadd.f32 %v3771, %v4500
      %4502 = vmatprep.mubr.f32.mxu0 0.0
      %4503 = vmatmul.mubr.f32.gmra.mxu0 %v3799
      %v4504 = vpop.f32.mrf.mxu0
      %v4505 = vadd.f32 %v3767, %v4504
      %v4506 = vpop.f32.mrf.mxu0
      %v4507 = vadd.f32 %v3771, %v4506
      %4508 = vmatprep.mubr.f32.mxu0 0.0
      %4509 = vmatmul.mubr.f32.gmra.mxu0 %v3802
      %v4510 = vpop.f32.mrf.mxu0
      %v4511 = vadd.f32 %v3767, %v4510
      %v4512 = vpop.f32.mrf.mxu0
      %v4513 = vadd.f32 %v3771, %v4512
      %4514 = vmatprep.mubr.f32.mxu0 0.0
      %4515 = vmatmul.mubr.f32.gmra.mxu0 %v3805
      %v4516 = vpop.f32.mrf.mxu0
      %v4517 = vadd.f32 %v3767, %v4516
      %v4518 = vpop.f32.mrf.mxu0
      %v4519 = vadd.f32 %v3771, %v4518
      %4520 = vmatprep.mubr.f32.mxu0 0.0
      %4521 = vmatmul.mubr.f32.gmra.mxu0 %v3808
      %v4522 = vpop.f32.mrf.mxu0
      %v4523 = vadd.f32 %v3767, %v4522
      %v4524 = vpop.f32.mrf.mxu0
      %v4525 = vadd.f32 %v3771, %v4524
      %4526 = vmatprep.mubr.f32.mxu0 0.0
      %4527 = vmatmul.mubr.f32.gmra.mxu0 %v3811
      %v4528 = vpop.f32.mrf.mxu0
      %v4529 = vadd.f32 %v3767, %v4528
      %v4530 = vpop.f32.mrf.mxu0
      %v4531 = vadd.f32 %v3771, %v4530
      %4532 = vmatprep.mubr.f32.mxu0 0.0
      %4533 = vmatmul.mubr.f32.gmra.mxu0 %v3814
      %v4534 = vpop.f32.mrf.mxu0
      %v4535 = vadd.f32 %v3767, %v4534
      %v4536 = vpop.f32.mrf.mxu0
      %v4537 = vadd.f32 %v3771, %v4536
      %4538 = vmatprep.mubr.f32.mxu0 0.0
      %4539 = vmatmul.mubr.f32.gmra.mxu0 %v3817
      %v4540 = vpop.f32.mrf.mxu0
      %v4541 = vadd.f32 %v3767, %v4540
      %v4542 = vpop.f32.mrf.mxu0
      %v4543 = vadd.f32 %v3771, %v4542
      %4544 = vmatprep.mubr.f32.mxu0 0.0
      %4545 = vmatmul.mubr.f32.gmra.mxu0 %v3820
      %v4546 = vpop.f32.mrf.mxu0
      %v4547 = vadd.f32 %v3767, %v4546
      %v4548 = vpop.f32.mrf.mxu0
      %v4549 = vadd.f32 %v3771, %v4548
      %4550 = vdwg.mxu0
      %4551 = vmatprep.subr.mxu0 0.0
      %4552 = vmatpush1.xpose.msra.mxu0 0.0
      %4553 = vmatprep.subr.mxu0 0.0
      %4554 = vmatpush1.xpose.msra.mxu0 0.0
      %4555 = vmatprep.subr.mxu0 0.0
      %4556 = vmatpush1.xpose.msra.mxu0 0.0
      %4557 = vmatprep.subr.mxu0 0.0
      %4558 = vmatpush1.xpose.msra.mxu0 0.0
      %4559 = vmatprep.subr.mxu0 0.0
      %4560 = vmatpush1.xpose.msra.mxu0 0.0
      %4561 = vmatprep.subr.mxu0 0.0
      %4562 = vmatpush1.xpose.msra.mxu0 0.0
      %4563 = vmatprep.subr.mxu0 0.0
      %4564 = vmatpush1.xpose.msra.mxu0 0.0
      %4565 = vmatprep.subr.mxu0 0.0
      %4566 = vmatpush1.xpose.msra.mxu0 0.0
      %4567 = vmatprep.subr.mxu0 0.0
      %4568 = vmatpush1.xpose.msra.mxu0 0.0
      %4569 = vmatprep.subr.mxu0 0.0
      %4570 = vmatpush1.xpose.msra.mxu0 0.0
      %4571 = vmatprep.subr.mxu0 0.0
      %4572 = vmatpush1.xpose.msra.mxu0 0.0
      %4573 = vmatprep.subr.mxu0 0.0
      %4574 = vmatpush1.xpose.msra.mxu0 0.0
      %4575 = vmatprep.subr.mxu0 0.0
      %4576 = vmatpush1.xpose.msra.mxu0 %v4120
      %4577 = vmatprep.subr.mxu0 0.0
      %4578 = vmatpush1.xpose.msra.mxu0 %v4117
      %4579 = vmatprep.subr.mxu0 0.0
      %4580 = vmatpush1.xpose.msra.mxu0 %v4114
      %4581 = vmatprep.subr.mxu0 0.0
      %4582 = vmatpush1.xpose.msra.mxu0 %v4111
      %4583 = vmatprep.subr.mxu0 0.0
      %4584 = vmatpush2.xpose.msra.mxu0 0.0
      %4585 = vmatprep.subr.mxu0 0.0
      %4586 = vmatpush2.xpose.msra.mxu0 0.0
      %4587 = vmatprep.subr.mxu0 0.0
      %4588 = vmatpush2.xpose.msra.mxu0 0.0
      %4589 = vmatprep.subr.mxu0 0.0
      %4590 = vmatpush2.xpose.msra.mxu0 0.0
      %4591 = vmatprep.subr.mxu0 0.0
      %4592 = vmatpush2.xpose.msra.mxu0 0.0
      %4593 = vmatprep.subr.mxu0 0.0
      %4594 = vmatpush2.xpose.msra.mxu0 0.0
      %4595 = vmatprep.subr.mxu0 0.0
      %4596 = vmatpush2.xpose.msra.mxu0 0.0
      %4597 = vmatprep.subr.mxu0 0.0
      %4598 = vmatpush2.xpose.msra.mxu0 0.0
      %4599 = vmatprep.subr.mxu0 0.0
      %4600 = vmatpush2.xpose.msra.mxu0 0.0
      %4601 = vmatprep.subr.mxu0 0.0
      %4602 = vmatpush2.xpose.msra.mxu0 0.0
      %4603 = vmatprep.subr.mxu0 0.0
      %4604 = vmatpush2.xpose.msra.mxu0 0.0
      %4605 = vmatprep.subr.mxu0 0.0
      %4606 = vmatpush2.xpose.msra.mxu0 0.0
      %4607 = vmatprep.subr.mxu0 0.0
      %4608 = vmatpush2.xpose.msra.mxu0 0.0
      %4609 = vmatprep.subr.mxu0 0.0
      %4610 = vmatpush2.xpose.msra.mxu0 0.0
      %4611 = vmatprep.subr.mxu0 0.0
      %4612 = vmatpush2.xpose.msra.mxu0 0.0
      %4613 = vmatprep.subr.mxu0 0.0
      %4614 = vmatpush2.xpose.msra.mxu0 0.0
      %4615 = vmatprep.mubr.f32.mxu0 0.0
      %4616 = vmatmul.mubr.f32.gmra.mxu0 %v3784
      %v4617 = vpop.f32.mrf.mxu0
      %v4618 = vadd.f32 %v3775, %v4617
      %v4619 = vpop.f32.mrf.mxu0
      %4620 = vmatprep.mubr.f32.mxu0 0.0
      %4621 = vmatmul.mubr.f32.gmra.mxu0 %v3787
      %v4622 = vpop.f32.mrf.mxu0
      %v4623 = vadd.f32 %v3775, %v4622
      %v4624 = vpop.f32.mrf.mxu0
      %4625 = vmatprep.mubr.f32.mxu0 0.0
      %4626 = vmatmul.mubr.f32.gmra.mxu0 %v3790
      %v4627 = vpop.f32.mrf.mxu0
      %v4628 = vadd.f32 %v3775, %v4627
      %v4629 = vpop.f32.mrf.mxu0
      %4630 = vmatprep.mubr.f32.mxu0 0.0
      %4631 = vmatmul.mubr.f32.gmra.mxu0 %v3793
      %v4632 = vpop.f32.mrf.mxu0
      %v4633 = vadd.f32 %v3775, %v4632
      %v4634 = vpop.f32.mrf.mxu0
      %4635 = vmatprep.mubr.f32.mxu0 0.0
      %4636 = vmatmul.mubr.f32.gmra.mxu0 %v3796
      %v4637 = vpop.f32.mrf.mxu0
      %v4638 = vadd.f32 %v3775, %v4637
      %v4639 = vpop.f32.mrf.mxu0
      %4640 = vmatprep.mubr.f32.mxu0 0.0
      %4641 = vmatmul.mubr.f32.gmra.mxu0 %v3799
      %v4642 = vpop.f32.mrf.mxu0
      %v4643 = vadd.f32 %v3775, %v4642
      %v4644 = vpop.f32.mrf.mxu0
      %4645 = vmatprep.mubr.f32.mxu0 0.0
      %4646 = vmatmul.mubr.f32.gmra.mxu0 %v3802
      %v4647 = vpop.f32.mrf.mxu0
      %v4648 = vadd.f32 %v3775, %v4647
      %v4649 = vpop.f32.mrf.mxu0
      %4650 = vmatprep.mubr.f32.mxu0 0.0
      %4651 = vmatmul.mubr.f32.gmra.mxu0 %v3805
      %v4652 = vpop.f32.mrf.mxu0
      %v4653 = vadd.f32 %v3775, %v4652
      %v4654 = vpop.f32.mrf.mxu0
      %4655 = vmatprep.mubr.f32.mxu0 0.0
      %4656 = vmatmul.mubr.f32.gmra.mxu0 %v3808
      %v4657 = vpop.f32.mrf.mxu0
      %v4658 = vadd.f32 %v3775, %v4657
      %v4659 = vpop.f32.mrf.mxu0
      %4660 = vmatprep.mubr.f32.mxu0 0.0
      %4661 = vmatmul.mubr.f32.gmra.mxu0 %v3811
      %v4662 = vpop.f32.mrf.mxu0
      %v4663 = vadd.f32 %v3775, %v4662
      %v4664 = vpop.f32.mrf.mxu0
      %4665 = vmatprep.mubr.f32.mxu0 0.0
      %4666 = vmatmul.mubr.f32.gmra.mxu0 %v3814
      %v4667 = vpop.f32.mrf.mxu0
      %v4668 = vadd.f32 %v3775, %v4667
      %v4669 = vpop.f32.mrf.mxu0
      %4670 = vmatprep.mubr.f32.mxu0 0.0
      %4671 = vmatmul.mubr.f32.gmra.mxu0 %v3817
      %v4672 = vpop.f32.mrf.mxu0
      %v4673 = vadd.f32 %v3775, %v4672
      %v4674 = vpop.f32.mrf.mxu0
      %4675 = vmatprep.mubr.f32.mxu0 0.0
      %4676 = vmatmul.mubr.f32.gmra.mxu0 %v3820
      %v4677 = vpop.f32.mrf.mxu0
      %v4678 = vadd.f32 %v3775, %v4677
      %v4679 = vpop.f32.mrf.mxu0
      %4680 = vdwg.mxu0
      %v4681 = vmul.f32 %v4189, 0.5
      %v4682 = vmul.f32 %v4191, 0.5
      %v4683 = vmul.f32 %v4332, 0.5
      %v4684 = vmul.f32 %v4334, 0.5
      %v4685 = vmul.f32 %v4475, 0.5
      %v4686 = vmul.f32 %v4477, 0.5
      %v4687 = vmul.f32 %v4618, 0.5
      %v4688 = vmul.f32 %v4195, 0.5
      %v4689 = vmul.f32 %v4197, 0.5
      %v4690 = vmul.f32 %v4338, 0.5
      %v4691 = vmul.f32 %v4340, 0.5
      %v4692 = vmul.f32 %v4481, 0.5
      %v4693 = vmul.f32 %v4483, 0.5
      %v4694 = vmul.f32 %v4623, 0.5
      %v4695 = vmul.f32 %v4201, 0.5
      %v4696 = vmul.f32 %v4203, 0.5
      %v4697 = vmul.f32 %v4344, 0.5
      %v4698 = vmul.f32 %v4346, 0.5
      %v4699 = vmul.f32 %v4487, 0.5
      %v4700 = vmul.f32 %v4489, 0.5
      %v4701 = vmul.f32 %v4628, 0.5
      %v4702 = vmul.f32 %v4207, 0.5
      %v4703 = vmul.f32 %v4209, 0.5
      %v4704 = vmul.f32 %v4350, 0.5
      %v4705 = vmul.f32 %v4352, 0.5
      %v4706 = vmul.f32 %v4493, 0.5
      %v4707 = vmul.f32 %v4495, 0.5
      %v4708 = vmul.f32 %v4633, 0.5
      %v4709 = vmul.f32 %v4213, 0.5
      %v4710 = vmul.f32 %v4215, 0.5
      %v4711 = vmul.f32 %v4356, 0.5
      %v4712 = vmul.f32 %v4358, 0.5
      %v4713 = vmul.f32 %v4499, 0.5
      %v4714 = vmul.f32 %v4501, 0.5
      %v4715 = vmul.f32 %v4638, 0.5
      %v4716 = vmul.f32 %v4219, 0.5
      %v4717 = vmul.f32 %v4221, 0.5
      %v4718 = vmul.f32 %v4362, 0.5
      %v4719 = vmul.f32 %v4364, 0.5
      %v4720 = vmul.f32 %v4505, 0.5
      %v4721 = vmul.f32 %v4507, 0.5
      %v4722 = vmul.f32 %v4643, 0.5
      %v4723 = vmul.f32 %v4225, 0.5
      %v4724 = vmul.f32 %v4227, 0.5
      %v4725 = vmul.f32 %v4368, 0.5
      %v4726 = vmul.f32 %v4370, 0.5
      %v4727 = vmul.f32 %v4511, 0.5
      %v4728 = vmul.f32 %v4513, 0.5
      %v4729 = vmul.f32 %v4648, 0.5
      %v4730 = vmul.f32 %v4231, 0.5
      %v4731 = vmul.f32 %v4233, 0.5
      %v4732 = vmul.f32 %v4374, 0.5
      %v4733 = vmul.f32 %v4376, 0.5
      %v4734 = vmul.f32 %v4517, 0.5
      %v4735 = vmul.f32 %v4519, 0.5
      %v4736 = vmul.f32 %v4653, 0.5
      %v4737 = vmul.f32 %v4237, 0.5
      %v4738 = vmul.f32 %v4239, 0.5
      %v4739 = vmul.f32 %v4380, 0.5
      %v4740 = vmul.f32 %v4382, 0.5
      %v4741 = vmul.f32 %v4523, 0.5
      %v4742 = vmul.f32 %v4525, 0.5
      %v4743 = vmul.f32 %v4658, 0.5
      %v4744 = vmul.f32 %v4243, 0.5
      %v4745 = vmul.f32 %v4245, 0.5
      %v4746 = vmul.f32 %v4386, 0.5
      %v4747 = vmul.f32 %v4388, 0.5
      %v4748 = vmul.f32 %v4529, 0.5
      %v4749 = vmul.f32 %v4531, 0.5
      %v4750 = vmul.f32 %v4663, 0.5
      %v4751 = vmul.f32 %v4249, 0.5
      %v4752 = vmul.f32 %v4251, 0.5
      %v4753 = vmul.f32 %v4392, 0.5
      %v4754 = vmul.f32 %v4394, 0.5
      %v4755 = vmul.f32 %v4535, 0.5
      %v4756 = vmul.f32 %v4537, 0.5
      %v4757 = vmul.f32 %v4668, 0.5
      %v4758 = vmul.f32 %v4255, 0.5
      %v4759 = vmul.f32 %v4257, 0.5
      %v4760 = vmul.f32 %v4398, 0.5
      %v4761 = vmul.f32 %v4400, 0.5
      %v4762 = vmul.f32 %v4541, 0.5
      %v4763 = vmul.f32 %v4543, 0.5
      %v4764 = vmul.f32 %v4673, 0.5
      %v4765 = vmul.f32 %v4261, 0.5
      %v4766 = vmul.f32 %v4263, 0.5
      %v4767 = vmul.f32 %v4404, 0.5
      %v4768 = vmul.f32 %v4406, 0.5
      %v4769 = vmul.f32 %v4547, 0.5
      %v4770 = vmul.f32 %v4549, 0.5
      %v4771 = vmul.f32 %v4678, 0.5
      %v4772 = vmul.f32 %v4189, 0.044715
      %v4773 = vmul.f32 %v4191, 0.044715
      %v4774 = vmul.f32 %v4332, 0.044715
      %v4775 = vmul.f32 %v4334, 0.044715
      %v4776 = vmul.f32 %v4475, 0.044715
      %v4777 = vmul.f32 %v4477, 0.044715
      %v4778 = vmul.f32 %v4618, 0.044715
      %v4779 = vmul.f32 %v4195, 0.044715
      %v4780 = vmul.f32 %v4197, 0.044715
      %v4781 = vmul.f32 %v4338, 0.044715
      %v4782 = vmul.f32 %v4340, 0.044715
      %v4783 = vmul.f32 %v4481, 0.044715
      %v4784 = vmul.f32 %v4483, 0.044715
      %v4785 = vmul.f32 %v4623, 0.044715
      %v4786 = vmul.f32 %v4201, 0.044715
      %v4787 = vmul.f32 %v4203, 0.044715
      %v4788 = vmul.f32 %v4344, 0.044715
      %v4789 = vmul.f32 %v4346, 0.044715
      %v4790 = vmul.f32 %v4487, 0.044715
      %v4791 = vmul.f32 %v4489, 0.044715
      %v4792 = vmul.f32 %v4628, 0.044715
      %v4793 = vmul.f32 %v4207, 0.044715
      %v4794 = vmul.f32 %v4209, 0.044715
      %v4795 = vmul.f32 %v4350, 0.044715
      %v4796 = vmul.f32 %v4352, 0.044715
      %v4797 = vmul.f32 %v4493, 0.044715
      %v4798 = vmul.f32 %v4495, 0.044715
      %v4799 = vmul.f32 %v4633, 0.044715
      %v4800 = vmul.f32 %v4213, 0.044715
      %v4801 = vmul.f32 %v4215, 0.044715
      %v4802 = vmul.f32 %v4356, 0.044715
      %v4803 = vmul.f32 %v4358, 0.044715
      %v4804 = vmul.f32 %v4499, 0.044715
      %v4805 = vmul.f32 %v4501, 0.044715
      %v4806 = vmul.f32 %v4638, 0.044715
      %v4807 = vmul.f32 %v4219, 0.044715
      %v4808 = vmul.f32 %v4221, 0.044715
      %v4809 = vmul.f32 %v4362, 0.044715
      %v4810 = vmul.f32 %v4364, 0.044715
      %v4811 = vmul.f32 %v4505, 0.044715
      %v4812 = vmul.f32 %v4507, 0.044715
      %v4813 = vmul.f32 %v4643, 0.044715
      %v4814 = vmul.f32 %v4225, 0.044715
      %v4815 = vmul.f32 %v4227, 0.044715
      %v4816 = vmul.f32 %v4368, 0.044715
      %v4817 = vmul.f32 %v4370, 0.044715
      %v4818 = vmul.f32 %v4511, 0.044715
      %v4819 = vmul.f32 %v4513, 0.044715
      %v4820 = vmul.f32 %v4648, 0.044715
      %v4821 = vmul.f32 %v4231, 0.044715
      %v4822 = vmul.f32 %v4233, 0.044715
      %v4823 = vmul.f32 %v4374, 0.044715
      %v4824 = vmul.f32 %v4376, 0.044715
      %v4825 = vmul.f32 %v4517, 0.044715
      %v4826 = vmul.f32 %v4519, 0.044715
      %v4827 = vmul.f32 %v4653, 0.044715
      %v4828 = vmul.f32 %v4237, 0.044715
      %v4829 = vmul.f32 %v4239, 0.044715
      %v4830 = vmul.f32 %v4380, 0.044715
      %v4831 = vmul.f32 %v4382, 0.044715
      %v4832 = vmul.f32 %v4523, 0.044715
      %v4833 = vmul.f32 %v4525, 0.044715
      %v4834 = vmul.f32 %v4658, 0.044715
      %v4835 = vmul.f32 %v4243, 0.044715
      %v4836 = vmul.f32 %v4245, 0.044715
      %v4837 = vmul.f32 %v4386, 0.044715
      %v4838 = vmul.f32 %v4388, 0.044715
      %v4839 = vmul.f32 %v4529, 0.044715
      %v4840 = vmul.f32 %v4531, 0.044715
      %v4841 = vmul.f32 %v4663, 0.044715
      %v4842 = vmul.f32 %v4249, 0.044715
      %v4843 = vmul.f32 %v4251, 0.044715
      %v4844 = vmul.f32 %v4392, 0.044715
      %v4845 = vmul.f32 %v4394, 0.044715
      %v4846 = vmul.f32 %v4535, 0.044715
      %v4847 = vmul.f32 %v4537, 0.044715
      %v4848 = vmul.f32 %v4668, 0.044715
      %v4849 = vmul.f32 %v4255, 0.044715
      %v4850 = vmul.f32 %v4257, 0.044715
      %v4851 = vmul.f32 %v4398, 0.044715
      %v4852 = vmul.f32 %v4400, 0.044715
      %v4853 = vmul.f32 %v4541, 0.044715
      %v4854 = vmul.f32 %v4543, 0.044715
      %v4855 = vmul.f32 %v4673, 0.044715
      %v4856 = vmul.f32 %v4261, 0.044715
      %v4857 = vmul.f32 %v4263, 0.044715
      %v4858 = vmul.f32 %v4404, 0.044715
      %v4859 = vmul.f32 %v4406, 0.044715
      %v4860 = vmul.f32 %v4547, 0.044715
      %v4861 = vmul.f32 %v4549, 0.044715
      %v4862 = vmul.f32 %v4678, 0.044715
      %v4863 = vmul.f32 %v4772, %v4189
      %v4864 = vmul.f32 %v4773, %v4191
      %v4865 = vmul.f32 %v4774, %v4332
      %v4866 = vmul.f32 %v4775, %v4334
      %v4867 = vmul.f32 %v4776, %v4475
      %v4868 = vmul.f32 %v4777, %v4477
      %v4869 = vmul.f32 %v4778, %v4618
      %v4870 = vmul.f32 %v4779, %v4195
      %v4871 = vmul.f32 %v4780, %v4197
      %v4872 = vmul.f32 %v4781, %v4338
      %v4873 = vmul.f32 %v4782, %v4340
      %v4874 = vmul.f32 %v4783, %v4481
      %v4875 = vmul.f32 %v4784, %v4483
      %v4876 = vmul.f32 %v4785, %v4623
      %v4877 = vmul.f32 %v4786, %v4201
      %v4878 = vmul.f32 %v4787, %v4203
      %v4879 = vmul.f32 %v4788, %v4344
      %v4880 = vmul.f32 %v4789, %v4346
      %v4881 = vmul.f32 %v4790, %v4487
      %v4882 = vmul.f32 %v4791, %v4489
      %v4883 = vmul.f32 %v4792, %v4628
      %v4884 = vmul.f32 %v4793, %v4207
      %v4885 = vmul.f32 %v4794, %v4209
      %v4886 = vmul.f32 %v4795, %v4350
      %v4887 = vmul.f32 %v4796, %v4352
      %v4888 = vmul.f32 %v4797, %v4493
      %v4889 = vmul.f32 %v4798, %v4495
      %v4890 = vmul.f32 %v4799, %v4633
      %v4891 = vmul.f32 %v4800, %v4213
      %v4892 = vmul.f32 %v4801, %v4215
      %v4893 = vmul.f32 %v4802, %v4356
      %v4894 = vmul.f32 %v4803, %v4358
      %v4895 = vmul.f32 %v4804, %v4499
      %v4896 = vmul.f32 %v4805, %v4501
      %v4897 = vmul.f32 %v4806, %v4638
      %v4898 = vmul.f32 %v4807, %v4219
      %v4899 = vmul.f32 %v4808, %v4221
      %v4900 = vmul.f32 %v4809, %v4362
      %v4901 = vmul.f32 %v4810, %v4364
      %v4902 = vmul.f32 %v4811, %v4505
      %v4903 = vmul.f32 %v4812, %v4507
      %v4904 = vmul.f32 %v4813, %v4643
      %v4905 = vmul.f32 %v4814, %v4225
      %v4906 = vmul.f32 %v4815, %v4227
      %v4907 = vmul.f32 %v4816, %v4368
      %v4908 = vmul.f32 %v4817, %v4370
      %v4909 = vmul.f32 %v4818, %v4511
      %v4910 = vmul.f32 %v4819, %v4513
      %v4911 = vmul.f32 %v4820, %v4648
      %v4912 = vmul.f32 %v4821, %v4231
      %v4913 = vmul.f32 %v4822, %v4233
      %v4914 = vmul.f32 %v4823, %v4374
      %v4915 = vmul.f32 %v4824, %v4376
      %v4916 = vmul.f32 %v4825, %v4517
      %v4917 = vmul.f32 %v4826, %v4519
      %v4918 = vmul.f32 %v4827, %v4653
      %v4919 = vmul.f32 %v4828, %v4237
      %v4920 = vmul.f32 %v4829, %v4239
      %v4921 = vmul.f32 %v4830, %v4380
      %v4922 = vmul.f32 %v4831, %v4382
      %v4923 = vmul.f32 %v4832, %v4523
      %v4924 = vmul.f32 %v4833, %v4525
      %v4925 = vmul.f32 %v4834, %v4658
      %v4926 = vmul.f32 %v4835, %v4243
      %v4927 = vmul.f32 %v4836, %v4245
      %v4928 = vmul.f32 %v4837, %v4386
      %v4929 = vmul.f32 %v4838, %v4388
      %v4930 = vmul.f32 %v4839, %v4529
      %v4931 = vmul.f32 %v4840, %v4531
      %v4932 = vmul.f32 %v4841, %v4663
      %v4933 = vmul.f32 %v4842, %v4249
      %v4934 = vmul.f32 %v4843, %v4251
      %v4935 = vmul.f32 %v4844, %v4392
      %v4936 = vmul.f32 %v4845, %v4394
      %v4937 = vmul.f32 %v4846, %v4535
      %v4938 = vmul.f32 %v4847, %v4537
      %v4939 = vmul.f32 %v4848, %v4668
      %v4940 = vmul.f32 %v4849, %v4255
      %v4941 = vmul.f32 %v4850, %v4257
      %v4942 = vmul.f32 %v4851, %v4398
      %v4943 = vmul.f32 %v4852, %v4400
      %v4944 = vmul.f32 %v4853, %v4541
      %v4945 = vmul.f32 %v4854, %v4543
      %v4946 = vmul.f32 %v4855, %v4673
      %v4947 = vmul.f32 %v4856, %v4261
      %v4948 = vmul.f32 %v4857, %v4263
      %v4949 = vmul.f32 %v4858, %v4404
      %v4950 = vmul.f32 %v4859, %v4406
      %v4951 = vmul.f32 %v4860, %v4547
      %v4952 = vmul.f32 %v4861, %v4549
      %v4953 = vmul.f32 %v4862, %v4678
      %v4954 = vmul.f32 %v4863, %v4189
      %v4955 = vmul.f32 %v4864, %v4191
      %v4956 = vmul.f32 %v4865, %v4332
      %v4957 = vmul.f32 %v4866, %v4334
      %v4958 = vmul.f32 %v4867, %v4475
      %v4959 = vmul.f32 %v4868, %v4477
      %v4960 = vmul.f32 %v4869, %v4618
      %v4961 = vmul.f32 %v4870, %v4195
      %v4962 = vmul.f32 %v4871, %v4197
      %v4963 = vmul.f32 %v4872, %v4338
      %v4964 = vmul.f32 %v4873, %v4340
      %v4965 = vmul.f32 %v4874, %v4481
      %v4966 = vmul.f32 %v4875, %v4483
      %v4967 = vmul.f32 %v4876, %v4623
      %v4968 = vmul.f32 %v4877, %v4201
      %v4969 = vmul.f32 %v4878, %v4203
      %v4970 = vmul.f32 %v4879, %v4344
      %v4971 = vmul.f32 %v4880, %v4346
      %v4972 = vmul.f32 %v4881, %v4487
      %v4973 = vmul.f32 %v4882, %v4489
      %v4974 = vmul.f32 %v4883, %v4628
      %v4975 = vmul.f32 %v4884, %v4207
      %v4976 = vmul.f32 %v4885, %v4209
      %v4977 = vmul.f32 %v4886, %v4350
      %v4978 = vmul.f32 %v4887, %v4352
      %v4979 = vmul.f32 %v4888, %v4493
      %v4980 = vmul.f32 %v4889, %v4495
      %v4981 = vmul.f32 %v4890, %v4633
      %v4982 = vmul.f32 %v4891, %v4213
      %v4983 = vmul.f32 %v4892, %v4215
      %v4984 = vmul.f32 %v4893, %v4356
      %v4985 = vmul.f32 %v4894, %v4358
      %v4986 = vmul.f32 %v4895, %v4499
      %v4987 = vmul.f32 %v4896, %v4501
      %v4988 = vmul.f32 %v4897, %v4638
      %v4989 = vmul.f32 %v4898, %v4219
      %v4990 = vmul.f32 %v4899, %v4221
      %v4991 = vmul.f32 %v4900, %v4362
      %v4992 = vmul.f32 %v4901, %v4364
      %v4993 = vmul.f32 %v4902, %v4505
      %v4994 = vmul.f32 %v4903, %v4507
      %v4995 = vmul.f32 %v4904, %v4643
      %v4996 = vmul.f32 %v4905, %v4225
      %v4997 = vmul.f32 %v4906, %v4227
      %v4998 = vmul.f32 %v4907, %v4368
      %v4999 = vmul.f32 %v4908, %v4370
      %v5000 = vmul.f32 %v4909, %v4511
      %v5001 = vmul.f32 %v4910, %v4513
      %v5002 = vmul.f32 %v4911, %v4648
      %v5003 = vmul.f32 %v4912, %v4231
      %v5004 = vmul.f32 %v4913, %v4233
      %v5005 = vmul.f32 %v4914, %v4374
      %v5006 = vmul.f32 %v4915, %v4376
      %v5007 = vmul.f32 %v4916, %v4517
      %v5008 = vmul.f32 %v4917, %v4519
      %v5009 = vmul.f32 %v4918, %v4653
      %v5010 = vmul.f32 %v4919, %v4237
      %v5011 = vmul.f32 %v4920, %v4239
      %v5012 = vmul.f32 %v4921, %v4380
      %v5013 = vmul.f32 %v4922, %v4382
      %v5014 = vmul.f32 %v4923, %v4523
      %v5015 = vmul.f32 %v4924, %v4525
      %v5016 = vmul.f32 %v4925, %v4658
      %v5017 = vmul.f32 %v4926, %v4243
      %v5018 = vmul.f32 %v4927, %v4245
      %v5019 = vmul.f32 %v4928, %v4386
      %v5020 = vmul.f32 %v4929, %v4388
      %v5021 = vmul.f32 %v4930, %v4529
      %v5022 = vmul.f32 %v4931, %v4531
      %v5023 = vmul.f32 %v4932, %v4663
      %v5024 = vmul.f32 %v4933, %v4249
      %v5025 = vmul.f32 %v4934, %v4251
      %v5026 = vmul.f32 %v4935, %v4392
      %v5027 = vmul.f32 %v4936, %v4394
      %v5028 = vmul.f32 %v4937, %v4535
      %v5029 = vmul.f32 %v4938, %v4537
      %v5030 = vmul.f32 %v4939, %v4668
      %v5031 = vmul.f32 %v4940, %v4255
      %v5032 = vmul.f32 %v4941, %v4257
      %v5033 = vmul.f32 %v4942, %v4398
      %v5034 = vmul.f32 %v4943, %v4400
      %v5035 = vmul.f32 %v4944, %v4541
      %v5036 = vmul.f32 %v4945, %v4543
      %v5037 = vmul.f32 %v4946, %v4673
      %v5038 = vmul.f32 %v4947, %v4261
      %v5039 = vmul.f32 %v4948, %v4263
      %v5040 = vmul.f32 %v4949, %v4404
      %v5041 = vmul.f32 %v4950, %v4406
      %v5042 = vmul.f32 %v4951, %v4547
      %v5043 = vmul.f32 %v4952, %v4549
      %v5044 = vmul.f32 %v4953, %v4678
      %v5045 = vadd.f32 %v4189, %v4954
      %v5046 = vadd.f32 %v4191, %v4955
      %v5047 = vadd.f32 %v4332, %v4956
      %v5048 = vadd.f32 %v4334, %v4957
      %v5049 = vadd.f32 %v4475, %v4958
      %v5050 = vadd.f32 %v4477, %v4959
      %v5051 = vadd.f32 %v4618, %v4960
      %v5052 = vadd.f32 %v4195, %v4961
      %v5053 = vadd.f32 %v4197, %v4962
      %v5054 = vadd.f32 %v4338, %v4963
      %v5055 = vadd.f32 %v4340, %v4964
      %v5056 = vadd.f32 %v4481, %v4965
      %v5057 = vadd.f32 %v4483, %v4966
      %v5058 = vadd.f32 %v4623, %v4967
      %v5059 = vadd.f32 %v4201, %v4968
      %v5060 = vadd.f32 %v4203, %v4969
      %v5061 = vadd.f32 %v4344, %v4970
      %v5062 = vadd.f32 %v4346, %v4971
      %v5063 = vadd.f32 %v4487, %v4972
      %v5064 = vadd.f32 %v4489, %v4973
      %v5065 = vadd.f32 %v4628, %v4974
      %v5066 = vadd.f32 %v4207, %v4975
      %v5067 = vadd.f32 %v4209, %v4976
      %v5068 = vadd.f32 %v4350, %v4977
      %v5069 = vadd.f32 %v4352, %v4978
      %v5070 = vadd.f32 %v4493, %v4979
      %v5071 = vadd.f32 %v4495, %v4980
      %v5072 = vadd.f32 %v4633, %v4981
      %v5073 = vadd.f32 %v4213, %v4982
      %v5074 = vadd.f32 %v4215, %v4983
      %v5075 = vadd.f32 %v4356, %v4984
      %v5076 = vadd.f32 %v4358, %v4985
      %v5077 = vadd.f32 %v4499, %v4986
      %v5078 = vadd.f32 %v4501, %v4987
      %v5079 = vadd.f32 %v4638, %v4988
      %v5080 = vadd.f32 %v4219, %v4989
      %v5081 = vadd.f32 %v4221, %v4990
      %v5082 = vadd.f32 %v4362, %v4991
      %v5083 = vadd.f32 %v4364, %v4992
      %v5084 = vadd.f32 %v4505, %v4993
      %v5085 = vadd.f32 %v4507, %v4994
      %v5086 = vadd.f32 %v4643, %v4995
      %v5087 = vadd.f32 %v4225, %v4996
      %v5088 = vadd.f32 %v4227, %v4997
      %v5089 = vadd.f32 %v4368, %v4998
      %v5090 = vadd.f32 %v4370, %v4999
      %v5091 = vadd.f32 %v4511, %v5000
      %v5092 = vadd.f32 %v4513, %v5001
      %v5093 = vadd.f32 %v4648, %v5002
      %v5094 = vadd.f32 %v4231, %v5003
      %v5095 = vadd.f32 %v4233, %v5004
      %v5096 = vadd.f32 %v4374, %v5005
      %v5097 = vadd.f32 %v4376, %v5006
      %v5098 = vadd.f32 %v4517, %v5007
      %v5099 = vadd.f32 %v4519, %v5008
      %v5100 = vadd.f32 %v4653, %v5009
      %v5101 = vadd.f32 %v4237, %v5010
      %v5102 = vadd.f32 %v4239, %v5011
      %v5103 = vadd.f32 %v4380, %v5012
      %v5104 = vadd.f32 %v4382, %v5013
      %v5105 = vadd.f32 %v4523, %v5014
      %v5106 = vadd.f32 %v4525, %v5015
      %v5107 = vadd.f32 %v4658, %v5016
      %v5108 = vadd.f32 %v4243, %v5017
      %v5109 = vadd.f32 %v4245, %v5018
      %v5110 = vadd.f32 %v4386, %v5019
      %v5111 = vadd.f32 %v4388, %v5020
      %v5112 = vadd.f32 %v4529, %v5021
      %v5113 = vadd.f32 %v4531, %v5022
      %v5114 = vadd.f32 %v4663, %v5023
      %v5115 = vadd.f32 %v4249, %v5024
      %v5116 = vadd.f32 %v4251, %v5025
      %v5117 = vadd.f32 %v4392, %v5026
      %v5118 = vadd.f32 %v4394, %v5027
      %v5119 = vadd.f32 %v4535, %v5028
      %v5120 = vadd.f32 %v4537, %v5029
      %v5121 = vadd.f32 %v4668, %v5030
      %v5122 = vadd.f32 %v4255, %v5031
      %v5123 = vadd.f32 %v4257, %v5032
      %v5124 = vadd.f32 %v4398, %v5033
      %v5125 = vadd.f32 %v4400, %v5034
      %v5126 = vadd.f32 %v4541, %v5035
      %v5127 = vadd.f32 %v4543, %v5036
      %v5128 = vadd.f32 %v4673, %v5037
      %v5129 = vadd.f32 %v4261, %v5038
      %v5130 = vadd.f32 %v4263, %v5039
      %v5131 = vadd.f32 %v4404, %v5040
      %v5132 = vadd.f32 %v4406, %v5041
      %v5133 = vadd.f32 %v4547, %v5042
      %v5134 = vadd.f32 %v4549, %v5043
      %v5135 = vadd.f32 %v4678, %v5044
      %v5136 = vmul.f32 %v5045, 0.7978846
      %v5137 = vmul.f32 %v5046, 0.7978846
      %v5138 = vmul.f32 %v5047, 0.7978846
      %v5139 = vmul.f32 %v5048, 0.7978846
      %v5140 = vmul.f32 %v5049, 0.7978846
      %v5141 = vmul.f32 %v5050, 0.7978846
      %v5142 = vmul.f32 %v5051, 0.7978846
      %v5143 = vmul.f32 %v5052, 0.7978846
      %v5144 = vmul.f32 %v5053, 0.7978846
      %v5145 = vmul.f32 %v5054, 0.7978846
      %v5146 = vmul.f32 %v5055, 0.7978846
      %v5147 = vmul.f32 %v5056, 0.7978846
      %v5148 = vmul.f32 %v5057, 0.7978846
      %v5149 = vmul.f32 %v5058, 0.7978846
      %v5150 = vmul.f32 %v5059, 0.7978846
      %v5151 = vmul.f32 %v5060, 0.7978846
      %v5152 = vmul.f32 %v5061, 0.7978846
      %v5153 = vmul.f32 %v5062, 0.7978846
      %v5154 = vmul.f32 %v5063, 0.7978846
      %v5155 = vmul.f32 %v5064, 0.7978846
      %v5156 = vmul.f32 %v5065, 0.7978846
      %v5157 = vmul.f32 %v5066, 0.7978846
      %v5158 = vmul.f32 %v5067, 0.7978846
      %v5159 = vmul.f32 %v5068, 0.7978846
      %v5160 = vmul.f32 %v5069, 0.7978846
      %v5161 = vmul.f32 %v5070, 0.7978846
      %v5162 = vmul.f32 %v5071, 0.7978846
      %v5163 = vmul.f32 %v5072, 0.7978846
      %v5164 = vmul.f32 %v5073, 0.7978846
      %v5165 = vmul.f32 %v5074, 0.7978846
      %v5166 = vmul.f32 %v5075, 0.7978846
      %v5167 = vmul.f32 %v5076, 0.7978846
      %v5168 = vmul.f32 %v5077, 0.7978846
      %v5169 = vmul.f32 %v5078, 0.7978846
      %v5170 = vmul.f32 %v5079, 0.7978846
      %v5171 = vmul.f32 %v5080, 0.7978846
      %v5172 = vmul.f32 %v5081, 0.7978846
      %v5173 = vmul.f32 %v5082, 0.7978846
      %v5174 = vmul.f32 %v5083, 0.7978846
      %v5175 = vmul.f32 %v5084, 0.7978846
      %v5176 = vmul.f32 %v5085, 0.7978846
      %v5177 = vmul.f32 %v5086, 0.7978846
      %v5178 = vmul.f32 %v5087, 0.7978846
      %v5179 = vmul.f32 %v5088, 0.7978846
      %v5180 = vmul.f32 %v5089, 0.7978846
      %v5181 = vmul.f32 %v5090, 0.7978846
      %v5182 = vmul.f32 %v5091, 0.7978846
      %v5183 = vmul.f32 %v5092, 0.7978846
      %v5184 = vmul.f32 %v5093, 0.7978846
      %v5185 = vmul.f32 %v5094, 0.7978846
      %v5186 = vmul.f32 %v5095, 0.7978846
      %v5187 = vmul.f32 %v5096, 0.7978846
      %v5188 = vmul.f32 %v5097, 0.7978846
      %v5189 = vmul.f32 %v5098, 0.7978846
      %v5190 = vmul.f32 %v5099, 0.7978846
      %v5191 = vmul.f32 %v5100, 0.7978846
      %v5192 = vmul.f32 %v5101, 0.7978846
      %v5193 = vmul.f32 %v5102, 0.7978846
      %v5194 = vmul.f32 %v5103, 0.7978846
      %v5195 = vmul.f32 %v5104, 0.7978846
      %v5196 = vmul.f32 %v5105, 0.7978846
      %v5197 = vmul.f32 %v5106, 0.7978846
      %v5198 = vmul.f32 %v5107, 0.7978846
      %v5199 = vmul.f32 %v5108, 0.7978846
      %v5200 = vmul.f32 %v5109, 0.7978846
      %v5201 = vmul.f32 %v5110, 0.7978846
      %v5202 = vmul.f32 %v5111, 0.7978846
      %v5203 = vmul.f32 %v5112, 0.7978846
      %v5204 = vmul.f32 %v5113, 0.7978846
      %v5205 = vmul.f32 %v5114, 0.7978846
      %v5206 = vmul.f32 %v5115, 0.7978846
      %v5207 = vmul.f32 %v5116, 0.7978846
      %v5208 = vmul.f32 %v5117, 0.7978846
      %v5209 = vmul.f32 %v5118, 0.7978846
      %v5210 = vmul.f32 %v5119, 0.7978846
      %v5211 = vmul.f32 %v5120, 0.7978846
      %v5212 = vmul.f32 %v5121, 0.7978846
      %v5213 = vmul.f32 %v5122, 0.7978846
      %v5214 = vmul.f32 %v5123, 0.7978846
      %v5215 = vmul.f32 %v5124, 0.7978846
      %v5216 = vmul.f32 %v5125, 0.7978846
      %v5217 = vmul.f32 %v5126, 0.7978846
      %v5218 = vmul.f32 %v5127, 0.7978846
      %v5219 = vmul.f32 %v5128, 0.7978846
      %v5220 = vmul.f32 %v5129, 0.7978846
      %v5221 = vmul.f32 %v5130, 0.7978846
      %v5222 = vmul.f32 %v5131, 0.7978846
      %v5223 = vmul.f32 %v5132, 0.7978846
      %v5224 = vmul.f32 %v5133, 0.7978846
      %v5225 = vmul.f32 %v5134, 0.7978846
      %v5226 = vmul.f32 %v5135, 0.7978846
      %v5227 = vtanh.pop %v5136
      %v5228 = vtanh.pop %v5137
      %v5229 = vtanh.pop %v5138
      %v5230 = vtanh.pop %v5139
      %v5231 = vtanh.pop %v5140
      %v5232 = vtanh.pop %v5141
      %v5233 = vtanh.pop %v5142
      %v5234 = vtanh.pop %v5143
      %v5235 = vtanh.pop %v5144
      %v5236 = vtanh.pop %v5145
      %v5237 = vtanh.pop %v5146
      %v5238 = vtanh.pop %v5147
      %v5239 = vtanh.pop %v5148
      %v5240 = vtanh.pop %v5149
      %v5241 = vtanh.pop %v5150
      %v5242 = vtanh.pop %v5151
      %v5243 = vtanh.pop %v5152
      %v5244 = vtanh.pop %v5153
      %v5245 = vtanh.pop %v5154
      %v5246 = vtanh.pop %v5155
      %v5247 = vtanh.pop %v5156
      %v5248 = vtanh.pop %v5157
      %v5249 = vtanh.pop %v5158
      %v5250 = vtanh.pop %v5159
      %v5251 = vtanh.pop %v5160
      %v5252 = vtanh.pop %v5161
      %v5253 = vtanh.pop %v5162
      %v5254 = vtanh.pop %v5163
      %v5255 = vtanh.pop %v5164
      %v5256 = vtanh.pop %v5165
      %v5257 = vtanh.pop %v5166
      %v5258 = vtanh.pop %v5167
      %v5259 = vtanh.pop %v5168
      %v5260 = vtanh.pop %v5169
      %v5261 = vtanh.pop %v5170
      %v5262 = vtanh.pop %v5171
      %v5263 = vtanh.pop %v5172
      %v5264 = vtanh.pop %v5173
      %v5265 = vtanh.pop %v5174
      %v5266 = vtanh.pop %v5175
      %v5267 = vtanh.pop %v5176
      %v5268 = vtanh.pop %v5177
      %v5269 = vtanh.pop %v5178
      %v5270 = vtanh.pop %v5179
      %v5271 = vtanh.pop %v5180
      %v5272 = vtanh.pop %v5181
      %v5273 = vtanh.pop %v5182
      %v5274 = vtanh.pop %v5183
      %v5275 = vtanh.pop %v5184
      %v5276 = vtanh.pop %v5185
      %v5277 = vtanh.pop %v5186
      %v5278 = vtanh.pop %v5187
      %v5279 = vtanh.pop %v5188
      %v5280 = vtanh.pop %v5189
      %v5281 = vtanh.pop %v5190
      %v5282 = vtanh.pop %v5191
      %v5283 = vtanh.pop %v5192
      %v5284 = vtanh.pop %v5193
      %v5285 = vtanh.pop %v5194
      %v5286 = vtanh.pop %v5195
      %v5287 = vtanh.pop %v5196
      %v5288 = vtanh.pop %v5197
      %v5289 = vtanh.pop %v5198
      %v5290 = vtanh.pop %v5199
      %v5291 = vtanh.pop %v5200
      %v5292 = vtanh.pop %v5201
      %v5293 = vtanh.pop %v5202
      %v5294 = vtanh.pop %v5203
      %v5295 = vtanh.pop %v5204
      %v5296 = vtanh.pop %v5205
      %v5297 = vtanh.pop %v5206
      %v5298 = vtanh.pop %v5207
      %v5299 = vtanh.pop %v5208
      %v5300 = vtanh.pop %v5209
      %v5301 = vtanh.pop %v5210
      %v5302 = vtanh.pop %v5211
      %v5303 = vtanh.pop %v5212
      %v5304 = vtanh.pop %v5213
      %v5305 = vtanh.pop %v5214
      %v5306 = vtanh.pop %v5215
      %v5307 = vtanh.pop %v5216
      %v5308 = vtanh.pop %v5217
      %v5309 = vtanh.pop %v5218
      %v5310 = vtanh.pop %v5219
      %v5311 = vtanh.pop %v5220
      %v5312 = vtanh.pop %v5221
      %v5313 = vtanh.pop %v5222
      %v5314 = vtanh.pop %v5223
      %v5315 = vtanh.pop %v5224
      %v5316 = vtanh.pop %v5225
      %v5317 = vtanh.pop %v5226
      %v5318 = vadd.f32 %v5227, 1.0
      %v5319 = vadd.f32 %v5228, 1.0
      %v5320 = vadd.f32 %v5229, 1.0
      %v5321 = vadd.f32 %v5230, 1.0
      %v5322 = vadd.f32 %v5231, 1.0
      %v5323 = vadd.f32 %v5232, 1.0
      %v5324 = vadd.f32 %v5233, 1.0
      %v5325 = vadd.f32 %v5234, 1.0
      %v5326 = vadd.f32 %v5235, 1.0
      %v5327 = vadd.f32 %v5236, 1.0
      %v5328 = vadd.f32 %v5237, 1.0
      %v5329 = vadd.f32 %v5238, 1.0
      %v5330 = vadd.f32 %v5239, 1.0
      %v5331 = vadd.f32 %v5240, 1.0
      %v5332 = vadd.f32 %v5241, 1.0
      %v5333 = vadd.f32 %v5242, 1.0
      %v5334 = vadd.f32 %v5243, 1.0
      %v5335 = vadd.f32 %v5244, 1.0
      %v5336 = vadd.f32 %v5245, 1.0
      %v5337 = vadd.f32 %v5246, 1.0
      %v5338 = vadd.f32 %v5247, 1.0
      %v5339 = vadd.f32 %v5248, 1.0
      %v5340 = vadd.f32 %v5249, 1.0
      %v5341 = vadd.f32 %v5250, 1.0
      %v5342 = vadd.f32 %v5251, 1.0
      %v5343 = vadd.f32 %v5252, 1.0
      %v5344 = vadd.f32 %v5253, 1.0
      %v5345 = vadd.f32 %v5254, 1.0
      %v5346 = vadd.f32 %v5255, 1.0
      %v5347 = vadd.f32 %v5256, 1.0
      %v5348 = vadd.f32 %v5257, 1.0
      %v5349 = vadd.f32 %v5258, 1.0
      %v5350 = vadd.f32 %v5259, 1.0
      %v5351 = vadd.f32 %v5260, 1.0
      %v5352 = vadd.f32 %v5261, 1.0
      %v5353 = vadd.f32 %v5262, 1.0
      %v5354 = vadd.f32 %v5263, 1.0
      %v5355 = vadd.f32 %v5264, 1.0
      %v5356 = vadd.f32 %v5265, 1.0
      %v5357 = vadd.f32 %v5266, 1.0
      %v5358 = vadd.f32 %v5267, 1.0
      %v5359 = vadd.f32 %v5268, 1.0
      %v5360 = vadd.f32 %v5269, 1.0
      %v5361 = vadd.f32 %v5270, 1.0
      %v5362 = vadd.f32 %v5271, 1.0
      %v5363 = vadd.f32 %v5272, 1.0
      %v5364 = vadd.f32 %v5273, 1.0
      %v5365 = vadd.f32 %v5274, 1.0
      %v5366 = vadd.f32 %v5275, 1.0
      %v5367 = vadd.f32 %v5276, 1.0
      %v5368 = vadd.f32 %v5277, 1.0
      %v5369 = vadd.f32 %v5278, 1.0
      %v5370 = vadd.f32 %v5279, 1.0
      %v5371 = vadd.f32 %v5280, 1.0
      %v5372 = vadd.f32 %v5281, 1.0
      %v5373 = vadd.f32 %v5282, 1.0
      %v5374 = vadd.f32 %v5283, 1.0
      %v5375 = vadd.f32 %v5284, 1.0
      %v5376 = vadd.f32 %v5285, 1.0
      %v5377 = vadd.f32 %v5286, 1.0
      %v5378 = vadd.f32 %v5287, 1.0
      %v5379 = vadd.f32 %v5288, 1.0
      %v5380 = vadd.f32 %v5289, 1.0
      %v5381 = vadd.f32 %v5290, 1.0
      %v5382 = vadd.f32 %v5291, 1.0
      %v5383 = vadd.f32 %v5292, 1.0
      %v5384 = vadd.f32 %v5293, 1.0
      %v5385 = vadd.f32 %v5294, 1.0
      %v5386 = vadd.f32 %v5295, 1.0
      %v5387 = vadd.f32 %v5296, 1.0
      %v5388 = vadd.f32 %v5297, 1.0
      %v5389 = vadd.f32 %v5298, 1.0
      %v5390 = vadd.f32 %v5299, 1.0
      %v5391 = vadd.f32 %v5300, 1.0
      %v5392 = vadd.f32 %v5301, 1.0
      %v5393 = vadd.f32 %v5302, 1.0
      %v5394 = vadd.f32 %v5303, 1.0
      %v5395 = vadd.f32 %v5304, 1.0
      %v5396 = vadd.f32 %v5305, 1.0
      %v5397 = vadd.f32 %v5306, 1.0
      %v5398 = vadd.f32 %v5307, 1.0
      %v5399 = vadd.f32 %v5308, 1.0
      %v5400 = vadd.f32 %v5309, 1.0
      %v5401 = vadd.f32 %v5310, 1.0
      %v5402 = vadd.f32 %v5311, 1.0
      %v5403 = vadd.f32 %v5312, 1.0
      %v5404 = vadd.f32 %v5313, 1.0
      %v5405 = vadd.f32 %v5314, 1.0
      %v5406 = vadd.f32 %v5315, 1.0
      %v5407 = vadd.f32 %v5316, 1.0
      %v5408 = vadd.f32 %v5317, 1.0
      %v5409 = vmul.f32 %v4681, %v5318
      %v5410 = vmul.f32 %v4682, %v5319
      %v5411 = vmul.f32 %v4683, %v5320
      %v5412 = vmul.f32 %v4684, %v5321
      %v5413 = vmul.f32 %v4685, %v5322
      %v5414 = vmul.f32 %v4686, %v5323
      %v5415 = vmul.f32 %v4687, %v5324
      %v5416 = vmul.f32 %v4688, %v5325
      %v5417 = vmul.f32 %v4689, %v5326
      %v5418 = vmul.f32 %v4690, %v5327
      %v5419 = vmul.f32 %v4691, %v5328
      %v5420 = vmul.f32 %v4692, %v5329
      %v5421 = vmul.f32 %v4693, %v5330
      %v5422 = vmul.f32 %v4694, %v5331
      %v5423 = vmul.f32 %v4695, %v5332
      %v5424 = vmul.f32 %v4696, %v5333
      %v5425 = vmul.f32 %v4697, %v5334
      %v5426 = vmul.f32 %v4698, %v5335
      %v5427 = vmul.f32 %v4699, %v5336
      %v5428 = vmul.f32 %v4700, %v5337
      %v5429 = vmul.f32 %v4701, %v5338
      %v5430 = vmul.f32 %v4702, %v5339
      %v5431 = vmul.f32 %v4703, %v5340
      %v5432 = vmul.f32 %v4704, %v5341
      %v5433 = vmul.f32 %v4705, %v5342
      %v5434 = vmul.f32 %v4706, %v5343
      %v5435 = vmul.f32 %v4707, %v5344
      %v5436 = vmul.f32 %v4708, %v5345
      %v5437 = vmul.f32 %v4709, %v5346
      %v5438 = vmul.f32 %v4710, %v5347
      %v5439 = vmul.f32 %v4711, %v5348
      %v5440 = vmul.f32 %v4712, %v5349
      %v5441 = vmul.f32 %v4713, %v5350
      %v5442 = vmul.f32 %v4714, %v5351
      %v5443 = vmul.f32 %v4715, %v5352
      %v5444 = vmul.f32 %v4716, %v5353
      %v5445 = vmul.f32 %v4717, %v5354
      %v5446 = vmul.f32 %v4718, %v5355
      %v5447 = vmul.f32 %v4719, %v5356
      %v5448 = vmul.f32 %v4720, %v5357
      %v5449 = vmul.f32 %v4721, %v5358
      %v5450 = vmul.f32 %v4722, %v5359
      %v5451 = vmul.f32 %v4723, %v5360
      %v5452 = vmul.f32 %v4724, %v5361
      %v5453 = vmul.f32 %v4725, %v5362
      %v5454 = vmul.f32 %v4726, %v5363
      %v5455 = vmul.f32 %v4727, %v5364
      %v5456 = vmul.f32 %v4728, %v5365
      %v5457 = vmul.f32 %v4729, %v5366
      %v5458 = vmul.f32 %v4730, %v5367
      %v5459 = vmul.f32 %v4731, %v5368
      %v5460 = vmul.f32 %v4732, %v5369
      %v5461 = vmul.f32 %v4733, %v5370
      %v5462 = vmul.f32 %v4734, %v5371
      %v5463 = vmul.f32 %v4735, %v5372
      %v5464 = vmul.f32 %v4736, %v5373
      %v5465 = vmul.f32 %v4737, %v5374
      %v5466 = vmul.f32 %v4738, %v5375
      %v5467 = vmul.f32 %v4739, %v5376
      %v5468 = vmul.f32 %v4740, %v5377
      %v5469 = vmul.f32 %v4741, %v5378
      %v5470 = vmul.f32 %v4742, %v5379
      %v5471 = vmul.f32 %v4743, %v5380
      %v5472 = vmul.f32 %v4744, %v5381
      %v5473 = vmul.f32 %v4745, %v5382
      %v5474 = vmul.f32 %v4746, %v5383
      %v5475 = vmul.f32 %v4747, %v5384
      %v5476 = vmul.f32 %v4748, %v5385
      %v5477 = vmul.f32 %v4749, %v5386
      %v5478 = vmul.f32 %v4750, %v5387
      %v5479 = vmul.f32 %v4751, %v5388
      %v5480 = vmul.f32 %v4752, %v5389
      %v5481 = vmul.f32 %v4753, %v5390
      %v5482 = vmul.f32 %v4754, %v5391
      %v5483 = vmul.f32 %v4755, %v5392
      %v5484 = vmul.f32 %v4756, %v5393
      %v5485 = vmul.f32 %v4757, %v5394
      %v5486 = vmul.f32 %v4758, %v5395
      %v5487 = vmul.f32 %v4759, %v5396
      %v5488 = vmul.f32 %v4760, %v5397
      %v5489 = vmul.f32 %v4761, %v5398
      %v5490 = vmul.f32 %v4762, %v5399
      %v5491 = vmul.f32 %v4763, %v5400
      %v5492 = vmul.f32 %v4764, %v5401
      %v5493 = vmul.f32 %v4765, %v5402
      %v5494 = vmul.f32 %v4766, %v5403
      %v5495 = vmul.f32 %v4767, %v5404
      %v5496 = vmul.f32 %v4768, %v5405
      %v5497 = vmul.f32 %v4769, %v5406
      %v5498 = vmul.f32 %v4770, %v5407
      %v5499 = vmul.f32 %v4771, %v5408
      %v5500 = vld [vmem:[%s9] sm:$0xff]
      %v5501 = vld [vmem:[%s9 + $0x8] sm:$0xff]
      %v5502 = vld [vmem:[%s9 + $0x10] sm:$0xff]
      %v5503 = vld [vmem:[%s9 + $0x18] sm:$0xff]
      %v5504 = vld [vmem:[%s9 + $0x20] sm:$0xff]
      %v5505 = vld [vmem:[%s9 + $0x28] sm:$0xff]
      %v5506 = vld [vmem:[%s9 + $0x30] sm:$0xff]
      %v5507 = vld [vmem:[%s10] sm:$0x1]
      %v5509 = vlaneseq
      %v5510 = vshrl.u32 %v5509, 7
      %v5511 = vsub.s32 0, %v5510
      %v5512 = vrot.slane %v5507, %v5511
      %vm5514 = vcmask 261120
      %v5516 = vsel %vm5514, %v5415, 0
      %v5519 = vsel %vm5514, %v5422, 0
      %v5522 = vsel %vm5514, %v5429, 0
      %v5525 = vsel %vm5514, %v5436, 0
      %v5528 = vsel %vm5514, %v5443, 0
      %v5531 = vsel %vm5514, %v5450, 0
      %v5534 = vsel %vm5514, %v5457, 0
      %v5537 = vsel %vm5514, %v5464, 0
      %v5540 = vsel %vm5514, %v5471, 0
      %v5543 = vsel %vm5514, %v5478, 0
      %v5546 = vsel %vm5514, %v5485, 0
      %v5549 = vsel %vm5514, %v5492, 0
      %v5552 = vsel %vm5514, %v5499, 0
      %v5555 = vsel %vm5514, %v5506, 0
      %5557 = vmatprep.subr.mxu0 0.0
      %5558 = vmatpush1.xpose.msra.mxu0 0.0
      %5559 = vmatprep.subr.mxu0 0.0
      %5560 = vmatpush1.xpose.msra.mxu0 0.0
      %5561 = vmatprep.subr.mxu0 0.0
      %5562 = vmatpush1.xpose.msra.mxu0 0.0
      %5563 = vmatprep.subr.mxu0 0.0
      %5564 = vmatpush1.xpose.msra.mxu0 0.0
      %5565 = vmatprep.subr.mxu0 0.0
      %5566 = vmatpush1.xpose.msra.mxu0 0.0
      %5567 = vmatprep.subr.mxu0 0.0
      %5568 = vmatpush1.xpose.msra.mxu0 0.0
      %5569 = vmatprep.subr.mxu0 0.0
      %5570 = vmatpush1.xpose.msra.mxu0 0.0
      %5571 = vmatprep.subr.mxu0 0.0
      %5572 = vmatpush1.xpose.msra.mxu0 0.0
      %5573 = vmatprep.subr.mxu0 0.0
      %5574 = vmatpush1.xpose.msra.mxu0 0.0
      %5575 = vmatprep.subr.mxu0 0.0
      %5576 = vmatpush1.xpose.msra.mxu0 0.0
      %5577 = vmatprep.subr.mxu0 0.0
      %5578 = vmatpush1.xpose.msra.mxu0 0.0
      %5579 = vmatprep.subr.mxu0 0.0
      %5580 = vmatpush1.xpose.msra.mxu0 0.0
      %5581 = vmatprep.subr.mxu0 0.0
      %5582 = vmatpush1.xpose.msra.mxu0 0.0
      %5583 = vmatprep.subr.mxu0 0.0
      %5584 = vmatpush1.xpose.msra.mxu0 0.0
      %5585 = vmatprep.subr.mxu0 0.0
      %5586 = vmatpush1.xpose.msra.mxu0 0.0
      %5587 = vmatprep.subr.mxu0 %v5501
      %5588 = vmatpush1.xpose.msra.mxu0 %v5500
      %5589 = vmatprep.subr.mxu0 0.0
      %5590 = vmatpush2.xpose.msra.mxu0 0.0
      %5591 = vmatprep.subr.mxu0 0.0
      %5592 = vmatpush2.xpose.msra.mxu0 0.0
      %5593 = vmatprep.subr.mxu0 0.0
      %5594 = vmatpush2.xpose.msra.mxu0 0.0
      %5595 = vmatprep.subr.mxu0 0.0
      %5596 = vmatpush2.xpose.msra.mxu0 0.0
      %5597 = vmatprep.subr.mxu0 0.0
      %5598 = vmatpush2.xpose.msra.mxu0 0.0
      %5599 = vmatprep.subr.mxu0 0.0
      %5600 = vmatpush2.xpose.msra.mxu0 0.0
      %5601 = vmatprep.subr.mxu0 0.0
      %5602 = vmatpush2.xpose.msra.mxu0 0.0
      %5603 = vmatprep.subr.mxu0 0.0
      %5604 = vmatpush2.xpose.msra.mxu0 0.0
      %5605 = vmatprep.subr.mxu0 0.0
      %5606 = vmatpush2.xpose.msra.mxu0 0.0
      %5607 = vmatprep.subr.mxu0 0.0
      %5608 = vmatpush2.xpose.msra.mxu0 0.0
      %5609 = vmatprep.subr.mxu0 0.0
      %5610 = vmatpush2.xpose.msra.mxu0 0.0
      %5611 = vmatprep.subr.mxu0 0.0
      %5612 = vmatpush2.xpose.msra.mxu0 0.0
      %5613 = vmatprep.subr.mxu0 0.0
      %5614 = vmatpush2.xpose.msra.mxu0 0.0
      %5615 = vmatprep.subr.mxu0 0.0
      %5616 = vmatpush2.xpose.msra.mxu0 0.0
      %5617 = vmatprep.subr.mxu0 0.0
      %5618 = vmatpush2.xpose.msra.mxu0 0.0
      %5619 = vmatprep.subr.mxu0 0.0
      %5620 = vmatpush2.xpose.msra.mxu0 0.0
      %5621 = vmatprep.mubr.f32.mxu0 %v5410
      %5622 = vmatmul.mubr.f32.gmra.mxu0 %v5409
      %v5623 = vpop.f32.mrf.mxu0
      %v5624 = vadd.f32 %v5512, %v5623
      %v5625 = vpop.f32.mrf.mxu0
      %5626 = vmatprep.mubr.f32.mxu0 %v5417
      %5627 = vmatmul.mubr.f32.gmra.mxu0 %v5416
      %v5628 = vpop.f32.mrf.mxu0
      %v5629 = vadd.f32 %v5512, %v5628
      %v5630 = vpop.f32.mrf.mxu0
      %5631 = vmatprep.mubr.f32.mxu0 %v5424
      %5632 = vmatmul.mubr.f32.gmra.mxu0 %v5423
      %v5633 = vpop.f32.mrf.mxu0
      %v5634 = vadd.f32 %v5512, %v5633
      %v5635 = vpop.f32.mrf.mxu0
      %5636 = vmatprep.mubr.f32.mxu0 %v5431
      %5637 = vmatmul.mubr.f32.gmra.mxu0 %v5430
      %v5638 = vpop.f32.mrf.mxu0
      %v5639 = vadd.f32 %v5512, %v5638
      %v5640 = vpop.f32.mrf.mxu0
      %5641 = vmatprep.mubr.f32.mxu0 %v5438
      %5642 = vmatmul.mubr.f32.gmra.mxu0 %v5437
      %v5643 = vpop.f32.mrf.mxu0
      %v5644 = vadd.f32 %v5512, %v5643
      %v5645 = vpop.f32.mrf.mxu0
      %5646 = vmatprep.mubr.f32.mxu0 %v5445
      %5647 = vmatmul.mubr.f32.gmra.mxu0 %v5444
      %v5648 = vpop.f32.mrf.mxu0
      %v5649 = vadd.f32 %v5512, %v5648
      %v5650 = vpop.f32.mrf.mxu0
      %5651 = vmatprep.mubr.f32.mxu0 %v5452
      %5652 = vmatmul.mubr.f32.gmra.mxu0 %v5451
      %v5653 = vpop.f32.mrf.mxu0
      %v5654 = vadd.f32 %v5512, %v5653
      %v5655 = vpop.f32.mrf.mxu0
      %5656 = vmatprep.mubr.f32.mxu0 %v5459
      %5657 = vmatmul.mubr.f32.gmra.mxu0 %v5458
      %v5658 = vpop.f32.mrf.mxu0
      %v5659 = vadd.f32 %v5512, %v5658
      %v5660 = vpop.f32.mrf.mxu0
      %5661 = vmatprep.mubr.f32.mxu0 %v5466
      %5662 = vmatmul.mubr.f32.gmra.mxu0 %v5465
      %v5663 = vpop.f32.mrf.mxu0
      %v5664 = vadd.f32 %v5512, %v5663
      %v5665 = vpop.f32.mrf.mxu0
      %5666 = vmatprep.mubr.f32.mxu0 %v5473
      %5667 = vmatmul.mubr.f32.gmra.mxu0 %v5472
      %v5668 = vpop.f32.mrf.mxu0
      %v5669 = vadd.f32 %v5512, %v5668
      %v5670 = vpop.f32.mrf.mxu0
      %5671 = vmatprep.mubr.f32.mxu0 %v5480
      %5672 = vmatmul.mubr.f32.gmra.mxu0 %v5479
      %v5673 = vpop.f32.mrf.mxu0
      %v5674 = vadd.f32 %v5512, %v5673
      %v5675 = vpop.f32.mrf.mxu0
      %5676 = vmatprep.mubr.f32.mxu0 %v5487
      %5677 = vmatmul.mubr.f32.gmra.mxu0 %v5486
      %v5678 = vpop.f32.mrf.mxu0
      %v5679 = vadd.f32 %v5512, %v5678
      %v5680 = vpop.f32.mrf.mxu0
      %5681 = vmatprep.mubr.f32.mxu0 %v5494
      %5682 = vmatmul.mubr.f32.gmra.mxu0 %v5493
      %v5683 = vpop.f32.mrf.mxu0
      %v5684 = vadd.f32 %v5512, %v5683
      %v5685 = vpop.f32.mrf.mxu0
      %5686 = vdwg.mxu0
      %5687 = vmatprep.subr.mxu0 0.0
      %5688 = vmatpush1.xpose.msra.mxu0 0.0
      %5689 = vmatprep.subr.mxu0 0.0
      %5690 = vmatpush1.xpose.msra.mxu0 0.0
      %5691 = vmatprep.subr.mxu0 0.0
      %5692 = vmatpush1.xpose.msra.mxu0 0.0
      %5693 = vmatprep.subr.mxu0 0.0
      %5694 = vmatpush1.xpose.msra.mxu0 0.0
      %5695 = vmatprep.subr.mxu0 0.0
      %5696 = vmatpush1.xpose.msra.mxu0 0.0
      %5697 = vmatprep.subr.mxu0 0.0
      %5698 = vmatpush1.xpose.msra.mxu0 0.0
      %5699 = vmatprep.subr.mxu0 0.0
      %5700 = vmatpush1.xpose.msra.mxu0 0.0
      %5701 = vmatprep.subr.mxu0 0.0
      %5702 = vmatpush1.xpose.msra.mxu0 0.0
      %5703 = vmatprep.subr.mxu0 0.0
      %5704 = vmatpush1.xpose.msra.mxu0 0.0
      %5705 = vmatprep.subr.mxu0 0.0
      %5706 = vmatpush1.xpose.msra.mxu0 0.0
      %5707 = vmatprep.subr.mxu0 0.0
      %5708 = vmatpush1.xpose.msra.mxu0 0.0
      %5709 = vmatprep.subr.mxu0 0.0
      %5710 = vmatpush1.xpose.msra.mxu0 0.0
      %5711 = vmatprep.subr.mxu0 0.0
      %5712 = vmatpush1.xpose.msra.mxu0 0.0
      %5713 = vmatprep.subr.mxu0 0.0
      %5714 = vmatpush1.xpose.msra.mxu0 0.0
      %5715 = vmatprep.subr.mxu0 0.0
      %5716 = vmatpush1.xpose.msra.mxu0 0.0
      %5717 = vmatprep.subr.mxu0 %v5503
      %5718 = vmatpush1.xpose.msra.mxu0 %v5502
      %5719 = vmatprep.subr.mxu0 0.0
      %5720 = vmatpush2.xpose.msra.mxu0 0.0
      %5721 = vmatprep.subr.mxu0 0.0
      %5722 = vmatpush2.xpose.msra.mxu0 0.0
      %5723 = vmatprep.subr.mxu0 0.0
      %5724 = vmatpush2.xpose.msra.mxu0 0.0
      %5725 = vmatprep.subr.mxu0 0.0
      %5726 = vmatpush2.xpose.msra.mxu0 0.0
      %5727 = vmatprep.subr.mxu0 0.0
      %5728 = vmatpush2.xpose.msra.mxu0 0.0
      %5729 = vmatprep.subr.mxu0 0.0
      %5730 = vmatpush2.xpose.msra.mxu0 0.0
      %5731 = vmatprep.subr.mxu0 0.0
      %5732 = vmatpush2.xpose.msra.mxu0 0.0
      %5733 = vmatprep.subr.mxu0 0.0
      %5734 = vmatpush2.xpose.msra.mxu0 0.0
      %5735 = vmatprep.subr.mxu0 0.0
      %5736 = vmatpush2.xpose.msra.mxu0 0.0
      %5737 = vmatprep.subr.mxu0 0.0
      %5738 = vmatpush2.xpose.msra.mxu0 0.0
      %5739 = vmatprep.subr.mxu0 0.0
      %5740 = vmatpush2.xpose.msra.mxu0 0.0
      %5741 = vmatprep.subr.mxu0 0.0
      %5742 = vmatpush2.xpose.msra.mxu0 0.0
      %5743 = vmatprep.subr.mxu0 0.0
      %5744 = vmatpush2.xpose.msra.mxu0 0.0
      %5745 = vmatprep.subr.mxu0 0.0
      %5746 = vmatpush2.xpose.msra.mxu0 0.0
      %5747 = vmatprep.subr.mxu0 0.0
      %5748 = vmatpush2.xpose.msra.mxu0 0.0
      %5749 = vmatprep.subr.mxu0 0.0
      %5750 = vmatpush2.xpose.msra.mxu0 0.0
      %5751 = vmatprep.mubr.f32.mxu0 %v5412
      %5752 = vmatmul.mubr.f32.gmra.mxu0 %v5411
      %v5753 = vpop.f32.mrf.mxu0
      %v5754 = vadd.f32 %v5624, %v5753
      %v5755 = vpop.f32.mrf.mxu0
      %5756 = vmatprep.mubr.f32.mxu0 %v5419
      %5757 = vmatmul.mubr.f32.gmra.mxu0 %v5418
      %v5758 = vpop.f32.mrf.mxu0
      %v5759 = vadd.f32 %v5629, %v5758
      %v5760 = vpop.f32.mrf.mxu0
      %5761 = vmatprep.mubr.f32.mxu0 %v5426
      %5762 = vmatmul.mubr.f32.gmra.mxu0 %v5425
      %v5763 = vpop.f32.mrf.mxu0
      %v5764 = vadd.f32 %v5634, %v5763
      %v5765 = vpop.f32.mrf.mxu0
      %5766 = vmatprep.mubr.f32.mxu0 %v5433
      %5767 = vmatmul.mubr.f32.gmra.mxu0 %v5432
      %v5768 = vpop.f32.mrf.mxu0
      %v5769 = vadd.f32 %v5639, %v5768
      %v5770 = vpop.f32.mrf.mxu0
      %5771 = vmatprep.mubr.f32.mxu0 %v5440
      %5772 = vmatmul.mubr.f32.gmra.mxu0 %v5439
      %v5773 = vpop.f32.mrf.mxu0
      %v5774 = vadd.f32 %v5644, %v5773
      %v5775 = vpop.f32.mrf.mxu0
      %5776 = vmatprep.mubr.f32.mxu0 %v5447
      %5777 = vmatmul.mubr.f32.gmra.mxu0 %v5446
      %v5778 = vpop.f32.mrf.mxu0
      %v5779 = vadd.f32 %v5649, %v5778
      %v5780 = vpop.f32.mrf.mxu0
      %5781 = vmatprep.mubr.f32.mxu0 %v5454
      %5782 = vmatmul.mubr.f32.gmra.mxu0 %v5453
      %v5783 = vpop.f32.mrf.mxu0
      %v5784 = vadd.f32 %v5654, %v5783
      %v5785 = vpop.f32.mrf.mxu0
      %5786 = vmatprep.mubr.f32.mxu0 %v5461
      %5787 = vmatmul.mubr.f32.gmra.mxu0 %v5460
      %v5788 = vpop.f32.mrf.mxu0
      %v5789 = vadd.f32 %v5659, %v5788
      %v5790 = vpop.f32.mrf.mxu0
      %5791 = vmatprep.mubr.f32.mxu0 %v5468
      %5792 = vmatmul.mubr.f32.gmra.mxu0 %v5467
      %v5793 = vpop.f32.mrf.mxu0
      %v5794 = vadd.f32 %v5664, %v5793
      %v5795 = vpop.f32.mrf.mxu0
      %5796 = vmatprep.mubr.f32.mxu0 %v5475
      %5797 = vmatmul.mubr.f32.gmra.mxu0 %v5474
      %v5798 = vpop.f32.mrf.mxu0
      %v5799 = vadd.f32 %v5669, %v5798
      %v5800 = vpop.f32.mrf.mxu0
      %5801 = vmatprep.mubr.f32.mxu0 %v5482
      %5802 = vmatmul.mubr.f32.gmra.mxu0 %v5481
      %v5803 = vpop.f32.mrf.mxu0
      %v5804 = vadd.f32 %v5674, %v5803
      %v5805 = vpop.f32.mrf.mxu0
      %5806 = vmatprep.mubr.f32.mxu0 %v5489
      %5807 = vmatmul.mubr.f32.gmra.mxu0 %v5488
      %v5808 = vpop.f32.mrf.mxu0
      %v5809 = vadd.f32 %v5679, %v5808
      %v5810 = vpop.f32.mrf.mxu0
      %5811 = vmatprep.mubr.f32.mxu0 %v5496
      %5812 = vmatmul.mubr.f32.gmra.mxu0 %v5495
      %v5813 = vpop.f32.mrf.mxu0
      %v5814 = vadd.f32 %v5684, %v5813
      %v5815 = vpop.f32.mrf.mxu0
      %5816 = vdwg.mxu0
      %5817 = vmatprep.subr.mxu0 0.0
      %5818 = vmatpush1.xpose.msra.mxu0 0.0
      %5819 = vmatprep.subr.mxu0 0.0
      %5820 = vmatpush1.xpose.msra.mxu0 0.0
      %5821 = vmatprep.subr.mxu0 0.0
      %5822 = vmatpush1.xpose.msra.mxu0 0.0
      %5823 = vmatprep.subr.mxu0 0.0
      %5824 = vmatpush1.xpose.msra.mxu0 0.0
      %5825 = vmatprep.subr.mxu0 0.0
      %5826 = vmatpush1.xpose.msra.mxu0 0.0
      %5827 = vmatprep.subr.mxu0 0.0
      %5828 = vmatpush1.xpose.msra.mxu0 0.0
      %5829 = vmatprep.subr.mxu0 0.0
      %5830 = vmatpush1.xpose.msra.mxu0 0.0
      %5831 = vmatprep.subr.mxu0 0.0
      %5832 = vmatpush1.xpose.msra.mxu0 0.0
      %5833 = vmatprep.subr.mxu0 0.0
      %5834 = vmatpush1.xpose.msra.mxu0 0.0
      %5835 = vmatprep.subr.mxu0 0.0
      %5836 = vmatpush1.xpose.msra.mxu0 0.0
      %5837 = vmatprep.subr.mxu0 0.0
      %5838 = vmatpush1.xpose.msra.mxu0 0.0
      %5839 = vmatprep.subr.mxu0 0.0
      %5840 = vmatpush1.xpose.msra.mxu0 0.0
      %5841 = vmatprep.subr.mxu0 0.0
      %5842 = vmatpush1.xpose.msra.mxu0 0.0
      %5843 = vmatprep.subr.mxu0 0.0
      %5844 = vmatpush1.xpose.msra.mxu0 0.0
      %5845 = vmatprep.subr.mxu0 0.0
      %5846 = vmatpush1.xpose.msra.mxu0 0.0
      %5847 = vmatprep.subr.mxu0 %v5505
      %5848 = vmatpush1.xpose.msra.mxu0 %v5504
      %5849 = vmatprep.subr.mxu0 0.0
      %5850 = vmatpush2.xpose.msra.mxu0 0.0
      %5851 = vmatprep.subr.mxu0 0.0
      %5852 = vmatpush2.xpose.msra.mxu0 0.0
      %5853 = vmatprep.subr.mxu0 0.0
      %5854 = vmatpush2.xpose.msra.mxu0 0.0
      %5855 = vmatprep.subr.mxu0 0.0
      %5856 = vmatpush2.xpose.msra.mxu0 0.0
      %5857 = vmatprep.subr.mxu0 0.0
      %5858 = vmatpush2.xpose.msra.mxu0 0.0
      %5859 = vmatprep.subr.mxu0 0.0
      %5860 = vmatpush2.xpose.msra.mxu0 0.0
      %5861 = vmatprep.subr.mxu0 0.0
      %5862 = vmatpush2.xpose.msra.mxu0 0.0
      %5863 = vmatprep.subr.mxu0 0.0
      %5864 = vmatpush2.xpose.msra.mxu0 0.0
      %5865 = vmatprep.subr.mxu0 0.0
      %5866 = vmatpush2.xpose.msra.mxu0 0.0
      %5867 = vmatprep.subr.mxu0 0.0
      %5868 = vmatpush2.xpose.msra.mxu0 0.0
      %5869 = vmatprep.subr.mxu0 0.0
      %5870 = vmatpush2.xpose.msra.mxu0 0.0
      %5871 = vmatprep.subr.mxu0 0.0
      %5872 = vmatpush2.xpose.msra.mxu0 0.0
      %5873 = vmatprep.subr.mxu0 0.0
      %5874 = vmatpush2.xpose.msra.mxu0 0.0
      %5875 = vmatprep.subr.mxu0 0.0
      %5876 = vmatpush2.xpose.msra.mxu0 0.0
      %5877 = vmatprep.subr.mxu0 0.0
      %5878 = vmatpush2.xpose.msra.mxu0 0.0
      %5879 = vmatprep.subr.mxu0 0.0
      %5880 = vmatpush2.xpose.msra.mxu0 0.0
      %5881 = vmatprep.mubr.f32.mxu0 %v5414
      %5882 = vmatmul.mubr.f32.gmra.mxu0 %v5413
      %v5883 = vpop.f32.mrf.mxu0
      %v5884 = vadd.f32 %v5754, %v5883
      %v5885 = vpop.f32.mrf.mxu0
      %5886 = vmatprep.mubr.f32.mxu0 %v5421
      %5887 = vmatmul.mubr.f32.gmra.mxu0 %v5420
      %v5888 = vpop.f32.mrf.mxu0
      %v5889 = vadd.f32 %v5759, %v5888
      %v5890 = vpop.f32.mrf.mxu0
      %5891 = vmatprep.mubr.f32.mxu0 %v5428
      %5892 = vmatmul.mubr.f32.gmra.mxu0 %v5427
      %v5893 = vpop.f32.mrf.mxu0
      %v5894 = vadd.f32 %v5764, %v5893
      %v5895 = vpop.f32.mrf.mxu0
      %5896 = vmatprep.mubr.f32.mxu0 %v5435
      %5897 = vmatmul.mubr.f32.gmra.mxu0 %v5434
      %v5898 = vpop.f32.mrf.mxu0
      %v5899 = vadd.f32 %v5769, %v5898
      %v5900 = vpop.f32.mrf.mxu0
      %5901 = vmatprep.mubr.f32.mxu0 %v5442
      %5902 = vmatmul.mubr.f32.gmra.mxu0 %v5441
      %v5903 = vpop.f32.mrf.mxu0
      %v5904 = vadd.f32 %v5774, %v5903
      %v5905 = vpop.f32.mrf.mxu0
      %5906 = vmatprep.mubr.f32.mxu0 %v5449
      %5907 = vmatmul.mubr.f32.gmra.mxu0 %v5448
      %v5908 = vpop.f32.mrf.mxu0
      %v5909 = vadd.f32 %v5779, %v5908
      %v5910 = vpop.f32.mrf.mxu0
      %5911 = vmatprep.mubr.f32.mxu0 %v5456
      %5912 = vmatmul.mubr.f32.gmra.mxu0 %v5455
      %v5913 = vpop.f32.mrf.mxu0
      %v5914 = vadd.f32 %v5784, %v5913
      %v5915 = vpop.f32.mrf.mxu0
      %5916 = vmatprep.mubr.f32.mxu0 %v5463
      %5917 = vmatmul.mubr.f32.gmra.mxu0 %v5462
      %v5918 = vpop.f32.mrf.mxu0
      %v5919 = vadd.f32 %v5789, %v5918
      %v5920 = vpop.f32.mrf.mxu0
      %5921 = vmatprep.mubr.f32.mxu0 %v5470
      %5922 = vmatmul.mubr.f32.gmra.mxu0 %v5469
      %v5923 = vpop.f32.mrf.mxu0
      %v5924 = vadd.f32 %v5794, %v5923
      %v5925 = vpop.f32.mrf.mxu0
      %5926 = vmatprep.mubr.f32.mxu0 %v5477
      %5927 = vmatmul.mubr.f32.gmra.mxu0 %v5476
      %v5928 = vpop.f32.mrf.mxu0
      %v5929 = vadd.f32 %v5799, %v5928
      %v5930 = vpop.f32.mrf.mxu0
      %5931 = vmatprep.mubr.f32.mxu0 %v5484
      %5932 = vmatmul.mubr.f32.gmra.mxu0 %v5483
      %v5933 = vpop.f32.mrf.mxu0
      %v5934 = vadd.f32 %v5804, %v5933
      %v5935 = vpop.f32.mrf.mxu0
      %5936 = vmatprep.mubr.f32.mxu0 %v5491
      %5937 = vmatmul.mubr.f32.gmra.mxu0 %v5490
      %v5938 = vpop.f32.mrf.mxu0
      %v5939 = vadd.f32 %v5809, %v5938
      %v5940 = vpop.f32.mrf.mxu0
      %5941 = vmatprep.mubr.f32.mxu0 %v5498
      %5942 = vmatmul.mubr.f32.gmra.mxu0 %v5497
      %v5943 = vpop.f32.mrf.mxu0
      %v5944 = vadd.f32 %v5814, %v5943
      %v5945 = vpop.f32.mrf.mxu0
      %5946 = vdwg.mxu0
      %5947 = vmatprep.subr.mxu0 0.0
      %5948 = vmatpush1.xpose.msra.mxu0 0.0
      %5949 = vmatprep.subr.mxu0 0.0
      %5950 = vmatpush1.xpose.msra.mxu0 0.0
      %5951 = vmatprep.subr.mxu0 0.0
      %5952 = vmatpush1.xpose.msra.mxu0 0.0
      %5953 = vmatprep.subr.mxu0 0.0
      %5954 = vmatpush1.xpose.msra.mxu0 0.0
      %5955 = vmatprep.subr.mxu0 0.0
      %5956 = vmatpush1.xpose.msra.mxu0 0.0
      %5957 = vmatprep.subr.mxu0 0.0
      %5958 = vmatpush1.xpose.msra.mxu0 0.0
      %5959 = vmatprep.subr.mxu0 0.0
      %5960 = vmatpush1.xpose.msra.mxu0 0.0
      %5961 = vmatprep.subr.mxu0 0.0
      %5962 = vmatpush1.xpose.msra.mxu0 0.0
      %5963 = vmatprep.subr.mxu0 0.0
      %5964 = vmatpush1.xpose.msra.mxu0 0.0
      %5965 = vmatprep.subr.mxu0 0.0
      %5966 = vmatpush1.xpose.msra.mxu0 0.0
      %5967 = vmatprep.subr.mxu0 0.0
      %5968 = vmatpush1.xpose.msra.mxu0 0.0
      %5969 = vmatprep.subr.mxu0 0.0
      %5970 = vmatpush1.xpose.msra.mxu0 0.0
      %5971 = vmatprep.subr.mxu0 0.0
      %5972 = vmatpush1.xpose.msra.mxu0 0.0
      %5973 = vmatprep.subr.mxu0 0.0
      %5974 = vmatpush1.xpose.msra.mxu0 0.0
      %5975 = vmatprep.subr.mxu0 0.0
      %5976 = vmatpush1.xpose.msra.mxu0 0.0
      %5977 = vmatprep.subr.mxu0 0.0
      %5978 = vmatpush1.xpose.msra.mxu0 %v5555
      %5979 = vmatprep.subr.mxu0 0.0
      %5980 = vmatpush2.xpose.msra.mxu0 0.0
      %5981 = vmatprep.subr.mxu0 0.0
      %5982 = vmatpush2.xpose.msra.mxu0 0.0
      %5983 = vmatprep.subr.mxu0 0.0
      %5984 = vmatpush2.xpose.msra.mxu0 0.0
      %5985 = vmatprep.subr.mxu0 0.0
      %5986 = vmatpush2.xpose.msra.mxu0 0.0
      %5987 = vmatprep.subr.mxu0 0.0
      %5988 = vmatpush2.xpose.msra.mxu0 0.0
      %5989 = vmatprep.subr.mxu0 0.0
      %5990 = vmatpush2.xpose.msra.mxu0 0.0
      %5991 = vmatprep.subr.mxu0 0.0
      %5992 = vmatpush2.xpose.msra.mxu0 0.0
      %5993 = vmatprep.subr.mxu0 0.0
      %5994 = vmatpush2.xpose.msra.mxu0 0.0
      %5995 = vmatprep.subr.mxu0 0.0
      %5996 = vmatpush2.xpose.msra.mxu0 0.0
      %5997 = vmatprep.subr.mxu0 0.0
      %5998 = vmatpush2.xpose.msra.mxu0 0.0
      %5999 = vmatprep.subr.mxu0 0.0
      %6000 = vmatpush2.xpose.msra.mxu0 0.0
      %6001 = vmatprep.subr.mxu0 0.0
      %6002 = vmatpush2.xpose.msra.mxu0 0.0
      %6003 = vmatprep.subr.mxu0 0.0
      %6004 = vmatpush2.xpose.msra.mxu0 0.0
      %6005 = vmatprep.subr.mxu0 0.0
      %6006 = vmatpush2.xpose.msra.mxu0 0.0
      %6007 = vmatprep.subr.mxu0 0.0
      %6008 = vmatpush2.xpose.msra.mxu0 0.0
      %6009 = vmatprep.subr.mxu0 0.0
      %6010 = vmatpush2.xpose.msra.mxu0 0.0
      %6011 = vmatprep.mubr.f32.mxu0 0.0
      %6012 = vmatmul.mubr.f32.gmra.mxu0 %v5516
      %v6013 = vpop.f32.mrf.mxu0
      %v6014 = vadd.f32 %v5884, %v6013
      %v6015 = vpop.f32.mrf.mxu0
      %6016 = vmatprep.mubr.f32.mxu0 0.0
      %6017 = vmatmul.mubr.f32.gmra.mxu0 %v5519
      %v6018 = vpop.f32.mrf.mxu0
      %v6019 = vadd.f32 %v5889, %v6018
      %v6020 = vpop.f32.mrf.mxu0
      %6021 = vmatprep.mubr.f32.mxu0 0.0
      %6022 = vmatmul.mubr.f32.gmra.mxu0 %v5522
      %v6023 = vpop.f32.mrf.mxu0
      %v6024 = vadd.f32 %v5894, %v6023
      %v6025 = vpop.f32.mrf.mxu0
      %6026 = vmatprep.mubr.f32.mxu0 0.0
      %6027 = vmatmul.mubr.f32.gmra.mxu0 %v5525
      %v6028 = vpop.f32.mrf.mxu0
      %v6029 = vadd.f32 %v5899, %v6028
      %v6030 = vpop.f32.mrf.mxu0
      %6031 = vmatprep.mubr.f32.mxu0 0.0
      %6032 = vmatmul.mubr.f32.gmra.mxu0 %v5528
      %v6033 = vpop.f32.mrf.mxu0
      %v6034 = vadd.f32 %v5904, %v6033
      %v6035 = vpop.f32.mrf.mxu0
      %6036 = vmatprep.mubr.f32.mxu0 0.0
      %6037 = vmatmul.mubr.f32.gmra.mxu0 %v5531
      %v6038 = vpop.f32.mrf.mxu0
      %v6039 = vadd.f32 %v5909, %v6038
      %v6040 = vpop.f32.mrf.mxu0
      %6041 = vmatprep.mubr.f32.mxu0 0.0
      %6042 = vmatmul.mubr.f32.gmra.mxu0 %v5534
      %v6043 = vpop.f32.mrf.mxu0
      %v6044 = vadd.f32 %v5914, %v6043
      %v6045 = vpop.f32.mrf.mxu0
      %6046 = vmatprep.mubr.f32.mxu0 0.0
      %6047 = vmatmul.mubr.f32.gmra.mxu0 %v5537
      %v6048 = vpop.f32.mrf.mxu0
      %v6049 = vadd.f32 %v5919, %v6048
      %v6050 = vpop.f32.mrf.mxu0
      %6051 = vmatprep.mubr.f32.mxu0 0.0
      %6052 = vmatmul.mubr.f32.gmra.mxu0 %v5540
      %v6053 = vpop.f32.mrf.mxu0
      %v6054 = vadd.f32 %v5924, %v6053
      %v6055 = vpop.f32.mrf.mxu0
      %6056 = vmatprep.mubr.f32.mxu0 0.0
      %6057 = vmatmul.mubr.f32.gmra.mxu0 %v5543
      %v6058 = vpop.f32.mrf.mxu0
      %v6059 = vadd.f32 %v5929, %v6058
      %v6060 = vpop.f32.mrf.mxu0
      %6061 = vmatprep.mubr.f32.mxu0 0.0
      %6062 = vmatmul.mubr.f32.gmra.mxu0 %v5546
      %v6063 = vpop.f32.mrf.mxu0
      %v6064 = vadd.f32 %v5934, %v6063
      %v6065 = vpop.f32.mrf.mxu0
      %6066 = vmatprep.mubr.f32.mxu0 0.0
      %6067 = vmatmul.mubr.f32.gmra.mxu0 %v5549
      %v6068 = vpop.f32.mrf.mxu0
      %v6069 = vadd.f32 %v5939, %v6068
      %v6070 = vpop.f32.mrf.mxu0
      %6071 = vmatprep.mubr.f32.mxu0 0.0
      %6072 = vmatmul.mubr.f32.gmra.mxu0 %v5552
      %v6073 = vpop.f32.mrf.mxu0
      %v6074 = vadd.f32 %v5944, %v6073
      %v6075 = vpop.f32.mrf.mxu0
      %6076 = vdwg.mxu0
      %v6077 = vadd.f32 %v3633, %v6014
      %v6078 = vadd.f32 %v3634, %v6019
      %v6079 = vadd.f32 %v3635, %v6024
      %v6080 = vadd.f32 %v3636, %v6029
      %v6081 = vadd.f32 %v3637, %v6034
      %v6082 = vadd.f32 %v3638, %v6039
      %v6083 = vadd.f32 %v3639, %v6044
      %v6084 = vadd.f32 %v3640, %v6049
      %v6085 = vadd.f32 %v3641, %v6054
      %v6086 = vadd.f32 %v3642, %v6059
      %v6087 = vadd.f32 %v3643, %v6064
      %v6088 = vadd.f32 %v3644, %v6069
      %v6089 = vadd.f32 %v3645, %v6074
      %v6090 = vld [vmem:[%s6 + $0x2] sm:$0x1]
      %v6091 = vld [vmem:[%s6 + $0x3] sm:$0x1]
      %v6092 = vsel %vm483, %v6077, 0.0
      %6093 = vadd.xlane.f32.xlu0 %v6092
      %v6094 = vpop.xlane.xlu0 %6093
      %v6095 = vsel %vm483, %v6078, 0.0
      %6096 = vadd.xlane.f32.xlu0 %v6095
      %v6097 = vpop.xlane.xlu0 %6096
      %v6098 = vsel %vm483, %v6079, 0.0
      %6099 = vadd.xlane.f32.xlu0 %v6098
      %v6100 = vpop.xlane.xlu0 %6099
      %v6101 = vsel %vm483, %v6080, 0.0
      %6102 = vadd.xlane.f32.xlu0 %v6101
      %v6103 = vpop.xlane.xlu0 %6102
      %v6104 = vsel %vm483, %v6081, 0.0
      %6105 = vadd.xlane.f32.xlu0 %v6104
      %v6106 = vpop.xlane.xlu0 %6105
      %v6107 = vsel %vm483, %v6082, 0.0
      %6108 = vadd.xlane.f32.xlu0 %v6107
      %v6109 = vpop.xlane.xlu0 %6108
      %v6110 = vsel %vm483, %v6083, 0.0
      %6111 = vadd.xlane.f32.xlu0 %v6110
      %v6112 = vpop.xlane.xlu0 %6111
      %v6113 = vsel %vm483, %v6084, 0.0
      %6114 = vadd.xlane.f32.xlu0 %v6113
      %v6115 = vpop.xlane.xlu0 %6114
      %v6116 = vsel %vm483, %v6085, 0.0
      %6117 = vadd.xlane.f32.xlu0 %v6116
      %v6118 = vpop.xlane.xlu0 %6117
      %v6119 = vsel %vm483, %v6086, 0.0
      %6120 = vadd.xlane.f32.xlu0 %v6119
      %v6121 = vpop.xlane.xlu0 %6120
      %v6122 = vsel %vm483, %v6087, 0.0
      %6123 = vadd.xlane.f32.xlu0 %v6122
      %v6124 = vpop.xlane.xlu0 %6123
      %v6125 = vsel %vm483, %v6088, 0.0
      %6126 = vadd.xlane.f32.xlu0 %v6125
      %v6127 = vpop.xlane.xlu0 %6126
      %v6128 = vsel %vm3477, %v6089, 0.0
      %6129 = vadd.xlane.f32.xlu0 %v6128
      %v6130 = vpop.xlane.xlu0 %6129
      %v6131 = vmul.f32 %v6094, %v3481
      %v6132 = vmul.f32 %v6097, %v3481
      %v6133 = vmul.f32 %v6100, %v3481
      %v6134 = vmul.f32 %v6103, %v3481
      %v6135 = vmul.f32 %v6106, %v3481
      %v6136 = vmul.f32 %v6109, %v3481
      %v6137 = vmul.f32 %v6112, %v3481
      %v6138 = vmul.f32 %v6115, %v3481
      %v6139 = vmul.f32 %v6118, %v3481
      %v6140 = vmul.f32 %v6121, %v3481
      %v6141 = vmul.f32 %v6124, %v3481
      %v6142 = vmul.f32 %v6127, %v3481
      %v6143 = vmul.f32 %v6130, %v3481
      %v6144 = vsub.f32 %v6077, %v6131
      %v6145 = vsub.f32 %v6078, %v6132
      %v6146 = vsub.f32 %v6079, %v6133
      %v6147 = vsub.f32 %v6080, %v6134
      %v6148 = vsub.f32 %v6081, %v6135
      %v6149 = vsub.f32 %v6082, %v6136
      %v6150 = vsub.f32 %v6083, %v6137
      %v6151 = vsub.f32 %v6084, %v6138
      %v6152 = vsub.f32 %v6085, %v6139
      %v6153 = vsub.f32 %v6086, %v6140
      %v6154 = vsub.f32 %v6087, %v6141
      %v6155 = vsub.f32 %v6088, %v6142
      %v6156 = vsub.f32 %v6089, %v6143
      %v6157 = vmul.f32 %v6144, %v6144
      %v6158 = vmul.f32 %v6145, %v6145
      %v6159 = vmul.f32 %v6146, %v6146
      %v6160 = vmul.f32 %v6147, %v6147
      %v6161 = vmul.f32 %v6148, %v6148
      %v6162 = vmul.f32 %v6149, %v6149
      %v6163 = vmul.f32 %v6150, %v6150
      %v6164 = vmul.f32 %v6151, %v6151
      %v6165 = vmul.f32 %v6152, %v6152
      %v6166 = vmul.f32 %v6153, %v6153
      %v6167 = vmul.f32 %v6154, %v6154
      %v6168 = vmul.f32 %v6155, %v6155
      %v6169 = vmul.f32 %v6156, %v6156
      %v6170 = vsel %vm483, %v6157, 0.0
      %6171 = vadd.xlane.f32.xlu0 %v6170
      %v6172 = vpop.xlane.xlu0 %6171
      %v6173 = vsel %vm483, %v6158, 0.0
      %6174 = vadd.xlane.f32.xlu0 %v6173
      %v6175 = vpop.xlane.xlu0 %6174
      %v6176 = vsel %vm483, %v6159, 0.0
      %6177 = vadd.xlane.f32.xlu0 %v6176
      %v6178 = vpop.xlane.xlu0 %6177
      %v6179 = vsel %vm483, %v6160, 0.0
      %6180 = vadd.xlane.f32.xlu0 %v6179
      %v6181 = vpop.xlane.xlu0 %6180
      %v6182 = vsel %vm483, %v6161, 0.0
      %6183 = vadd.xlane.f32.xlu0 %v6182
      %v6184 = vpop.xlane.xlu0 %6183
      %v6185 = vsel %vm483, %v6162, 0.0
      %6186 = vadd.xlane.f32.xlu0 %v6185
      %v6187 = vpop.xlane.xlu0 %6186
      %v6188 = vsel %vm483, %v6163, 0.0
      %6189 = vadd.xlane.f32.xlu0 %v6188
      %v6190 = vpop.xlane.xlu0 %6189
      %v6191 = vsel %vm483, %v6164, 0.0
      %6192 = vadd.xlane.f32.xlu0 %v6191
      %v6193 = vpop.xlane.xlu0 %6192
      %v6194 = vsel %vm483, %v6165, 0.0
      %6195 = vadd.xlane.f32.xlu0 %v6194
      %v6196 = vpop.xlane.xlu0 %6195
      %v6197 = vsel %vm483, %v6166, 0.0
      %6198 = vadd.xlane.f32.xlu0 %v6197
      %v6199 = vpop.xlane.xlu0 %6198
      %v6200 = vsel %vm483, %v6167, 0.0
      %6201 = vadd.xlane.f32.xlu0 %v6200
      %v6202 = vpop.xlane.xlu0 %6201
      %v6203 = vsel %vm483, %v6168, 0.0
      %6204 = vadd.xlane.f32.xlu0 %v6203
      %v6205 = vpop.xlane.xlu0 %6204
      %v6206 = vsel %vm3477, %v6169, 0.0
      %6207 = vadd.xlane.f32.xlu0 %v6206
      %v6208 = vpop.xlane.xlu0 %6207
      %v6209 = vmul.f32 %v6172, %v3481
      %v6210 = vmul.f32 %v6175, %v3481
      %v6211 = vmul.f32 %v6178, %v3481
      %v6212 = vmul.f32 %v6181, %v3481
      %v6213 = vmul.f32 %v6184, %v3481
      %v6214 = vmul.f32 %v6187, %v3481
      %v6215 = vmul.f32 %v6190, %v3481
      %v6216 = vmul.f32 %v6193, %v3481
      %v6217 = vmul.f32 %v6196, %v3481
      %v6218 = vmul.f32 %v6199, %v3481
      %v6219 = vmul.f32 %v6202, %v3481
      %v6220 = vmul.f32 %v6205, %v3481
      %v6221 = vmul.f32 %v6208, %v3481
      %v6222 = vadd.f32 %v6209, 1e-05
      %v6223 = vadd.f32 %v6210, 1e-05
      %v6224 = vadd.f32 %v6211, 1e-05
      %v6225 = vadd.f32 %v6212, 1e-05
      %v6226 = vadd.f32 %v6213, 1e-05
      %v6227 = vadd.f32 %v6214, 1e-05
      %v6228 = vadd.f32 %v6215, 1e-05
      %v6229 = vadd.f32 %v6216, 1e-05
      %v6230 = vadd.f32 %v6217, 1e-05
      %v6231 = vadd.f32 %v6218, 1e-05
      %v6232 = vadd.f32 %v6219, 1e-05
      %v6233 = vadd.f32 %v6220, 1e-05
      %v6234 = vadd.f32 %v6221, 1e-05
      %v6235 = vrsqrt.pop %v6222
      %v6236 = vrsqrt.pop %v6223
      %v6237 = vrsqrt.pop %v6224
      %v6238 = vrsqrt.pop %v6225
      %v6239 = vrsqrt.pop %v6226
      %v6240 = vrsqrt.pop %v6227
      %v6241 = vrsqrt.pop %v6228
      %v6242 = vrsqrt.pop %v6229
      %v6243 = vrsqrt.pop %v6230
      %v6244 = vrsqrt.pop %v6231
      %v6245 = vrsqrt.pop %v6232
      %v6246 = vrsqrt.pop %v6233
      %v6247 = vrsqrt.pop %v6234
      %v6248 = vmul.f32 %v6144, %v6235
      %v6249 = vmul.f32 %v6145, %v6236
      %v6250 = vmul.f32 %v6146, %v6237
      %v6251 = vmul.f32 %v6147, %v6238
      %v6252 = vmul.f32 %v6148, %v6239
      %v6253 = vmul.f32 %v6149, %v6240
      %v6254 = vmul.f32 %v6150, %v6241
      %v6255 = vmul.f32 %v6151, %v6242
      %v6256 = vmul.f32 %v6152, %v6243
      %v6257 = vmul.f32 %v6153, %v6244
      %v6258 = vmul.f32 %v6154, %v6245
      %v6259 = vmul.f32 %v6155, %v6246
      %v6260 = vmul.f32 %v6156, %v6247
      %v6261 = vlaneseq
      %v6262 = vshrl.u32 %v6261, 7
      %v6263 = vsub.s32 0, %v6262
      %v6264 = vrot.slane %v6090, %v6263
      %v6265 = vmul.f32 %v6248, %v6264
      %v6266 = vmul.f32 %v6249, %v6264
      %v6267 = vmul.f32 %v6250, %v6264
      %v6268 = vmul.f32 %v6251, %v6264
      %v6269 = vmul.f32 %v6252, %v6264
      %v6270 = vmul.f32 %v6253, %v6264
      %v6271 = vmul.f32 %v6254, %v6264
      %v6272 = vmul.f32 %v6255, %v6264
      %v6273 = vmul.f32 %v6256, %v6264
      %v6274 = vmul.f32 %v6257, %v6264
      %v6275 = vmul.f32 %v6258, %v6264
      %v6276 = vmul.f32 %v6259, %v6264
      %v6277 = vmul.f32 %v6260, %v6264
      %v6278 = vlaneseq
      %v6279 = vshrl.u32 %v6278, 7
      %v6280 = vsub.s32 0, %v6279
      %v6281 = vrot.slane %v6091, %v6280
      %v6282 = vadd.f32 %v6265, %v6281
      %v6283 = vadd.f32 %v6266, %v6281
      %v6284 = vadd.f32 %v6267, %v6281
      %v6285 = vadd.f32 %v6268, %v6281
      %v6286 = vadd.f32 %v6269, %v6281
      %v6287 = vadd.f32 %v6270, %v6281
      %v6288 = vadd.f32 %v6271, %v6281
      %v6289 = vadd.f32 %v6272, %v6281
      %v6290 = vadd.f32 %v6273, %v6281
      %v6291 = vadd.f32 %v6274, %v6281
      %v6292 = vadd.f32 %v6275, %v6281
      %v6293 = vadd.f32 %v6276, %v6281
      %v6294 = vadd.f32 %v6277, %v6281
      %v6295 = vld [vmem:[%s428] sm:$0xff]
      %v6296 = vld [vmem:[%s428 + $0x8] sm:$0xff]
      %v6297 = vld [vmem:[%s428 + $0x10] sm:$0xff]
      %v6298 = vld [vmem:[%s428 + $0x18] sm:$0xff]
      %v6299 = vld [vmem:[%s428 + $0x20] sm:$0xff]
      %v6300 = vld [vmem:[%s428 + $0x28] sm:$0xff]
      %v6301 = vld [vmem:[%s428 + $0x30] sm:$0xff]
      %v6302 = vld [vmem:[%s428 + $0x38] sm:$0xff]
      %v6303 = vld [vmem:[%s428 + $0x40] sm:$0xff]
      %v6304 = vld [vmem:[%s428 + $0x48] sm:$0xff]
      %v6305 = vld [vmem:[%s428 + $0x50] sm:$0xff]
      %v6306 = vld [vmem:[%s428 + $0x58] sm:$0xff]
      %v6307 = vld [vmem:[%s428 + $0x60] sm:$0xf]
      %v6308 = vld [vmem:[%s428 + $0x68] sm:$0xff]
      %v6309 = vld [vmem:[%s428 + $0x70] sm:$0xff]
      %v6310 = vld [vmem:[%s428 + $0x78] sm:$0xff]
      %v6311 = vld [vmem:[%s428 + $0x80] sm:$0xff]
      %v6312 = vld [vmem:[%s428 + $0x88] sm:$0xff]
      %v6313 = vld [vmem:[%s428 + $0x90] sm:$0xff]
      %v6314 = vld [vmem:[%s428 + $0x98] sm:$0xff]
      %v6315 = vld [vmem:[%s428 + $0xa0] sm:$0xff]
      %v6316 = vld [vmem:[%s428 + $0xa8] sm:$0xff]
      %v6317 = vld [vmem:[%s428 + $0xb0] sm:$0xff]
      %v6318 = vld [vmem:[%s428 + $0xb8] sm:$0xff]
      %v6319 = vld [vmem:[%s428 + $0xc0] sm:$0xff]
      %v6320 = vld [vmem:[%s428 + $0xc8] sm:$0xf]
      %v6321 = vld [vmem:[%s428 + $0xd0] sm:$0xff]
      %v6322 = vld [vmem:[%s428 + $0xd8] sm:$0xff]
      %v6323 = vld [vmem:[%s428 + $0xe0] sm:$0xff]
      %v6324 = vld [vmem:[%s428 + $0xe8] sm:$0xff]
      %v6325 = vld [vmem:[%s428 + $0xf0] sm:$0xff]
      %v6326 = vld [vmem:[%s428 + $0xf8] sm:$0xff]
      %v6327 = vld [vmem:[%s428 + $0x100] sm:$0xff]
      %v6328 = vld [vmem:[%s428 + $0x108] sm:$0xff]
      %v6329 = vld [vmem:[%s428 + $0x110] sm:$0xff]
      %v6330 = vld [vmem:[%s428 + $0x118] sm:$0xff]
      %v6331 = vld [vmem:[%s428 + $0x120] sm:$0xff]
      %v6332 = vld [vmem:[%s428 + $0x128] sm:$0xff]
      %v6333 = vld [vmem:[%s428 + $0x130] sm:$0xf]
      %v6334 = vld [vmem:[%s428 + $0x138] sm:$0xff]
      %v6335 = vld [vmem:[%s428 + $0x140] sm:$0xff]
      %v6336 = vld [vmem:[%s428 + $0x148] sm:$0xff]
      %v6337 = vld [vmem:[%s428 + $0x150] sm:$0xff]
      %v6338 = vld [vmem:[%s428 + $0x158] sm:$0xff]
      %v6339 = vld [vmem:[%s428 + $0x160] sm:$0xff]
      %v6340 = vld [vmem:[%s428 + $0x168] sm:$0xff]
      %v6341 = vld [vmem:[%s428 + $0x170] sm:$0xff]
      %v6342 = vld [vmem:[%s428 + $0x178] sm:$0xff]
      %v6343 = vld [vmem:[%s428 + $0x180] sm:$0xff]
      %v6344 = vld [vmem:[%s428 + $0x188] sm:$0xff]
      %v6345 = vld [vmem:[%s428 + $0x190] sm:$0xff]
      %v6346 = vld [vmem:[%s428 + $0x198] sm:$0xf]
      %v6347 = vld [vmem:[%s428 + $0x1a0] sm:$0xff]
      %v6348 = vld [vmem:[%s428 + $0x1a8] sm:$0xff]
      %v6349 = vld [vmem:[%s428 + $0x1b0] sm:$0xff]
      %v6350 = vld [vmem:[%s428 + $0x1b8] sm:$0xff]
      %v6351 = vld [vmem:[%s428 + $0x1c0] sm:$0xff]
      %v6352 = vld [vmem:[%s428 + $0x1c8] sm:$0xff]
      %v6353 = vld [vmem:[%s428 + $0x1d0] sm:$0xff]
      %v6354 = vld [vmem:[%s428 + $0x1d8] sm:$0xff]
      %v6355 = vld [vmem:[%s428 + $0x1e0] sm:$0xff]
      %v6356 = vld [vmem:[%s428 + $0x1e8] sm:$0xff]
      %v6357 = vld [vmem:[%s428 + $0x1f0] sm:$0xff]
      %v6358 = vld [vmem:[%s428 + $0x1f8] sm:$0xff]
      %v6359 = vld [vmem:[%s428 + $0x200] sm:$0xf]
      %v6360 = vld [vmem:[%s428 + $0x208] sm:$0xff]
      %v6361 = vld [vmem:[%s428 + $0x210] sm:$0xff]
      %v6362 = vld [vmem:[%s428 + $0x218] sm:$0xff]
      %v6363 = vld [vmem:[%s428 + $0x220] sm:$0xff]
      %v6364 = vld [vmem:[%s428 + $0x228] sm:$0xff]
      %v6365 = vld [vmem:[%s428 + $0x230] sm:$0xff]
      %v6366 = vld [vmem:[%s428 + $0x238] sm:$0xff]
      %v6367 = vld [vmem:[%s428 + $0x240] sm:$0xff]
      %v6368 = vld [vmem:[%s428 + $0x248] sm:$0xff]
      %v6369 = vld [vmem:[%s428 + $0x250] sm:$0xff]
      %v6370 = vld [vmem:[%s428 + $0x258] sm:$0xff]
      %v6371 = vld [vmem:[%s428 + $0x260] sm:$0xff]
      %v6372 = vld [vmem:[%s428 + $0x268] sm:$0xf]
      %v6373 = vld [vmem:[%s428 + $0x270] sm:$0xff]
      %v6374 = vld [vmem:[%s428 + $0x278] sm:$0xff]
      %v6375 = vld [vmem:[%s428 + $0x280] sm:$0xff]
      %v6376 = vld [vmem:[%s428 + $0x288] sm:$0xff]
      %v6377 = vld [vmem:[%s428 + $0x290] sm:$0xff]
      %v6378 = vld [vmem:[%s428 + $0x298] sm:$0xff]
      %v6379 = vld [vmem:[%s428 + $0x2a0] sm:$0xff]
      %v6380 = vld [vmem:[%s428 + $0x2a8] sm:$0xff]
      %v6381 = vld [vmem:[%s428 + $0x2b0] sm:$0xff]
      %v6382 = vld [vmem:[%s428 + $0x2b8] sm:$0xff]
      %v6383 = vld [vmem:[%s428 + $0x2c0] sm:$0xff]
      %v6384 = vld [vmem:[%s428 + $0x2c8] sm:$0xff]
      %v6385 = vld [vmem:[%s428 + $0x2d0] sm:$0xf]
      %v6386 = vld [vmem:[%s428 + $0x2d8] sm:$0xff]
      %v6387 = vld [vmem:[%s428 + $0x2e0] sm:$0xff]
      %v6388 = vld [vmem:[%s428 + $0x2e8] sm:$0xff]
      %v6389 = vld [vmem:[%s428 + $0x2f0] sm:$0xff]
      %v6390 = vld [vmem:[%s428 + $0x2f8] sm:$0xff]
      %v6391 = vld [vmem:[%s428 + $0x300] sm:$0xff]
      %v6392 = vld [vmem:[%s428 + $0x308] sm:$0xff]
      %v6393 = vld [vmem:[%s428 + $0x310] sm:$0xff]
      %v6394 = vld [vmem:[%s428 + $0x318] sm:$0xff]
      %v6395 = vld [vmem:[%s428 + $0x320] sm:$0xff]
      %v6396 = vld [vmem:[%s428 + $0x328] sm:$0xff]
      %v6397 = vld [vmem:[%s428 + $0x330] sm:$0xff]
      %v6398 = vld [vmem:[%s428 + $0x338] sm:$0xf]
      %v6399 = vld [vmem:[%s428 + $0x340] sm:$0xff]
      %v6400 = vld [vmem:[%s428 + $0x348] sm:$0xff]
      %v6401 = vld [vmem:[%s428 + $0x350] sm:$0xff]
      %v6402 = vld [vmem:[%s428 + $0x358] sm:$0xff]
      %v6403 = vld [vmem:[%s428 + $0x360] sm:$0xff]
      %v6404 = vld [vmem:[%s428 + $0x368] sm:$0xff]
      %v6405 = vld [vmem:[%s428 + $0x370] sm:$0xff]
      %v6406 = vld [vmem:[%s428 + $0x378] sm:$0xff]
      %v6407 = vld [vmem:[%s428 + $0x380] sm:$0xff]
      %v6408 = vld [vmem:[%s428 + $0x388] sm:$0xff]
      %v6409 = vld [vmem:[%s428 + $0x390] sm:$0xff]
      %v6410 = vld [vmem:[%s428 + $0x398] sm:$0xff]
      %v6411 = vld [vmem:[%s428 + $0x3a0] sm:$0xf]
      %v6412 = vld [vmem:[%s428 + $0x3a8] sm:$0xff]
      %v6413 = vld [vmem:[%s428 + $0x3b0] sm:$0xff]
      %v6414 = vld [vmem:[%s428 + $0x3b8] sm:$0xff]
      %v6415 = vld [vmem:[%s428 + $0x3c0] sm:$0xff]
      %v6416 = vld [vmem:[%s428 + $0x3c8] sm:$0xff]
      %v6417 = vld [vmem:[%s428 + $0x3d0] sm:$0xff]
      %v6418 = vld [vmem:[%s428 + $0x3d8] sm:$0xff]
      %v6419 = vld [vmem:[%s428 + $0x3e0] sm:$0xff]
      %v6420 = vld [vmem:[%s428 + $0x3e8] sm:$0xff]
      %v6421 = vld [vmem:[%s428 + $0x3f0] sm:$0xff]
      %v6422 = vld [vmem:[%s428 + $0x3f8] sm:$0xff]
      %v6423 = vld [vmem:[%s428 + $0x400] sm:$0xff]
      %v6424 = vld [vmem:[%s428 + $0x408] sm:$0xf]
      %v6425 = vld [vmem:[%s428 + $0x410] sm:$0xff]
      %v6426 = vld [vmem:[%s428 + $0x418] sm:$0xff]
      %v6427 = vld [vmem:[%s428 + $0x420] sm:$0xff]
      %v6428 = vld [vmem:[%s428 + $0x428] sm:$0xff]
      %v6429 = vld [vmem:[%s428 + $0x430] sm:$0xff]
      %v6430 = vld [vmem:[%s428 + $0x438] sm:$0xff]
      %v6431 = vld [vmem:[%s428 + $0x440] sm:$0xff]
      %v6432 = vld [vmem:[%s428 + $0x448] sm:$0xff]
      %v6433 = vld [vmem:[%s428 + $0x450] sm:$0xff]
      %v6434 = vld [vmem:[%s428 + $0x458] sm:$0xff]
      %v6435 = vld [vmem:[%s428 + $0x460] sm:$0xff]
      %v6436 = vld [vmem:[%s428 + $0x468] sm:$0xff]
      %v6437 = vld [vmem:[%s428 + $0x470] sm:$0xf]
      %v6438 = vld [vmem:[%s428 + $0x478] sm:$0xff]
      %v6439 = vld [vmem:[%s428 + $0x480] sm:$0xff]
      %v6440 = vld [vmem:[%s428 + $0x488] sm:$0xff]
      %v6441 = vld [vmem:[%s428 + $0x490] sm:$0xff]
      %v6442 = vld [vmem:[%s428 + $0x498] sm:$0xff]
      %v6443 = vld [vmem:[%s428 + $0x4a0] sm:$0xff]
      %v6444 = vld [vmem:[%s428 + $0x4a8] sm:$0xff]
      %v6445 = vld [vmem:[%s428 + $0x4b0] sm:$0xff]
      %v6446 = vld [vmem:[%s428 + $0x4b8] sm:$0xff]
      %v6447 = vld [vmem:[%s428 + $0x4c0] sm:$0xff]
      %v6448 = vld [vmem:[%s428 + $0x4c8] sm:$0xff]
      %v6449 = vld [vmem:[%s428 + $0x4d0] sm:$0xff]
      %v6450 = vld [vmem:[%s428 + $0x4d8] sm:$0xf]
      %v6451 = vmul.f32 %v6282, %v6295
      %v6452 = vmul.f32 %v6283, %v6296
      %v6453 = vmul.f32 %v6284, %v6297
      %v6454 = vmul.f32 %v6285, %v6298
      %v6455 = vmul.f32 %v6286, %v6299
      %v6456 = vmul.f32 %v6287, %v6300
      %v6457 = vmul.f32 %v6288, %v6301
      %v6458 = vmul.f32 %v6289, %v6302
      %v6459 = vmul.f32 %v6290, %v6303
      %v6460 = vmul.f32 %v6291, %v6304
      %v6461 = vmul.f32 %v6292, %v6305
      %v6462 = vmul.f32 %v6293, %v6306
      %v6463 = vmul.f32 %v6294, %v6307
      %v6464 = vmul.f32 %v6282, %v6308
      %v6465 = vmul.f32 %v6283, %v6309
      %v6466 = vmul.f32 %v6284, %v6310
      %v6467 = vmul.f32 %v6285, %v6311
      %v6468 = vmul.f32 %v6286, %v6312
      %v6469 = vmul.f32 %v6287, %v6313
      %v6470 = vmul.f32 %v6288, %v6314
      %v6471 = vmul.f32 %v6289, %v6315
      %v6472 = vmul.f32 %v6290, %v6316
      %v6473 = vmul.f32 %v6291, %v6317
      %v6474 = vmul.f32 %v6292, %v6318
      %v6475 = vmul.f32 %v6293, %v6319
      %v6476 = vmul.f32 %v6294, %v6320
      %v6477 = vmul.f32 %v6282, %v6321
      %v6478 = vmul.f32 %v6283, %v6322
      %v6479 = vmul.f32 %v6284, %v6323
      %v6480 = vmul.f32 %v6285, %v6324
      %v6481 = vmul.f32 %v6286, %v6325
      %v6482 = vmul.f32 %v6287, %v6326
      %v6483 = vmul.f32 %v6288, %v6327
      %v6484 = vmul.f32 %v6289, %v6328
      %v6485 = vmul.f32 %v6290, %v6329
      %v6486 = vmul.f32 %v6291, %v6330
      %v6487 = vmul.f32 %v6292, %v6331
      %v6488 = vmul.f32 %v6293, %v6332
      %v6489 = vmul.f32 %v6294, %v6333
      %v6490 = vmul.f32 %v6282, %v6334
      %v6491 = vmul.f32 %v6283, %v6335
      %v6492 = vmul.f32 %v6284, %v6336
      %v6493 = vmul.f32 %v6285, %v6337
      %v6494 = vmul.f32 %v6286, %v6338
      %v6495 = vmul.f32 %v6287, %v6339
      %v6496 = vmul.f32 %v6288, %v6340
      %v6497 = vmul.f32 %v6289, %v6341
      %v6498 = vmul.f32 %v6290, %v6342
      %v6499 = vmul.f32 %v6291, %v6343
      %v6500 = vmul.f32 %v6292, %v6344
      %v6501 = vmul.f32 %v6293, %v6345
      %v6502 = vmul.f32 %v6294, %v6346
      %v6503 = vmul.f32 %v6282, %v6347
      %v6504 = vmul.f32 %v6283, %v6348
      %v6505 = vmul.f32 %v6284, %v6349
      %v6506 = vmul.f32 %v6285, %v6350
      %v6507 = vmul.f32 %v6286, %v6351
      %v6508 = vmul.f32 %v6287, %v6352
      %v6509 = vmul.f32 %v6288, %v6353
      %v6510 = vmul.f32 %v6289, %v6354
      %v6511 = vmul.f32 %v6290, %v6355
      %v6512 = vmul.f32 %v6291, %v6356
      %v6513 = vmul.f32 %v6292, %v6357
      %v6514 = vmul.f32 %v6293, %v6358
      %v6515 = vmul.f32 %v6294, %v6359
      %v6516 = vmul.f32 %v6282, %v6360
      %v6517 = vmul.f32 %v6283, %v6361
      %v6518 = vmul.f32 %v6284, %v6362
      %v6519 = vmul.f32 %v6285, %v6363
      %v6520 = vmul.f32 %v6286, %v6364
      %v6521 = vmul.f32 %v6287, %v6365
      %v6522 = vmul.f32 %v6288, %v6366
      %v6523 = vmul.f32 %v6289, %v6367
      %v6524 = vmul.f32 %v6290, %v6368
      %v6525 = vmul.f32 %v6291, %v6369
      %v6526 = vmul.f32 %v6292, %v6370
      %v6527 = vmul.f32 %v6293, %v6371
      %v6528 = vmul.f32 %v6294, %v6372
      %v6529 = vmul.f32 %v6282, %v6373
      %v6530 = vmul.f32 %v6283, %v6374
      %v6531 = vmul.f32 %v6284, %v6375
      %v6532 = vmul.f32 %v6285, %v6376
      %v6533 = vmul.f32 %v6286, %v6377
      %v6534 = vmul.f32 %v6287, %v6378
      %v6535 = vmul.f32 %v6288, %v6379
      %v6536 = vmul.f32 %v6289, %v6380
      %v6537 = vmul.f32 %v6290, %v6381
      %v6538 = vmul.f32 %v6291, %v6382
      %v6539 = vmul.f32 %v6292, %v6383
      %v6540 = vmul.f32 %v6293, %v6384
      %v6541 = vmul.f32 %v6294, %v6385
      %v6542 = vmul.f32 %v6282, %v6386
      %v6543 = vmul.f32 %v6283, %v6387
      %v6544 = vmul.f32 %v6284, %v6388
      %v6545 = vmul.f32 %v6285, %v6389
      %v6546 = vmul.f32 %v6286, %v6390
      %v6547 = vmul.f32 %v6287, %v6391
      %v6548 = vmul.f32 %v6288, %v6392
      %v6549 = vmul.f32 %v6289, %v6393
      %v6550 = vmul.f32 %v6290, %v6394
      %v6551 = vmul.f32 %v6291, %v6395
      %v6552 = vmul.f32 %v6292, %v6396
      %v6553 = vmul.f32 %v6293, %v6397
      %v6554 = vmul.f32 %v6294, %v6398
      %v6555 = vmul.f32 %v6282, %v6399
      %v6556 = vmul.f32 %v6283, %v6400
      %v6557 = vmul.f32 %v6284, %v6401
      %v6558 = vmul.f32 %v6285, %v6402
      %v6559 = vmul.f32 %v6286, %v6403
      %v6560 = vmul.f32 %v6287, %v6404
      %v6561 = vmul.f32 %v6288, %v6405
      %v6562 = vmul.f32 %v6289, %v6406
      %v6563 = vmul.f32 %v6290, %v6407
      %v6564 = vmul.f32 %v6291, %v6408
      %v6565 = vmul.f32 %v6292, %v6409
      %v6566 = vmul.f32 %v6293, %v6410
      %v6567 = vmul.f32 %v6294, %v6411
      %v6568 = vmul.f32 %v6282, %v6412
      %v6569 = vmul.f32 %v6283, %v6413
      %v6570 = vmul.f32 %v6284, %v6414
      %v6571 = vmul.f32 %v6285, %v6415
      %v6572 = vmul.f32 %v6286, %v6416
      %v6573 = vmul.f32 %v6287, %v6417
      %v6574 = vmul.f32 %v6288, %v6418
      %v6575 = vmul.f32 %v6289, %v6419
      %v6576 = vmul.f32 %v6290, %v6420
      %v6577 = vmul.f32 %v6291, %v6421
      %v6578 = vmul.f32 %v6292, %v6422
      %v6579 = vmul.f32 %v6293, %v6423
      %v6580 = vmul.f32 %v6294, %v6424
      %v6581 = vmul.f32 %v6282, %v6425
      %v6582 = vmul.f32 %v6283, %v6426
      %v6583 = vmul.f32 %v6284, %v6427
      %v6584 = vmul.f32 %v6285, %v6428
      %v6585 = vmul.f32 %v6286, %v6429
      %v6586 = vmul.f32 %v6287, %v6430
      %v6587 = vmul.f32 %v6288, %v6431
      %v6588 = vmul.f32 %v6289, %v6432
      %v6589 = vmul.f32 %v6290, %v6433
      %v6590 = vmul.f32 %v6291, %v6434
      %v6591 = vmul.f32 %v6292, %v6435
      %v6592 = vmul.f32 %v6293, %v6436
      %v6593 = vmul.f32 %v6294, %v6437
      %v6594 = vmul.f32 %v6282, %v6438
      %v6595 = vmul.f32 %v6283, %v6439
      %v6596 = vmul.f32 %v6284, %v6440
      %v6597 = vmul.f32 %v6285, %v6441
      %v6598 = vmul.f32 %v6286, %v6442
      %v6599 = vmul.f32 %v6287, %v6443
      %v6600 = vmul.f32 %v6288, %v6444
      %v6601 = vmul.f32 %v6289, %v6445
      %v6602 = vmul.f32 %v6290, %v6446
      %v6603 = vmul.f32 %v6291, %v6447
      %v6604 = vmul.f32 %v6292, %v6448
      %v6605 = vmul.f32 %v6293, %v6449
      %v6606 = vmul.f32 %v6294, %v6450
      %v6607 = vsel %vm483, %v6451, 0.0
      %6608 = vadd.xlane.f32.xlu0 %v6607
      %v6609 = vpop.xlane.xlu0 %6608
      %v6610 = vsel %vm483, %v6452, 0.0
      %6611 = vadd.xlane.f32.xlu0 %v6610
      %v6612 = vpop.xlane.xlu0 %6611
      %v6613 = vsel %vm483, %v6453, 0.0
      %6614 = vadd.xlane.f32.xlu0 %v6613
      %v6615 = vpop.xlane.xlu0 %6614
      %v6616 = vsel %vm483, %v6454, 0.0
      %6617 = vadd.xlane.f32.xlu0 %v6616
      %v6618 = vpop.xlane.xlu0 %6617
      %v6619 = vsel %vm483, %v6455, 0.0
      %6620 = vadd.xlane.f32.xlu0 %v6619
      %v6621 = vpop.xlane.xlu0 %6620
      %v6622 = vsel %vm483, %v6456, 0.0
      %6623 = vadd.xlane.f32.xlu0 %v6622
      %v6624 = vpop.xlane.xlu0 %6623
      %v6625 = vsel %vm483, %v6457, 0.0
      %6626 = vadd.xlane.f32.xlu0 %v6625
      %v6627 = vpop.xlane.xlu0 %6626
      %v6628 = vsel %vm483, %v6458, 0.0
      %6629 = vadd.xlane.f32.xlu0 %v6628
      %v6630 = vpop.xlane.xlu0 %6629
      %v6631 = vsel %vm483, %v6459, 0.0
      %6632 = vadd.xlane.f32.xlu0 %v6631
      %v6633 = vpop.xlane.xlu0 %6632
      %v6634 = vsel %vm483, %v6460, 0.0
      %6635 = vadd.xlane.f32.xlu0 %v6634
      %v6636 = vpop.xlane.xlu0 %6635
      %v6637 = vsel %vm483, %v6461, 0.0
      %6638 = vadd.xlane.f32.xlu0 %v6637
      %v6639 = vpop.xlane.xlu0 %6638
      %v6640 = vsel %vm483, %v6462, 0.0
      %6641 = vadd.xlane.f32.xlu0 %v6640
      %v6642 = vpop.xlane.xlu0 %6641
      %v6643 = vsel %vm3477, %v6463, 0.0
      %6644 = vadd.xlane.f32.xlu0 %v6643
      %v6645 = vpop.xlane.xlu0 %6644
      %v6646 = vsel %vm483, %v6464, 0.0
      %6647 = vadd.xlane.f32.xlu0 %v6646
      %v6648 = vpop.xlane.xlu0 %6647
      %v6649 = vsel %vm483, %v6465, 0.0
      %6650 = vadd.xlane.f32.xlu0 %v6649
      %v6651 = vpop.xlane.xlu0 %6650
      %v6652 = vsel %vm483, %v6466, 0.0
      %6653 = vadd.xlane.f32.xlu0 %v6652
      %v6654 = vpop.xlane.xlu0 %6653
      %v6655 = vsel %vm483, %v6467, 0.0
      %6656 = vadd.xlane.f32.xlu0 %v6655
      %v6657 = vpop.xlane.xlu0 %6656
      %v6658 = vsel %vm483, %v6468, 0.0
      %6659 = vadd.xlane.f32.xlu0 %v6658
      %v6660 = vpop.xlane.xlu0 %6659
      %v6661 = vsel %vm483, %v6469, 0.0
      %6662 = vadd.xlane.f32.xlu0 %v6661
      %v6663 = vpop.xlane.xlu0 %6662
      %v6664 = vsel %vm483, %v6470, 0.0
      %6665 = vadd.xlane.f32.xlu0 %v6664
      %v6666 = vpop.xlane.xlu0 %6665
      %v6667 = vsel %vm483, %v6471, 0.0
      %6668 = vadd.xlane.f32.xlu0 %v6667
      %v6669 = vpop.xlane.xlu0 %6668
      %v6670 = vsel %vm483, %v6472, 0.0
      %6671 = vadd.xlane.f32.xlu0 %v6670
      %v6672 = vpop.xlane.xlu0 %6671
      %v6673 = vsel %vm483, %v6473, 0.0
      %6674 = vadd.xlane.f32.xlu0 %v6673
      %v6675 = vpop.xlane.xlu0 %6674
      %v6676 = vsel %vm483, %v6474, 0.0
      %6677 = vadd.xlane.f32.xlu0 %v6676
      %v6678 = vpop.xlane.xlu0 %6677
      %v6679 = vsel %vm483, %v6475, 0.0
      %6680 = vadd.xlane.f32.xlu0 %v6679
      %v6681 = vpop.xlane.xlu0 %6680
      %v6682 = vsel %vm3477, %v6476, 0.0
      %6683 = vadd.xlane.f32.xlu0 %v6682
      %v6684 = vpop.xlane.xlu0 %6683
      %v6685 = vsel %vm483, %v6477, 0.0
      %6686 = vadd.xlane.f32.xlu0 %v6685
      %v6687 = vpop.xlane.xlu0 %6686
      %v6688 = vsel %vm483, %v6478, 0.0
      %6689 = vadd.xlane.f32.xlu0 %v6688
      %v6690 = vpop.xlane.xlu0 %6689
      %v6691 = vsel %vm483, %v6479, 0.0
      %6692 = vadd.xlane.f32.xlu0 %v6691
      %v6693 = vpop.xlane.xlu0 %6692
      %v6694 = vsel %vm483, %v6480, 0.0
      %6695 = vadd.xlane.f32.xlu0 %v6694
      %v6696 = vpop.xlane.xlu0 %6695
      %v6697 = vsel %vm483, %v6481, 0.0
      %6698 = vadd.xlane.f32.xlu0 %v6697
      %v6699 = vpop.xlane.xlu0 %6698
      %v6700 = vsel %vm483, %v6482, 0.0
      %6701 = vadd.xlane.f32.xlu0 %v6700
      %v6702 = vpop.xlane.xlu0 %6701
      %v6703 = vsel %vm483, %v6483, 0.0
      %6704 = vadd.xlane.f32.xlu0 %v6703
      %v6705 = vpop.xlane.xlu0 %6704
      %v6706 = vsel %vm483, %v6484, 0.0
      %6707 = vadd.xlane.f32.xlu0 %v6706
      %v6708 = vpop.xlane.xlu0 %6707
      %v6709 = vsel %vm483, %v6485, 0.0
      %6710 = vadd.xlane.f32.xlu0 %v6709
      %v6711 = vpop.xlane.xlu0 %6710
      %v6712 = vsel %vm483, %v6486, 0.0
      %6713 = vadd.xlane.f32.xlu0 %v6712
      %v6714 = vpop.xlane.xlu0 %6713
      %v6715 = vsel %vm483, %v6487, 0.0
      %6716 = vadd.xlane.f32.xlu0 %v6715
      %v6717 = vpop.xlane.xlu0 %6716
      %v6718 = vsel %vm483, %v6488, 0.0
      %6719 = vadd.xlane.f32.xlu0 %v6718
      %v6720 = vpop.xlane.xlu0 %6719
      %v6721 = vsel %vm3477, %v6489, 0.0
      %6722 = vadd.xlane.f32.xlu0 %v6721
      %v6723 = vpop.xlane.xlu0 %6722
      %v6724 = vsel %vm483, %v6490, 0.0
      %6725 = vadd.xlane.f32.xlu0 %v6724
      %v6726 = vpop.xlane.xlu0 %6725
      %v6727 = vsel %vm483, %v6491, 0.0
      %6728 = vadd.xlane.f32.xlu0 %v6727
      %v6729 = vpop.xlane.xlu0 %6728
      %v6730 = vsel %vm483, %v6492, 0.0
      %6731 = vadd.xlane.f32.xlu0 %v6730
      %v6732 = vpop.xlane.xlu0 %6731
      %v6733 = vsel %vm483, %v6493, 0.0
      %6734 = vadd.xlane.f32.xlu0 %v6733
      %v6735 = vpop.xlane.xlu0 %6734
      %v6736 = vsel %vm483, %v6494, 0.0
      %6737 = vadd.xlane.f32.xlu0 %v6736
      %v6738 = vpop.xlane.xlu0 %6737
      %v6739 = vsel %vm483, %v6495, 0.0
      %6740 = vadd.xlane.f32.xlu0 %v6739
      %v6741 = vpop.xlane.xlu0 %6740
      %v6742 = vsel %vm483, %v6496, 0.0
      %6743 = vadd.xlane.f32.xlu0 %v6742
      %v6744 = vpop.xlane.xlu0 %6743
      %v6745 = vsel %vm483, %v6497, 0.0
      %6746 = vadd.xlane.f32.xlu0 %v6745
      %v6747 = vpop.xlane.xlu0 %6746
      %v6748 = vsel %vm483, %v6498, 0.0
      %6749 = vadd.xlane.f32.xlu0 %v6748
      %v6750 = vpop.xlane.xlu0 %6749
      %v6751 = vsel %vm483, %v6499, 0.0
      %6752 = vadd.xlane.f32.xlu0 %v6751
      %v6753 = vpop.xlane.xlu0 %6752
      %v6754 = vsel %vm483, %v6500, 0.0
      %6755 = vadd.xlane.f32.xlu0 %v6754
      %v6756 = vpop.xlane.xlu0 %6755
      %v6757 = vsel %vm483, %v6501, 0.0
      %6758 = vadd.xlane.f32.xlu0 %v6757
      %v6759 = vpop.xlane.xlu0 %6758
      %v6760 = vsel %vm3477, %v6502, 0.0
      %6761 = vadd.xlane.f32.xlu0 %v6760
      %v6762 = vpop.xlane.xlu0 %6761
      %v6763 = vsel %vm483, %v6503, 0.0
      %6764 = vadd.xlane.f32.xlu0 %v6763
      %v6765 = vpop.xlane.xlu0 %6764
      %v6766 = vsel %vm483, %v6504, 0.0
      %6767 = vadd.xlane.f32.xlu0 %v6766
      %v6768 = vpop.xlane.xlu0 %6767
      %v6769 = vsel %vm483, %v6505, 0.0
      %6770 = vadd.xlane.f32.xlu0 %v6769
      %v6771 = vpop.xlane.xlu0 %6770
      %v6772 = vsel %vm483, %v6506, 0.0
      %6773 = vadd.xlane.f32.xlu0 %v6772
      %v6774 = vpop.xlane.xlu0 %6773
      %v6775 = vsel %vm483, %v6507, 0.0
      %6776 = vadd.xlane.f32.xlu0 %v6775
      %v6777 = vpop.xlane.xlu0 %6776
      %v6778 = vsel %vm483, %v6508, 0.0
      %6779 = vadd.xlane.f32.xlu0 %v6778
      %v6780 = vpop.xlane.xlu0 %6779
      %v6781 = vsel %vm483, %v6509, 0.0
      %6782 = vadd.xlane.f32.xlu0 %v6781
      %v6783 = vpop.xlane.xlu0 %6782
      %v6784 = vsel %vm483, %v6510, 0.0
      %6785 = vadd.xlane.f32.xlu0 %v6784
      %v6786 = vpop.xlane.xlu0 %6785
      %v6787 = vsel %vm483, %v6511, 0.0
      %6788 = vadd.xlane.f32.xlu0 %v6787
      %v6789 = vpop.xlane.xlu0 %6788
      %v6790 = vsel %vm483, %v6512, 0.0
      %6791 = vadd.xlane.f32.xlu0 %v6790
      %v6792 = vpop.xlane.xlu0 %6791
      %v6793 = vsel %vm483, %v6513, 0.0
      %6794 = vadd.xlane.f32.xlu0 %v6793
      %v6795 = vpop.xlane.xlu0 %6794
      %v6796 = vsel %vm483, %v6514, 0.0
      %6797 = vadd.xlane.f32.xlu0 %v6796
      %v6798 = vpop.xlane.xlu0 %6797
      %v6799 = vsel %vm3477, %v6515, 0.0
      %6800 = vadd.xlane.f32.xlu0 %v6799
      %v6801 = vpop.xlane.xlu0 %6800
      %v6802 = vsel %vm483, %v6516, 0.0
      %6803 = vadd.xlane.f32.xlu0 %v6802
      %v6804 = vpop.xlane.xlu0 %6803
      %v6805 = vsel %vm483, %v6517, 0.0
      %6806 = vadd.xlane.f32.xlu0 %v6805
      %v6807 = vpop.xlane.xlu0 %6806
      %v6808 = vsel %vm483, %v6518, 0.0
      %6809 = vadd.xlane.f32.xlu0 %v6808
      %v6810 = vpop.xlane.xlu0 %6809
      %v6811 = vsel %vm483, %v6519, 0.0
      %6812 = vadd.xlane.f32.xlu0 %v6811
      %v6813 = vpop.xlane.xlu0 %6812
      %v6814 = vsel %vm483, %v6520, 0.0
      %6815 = vadd.xlane.f32.xlu0 %v6814
      %v6816 = vpop.xlane.xlu0 %6815
      %v6817 = vsel %vm483, %v6521, 0.0
      %6818 = vadd.xlane.f32.xlu0 %v6817
      %v6819 = vpop.xlane.xlu0 %6818
      %v6820 = vsel %vm483, %v6522, 0.0
      %6821 = vadd.xlane.f32.xlu0 %v6820
      %v6822 = vpop.xlane.xlu0 %6821
      %v6823 = vsel %vm483, %v6523, 0.0
      %6824 = vadd.xlane.f32.xlu0 %v6823
      %v6825 = vpop.xlane.xlu0 %6824
      %v6826 = vsel %vm483, %v6524, 0.0
      %6827 = vadd.xlane.f32.xlu0 %v6826
      %v6828 = vpop.xlane.xlu0 %6827
      %v6829 = vsel %vm483, %v6525, 0.0
      %6830 = vadd.xlane.f32.xlu0 %v6829
      %v6831 = vpop.xlane.xlu0 %6830
      %v6832 = vsel %vm483, %v6526, 0.0
      %6833 = vadd.xlane.f32.xlu0 %v6832
      %v6834 = vpop.xlane.xlu0 %6833
      %v6835 = vsel %vm483, %v6527, 0.0
      %6836 = vadd.xlane.f32.xlu0 %v6835
      %v6837 = vpop.xlane.xlu0 %6836
      %v6838 = vsel %vm3477, %v6528, 0.0
      %6839 = vadd.xlane.f32.xlu0 %v6838
      %v6840 = vpop.xlane.xlu0 %6839
      %v6841 = vsel %vm483, %v6529, 0.0
      %6842 = vadd.xlane.f32.xlu0 %v6841
      %v6843 = vpop.xlane.xlu0 %6842
      %v6844 = vsel %vm483, %v6530, 0.0
      %6845 = vadd.xlane.f32.xlu0 %v6844
      %v6846 = vpop.xlane.xlu0 %6845
      %v6847 = vsel %vm483, %v6531, 0.0
      %6848 = vadd.xlane.f32.xlu0 %v6847
      %v6849 = vpop.xlane.xlu0 %6848
      %v6850 = vsel %vm483, %v6532, 0.0
      %6851 = vadd.xlane.f32.xlu0 %v6850
      %v6852 = vpop.xlane.xlu0 %6851
      %v6853 = vsel %vm483, %v6533, 0.0
      %6854 = vadd.xlane.f32.xlu0 %v6853
      %v6855 = vpop.xlane.xlu0 %6854
      %v6856 = vsel %vm483, %v6534, 0.0
      %6857 = vadd.xlane.f32.xlu0 %v6856
      %v6858 = vpop.xlane.xlu0 %6857
      %v6859 = vsel %vm483, %v6535, 0.0
      %6860 = vadd.xlane.f32.xlu0 %v6859
      %v6861 = vpop.xlane.xlu0 %6860
      %v6862 = vsel %vm483, %v6536, 0.0
      %6863 = vadd.xlane.f32.xlu0 %v6862
      %v6864 = vpop.xlane.xlu0 %6863
      %v6865 = vsel %vm483, %v6537, 0.0
      %6866 = vadd.xlane.f32.xlu0 %v6865
      %v6867 = vpop.xlane.xlu0 %6866
      %v6868 = vsel %vm483, %v6538, 0.0
      %6869 = vadd.xlane.f32.xlu0 %v6868
      %v6870 = vpop.xlane.xlu0 %6869
      %v6871 = vsel %vm483, %v6539, 0.0
      %6872 = vadd.xlane.f32.xlu0 %v6871
      %v6873 = vpop.xlane.xlu0 %6872
      %v6874 = vsel %vm483, %v6540, 0.0
      %6875 = vadd.xlane.f32.xlu0 %v6874
      %v6876 = vpop.xlane.xlu0 %6875
      %v6877 = vsel %vm3477, %v6541, 0.0
      %6878 = vadd.xlane.f32.xlu0 %v6877
      %v6879 = vpop.xlane.xlu0 %6878
      %v6880 = vsel %vm483, %v6542, 0.0
      %6881 = vadd.xlane.f32.xlu0 %v6880
      %v6882 = vpop.xlane.xlu0 %6881
      %v6883 = vsel %vm483, %v6543, 0.0
      %6884 = vadd.xlane.f32.xlu0 %v6883
      %v6885 = vpop.xlane.xlu0 %6884
      %v6886 = vsel %vm483, %v6544, 0.0
      %6887 = vadd.xlane.f32.xlu0 %v6886
      %v6888 = vpop.xlane.xlu0 %6887
      %v6889 = vsel %vm483, %v6545, 0.0
      %6890 = vadd.xlane.f32.xlu0 %v6889
      %v6891 = vpop.xlane.xlu0 %6890
      %v6892 = vsel %vm483, %v6546, 0.0
      %6893 = vadd.xlane.f32.xlu0 %v6892
      %v6894 = vpop.xlane.xlu0 %6893
      %v6895 = vsel %vm483, %v6547, 0.0
      %6896 = vadd.xlane.f32.xlu0 %v6895
      %v6897 = vpop.xlane.xlu0 %6896
      %v6898 = vsel %vm483, %v6548, 0.0
      %6899 = vadd.xlane.f32.xlu0 %v6898
      %v6900 = vpop.xlane.xlu0 %6899
      %v6901 = vsel %vm483, %v6549, 0.0
      %6902 = vadd.xlane.f32.xlu0 %v6901
      %v6903 = vpop.xlane.xlu0 %6902
      %v6904 = vsel %vm483, %v6550, 0.0
      %6905 = vadd.xlane.f32.xlu0 %v6904
      %v6906 = vpop.xlane.xlu0 %6905
      %v6907 = vsel %vm483, %v6551, 0.0
      %6908 = vadd.xlane.f32.xlu0 %v6907
      %v6909 = vpop.xlane.xlu0 %6908
      %v6910 = vsel %vm483, %v6552, 0.0
      %6911 = vadd.xlane.f32.xlu0 %v6910
      %v6912 = vpop.xlane.xlu0 %6911
      %v6913 = vsel %vm483, %v6553, 0.0
      %6914 = vadd.xlane.f32.xlu0 %v6913
      %v6915 = vpop.xlane.xlu0 %6914
      %v6916 = vsel %vm3477, %v6554, 0.0
      %6917 = vadd.xlane.f32.xlu0 %v6916
      %v6918 = vpop.xlane.xlu0 %6917
      %v6919 = vsel %vm483, %v6555, 0.0
      %6920 = vadd.xlane.f32.xlu0 %v6919
      %v6921 = vpop.xlane.xlu0 %6920
      %v6922 = vsel %vm483, %v6556, 0.0
      %6923 = vadd.xlane.f32.xlu0 %v6922
      %v6924 = vpop.xlane.xlu0 %6923
      %v6925 = vsel %vm483, %v6557, 0.0
      %6926 = vadd.xlane.f32.xlu0 %v6925
      %v6927 = vpop.xlane.xlu0 %6926
      %v6928 = vsel %vm483, %v6558, 0.0
      %6929 = vadd.xlane.f32.xlu0 %v6928
      %v6930 = vpop.xlane.xlu0 %6929
      %v6931 = vsel %vm483, %v6559, 0.0
      %6932 = vadd.xlane.f32.xlu0 %v6931
      %v6933 = vpop.xlane.xlu0 %6932
      %v6934 = vsel %vm483, %v6560, 0.0
      %6935 = vadd.xlane.f32.xlu0 %v6934
      %v6936 = vpop.xlane.xlu0 %6935
      %v6937 = vsel %vm483, %v6561, 0.0
      %6938 = vadd.xlane.f32.xlu0 %v6937
      %v6939 = vpop.xlane.xlu0 %6938
      %v6940 = vsel %vm483, %v6562, 0.0
      %6941 = vadd.xlane.f32.xlu0 %v6940
      %v6942 = vpop.xlane.xlu0 %6941
      %v6943 = vsel %vm483, %v6563, 0.0
      %6944 = vadd.xlane.f32.xlu0 %v6943
      %v6945 = vpop.xlane.xlu0 %6944
      %v6946 = vsel %vm483, %v6564, 0.0
      %6947 = vadd.xlane.f32.xlu0 %v6946
      %v6948 = vpop.xlane.xlu0 %6947
      %v6949 = vsel %vm483, %v6565, 0.0
      %6950 = vadd.xlane.f32.xlu0 %v6949
      %v6951 = vpop.xlane.xlu0 %6950
      %v6952 = vsel %vm483, %v6566, 0.0
      %6953 = vadd.xlane.f32.xlu0 %v6952
      %v6954 = vpop.xlane.xlu0 %6953
      %v6955 = vsel %vm3477, %v6567, 0.0
      %6956 = vadd.xlane.f32.xlu0 %v6955
      %v6957 = vpop.xlane.xlu0 %6956
      %v6958 = vsel %vm483, %v6568, 0.0
      %6959 = vadd.xlane.f32.xlu0 %v6958
      %v6960 = vpop.xlane.xlu0 %6959
      %v6961 = vsel %vm483, %v6569, 0.0
      %6962 = vadd.xlane.f32.xlu0 %v6961
      %v6963 = vpop.xlane.xlu0 %6962
      %v6964 = vsel %vm483, %v6570, 0.0
      %6965 = vadd.xlane.f32.xlu0 %v6964
      %v6966 = vpop.xlane.xlu0 %6965
      %v6967 = vsel %vm483, %v6571, 0.0
      %6968 = vadd.xlane.f32.xlu0 %v6967
      %v6969 = vpop.xlane.xlu0 %6968
      %v6970 = vsel %vm483, %v6572, 0.0
      %6971 = vadd.xlane.f32.xlu0 %v6970
      %v6972 = vpop.xlane.xlu0 %6971
      %v6973 = vsel %vm483, %v6573, 0.0
      %6974 = vadd.xlane.f32.xlu0 %v6973
      %v6975 = vpop.xlane.xlu0 %6974
      %v6976 = vsel %vm483, %v6574, 0.0
      %6977 = vadd.xlane.f32.xlu0 %v6976
      %v6978 = vpop.xlane.xlu0 %6977
      %v6979 = vsel %vm483, %v6575, 0.0
      %6980 = vadd.xlane.f32.xlu0 %v6979
      %v6981 = vpop.xlane.xlu0 %6980
      %v6982 = vsel %vm483, %v6576, 0.0
      %6983 = vadd.xlane.f32.xlu0 %v6982
      %v6984 = vpop.xlane.xlu0 %6983
      %v6985 = vsel %vm483, %v6577, 0.0
      %6986 = vadd.xlane.f32.xlu0 %v6985
      %v6987 = vpop.xlane.xlu0 %6986
      %v6988 = vsel %vm483, %v6578, 0.0
      %6989 = vadd.xlane.f32.xlu0 %v6988
      %v6990 = vpop.xlane.xlu0 %6989
      %v6991 = vsel %vm483, %v6579, 0.0
      %6992 = vadd.xlane.f32.xlu0 %v6991
      %v6993 = vpop.xlane.xlu0 %6992
      %v6994 = vsel %vm3477, %v6580, 0.0
      %6995 = vadd.xlane.f32.xlu0 %v6994
      %v6996 = vpop.xlane.xlu0 %6995
      %v6997 = vsel %vm483, %v6581, 0.0
      %6998 = vadd.xlane.f32.xlu0 %v6997
      %v6999 = vpop.xlane.xlu0 %6998
      %v7000 = vsel %vm483, %v6582, 0.0
      %7001 = vadd.xlane.f32.xlu0 %v7000
      %v7002 = vpop.xlane.xlu0 %7001
      %v7003 = vsel %vm483, %v6583, 0.0
      %7004 = vadd.xlane.f32.xlu0 %v7003
      %v7005 = vpop.xlane.xlu0 %7004
      %v7006 = vsel %vm483, %v6584, 0.0
      %7007 = vadd.xlane.f32.xlu0 %v7006
      %v7008 = vpop.xlane.xlu0 %7007
      %v7009 = vsel %vm483, %v6585, 0.0
      %7010 = vadd.xlane.f32.xlu0 %v7009
      %v7011 = vpop.xlane.xlu0 %7010
      %v7012 = vsel %vm483, %v6586, 0.0
      %7013 = vadd.xlane.f32.xlu0 %v7012
      %v7014 = vpop.xlane.xlu0 %7013
      %v7015 = vsel %vm483, %v6587, 0.0
      %7016 = vadd.xlane.f32.xlu0 %v7015
      %v7017 = vpop.xlane.xlu0 %7016
      %v7018 = vsel %vm483, %v6588, 0.0
      %7019 = vadd.xlane.f32.xlu0 %v7018
      %v7020 = vpop.xlane.xlu0 %7019
      %v7021 = vsel %vm483, %v6589, 0.0
      %7022 = vadd.xlane.f32.xlu0 %v7021
      %v7023 = vpop.xlane.xlu0 %7022
      %v7024 = vsel %vm483, %v6590, 0.0
      %7025 = vadd.xlane.f32.xlu0 %v7024
      %v7026 = vpop.xlane.xlu0 %7025
      %v7027 = vsel %vm483, %v6591, 0.0
      %7028 = vadd.xlane.f32.xlu0 %v7027
      %v7029 = vpop.xlane.xlu0 %7028
      %v7030 = vsel %vm483, %v6592, 0.0
      %7031 = vadd.xlane.f32.xlu0 %v7030
      %v7032 = vpop.xlane.xlu0 %7031
      %v7033 = vsel %vm3477, %v6593, 0.0
      %7034 = vadd.xlane.f32.xlu0 %v7033
      %v7035 = vpop.xlane.xlu0 %7034
      %v7036 = vsel %vm483, %v6594, 0.0
      %7037 = vadd.xlane.f32.xlu0 %v7036
      %v7038 = vpop.xlane.xlu0 %7037
      %v7039 = vsel %vm483, %v6595, 0.0
      %7040 = vadd.xlane.f32.xlu0 %v7039
      %v7041 = vpop.xlane.xlu0 %7040
      %v7042 = vsel %vm483, %v6596, 0.0
      %7043 = vadd.xlane.f32.xlu0 %v7042
      %v7044 = vpop.xlane.xlu0 %7043
      %v7045 = vsel %vm483, %v6597, 0.0
      %7046 = vadd.xlane.f32.xlu0 %v7045
      %v7047 = vpop.xlane.xlu0 %7046
      %v7048 = vsel %vm483, %v6598, 0.0
      %7049 = vadd.xlane.f32.xlu0 %v7048
      %v7050 = vpop.xlane.xlu0 %7049
      %v7051 = vsel %vm483, %v6599, 0.0
      %7052 = vadd.xlane.f32.xlu0 %v7051
      %v7053 = vpop.xlane.xlu0 %7052
      %v7054 = vsel %vm483, %v6600, 0.0
      %7055 = vadd.xlane.f32.xlu0 %v7054
      %v7056 = vpop.xlane.xlu0 %7055
      %v7057 = vsel %vm483, %v6601, 0.0
      %7058 = vadd.xlane.f32.xlu0 %v7057
      %v7059 = vpop.xlane.xlu0 %7058
      %v7060 = vsel %vm483, %v6602, 0.0
      %7061 = vadd.xlane.f32.xlu0 %v7060
      %v7062 = vpop.xlane.xlu0 %7061
      %v7063 = vsel %vm483, %v6603, 0.0
      %7064 = vadd.xlane.f32.xlu0 %v7063
      %v7065 = vpop.xlane.xlu0 %7064
      %v7066 = vsel %vm483, %v6604, 0.0
      %7067 = vadd.xlane.f32.xlu0 %v7066
      %v7068 = vpop.xlane.xlu0 %7067
      %v7069 = vsel %vm483, %v6605, 0.0
      %7070 = vadd.xlane.f32.xlu0 %v7069
      %v7071 = vpop.xlane.xlu0 %7070
      %v7072 = vsel %vm3477, %v6606, 0.0
      %7073 = vadd.xlane.f32.xlu0 %v7072
      %v7074 = vpop.xlane.xlu0 %7073
      %v7231 = vlaneseq
      %v7232 = vand.u32 %v7231, 127
      %v7233 = vlaneseq
      %v7234 = vshrl.u32 %v7233, 7
      %v7235 = vsub.s32 %v7232, %v7234
      %v7236 = vrot.slane %v6609, %v7235
      %v7237 = vadd.s32 %v7232, 4294967288
      %v7238 = vlaneseq
      %v7239 = vshrl.u32 %v7238, 7
      %v7240 = vsub.s32 %v7237, %v7239
      %v7241 = vrot.slane %v6612, %v7240
      %vm7242 = vcmask 130112
      %v7243 = vsel %vm7242, %v7241, %v7236
      %v7244 = vadd.s32 %v7232, 4294967280
      %v7245 = vlaneseq
      %v7246 = vshrl.u32 %v7245, 7
      %v7247 = vsub.s32 %v7244, %v7246
      %v7248 = vrot.slane %v6615, %v7247
      %vm7249 = vcmask 195712
      %v7250 = vsel %vm7249, %v7248, %v7243
      %v7251 = vadd.s32 %v7232, 4294967272
      %v7252 = vlaneseq
      %v7253 = vshrl.u32 %v7252, 7
      %v7254 = vsub.s32 %v7251, %v7253
      %v7255 = vrot.slane %v6618, %v7254
      %vm7256 = vcmask 261312
      %v7257 = vsel %vm7256, %v7255, %v7250
      %v7258 = vadd.s32 %v7232, 4294967264
      %v7259 = vlaneseq
      %v7260 = vshrl.u32 %v7259, 7
      %v7261 = vsub.s32 %v7258, %v7260
      %v7262 = vrot.slane %v6621, %v7261
      %vm7263 = vcmask 326912
      %v7264 = vsel %vm7263, %v7262, %v7257
      %v7265 = vadd.s32 %v7232, 4294967256
      %v7266 = vlaneseq
      %v7267 = vshrl.u32 %v7266, 7
      %v7268 = vsub.s32 %v7265, %v7267
      %v7269 = vrot.slane %v6624, %v7268
      %vm7270 = vcmask 392512
      %v7271 = vsel %vm7270, %v7269, %v7264
      %v7272 = vadd.s32 %v7232, 4294967248
      %v7273 = vlaneseq
      %v7274 = vshrl.u32 %v7273, 7
      %v7275 = vsub.s32 %v7272, %v7274
      %v7276 = vrot.slane %v6627, %v7275
      %vm7277 = vcmask 458112
      %v7278 = vsel %vm7277, %v7276, %v7271
      %v7279 = vadd.s32 %v7232, 4294967240
      %v7280 = vlaneseq
      %v7281 = vshrl.u32 %v7280, 7
      %v7282 = vsub.s32 %v7279, %v7281
      %v7283 = vrot.slane %v6630, %v7282
      %vm7284 = vcmask 523712
      %v7285 = vsel %vm7284, %v7283, %v7278
      %v7286 = vadd.s32 %v7232, 4294967232
      %v7287 = vlaneseq
      %v7288 = vshrl.u32 %v7287, 7
      %v7289 = vsub.s32 %v7286, %v7288
      %v7290 = vrot.slane %v6633, %v7289
      %vm7291 = vcmask 589312
      %v7292 = vsel %vm7291, %v7290, %v7285
      %v7293 = vadd.s32 %v7232, 4294967224
      %v7294 = vlaneseq
      %v7295 = vshrl.u32 %v7294, 7
      %v7296 = vsub.s32 %v7293, %v7295
      %v7297 = vrot.slane %v6636, %v7296
      %vm7298 = vcmask 654912
      %v7299 = vsel %vm7298, %v7297, %v7292
      %v7300 = vadd.s32 %v7232, 4294967216
      %v7301 = vlaneseq
      %v7302 = vshrl.u32 %v7301, 7
      %v7303 = vsub.s32 %v7300, %v7302
      %v7304 = vrot.slane %v6639, %v7303
      %vm7305 = vcmask 720512
      %v7306 = vsel %vm7305, %v7304, %v7299
      %v7307 = vadd.s32 %v7232, 4294967208
      %v7308 = vlaneseq
      %v7309 = vshrl.u32 %v7308, 7
      %v7310 = vsub.s32 %v7307, %v7309
      %v7311 = vrot.slane %v6642, %v7310
      %vm7312 = vcmask 786112
      %v7313 = vsel %vm7312, %v7311, %v7306
      %v7314 = vadd.s32 %v7232, 4294967200
      %v7315 = vlaneseq
      %v7316 = vshrl.u32 %v7315, 7
      %v7317 = vsub.s32 %v7314, %v7316
      %v7318 = vrot.slane %v6645, %v7317
      %vm7319 = vcmask 851712
      %v7320 = vsel %vm7319, %v7318, %v7313
      %v7321 = vlaneseq
      %v7322 = vshrl.u32 %v7321, 7
      %v7323 = vsub.s32 %v7232, %v7322
      %v7324 = vrot.slane %v6648, %v7323
      %v7325 = vlaneseq
      %v7326 = vshrl.u32 %v7325, 7
      %v7327 = vsub.s32 %v7237, %v7326
      %v7328 = vrot.slane %v6651, %v7327
      %v7329 = vsel %vm7242, %v7328, %v7324
      %v7330 = vlaneseq
      %v7331 = vshrl.u32 %v7330, 7
      %v7332 = vsub.s32 %v7244, %v7331
      %v7333 = vrot.slane %v6654, %v7332
      %v7334 = vsel %vm7249, %v7333, %v7329
      %v7335 = vlaneseq
      %v7336 = vshrl.u32 %v7335, 7
      %v7337 = vsub.s32 %v7251, %v7336
      %v7338 = vrot.slane %v6657, %v7337
      %v7339 = vsel %vm7256, %v7338, %v7334
      %v7340 = vlaneseq
      %v7341 = vshrl.u32 %v7340, 7
      %v7342 = vsub.s32 %v7258, %v7341
      %v7343 = vrot.slane %v6660, %v7342
      %v7344 = vsel %vm7263, %v7343, %v7339
      %v7345 = vlaneseq
      %v7346 = vshrl.u32 %v7345, 7
      %v7347 = vsub.s32 %v7265, %v7346
      %v7348 = vrot.slane %v6663, %v7347
      %v7349 = vsel %vm7270, %v7348, %v7344
      %v7350 = vlaneseq
      %v7351 = vshrl.u32 %v7350, 7
      %v7352 = vsub.s32 %v7272, %v7351
      %v7353 = vrot.slane %v6666, %v7352
      %v7354 = vsel %vm7277, %v7353, %v7349
      %v7355 = vlaneseq
      %v7356 = vshrl.u32 %v7355, 7
      %v7357 = vsub.s32 %v7279, %v7356
      %v7358 = vrot.slane %v6669, %v7357
      %v7359 = vsel %vm7284, %v7358, %v7354
      %v7360 = vlaneseq
      %v7361 = vshrl.u32 %v7360, 7
      %v7362 = vsub.s32 %v7286, %v7361
      %v7363 = vrot.slane %v6672, %v7362
      %v7364 = vsel %vm7291, %v7363, %v7359
      %v7365 = vlaneseq
      %v7366 = vshrl.u32 %v7365, 7
      %v7367 = vsub.s32 %v7293, %v7366
      %v7368 = vrot.slane %v6675, %v7367
      %v7369 = vsel %vm7298, %v7368, %v7364
      %v7370 = vlaneseq
      %v7371 = vshrl.u32 %v7370, 7
      %v7372 = vsub.s32 %v7300, %v7371
      %v7373 = vrot.slane %v6678, %v7372
      %v7374 = vsel %vm7305, %v7373, %v7369
      %v7375 = vlaneseq
      %v7376 = vshrl.u32 %v7375, 7
      %v7377 = vsub.s32 %v7307, %v7376
      %v7378 = vrot.slane %v6681, %v7377
      %v7379 = vsel %vm7312, %v7378, %v7374
      %v7380 = vlaneseq
      %v7381 = vshrl.u32 %v7380, 7
      %v7382 = vsub.s32 %v7314, %v7381
      %v7383 = vrot.slane %v6684, %v7382
      %v7384 = vsel %vm7319, %v7383, %v7379
      %v7385 = vlaneseq
      %v7386 = vshrl.u32 %v7385, 7
      %v7387 = vsub.s32 %v7232, %v7386
      %v7388 = vrot.slane %v6687, %v7387
      %v7389 = vlaneseq
      %v7390 = vshrl.u32 %v7389, 7
      %v7391 = vsub.s32 %v7237, %v7390
      %v7392 = vrot.slane %v6690, %v7391
      %v7393 = vsel %vm7242, %v7392, %v7388
      %v7394 = vlaneseq
      %v7395 = vshrl.u32 %v7394, 7
      %v7396 = vsub.s32 %v7244, %v7395
      %v7397 = vrot.slane %v6693, %v7396
      %v7398 = vsel %vm7249, %v7397, %v7393
      %v7399 = vlaneseq
      %v7400 = vshrl.u32 %v7399, 7
      %v7401 = vsub.s32 %v7251, %v7400
      %v7402 = vrot.slane %v6696, %v7401
      %v7403 = vsel %vm7256, %v7402, %v7398
      %v7404 = vlaneseq
      %v7405 = vshrl.u32 %v7404, 7
      %v7406 = vsub.s32 %v7258, %v7405
      %v7407 = vrot.slane %v6699, %v7406
      %v7408 = vsel %vm7263, %v7407, %v7403
      %v7409 = vlaneseq
      %v7410 = vshrl.u32 %v7409, 7
      %v7411 = vsub.s32 %v7265, %v7410
      %v7412 = vrot.slane %v6702, %v7411
      %v7413 = vsel %vm7270, %v7412, %v7408
      %v7414 = vlaneseq
      %v7415 = vshrl.u32 %v7414, 7
      %v7416 = vsub.s32 %v7272, %v7415
      %v7417 = vrot.slane %v6705, %v7416
      %v7418 = vsel %vm7277, %v7417, %v7413
      %v7419 = vlaneseq
      %v7420 = vshrl.u32 %v7419, 7
      %v7421 = vsub.s32 %v7279, %v7420
      %v7422 = vrot.slane %v6708, %v7421
      %v7423 = vsel %vm7284, %v7422, %v7418
      %v7424 = vlaneseq
      %v7425 = vshrl.u32 %v7424, 7
      %v7426 = vsub.s32 %v7286, %v7425
      %v7427 = vrot.slane %v6711, %v7426
      %v7428 = vsel %vm7291, %v7427, %v7423
      %v7429 = vlaneseq
      %v7430 = vshrl.u32 %v7429, 7
      %v7431 = vsub.s32 %v7293, %v7430
      %v7432 = vrot.slane %v6714, %v7431
      %v7433 = vsel %vm7298, %v7432, %v7428
      %v7434 = vlaneseq
      %v7435 = vshrl.u32 %v7434, 7
      %v7436 = vsub.s32 %v7300, %v7435
      %v7437 = vrot.slane %v6717, %v7436
      %v7438 = vsel %vm7305, %v7437, %v7433
      %v7439 = vlaneseq
      %v7440 = vshrl.u32 %v7439, 7
      %v7441 = vsub.s32 %v7307, %v7440
      %v7442 = vrot.slane %v6720, %v7441
      %v7443 = vsel %vm7312, %v7442, %v7438
      %v7444 = vlaneseq
      %v7445 = vshrl.u32 %v7444, 7
      %v7446 = vsub.s32 %v7314, %v7445
      %v7447 = vrot.slane %v6723, %v7446
      %v7448 = vsel %vm7319, %v7447, %v7443
      %v7449 = vlaneseq
      %v7450 = vshrl.u32 %v7449, 7
      %v7451 = vsub.s32 %v7232, %v7450
      %v7452 = vrot.slane %v6726, %v7451
      %v7453 = vlaneseq
      %v7454 = vshrl.u32 %v7453, 7
      %v7455 = vsub.s32 %v7237, %v7454
      %v7456 = vrot.slane %v6729, %v7455
      %v7457 = vsel %vm7242, %v7456, %v7452
      %v7458 = vlaneseq
      %v7459 = vshrl.u32 %v7458, 7
      %v7460 = vsub.s32 %v7244, %v7459
      %v7461 = vrot.slane %v6732, %v7460
      %v7462 = vsel %vm7249, %v7461, %v7457
      %v7463 = vlaneseq
      %v7464 = vshrl.u32 %v7463, 7
      %v7465 = vsub.s32 %v7251, %v7464
      %v7466 = vrot.slane %v6735, %v7465
      %v7467 = vsel %vm7256, %v7466, %v7462
      %v7468 = vlaneseq
      %v7469 = vshrl.u32 %v7468, 7
      %v7470 = vsub.s32 %v7258, %v7469
      %v7471 = vrot.slane %v6738, %v7470
      %v7472 = vsel %vm7263, %v7471, %v7467
      %v7473 = vlaneseq
      %v7474 = vshrl.u32 %v7473, 7
      %v7475 = vsub.s32 %v7265, %v7474
      %v7476 = vrot.slane %v6741, %v7475
      %v7477 = vsel %vm7270, %v7476, %v7472
      %v7478 = vlaneseq
      %v7479 = vshrl.u32 %v7478, 7
      %v7480 = vsub.s32 %v7272, %v7479
      %v7481 = vrot.slane %v6744, %v7480
      %v7482 = vsel %vm7277, %v7481, %v7477
      %v7483 = vlaneseq
      %v7484 = vshrl.u32 %v7483, 7
      %v7485 = vsub.s32 %v7279, %v7484
      %v7486 = vrot.slane %v6747, %v7485
      %v7487 = vsel %vm7284, %v7486, %v7482
      %v7488 = vlaneseq
      %v7489 = vshrl.u32 %v7488, 7
      %v7490 = vsub.s32 %v7286, %v7489
      %v7491 = vrot.slane %v6750, %v7490
      %v7492 = vsel %vm7291, %v7491, %v7487
      %v7493 = vlaneseq
      %v7494 = vshrl.u32 %v7493, 7
      %v7495 = vsub.s32 %v7293, %v7494
      %v7496 = vrot.slane %v6753, %v7495
      %v7497 = vsel %vm7298, %v7496, %v7492
      %v7498 = vlaneseq
      %v7499 = vshrl.u32 %v7498, 7
      %v7500 = vsub.s32 %v7300, %v7499
      %v7501 = vrot.slane %v6756, %v7500
      %v7502 = vsel %vm7305, %v7501, %v7497
      %v7503 = vlaneseq
      %v7504 = vshrl.u32 %v7503, 7
      %v7505 = vsub.s32 %v7307, %v7504
      %v7506 = vrot.slane %v6759, %v7505
      %v7507 = vsel %vm7312, %v7506, %v7502
      %v7508 = vlaneseq
      %v7509 = vshrl.u32 %v7508, 7
      %v7510 = vsub.s32 %v7314, %v7509
      %v7511 = vrot.slane %v6762, %v7510
      %v7512 = vsel %vm7319, %v7511, %v7507
      %v7513 = vlaneseq
      %v7514 = vshrl.u32 %v7513, 7
      %v7515 = vsub.s32 %v7232, %v7514
      %v7516 = vrot.slane %v6765, %v7515
      %v7517 = vlaneseq
      %v7518 = vshrl.u32 %v7517, 7
      %v7519 = vsub.s32 %v7237, %v7518
      %v7520 = vrot.slane %v6768, %v7519
      %v7521 = vsel %vm7242, %v7520, %v7516
      %v7522 = vlaneseq
      %v7523 = vshrl.u32 %v7522, 7
      %v7524 = vsub.s32 %v7244, %v7523
      %v7525 = vrot.slane %v6771, %v7524
      %v7526 = vsel %vm7249, %v7525, %v7521
      %v7527 = vlaneseq
      %v7528 = vshrl.u32 %v7527, 7
      %v7529 = vsub.s32 %v7251, %v7528
      %v7530 = vrot.slane %v6774, %v7529
      %v7531 = vsel %vm7256, %v7530, %v7526
      %v7532 = vlaneseq
      %v7533 = vshrl.u32 %v7532, 7
      %v7534 = vsub.s32 %v7258, %v7533
      %v7535 = vrot.slane %v6777, %v7534
      %v7536 = vsel %vm7263, %v7535, %v7531
      %v7537 = vlaneseq
      %v7538 = vshrl.u32 %v7537, 7
      %v7539 = vsub.s32 %v7265, %v7538
      %v7540 = vrot.slane %v6780, %v7539
      %v7541 = vsel %vm7270, %v7540, %v7536
      %v7542 = vlaneseq
      %v7543 = vshrl.u32 %v7542, 7
      %v7544 = vsub.s32 %v7272, %v7543
      %v7545 = vrot.slane %v6783, %v7544
      %v7546 = vsel %vm7277, %v7545, %v7541
      %v7547 = vlaneseq
      %v7548 = vshrl.u32 %v7547, 7
      %v7549 = vsub.s32 %v7279, %v7548
      %v7550 = vrot.slane %v6786, %v7549
      %v7551 = vsel %vm7284, %v7550, %v7546
      %v7552 = vlaneseq
      %v7553 = vshrl.u32 %v7552, 7
      %v7554 = vsub.s32 %v7286, %v7553
      %v7555 = vrot.slane %v6789, %v7554
      %v7556 = vsel %vm7291, %v7555, %v7551
      %v7557 = vlaneseq
      %v7558 = vshrl.u32 %v7557, 7
      %v7559 = vsub.s32 %v7293, %v7558
      %v7560 = vrot.slane %v6792, %v7559
      %v7561 = vsel %vm7298, %v7560, %v7556
      %v7562 = vlaneseq
      %v7563 = vshrl.u32 %v7562, 7
      %v7564 = vsub.s32 %v7300, %v7563
      %v7565 = vrot.slane %v6795, %v7564
      %v7566 = vsel %vm7305, %v7565, %v7561
      %v7567 = vlaneseq
      %v7568 = vshrl.u32 %v7567, 7
      %v7569 = vsub.s32 %v7307, %v7568
      %v7570 = vrot.slane %v6798, %v7569
      %v7571 = vsel %vm7312, %v7570, %v7566
      %v7572 = vlaneseq
      %v7573 = vshrl.u32 %v7572, 7
      %v7574 = vsub.s32 %v7314, %v7573
      %v7575 = vrot.slane %v6801, %v7574
      %v7576 = vsel %vm7319, %v7575, %v7571
      %v7577 = vlaneseq
      %v7578 = vshrl.u32 %v7577, 7
      %v7579 = vsub.s32 %v7232, %v7578
      %v7580 = vrot.slane %v6804, %v7579
      %v7581 = vlaneseq
      %v7582 = vshrl.u32 %v7581, 7
      %v7583 = vsub.s32 %v7237, %v7582
      %v7584 = vrot.slane %v6807, %v7583
      %v7585 = vsel %vm7242, %v7584, %v7580
      %v7586 = vlaneseq
      %v7587 = vshrl.u32 %v7586, 7
      %v7588 = vsub.s32 %v7244, %v7587
      %v7589 = vrot.slane %v6810, %v7588
      %v7590 = vsel %vm7249, %v7589, %v7585
      %v7591 = vlaneseq
      %v7592 = vshrl.u32 %v7591, 7
      %v7593 = vsub.s32 %v7251, %v7592
      %v7594 = vrot.slane %v6813, %v7593
      %v7595 = vsel %vm7256, %v7594, %v7590
      %v7596 = vlaneseq
      %v7597 = vshrl.u32 %v7596, 7
      %v7598 = vsub.s32 %v7258, %v7597
      %v7599 = vrot.slane %v6816, %v7598
      %v7600 = vsel %vm7263, %v7599, %v7595
      %v7601 = vlaneseq
      %v7602 = vshrl.u32 %v7601, 7
      %v7603 = vsub.s32 %v7265, %v7602
      %v7604 = vrot.slane %v6819, %v7603
      %v7605 = vsel %vm7270, %v7604, %v7600
      %v7606 = vlaneseq
      %v7607 = vshrl.u32 %v7606, 7
      %v7608 = vsub.s32 %v7272, %v7607
      %v7609 = vrot.slane %v6822, %v7608
      %v7610 = vsel %vm7277, %v7609, %v7605
      %v7611 = vlaneseq
      %v7612 = vshrl.u32 %v7611, 7
      %v7613 = vsub.s32 %v7279, %v7612
      %v7614 = vrot.slane %v6825, %v7613
      %v7615 = vsel %vm7284, %v7614, %v7610
      %v7616 = vlaneseq
      %v7617 = vshrl.u32 %v7616, 7
      %v7618 = vsub.s32 %v7286, %v7617
      %v7619 = vrot.slane %v6828, %v7618
      %v7620 = vsel %vm7291, %v7619, %v7615
      %v7621 = vlaneseq
      %v7622 = vshrl.u32 %v7621, 7
      %v7623 = vsub.s32 %v7293, %v7622
      %v7624 = vrot.slane %v6831, %v7623
      %v7625 = vsel %vm7298, %v7624, %v7620
      %v7626 = vlaneseq
      %v7627 = vshrl.u32 %v7626, 7
      %v7628 = vsub.s32 %v7300, %v7627
      %v7629 = vrot.slane %v6834, %v7628
      %v7630 = vsel %vm7305, %v7629, %v7625
      %v7631 = vlaneseq
      %v7632 = vshrl.u32 %v7631, 7
      %v7633 = vsub.s32 %v7307, %v7632
      %v7634 = vrot.slane %v6837, %v7633
      %v7635 = vsel %vm7312, %v7634, %v7630
      %v7636 = vlaneseq
      %v7637 = vshrl.u32 %v7636, 7
      %v7638 = vsub.s32 %v7314, %v7637
      %v7639 = vrot.slane %v6840, %v7638
      %v7640 = vsel %vm7319, %v7639, %v7635
      %v7641 = vlaneseq
      %v7642 = vshrl.u32 %v7641, 7
      %v7643 = vsub.s32 %v7232, %v7642
      %v7644 = vrot.slane %v6843, %v7643
      %v7645 = vlaneseq
      %v7646 = vshrl.u32 %v7645, 7
      %v7647 = vsub.s32 %v7237, %v7646
      %v7648 = vrot.slane %v6846, %v7647
      %v7649 = vsel %vm7242, %v7648, %v7644
      %v7650 = vlaneseq
      %v7651 = vshrl.u32 %v7650, 7
      %v7652 = vsub.s32 %v7244, %v7651
      %v7653 = vrot.slane %v6849, %v7652
      %v7654 = vsel %vm7249, %v7653, %v7649
      %v7655 = vlaneseq
      %v7656 = vshrl.u32 %v7655, 7
      %v7657 = vsub.s32 %v7251, %v7656
      %v7658 = vrot.slane %v6852, %v7657
      %v7659 = vsel %vm7256, %v7658, %v7654
      %v7660 = vlaneseq
      %v7661 = vshrl.u32 %v7660, 7
      %v7662 = vsub.s32 %v7258, %v7661
      %v7663 = vrot.slane %v6855, %v7662
      %v7664 = vsel %vm7263, %v7663, %v7659
      %v7665 = vlaneseq
      %v7666 = vshrl.u32 %v7665, 7
      %v7667 = vsub.s32 %v7265, %v7666
      %v7668 = vrot.slane %v6858, %v7667
      %v7669 = vsel %vm7270, %v7668, %v7664
      %v7670 = vlaneseq
      %v7671 = vshrl.u32 %v7670, 7
      %v7672 = vsub.s32 %v7272, %v7671
      %v7673 = vrot.slane %v6861, %v7672
      %v7674 = vsel %vm7277, %v7673, %v7669
      %v7675 = vlaneseq
      %v7676 = vshrl.u32 %v7675, 7
      %v7677 = vsub.s32 %v7279, %v7676
      %v7678 = vrot.slane %v6864, %v7677
      %v7679 = vsel %vm7284, %v7678, %v7674
      %v7680 = vlaneseq
      %v7681 = vshrl.u32 %v7680, 7
      %v7682 = vsub.s32 %v7286, %v7681
      %v7683 = vrot.slane %v6867, %v7682
      %v7684 = vsel %vm7291, %v7683, %v7679
      %v7685 = vlaneseq
      %v7686 = vshrl.u32 %v7685, 7
      %v7687 = vsub.s32 %v7293, %v7686
      %v7688 = vrot.slane %v6870, %v7687
      %v7689 = vsel %vm7298, %v7688, %v7684
      %v7690 = vlaneseq
      %v7691 = vshrl.u32 %v7690, 7
      %v7692 = vsub.s32 %v7300, %v7691
      %v7693 = vrot.slane %v6873, %v7692
      %v7694 = vsel %vm7305, %v7693, %v7689
      %v7695 = vlaneseq
      %v7696 = vshrl.u32 %v7695, 7
      %v7697 = vsub.s32 %v7307, %v7696
      %v7698 = vrot.slane %v6876, %v7697
      %v7699 = vsel %vm7312, %v7698, %v7694
      %v7700 = vlaneseq
      %v7701 = vshrl.u32 %v7700, 7
      %v7702 = vsub.s32 %v7314, %v7701
      %v7703 = vrot.slane %v6879, %v7702
      %v7704 = vsel %vm7319, %v7703, %v7699
      %v7705 = vlaneseq
      %v7706 = vshrl.u32 %v7705, 7
      %v7707 = vsub.s32 %v7232, %v7706
      %v7708 = vrot.slane %v6882, %v7707
      %v7709 = vlaneseq
      %v7710 = vshrl.u32 %v7709, 7
      %v7711 = vsub.s32 %v7237, %v7710
      %v7712 = vrot.slane %v6885, %v7711
      %v7713 = vsel %vm7242, %v7712, %v7708
      %v7714 = vlaneseq
      %v7715 = vshrl.u32 %v7714, 7
      %v7716 = vsub.s32 %v7244, %v7715
      %v7717 = vrot.slane %v6888, %v7716
      %v7718 = vsel %vm7249, %v7717, %v7713
      %v7719 = vlaneseq
      %v7720 = vshrl.u32 %v7719, 7
      %v7721 = vsub.s32 %v7251, %v7720
      %v7722 = vrot.slane %v6891, %v7721
      %v7723 = vsel %vm7256, %v7722, %v7718
      %v7724 = vlaneseq
      %v7725 = vshrl.u32 %v7724, 7
      %v7726 = vsub.s32 %v7258, %v7725
      %v7727 = vrot.slane %v6894, %v7726
      %v7728 = vsel %vm7263, %v7727, %v7723
      %v7729 = vlaneseq
      %v7730 = vshrl.u32 %v7729, 7
      %v7731 = vsub.s32 %v7265, %v7730
      %v7732 = vrot.slane %v6897, %v7731
      %v7733 = vsel %vm7270, %v7732, %v7728
      %v7734 = vlaneseq
      %v7735 = vshrl.u32 %v7734, 7
      %v7736 = vsub.s32 %v7272, %v7735
      %v7737 = vrot.slane %v6900, %v7736
      %v7738 = vsel %vm7277, %v7737, %v7733
      %v7739 = vlaneseq
      %v7740 = vshrl.u32 %v7739, 7
      %v7741 = vsub.s32 %v7279, %v7740
      %v7742 = vrot.slane %v6903, %v7741
      %v7743 = vsel %vm7284, %v7742, %v7738
      %v7744 = vlaneseq
      %v7745 = vshrl.u32 %v7744, 7
      %v7746 = vsub.s32 %v7286, %v7745
      %v7747 = vrot.slane %v6906, %v7746
      %v7748 = vsel %vm7291, %v7747, %v7743
      %v7749 = vlaneseq
      %v7750 = vshrl.u32 %v7749, 7
      %v7751 = vsub.s32 %v7293, %v7750
      %v7752 = vrot.slane %v6909, %v7751
      %v7753 = vsel %vm7298, %v7752, %v7748
      %v7754 = vlaneseq
      %v7755 = vshrl.u32 %v7754, 7
      %v7756 = vsub.s32 %v7300, %v7755
      %v7757 = vrot.slane %v6912, %v7756
      %v7758 = vsel %vm7305, %v7757, %v7753
      %v7759 = vlaneseq
      %v7760 = vshrl.u32 %v7759, 7
      %v7761 = vsub.s32 %v7307, %v7760
      %v7762 = vrot.slane %v6915, %v7761
      %v7763 = vsel %vm7312, %v7762, %v7758
      %v7764 = vlaneseq
      %v7765 = vshrl.u32 %v7764, 7
      %v7766 = vsub.s32 %v7314, %v7765
      %v7767 = vrot.slane %v6918, %v7766
      %v7768 = vsel %vm7319, %v7767, %v7763
      %v7769 = vlaneseq
      %v7770 = vshrl.u32 %v7769, 7
      %v7771 = vsub.s32 %v7232, %v7770
      %v7772 = vrot.slane %v6921, %v7771
      %v7773 = vlaneseq
      %v7774 = vshrl.u32 %v7773, 7
      %v7775 = vsub.s32 %v7237, %v7774
      %v7776 = vrot.slane %v6924, %v7775
      %v7777 = vsel %vm7242, %v7776, %v7772
      %v7778 = vlaneseq
      %v7779 = vshrl.u32 %v7778, 7
      %v7780 = vsub.s32 %v7244, %v7779
      %v7781 = vrot.slane %v6927, %v7780
      %v7782 = vsel %vm7249, %v7781, %v7777
      %v7783 = vlaneseq
      %v7784 = vshrl.u32 %v7783, 7
      %v7785 = vsub.s32 %v7251, %v7784
      %v7786 = vrot.slane %v6930, %v7785
      %v7787 = vsel %vm7256, %v7786, %v7782
      %v7788 = vlaneseq
      %v7789 = vshrl.u32 %v7788, 7
      %v7790 = vsub.s32 %v7258, %v7789
      %v7791 = vrot.slane %v6933, %v7790
      %v7792 = vsel %vm7263, %v7791, %v7787
      %v7793 = vlaneseq
      %v7794 = vshrl.u32 %v7793, 7
      %v7795 = vsub.s32 %v7265, %v7794
      %v7796 = vrot.slane %v6936, %v7795
      %v7797 = vsel %vm7270, %v7796, %v7792
      %v7798 = vlaneseq
      %v7799 = vshrl.u32 %v7798, 7
      %v7800 = vsub.s32 %v7272, %v7799
      %v7801 = vrot.slane %v6939, %v7800
      %v7802 = vsel %vm7277, %v7801, %v7797
      %v7803 = vlaneseq
      %v7804 = vshrl.u32 %v7803, 7
      %v7805 = vsub.s32 %v7279, %v7804
      %v7806 = vrot.slane %v6942, %v7805
      %v7807 = vsel %vm7284, %v7806, %v7802
      %v7808 = vlaneseq
      %v7809 = vshrl.u32 %v7808, 7
      %v7810 = vsub.s32 %v7286, %v7809
      %v7811 = vrot.slane %v6945, %v7810
      %v7812 = vsel %vm7291, %v7811, %v7807
      %v7813 = vlaneseq
      %v7814 = vshrl.u32 %v7813, 7
      %v7815 = vsub.s32 %v7293, %v7814
      %v7816 = vrot.slane %v6948, %v7815
      %v7817 = vsel %vm7298, %v7816, %v7812
      %v7818 = vlaneseq
      %v7819 = vshrl.u32 %v7818, 7
      %v7820 = vsub.s32 %v7300, %v7819
      %v7821 = vrot.slane %v6951, %v7820
      %v7822 = vsel %vm7305, %v7821, %v7817
      %v7823 = vlaneseq
      %v7824 = vshrl.u32 %v7823, 7
      %v7825 = vsub.s32 %v7307, %v7824
      %v7826 = vrot.slane %v6954, %v7825
      %v7827 = vsel %vm7312, %v7826, %v7822
      %v7828 = vlaneseq
      %v7829 = vshrl.u32 %v7828, 7
      %v7830 = vsub.s32 %v7314, %v7829
      %v7831 = vrot.slane %v6957, %v7830
      %v7832 = vsel %vm7319, %v7831, %v7827
      %v7833 = vlaneseq
      %v7834 = vshrl.u32 %v7833, 7
      %v7835 = vsub.s32 %v7232, %v7834
      %v7836 = vrot.slane %v6960, %v7835
      %v7837 = vlaneseq
      %v7838 = vshrl.u32 %v7837, 7
      %v7839 = vsub.s32 %v7237, %v7838
      %v7840 = vrot.slane %v6963, %v7839
      %v7841 = vsel %vm7242, %v7840, %v7836
      %v7842 = vlaneseq
      %v7843 = vshrl.u32 %v7842, 7
      %v7844 = vsub.s32 %v7244, %v7843
      %v7845 = vrot.slane %v6966, %v7844
      %v7846 = vsel %vm7249, %v7845, %v7841
      %v7847 = vlaneseq
      %v7848 = vshrl.u32 %v7847, 7
      %v7849 = vsub.s32 %v7251, %v7848
      %v7850 = vrot.slane %v6969, %v7849
      %v7851 = vsel %vm7256, %v7850, %v7846
      %v7852 = vlaneseq
      %v7853 = vshrl.u32 %v7852, 7
      %v7854 = vsub.s32 %v7258, %v7853
      %v7855 = vrot.slane %v6972, %v7854
      %v7856 = vsel %vm7263, %v7855, %v7851
      %v7857 = vlaneseq
      %v7858 = vshrl.u32 %v7857, 7
      %v7859 = vsub.s32 %v7265, %v7858
      %v7860 = vrot.slane %v6975, %v7859
      %v7861 = vsel %vm7270, %v7860, %v7856
      %v7862 = vlaneseq
      %v7863 = vshrl.u32 %v7862, 7
      %v7864 = vsub.s32 %v7272, %v7863
      %v7865 = vrot.slane %v6978, %v7864
      %v7866 = vsel %vm7277, %v7865, %v7861
      %v7867 = vlaneseq
      %v7868 = vshrl.u32 %v7867, 7
      %v7869 = vsub.s32 %v7279, %v7868
      %v7870 = vrot.slane %v6981, %v7869
      %v7871 = vsel %vm7284, %v7870, %v7866
      %v7872 = vlaneseq
      %v7873 = vshrl.u32 %v7872, 7
      %v7874 = vsub.s32 %v7286, %v7873
      %v7875 = vrot.slane %v6984, %v7874
      %v7876 = vsel %vm7291, %v7875, %v7871
      %v7877 = vlaneseq
      %v7878 = vshrl.u32 %v7877, 7
      %v7879 = vsub.s32 %v7293, %v7878
      %v7880 = vrot.slane %v6987, %v7879
      %v7881 = vsel %vm7298, %v7880, %v7876
      %v7882 = vlaneseq
      %v7883 = vshrl.u32 %v7882, 7
      %v7884 = vsub.s32 %v7300, %v7883
      %v7885 = vrot.slane %v6990, %v7884
      %v7886 = vsel %vm7305, %v7885, %v7881
      %v7887 = vlaneseq
      %v7888 = vshrl.u32 %v7887, 7
      %v7889 = vsub.s32 %v7307, %v7888
      %v7890 = vrot.slane %v6993, %v7889
      %v7891 = vsel %vm7312, %v7890, %v7886
      %v7892 = vlaneseq
      %v7893 = vshrl.u32 %v7892, 7
      %v7894 = vsub.s32 %v7314, %v7893
      %v7895 = vrot.slane %v6996, %v7894
      %v7896 = vsel %vm7319, %v7895, %v7891
      %v7897 = vlaneseq
      %v7898 = vshrl.u32 %v7897, 7
      %v7899 = vsub.s32 %v7232, %v7898
      %v7900 = vrot.slane %v6999, %v7899
      %v7901 = vlaneseq
      %v7902 = vshrl.u32 %v7901, 7
      %v7903 = vsub.s32 %v7237, %v7902
      %v7904 = vrot.slane %v7002, %v7903
      %v7905 = vsel %vm7242, %v7904, %v7900
      %v7906 = vlaneseq
      %v7907 = vshrl.u32 %v7906, 7
      %v7908 = vsub.s32 %v7244, %v7907
      %v7909 = vrot.slane %v7005, %v7908
      %v7910 = vsel %vm7249, %v7909, %v7905
      %v7911 = vlaneseq
      %v7912 = vshrl.u32 %v7911, 7
      %v7913 = vsub.s32 %v7251, %v7912
      %v7914 = vrot.slane %v7008, %v7913
      %v7915 = vsel %vm7256, %v7914, %v7910
      %v7916 = vlaneseq
      %v7917 = vshrl.u32 %v7916, 7
      %v7918 = vsub.s32 %v7258, %v7917
      %v7919 = vrot.slane %v7011, %v7918
      %v7920 = vsel %vm7263, %v7919, %v7915
      %v7921 = vlaneseq
      %v7922 = vshrl.u32 %v7921, 7
      %v7923 = vsub.s32 %v7265, %v7922
      %v7924 = vrot.slane %v7014, %v7923
      %v7925 = vsel %vm7270, %v7924, %v7920
      %v7926 = vlaneseq
      %v7927 = vshrl.u32 %v7926, 7
      %v7928 = vsub.s32 %v7272, %v7927
      %v7929 = vrot.slane %v7017, %v7928
      %v7930 = vsel %vm7277, %v7929, %v7925
      %v7931 = vlaneseq
      %v7932 = vshrl.u32 %v7931, 7
      %v7933 = vsub.s32 %v7279, %v7932
      %v7934 = vrot.slane %v7020, %v7933
      %v7935 = vsel %vm7284, %v7934, %v7930
      %v7936 = vlaneseq
      %v7937 = vshrl.u32 %v7936, 7
      %v7938 = vsub.s32 %v7286, %v7937
      %v7939 = vrot.slane %v7023, %v7938
      %v7940 = vsel %vm7291, %v7939, %v7935
      %v7941 = vlaneseq
      %v7942 = vshrl.u32 %v7941, 7
      %v7943 = vsub.s32 %v7293, %v7942
      %v7944 = vrot.slane %v7026, %v7943
      %v7945 = vsel %vm7298, %v7944, %v7940
      %v7946 = vlaneseq
      %v7947 = vshrl.u32 %v7946, 7
      %v7948 = vsub.s32 %v7300, %v7947
      %v7949 = vrot.slane %v7029, %v7948
      %v7950 = vsel %vm7305, %v7949, %v7945
      %v7951 = vlaneseq
      %v7952 = vshrl.u32 %v7951, 7
      %v7953 = vsub.s32 %v7307, %v7952
      %v7954 = vrot.slane %v7032, %v7953
      %v7955 = vsel %vm7312, %v7954, %v7950
      %v7956 = vlaneseq
      %v7957 = vshrl.u32 %v7956, 7
      %v7958 = vsub.s32 %v7314, %v7957
      %v7959 = vrot.slane %v7035, %v7958
      %v7960 = vsel %vm7319, %v7959, %v7955
      %v7961 = vlaneseq
      %v7962 = vshrl.u32 %v7961, 7
      %v7963 = vsub.s32 %v7232, %v7962
      %v7964 = vrot.slane %v7038, %v7963
      %v7965 = vlaneseq
      %v7966 = vshrl.u32 %v7965, 7
      %v7967 = vsub.s32 %v7237, %v7966
      %v7968 = vrot.slane %v7041, %v7967
      %v7969 = vsel %vm7242, %v7968, %v7964
      %v7970 = vlaneseq
      %v7971 = vshrl.u32 %v7970, 7
      %v7972 = vsub.s32 %v7244, %v7971
      %v7973 = vrot.slane %v7044, %v7972
      %v7974 = vsel %vm7249, %v7973, %v7969
      %v7975 = vlaneseq
      %v7976 = vshrl.u32 %v7975, 7
      %v7977 = vsub.s32 %v7251, %v7976
      %v7978 = vrot.slane %v7047, %v7977
      %v7979 = vsel %vm7256, %v7978, %v7974
      %v7980 = vlaneseq
      %v7981 = vshrl.u32 %v7980, 7
      %v7982 = vsub.s32 %v7258, %v7981
      %v7983 = vrot.slane %v7050, %v7982
      %v7984 = vsel %vm7263, %v7983, %v7979
      %v7985 = vlaneseq
      %v7986 = vshrl.u32 %v7985, 7
      %v7987 = vsub.s32 %v7265, %v7986
      %v7988 = vrot.slane %v7053, %v7987
      %v7989 = vsel %vm7270, %v7988, %v7984
      %v7990 = vlaneseq
      %v7991 = vshrl.u32 %v7990, 7
      %v7992 = vsub.s32 %v7272, %v7991
      %v7993 = vrot.slane %v7056, %v7992
      %v7994 = vsel %vm7277, %v7993, %v7989
      %v7995 = vlaneseq
      %v7996 = vshrl.u32 %v7995, 7
      %v7997 = vsub.s32 %v7279, %v7996
      %v7998 = vrot.slane %v7059, %v7997
      %v7999 = vsel %vm7284, %v7998, %v7994
      %v8000 = vlaneseq
      %v8001 = vshrl.u32 %v8000, 7
      %v8002 = vsub.s32 %v7286, %v8001
      %v8003 = vrot.slane %v7062, %v8002
      %v8004 = vsel %vm7291, %v8003, %v7999
      %v8005 = vlaneseq
      %v8006 = vshrl.u32 %v8005, 7
      %v8007 = vsub.s32 %v7293, %v8006
      %v8008 = vrot.slane %v7065, %v8007
      %v8009 = vsel %vm7298, %v8008, %v8004
      %v8010 = vlaneseq
      %v8011 = vshrl.u32 %v8010, 7
      %v8012 = vsub.s32 %v7300, %v8011
      %v8013 = vrot.slane %v7068, %v8012
      %v8014 = vsel %vm7305, %v8013, %v8009
      %v8015 = vlaneseq
      %v8016 = vshrl.u32 %v8015, 7
      %v8017 = vsub.s32 %v7307, %v8016
      %v8018 = vrot.slane %v7071, %v8017
      %v8019 = vsel %vm7312, %v8018, %v8014
      %v8020 = vlaneseq
      %v8021 = vshrl.u32 %v8020, 7
      %v8022 = vsub.s32 %v7314, %v8021
      %v8023 = vrot.slane %v7074, %v8022
      %v8024 = vsel %vm7319, %v8023, %v8019
      %vm8025 = vcmask 1041409
      %v8026 = vsel %vm8025, %v7384, %v7320
      %vm8027 = vcmask 1042434
      %v8028 = vsel %vm8027, %v7448, %v8026
      %vm8029 = vcmask 1043459
      %v8030 = vsel %vm8029, %v7512, %v8028
      %vm8031 = vcmask 1044484
      %v8032 = vsel %vm8031, %v7576, %v8030
      %vm8033 = vcmask 1045509
      %v8034 = vsel %vm8033, %v7640, %v8032
      %vm8035 = vcmask 1046534
      %v8036 = vsel %vm8035, %v7704, %v8034
      %vm8037 = vcmask 1047559
      %v8038 = vsel %vm8037, %v7768, %v8036
      %v8039 = vsel %vm8025, %v7896, %v7832
      %v8040 = vsel %vm8027, %v7960, %v8039
      %v8041 = vsel %vm8029, %v8024, %v8040
      %v8044 = vsel %vm897, %v8038, 0.0
      %8045 = vadd.xlane.f32.xlu0 %v8044
      %v8046 = vpop.xlane.xlu0 %8045
      %v8047 = vsel %vm934, %v8041, 0.0
      %8048 = vadd.xlane.f32.xlu0 %v8047
      %v8049 = vpop.xlane.xlu0 %8048
      %vm8050 = vcmask 7168
      %8051 = vst.msk [vmem:[%s433] sm:$0xff] %vm8050, %v8046
      %vm8052 = vcmask 3072
      %8053 = vst.msk [vmem:[%s433 + $0x8] sm:$0xf] %vm8052, %v8049
      %p8054 = scmp.lt.s32.totalorder %s23, 1
      %s8055 = scalar_select %p8054, %s23, 1
      %s8056 = smul.addr %s8055, 2
      %s8057 = smul.addr %s8056, 8
      %s8058 = scalar_lea.vmem %s12, %s8057
      // Predicated region
      $region69: #{one_c_one_t_one_f.3} parent=67 // pred_check
        %p8059 = pneg %p303
      $region70: #{one_c_one_t_one_f.3} parent=67 // pred_check_branch
        %8061 = sbr.rel (%p8059) target = $region72
      $region71: #{one_c_one_t_one_f.3} parent=67 // pred_region
        _
      $region72: #{one_c_one_t_one_f.3} parent=67 // pred_fallthru
        _
    $region68: #{one_c_one_t_one_f.3} parent=5 // pred_fallthru
      _
    %p8062 = scmp.le.s32.totalorder 2, %s18
    // Predicated region
    $region73: #{one_c_one_t_one_f.3} parent=5 // pred_check
      %p8063 = pneg %p8062
    $region74: #{one_c_one_t_one_f.3} parent=5 // pred_check_branch
      %8065 = sbr.rel (%p8063) target = $region76
    $region75: #{one_c_one_t_one_f.3} parent=5 // pred_region
      %s8066 = ssub.s32 %s18, 2
      // Predicated region
      $region77: #{one_c_one_t_one_f.3} parent=75 // pred_check
        %p8067 = pneg %p309
      $region78: #{one_c_one_t_one_f.3} parent=75 // pred_check_branch
        %8069 = sbr.rel (%p8067) target = $region80
      $region79: #{one_c_one_t_one_f.3} parent=75 // pred_region
        %p8070 = scmp.lt.s32.totalorder %s24, 1
        %s8071 = scalar_select %p8070, %s24, 1
        %s8072 = smul.addr %s8071, 2
        %s8073 = smul.addr %s8072, 8
        %s8074 = scalar_lea.vmem %s12, %s8073
      $region80: #{one_c_one_t_one_f.3} parent=75 // pred_fallthru
        _
    $region76: #{one_c_one_t_one_f.3} parent=5 // pred_fallthru
      _
  $region6: #{one_c_one_t_one_f.3} parent=0 // loop_footer
    %s22 = sadd.s32 1, %s18
  $region7: #{one_c_one_t_one_f.3} parent=0 // loop_footer_branch
    %17 = sbr.rel target = $region3
  $region8: #{one_c_one_t_one_f.3} parent=0 // loop_exit
    _

</llo_original>
